<compile_context>
chip_gen: v5e
topology: v5e:2x2
jax: 0.10.0
libtpu: 0.0.40
codegen_flags: <defaults>
</compile_context>

<pallas_src>
import jax
import jax.numpy as jnp
import numpy as np
from jax import lax
from jax.experimental import pallas as pl
from jax.experimental.pallas import tpu as pltpu

INPUT_DIM   = 390
HIDDEN_DIM  = 8
HIDDEN2     = 2 * HIDDEN_DIM          # lstm2 hidden size (layers==1 path) = 16
NB_FILTERS  = 100
NBF_PAD     = 128                     # lane-dense padded conv output channels
KSIZES      = (2, 3, 4)
SEQ_LEN     = 48                      # required so concat-flatten dim == 6800
BATCH       = 2
NUM_CLASSES = 1
FEAT_DIM    = NB_FILTERS * sum((SEQ_LEN - k + 1) // 2 for k in KSIZES)  # 6800


def _vmem():
    return pl.BlockSpec(memory_space=pltpu.MemorySpace.VMEM)


# --------------------------- fused forward kernel ----------------------------
def fused_kernel(x_ref, wih_ref, whh_ref, bl_ref,
                 w1_ref, b1_ref, wf1_ref,
                 w2_ref, b2_ref, wf2_ref,
                 w3_ref, b3_ref, wf3_ref,
                 bf_ref, out_ref, xp_ref, seq_ref):
    # x_ref   : (T*B, D)   TIME-MAJOR rows ordered t*B + b
    # wih_ref : (D, 4H), whh_ref: (H, 4H), bl_ref: (1, 4H)   PyTorch gate order i,f,g,o
    # w{i}    : (k*H, 128) per-tap conv weights (channels zero-padded 100->128)
    # b{i}    : (1, 128)   conv bias (zero-padded)
    # wf{i}   : (Lp, 1, 128) final-linear rows rearranged per branch (zero-padded)
    # bf_ref  : (1, 1), out_ref: (B, 1)
    # xp_ref  : (T*B, 4H) scratch (hoisted input projection, time-major rows)
    # seq_ref : (T*B, H)  scratch (LSTM hidden-state sequence, time-major rows)
    TB, HID = seq_ref.shape
    B = out_ref.shape[0]
    T = TB // B

    # ---- hoisted input projection: one MXU matmul for all (t, b), bias folded in ----
    xp_ref[...] = (jnp.dot(x_ref[...], wih_ref[...],
                           preferred_element_type=jnp.float32)
                   + bl_ref[...])                               # (T*B, 4H)

    whh = whh_ref[...]                                          # (H, 4H)

    # ---- fully unrolled recurrence: only h @ whh + gate nonlinearities are on the
    #      serial dependency chain; all xp reads / seq stores are static slices -------
    h = jnp.zeros((B, HID), jnp.float32)
    c = jnp.zeros((B, HID), jnp.float32)
    for t in range(T):
        gx = xp_ref[t * B:(t + 1) * B, :]                       # (B, 4H) static slice
        gates = gx + jnp.dot(h, whh, preferred_element_type=jnp.float32)   # (B, 4H)
        sg = jax.nn.sigmoid(gates)          # one EUP pass over the whole gates vreg
        tg = jnp.tanh(gates)                # one EUP pass over the whole gates vreg
        i = sg[:, 0 * HID:1 * HID]
        f = sg[:, 1 * HID:2 * HID]
        g = tg[:, 2 * HID:3 * HID]
        o = sg[:, 3 * HID:4 * HID]
        c = f * c + i * g
        h = o * jnp.tanh(c)
        seq_ref[t * B:(t + 1) * B, :] = h   # static store, off the dependency chain

    # ---- conv branches (accumulated tap matmuls) + ReLU + MaxPool + folded linear ----
    total = jnp.zeros((B, 1), jnp.float32)
    branch_refs = ((w1_ref, b1_ref, wf1_ref),
                   (w2_ref, b2_ref, wf2_ref),
                   (w3_ref, b3_ref, wf3_ref))
    for k, (w_ref, b_ref, wf_ref) in zip(KSIZES, branch_refs):
        Lout = T - k + 1
        Lp = Lout // 2
        # sum over taps: conv[l*B+b, o] = sum_kk h_{l+kk}[b,:] @ W_tap_kk
        conv = jnp.dot(seq_ref[0:Lout * B, :], w_ref[0:HID, :],
                       preferred_element_type=jnp.float32)       # (Lout*B, 128)
        for kk in range(1, k):
            conv = conv + jnp.dot(seq_ref[kk * B:(kk + Lout) * B, :],
                                  w_ref[kk * HID:(kk + 1) * HID, :],
                                  preferred_element_type=jnp.float32)
        conv = jnp.maximum(conv + b_ref[...], 0.0)               # bias + ReLU
        # MaxPool1d(2) over time: rows are (l, b) pairs, pool l pairs
        pooled = jnp.max(conv[:2 * Lp * B].reshape(Lp, 2, B, NBF_PAD), axis=1)  # (Lp,B,128)
        # folded Linear(6800,1): partial dot with the rearranged wf rows
        part = jnp.sum(pooled * wf_ref[...], axis=0)             # (B, 128)
        total = total + jnp.sum(part, axis=1, keepdims=True)     # (B, 1)

    out_ref[...] = total + bf_ref[...]


# ------------------------------ forward wrapper ------------------------------
def lstm_cnn4_forward(x, kp):
    """x: (B, T, D) float32, batch-first like the PyTorch module."""
    B, T, D = x.shape
    H = kp['whh_t'].shape[0]
    # time-major feed (row order t*B + b): one small XLA transpose outside the kernel
    x_tm = jnp.transpose(x, (1, 0, 2)).reshape(T * B, D)
    out = pl.pallas_call(
        fused_kernel,
        out_shape=jax.ShapeDtypeStruct((B, NUM_CLASSES), jnp.float32),
        in_specs=[_vmem()] * 14,
        out_specs=_vmem(),
        scratch_shapes=[
            pltpu.VMEM((T * B, 4 * H), jnp.float32),   # hoisted input projection
            pltpu.VMEM((T * B, H), jnp.float32),       # LSTM hidden-state sequence
        ],
    )(x_tm, kp['wih_t'], kp['whh_t'], kp['b_lstm'],
      kp['w1'], kp['b1'], kp['wf1'],
      kp['w2'], kp['b2'], kp['wf2'],
      kp['w3'], kp['b3'], kp['wf3'],
      kp['bf'])
    return out


# --------------------------- parameter init (torch layout) -------------------
def init_params(key):
    keys = jax.random.split(key, 10)
    D, H = INPUT_DIM, HIDDEN2
    # LSTMNew init: xavier_uniform for weight_ih, orthogonal for weight_hh,
    # biases zero except forget gate (==1 in both bias_ih and bias_hh -> 2 combined).
    wih = jax.nn.initializers.xavier_uniform()(keys[0], (4 * H, D), jnp.float32)
    whh = jax.nn.initializers.orthogonal()(keys[1], (4 * H, H), jnp.float32)
    b = jnp.zeros((4 * H,), jnp.float32).at[H:2 * H].set(2.0)
    p = {'wih': wih, 'whh': whh, 'b_lstm': b}
    for idx, k in enumerate(KSIZES):
        fan_in = H * k
        bound = 1.0 / np.sqrt(fan_in)
        p[f'wconv{k}'] = jax.random.uniform(keys[2 + 2 * idx], (NB_FILTERS, H, k),
                                            jnp.float32, -bound, bound)   # (O, C, k)
        p[f'bconv{k}'] = jax.random.uniform(keys[3 + 2 * idx], (NB_FILTERS,),
                                            jnp.float32, -bound, bound)
    boundf = 1.0 / np.sqrt(FEAT_DIM)
    p['wf'] = jax.random.uniform(keys[8], (NUM_CLASSES, FEAT_DIM), jnp.float32,
                                 -boundf, boundf)
    p['bf'] = jax.random.uniform(keys[9], (NUM_CLASSES,), jnp.float32, -boundf, boundf)
    return p


# --------------------- kernel-layout parameter preparation -------------------
def prep_kernel_params(p, seq_len=SEQ_LEN):
    H = HIDDEN2
    kp = {
        'wih_t': jnp.transpose(p['wih']),          # (D, 4H)
        'whh_t': jnp.transpose(p['whh']),          # (H, 4H)
        'b_lstm': p['b_lstm'][None, :],            # (1, 4H)
        'bf': p['bf'].reshape(1, 1),               # (1, 1)
    }
    off = 0
    for idx, k in enumerate(KSIZES):
        Lout = seq_len - k + 1
        Lp = Lout // 2
        w = p[f'wconv{k}']                                         # (O, C, k)
        # per-tap weight: rows kk*C + c, cols o  == W[o, c, kk]; channels padded 100->128
        w_im = jnp.transpose(w, (2, 1, 0)).reshape(k * H, NB_FILTERS)
        kp[f'w{idx + 1}'] = jnp.pad(w_im, ((0, 0), (0, NBF_PAD - NB_FILTERS)))
        kp[f'b{idx + 1}'] = jnp.pad(p[f'bconv{k}'],
                                    (0, NBF_PAD - NB_FILTERS))[None, :]    # (1, 128)
        # final-linear rows for this branch: rep index = off + o*Lp + l  -> wf[l, o]
        wfb = p['wf'][0, off:off + NB_FILTERS * Lp].reshape(NB_FILTERS, Lp).T  # (Lp, 100)
        kp[f'wf{idx + 1}'] = jnp.pad(
            wfb, ((0, 0), (0, NBF_PAD - NB_FILTERS)))[:, None, :]  # (Lp, 1, 128)
        off += NB_FILTERS * Lp
    return kp


# ------------------------- pure-JAX reference --------------------------------
def reference_forward(x, p):
    B, T, _ = x.shape
    H = HIDDEN2
    hi = lax.Precision.HIGHEST
    wih_t, whh_t, b = p['wih'].T, p['whh'].T, p['b_lstm'][None, :]

    def step(carry, x_t):
        h, c = carry
        gates = (jnp.dot(x_t, wih_t, precision=hi)
                 + jnp.dot(h, whh_t, precision=hi) + b)
        i = jax.nn.sigmoid(gates[:, 0:H])
        f = jax.nn.sigmoid(gates[:, H:2 * H])
        g = jnp.tanh(gates[:, 2 * H:3 * H])
        o = jax.nn.sigmoid(gates[:, 3 * H:4 * H])
        c = f * c + i * g
        h = o * jnp.tanh(c)
        return (h, c), h

    (_, _), hs = lax.scan(step, (jnp.zeros((B, H)), jnp.zeros((B, H))),
                          jnp.transpose(x, (1, 0, 2)))
    y = jnp.transpose(hs, (1, 2, 0))                             # (B, C, L), NCL like PyTorch

    reps = []
    for k in KSIZES:
        w = p[f'wconv{k}']                                       # (O, C, k)
        bconv = p[f'bconv{k}']
        conv = lax.conv_general_dilated(
            y, w, window_strides=(1,), padding='VALID',
            dimension_numbers=('NCH', 'OIH', 'NCH'), precision=hi)
        conv = jnp.maximum(conv + bconv[None, :, None], 0.0)
        Lp = conv.shape[-1] // 2
        pooled = jnp.max(conv[:, :, :2 * Lp].reshape(B, NB_FILTERS, Lp, 2), axis=-1)
        reps.append(pooled.reshape(B, -1))
    rep = jnp.concatenate(reps, axis=1)
    return jnp.dot(rep, p['wf'].T, precision=hi) + p['bf'][None, :]


if __name__ == "__main__":
    key = jax.random.PRNGKey(0)
    pkey, xkey = jax.random.split(key)
    params = init_params(pkey)
    kparams = prep_kernel_params(params)
    x = jax.random.normal(xkey, (BATCH, SEQ_LEN, INPUT_DIM), dtype=jnp.float32)

    fwd = jax.jit(lstm_cnn4_forward)
    out = jax.block_until_ready(fwd(x, kparams))

    assert out.shape == (BATCH, NUM_CLASSES)
    ref = reference_forward(x, params)
    np.testing.assert_allclose(np.asarray(out), np.asarray(ref), rtol=5e-3, atol=5e-3)
    print("KERNEL_OK")
</pallas_src>

<mosaic_0001>
module attributes {stable_mosaic.version = 11 : i64} {
  func.func @fused_kernel(%arg0: memref<96x390xf32, #tpu.memory_space<vmem>>, %arg1: memref<390x64xf32, #tpu.memory_space<vmem>>, %arg2: memref<16x64xf32, #tpu.memory_space<vmem>>, %arg3: memref<1x64xf32, #tpu.memory_space<vmem>>, %arg4: memref<32x128xf32, #tpu.memory_space<vmem>>, %arg5: memref<1x128xf32, #tpu.memory_space<vmem>>, %arg6: memref<23x1x128xf32, #tpu.memory_space<vmem>>, %arg7: memref<48x128xf32, #tpu.memory_space<vmem>>, %arg8: memref<1x128xf32, #tpu.memory_space<vmem>>, %arg9: memref<23x1x128xf32, #tpu.memory_space<vmem>>, %arg10: memref<64x128xf32, #tpu.memory_space<vmem>>, %arg11: memref<1x128xf32, #tpu.memory_space<vmem>>, %arg12: memref<22x1x128xf32, #tpu.memory_space<vmem>>, %arg13: memref<1x1xf32, #tpu.memory_space<vmem>>, %arg14: memref<2x1xf32, #tpu.memory_space<vmem>>, %arg15: memref<96x64xf32, #tpu.memory_space<vmem>>, %arg16: memref<96x16xf32, #tpu.memory_space<vmem>>) attributes {dimension_semantics = [], scalar_prefetch = 0 : i64, scratch_operands = 2 : i64, tpu.core_type = #tpu.core_type<tc>} {
    %c0 = arith.constant 0 : index
    %c0_0 = arith.constant 0 : index
    %0 = vector.load %arg0[%c0, %c0_0] : memref<96x390xf32, #tpu.memory_space<vmem>>, vector<96x390xf32>
    %c0_1 = arith.constant 0 : index
    %c0_2 = arith.constant 0 : index
    %1 = vector.load %arg1[%c0_1, %c0_2] : memref<390x64xf32, #tpu.memory_space<vmem>>, vector<390x64xf32>
    %cst = arith.constant dense<0.000000e+00> : vector<96x64xf32>
    %2 = tpu.matmul %0, %1, %cst {dimension_numbers = #tpu.dot_dimension_numbers<[1], [0], [0], [1], [0, 0, 1, 1], [], []>} : vector<96x390xf32>, vector<390x64xf32>, vector<96x64xf32> -> vector<96x64xf32>
    %c0_3 = arith.constant 0 : index
    %c0_4 = arith.constant 0 : index
    %3 = vector.load %arg3[%c0_3, %c0_4] : memref<1x64xf32, #tpu.memory_space<vmem>>, vector<1x64xf32>
    %4 = vector.broadcast %3 : vector<1x64xf32> to vector<96x64xf32>
    %5 = arith.addf %2, %4 : vector<96x64xf32>
    %c0_5 = arith.constant 0 : index
    %c0_6 = arith.constant 0 : index
    %6 = vector.load %arg15[%c0_5, %c0_6] : memref<96x64xf32, #tpu.memory_space<vmem>>, vector<96x64xf32>
    tpu.vector_store %arg15[%c0_5, %c0_6], %5 {strides = array<i32>} : memref<96x64xf32, #tpu.memory_space<vmem>>, vector<96x64xf32>,
    %c0_7 = arith.constant 0 : index
    %c0_8 = arith.constant 0 : index
    %7 = vector.load %arg2[%c0_7, %c0_8] : memref<16x64xf32, #tpu.memory_space<vmem>>, vector<16x64xf32>
    %cst_9 = arith.constant 0.000000e+00 : f32
    %8 = vector.broadcast %cst_9 : f32 to vector<2x16xf32>
    %cst_10 = arith.constant 0.000000e+00 : f32
    %9 = vector.broadcast %cst_10 : f32 to vector<2x16xf32>
    %c0_11 = arith.constant 0 : index
    %c0_12 = arith.constant 0 : index
    %10 = vector.load %arg15[%c0_11, %c0_12] : memref<96x64xf32, #tpu.memory_space<vmem>>, vector<2x64xf32>
    %cst_13 = arith.constant dense<0.000000e+00> : vector<2x64xf32>
    %11 = tpu.matmul %8, %7, %cst_13 {dimension_numbers = #tpu.dot_dimension_numbers<[1], [0], [0], [1], [0, 0, 1, 1], [], []>} : vector<2x16xf32>, vector<16x64xf32>, vector<2x64xf32> -> vector<2x64xf32>
    %12 = arith.addf %10, %11 : vector<2x64xf32>
    %13 = arith.negf %12 : vector<2x64xf32>
    %14 = math.exp %13 : vector<2x64xf32>
    %cst_14 = arith.constant 1.000000e+00 : f32
    %15 = vector.broadcast %cst_14 : f32 to vector<2x64xf32>
    %16 = arith.addf %15, %14 : vector<2x64xf32>
    %17 = arith.divf %15, %16 : vector<2x64xf32>
    %18 = math.tanh %12 : vector<2x64xf32>
    %19 = vector.extract_strided_slice %17 {offsets = [0, 0], sizes = [2, 16], strides = [1, 1]} : vector<2x64xf32> to vector<2x16xf32>
    %20 = vector.extract_strided_slice %17 {offsets = [0, 16], sizes = [2, 16], strides = [1, 1]} : vector<2x64xf32> to vector<2x16xf32>
    %21 = vector.extract_strided_slice %18 {offsets = [0, 32], sizes = [2, 16], strides = [1, 1]} : vector<2x64xf32> to vector<2x16xf32>
    %22 = vector.extract_strided_slice %17 {offsets = [0, 48], sizes = [2, 16], strides = [1, 1]} : vector<2x64xf32> to vector<2x16xf32>
    %23 = arith.mulf %20, %9 : vector<2x16xf32>
    %24 = arith.mulf %19, %21 : vector<2x16xf32>
    %25 = arith.addf %23, %24 : vector<2x16xf32>
    %26 = math.tanh %25 : vector<2x16xf32>
    %27 = arith.mulf %22, %26 : vector<2x16xf32>
    %c0_15 = arith.constant 0 : index
    %c0_16 = arith.constant 0 : index
    %28 = vector.load %arg16[%c0_15, %c0_16] : memref<96x16xf32, #tpu.memory_space<vmem>>, vector<2x16xf32>
    tpu.vector_store %arg16[%c0_15, %c0_16], %27 {strides = array<i32>} : memref<96x16xf32, #tpu.memory_space<vmem>>, vector<2x16xf32>,
    %c2 = arith.constant 2 : index
    %c0_17 = arith.constant 0 : index
    %29 = vector.load %arg15[%c2, %c0_17] : memref<96x64xf32, #tpu.memory_space<vmem>>, vector<2x64xf32>
    %cst_18 = arith.constant dense<0.000000e+00> : vector<2x64xf32>
    %30 = tpu.matmul %27, %7, %cst_18 {dimension_numbers = #tpu.dot_dimension_numbers<[1], [0], [0], [1], [0, 0, 1, 1], [], []>} : vector<2x16xf32>, vector<16x64xf32>, vector<2x64xf32> -> vector<2x64xf32>
    %31 = arith.addf %29, %30 : vector<2x64xf32>
    %32 = arith.negf %31 : vector<2x64xf32>
    %33 = math.exp %32 : vector<2x64xf32>
    %cst_19 = arith.constant 1.000000e+00 : f32
    %34 = vector.broadcast %cst_19 : f32 to vector<2x64xf32>
    %35 = arith.addf %34, %33 : vector<2x64xf32>
    %36 = arith.divf %34, %35 : vector<2x64xf32>
    %37 = math.tanh %31 : vector<2x64xf32>
    %38 = vector.extract_strided_slice %36 {offsets = [0, 0], sizes = [2, 16], strides = [1, 1]} : vector<2x64xf32> to vector<2x16xf32>
    %39 = vector.extract_strided_slice %36 {offsets = [0, 16], sizes = [2, 16], strides = [1, 1]} : vector<2x64xf32> to vector<2x16xf32>
    %40 = vector.extract_strided_slice %37 {offsets = [0, 32], sizes = [2, 16], strides = [1, 1]} : vector<2x64xf32> to vector<2x16xf32>
    %41 = vector.extract_strided_slice %36 {offsets = [0, 48], sizes = [2, 16], strides = [1, 1]} : vector<2x64xf32> to vector<2x16xf32>
    %42 = arith.mulf %39, %25 : vector<2x16xf32>
    %43 = arith.mulf %38, %40 : vector<2x16xf32>
    %44 = arith.addf %42, %43 : vector<2x16xf32>
    %45 = math.tanh %44 : vector<2x16xf32>
    %46 = arith.mulf %41, %45 : vector<2x16xf32>
    %c2_20 = arith.constant 2 : index
    %c0_21 = arith.constant 0 : index
    %47 = vector.load %arg16[%c2_20, %c0_21] : memref<96x16xf32, #tpu.memory_space<vmem>>, vector<2x16xf32>
    tpu.vector_store %arg16[%c2_20, %c0_21], %46 {strides = array<i32>} : memref<96x16xf32, #tpu.memory_space<vmem>>, vector<2x16xf32>,
    %c4 = arith.constant 4 : index
    %c0_22 = arith.constant 0 : index
    %48 = vector.load %arg15[%c4, %c0_22] : memref<96x64xf32, #tpu.memory_space<vmem>>, vector<2x64xf32>
    %cst_23 = arith.constant dense<0.000000e+00> : vector<2x64xf32>
    %49 = tpu.matmul %46, %7, %cst_23 {dimension_numbers = #tpu.dot_dimension_numbers<[1], [0], [0], [1], [0, 0, 1, 1], [], []>} : vector<2x16xf32>, vector<16x64xf32>, vector<2x64xf32> -> vector<2x64xf32>
    %50 = arith.addf %48, %49 : vector<2x64xf32>
    %51 = arith.negf %50 : vector<2x64xf32>
    %52 = math.exp %51 : vector<2x64xf32>
    %cst_24 = arith.constant 1.000000e+00 : f32
    %53 = vector.broadcast %cst_24 : f32 to vector<2x64xf32>
    %54 = arith.addf %53, %52 : vector<2x64xf32>
    %55 = arith.divf %53, %54 : vector<2x64xf32>
    %56 = math.tanh %50 : vector<2x64xf32>
    %57 = vector.extract_strided_slice %55 {offsets = [0, 0], sizes = [2, 16], strides = [1, 1]} : vector<2x64xf32> to vector<2x16xf32>
    %58 = vector.extract_strided_slice %55 {offsets = [0, 16], sizes = [2, 16], strides = [1, 1]} : vector<2x64xf32> to vector<2x16xf32>
    %59 = vector.extract_strided_slice %56 {offsets = [0, 32], sizes = [2, 16], strides = [1, 1]} : vector<2x64xf32> to vector<2x16xf32>
    %60 = vector.extract_strided_slice %55 {offsets = [0, 48], sizes = [2, 16], strides = [1, 1]} : vector<2x64xf32> to vector<2x16xf32>
    %61 = arith.mulf %58, %44 : vector<2x16xf32>
    %62 = arith.mulf %57, %59 : vector<2x16xf32>
    %63 = arith.addf %61, %62 : vector<2x16xf32>
    %64 = math.tanh %63 : vector<2x16xf32>
    %65 = arith.mulf %60, %64 : vector<2x16xf32>
    %c4_25 = arith.constant 4 : index
    %c0_26 = arith.constant 0 : index
    %66 = vector.load %arg16[%c4_25, %c0_26] : memref<96x16xf32, #tpu.memory_space<vmem>>, vector<2x16xf32>
    tpu.vector_store %arg16[%c4_25, %c0_26], %65 {strides = array<i32>} : memref<96x16xf32, #tpu.memory_space<vmem>>, vector<2x16xf32>,
    %c6 = arith.constant 6 : index
    %c0_27 = arith.constant 0 : index
    %67 = vector.load %arg15[%c6, %c0_27] : memref<96x64xf32, #tpu.memory_space<vmem>>, vector<2x64xf32>
    %cst_28 = arith.constant dense<0.000000e+00> : vector<2x64xf32>
    %68 = tpu.matmul %65, %7, %cst_28 {dimension_numbers = #tpu.dot_dimension_numbers<[1], [0], [0], [1], [0, 0, 1, 1], [], []>} : vector<2x16xf32>, vector<16x64xf32>, vector<2x64xf32> -> vector<2x64xf32>
    %69 = arith.addf %67, %68 : vector<2x64xf32>
    %70 = arith.negf %69 : vector<2x64xf32>
    %71 = math.exp %70 : vector<2x64xf32>
    %cst_29 = arith.constant 1.000000e+00 : f32
    %72 = vector.broadcast %cst_29 : f32 to vector<2x64xf32>
    %73 = arith.addf %72, %71 : vector<2x64xf32>
    %74 = arith.divf %72, %73 : vector<2x64xf32>
    %75 = math.tanh %69 : vector<2x64xf32>
    %76 = vector.extract_strided_slice %74 {offsets = [0, 0], sizes = [2, 16], strides = [1, 1]} : vector<2x64xf32> to vector<2x16xf32>
    %77 = vector.extract_strided_slice %74 {offsets = [0, 16], sizes = [2, 16], strides = [1, 1]} : vector<2x64xf32> to vector<2x16xf32>
    %78 = vector.extract_strided_slice %75 {offsets = [0, 32], sizes = [2, 16], strides = [1, 1]} : vector<2x64xf32> to vector<2x16xf32>
    %79 = vector.extract_strided_slice %74 {offsets = [0, 48], sizes = [2, 16], strides = [1, 1]} : vector<2x64xf32> to vector<2x16xf32>
    %80 = arith.mulf %77, %63 : vector<2x16xf32>
    %81 = arith.mulf %76, %78 : vector<2x16xf32>
    %82 = arith.addf %80, %81 : vector<2x16xf32>
    %83 = math.tanh %82 : vector<2x16xf32>
    %84 = arith.mulf %79, %83 : vector<2x16xf32>
    %c6_30 = arith.constant 6 : index
    %c0_31 = arith.constant 0 : index
    %85 = vector.load %arg16[%c6_30, %c0_31] : memref<96x16xf32, #tpu.memory_space<vmem>>, vector<2x16xf32>
    tpu.vector_store %arg16[%c6_30, %c0_31], %84 {strides = array<i32>} : memref<96x16xf32, #tpu.memory_space<vmem>>, vector<2x16xf32>,
    %c8 = arith.constant 8 : index
    %c0_32 = arith.constant 0 : index
    %86 = vector.load %arg15[%c8, %c0_32] : memref<96x64xf32, #tpu.memory_space<vmem>>, vector<2x64xf32>
    %cst_33 = arith.constant dense<0.000000e+00> : vector<2x64xf32>
    %87 = tpu.matmul %84, %7, %cst_33 {dimension_numbers = #tpu.dot_dimension_numbers<[1], [0], [0], [1], [0, 0, 1, 1], [], []>} : vector<2x16xf32>, vector<16x64xf32>, vector<2x64xf32> -> vector<2x64xf32>
    %88 = arith.addf %86, %87 : vector<2x64xf32>
    %89 = arith.negf %88 : vector<2x64xf32>
    %90 = math.exp %89 : vector<2x64xf32>
    %cst_34 = arith.constant 1.000000e+00 : f32
    %91 = vector.broadcast %cst_34 : f32 to vector<2x64xf32>
    %92 = arith.addf %91, %90 : vector<2x64xf32>
    %93 = arith.divf %91, %92 : vector<2x64xf32>
    %94 = math.tanh %88 : vector<2x64xf32>
    %95 = vector.extract_strided_slice %93 {offsets = [0, 0], sizes = [2, 16], strides = [1, 1]} : vector<2x64xf32> to vector<2x16xf32>
    %96 = vector.extract_strided_slice %93 {offsets = [0, 16], sizes = [2, 16], strides = [1, 1]} : vector<2x64xf32> to vector<2x16xf32>
    %97 = vector.extract_strided_slice %94 {offsets = [0, 32], sizes = [2, 16], strides = [1, 1]} : vector<2x64xf32> to vector<2x16xf32>
    %98 = vector.extract_strided_slice %93 {offsets = [0, 48], sizes = [2, 16], strides = [1, 1]} : vector<2x64xf32> to vector<2x16xf32>
    %99 = arith.mulf %96, %82 : vector<2x16xf32>
    %100 = arith.mulf %95, %97 : vector<2x16xf32>
    %101 = arith.addf %99, %100 : vector<2x16xf32>
    %102 = math.tanh %101 : vector<2x16xf32>
    %103 = arith.mulf %98, %102 : vector<2x16xf32>
    %c8_35 = arith.constant 8 : index
    %c0_36 = arith.constant 0 : index
    %104 = vector.load %arg16[%c8_35, %c0_36] : memref<96x16xf32, #tpu.memory_space<vmem>>, vector<2x16xf32>
    tpu.vector_store %arg16[%c8_35, %c0_36], %103 {strides = array<i32>} : memref<96x16xf32, #tpu.memory_space<vmem>>, vector<2x16xf32>,
    %c10 = arith.constant 10 : index
    %c0_37 = arith.constant 0 : index
    %105 = vector.load %arg15[%c10, %c0_37] : memref<96x64xf32, #tpu.memory_space<vmem>>, vector<2x64xf32>
    %cst_38 = arith.constant dense<0.000000e+00> : vector<2x64xf32>
    %106 = tpu.matmul %103, %7, %cst_38 {dimension_numbers = #tpu.dot_dimension_numbers<[1], [0], [0], [1], [0, 0, 1, 1], [], []>} : vector<2x16xf32>, vector<16x64xf32>, vector<2x64xf32> -> vector<2x64xf32>
    %107 = arith.addf %105, %106 : vector<2x64xf32>
    %108 = arith.negf %107 : vector<2x64xf32>
    %109 = math.exp %108 : vector<2x64xf32>
    %cst_39 = arith.constant 1.000000e+00 : f32
    %110 = vector.broadcast %cst_39 : f32 to vector<2x64xf32>
    %111 = arith.addf %110, %109 : vector<2x64xf32>
    %112 = arith.divf %110, %111 : vector<2x64xf32>
    %113 = math.tanh %107 : vector<2x64xf32>
    %114 = vector.extract_strided_slice %112 {offsets = [0, 0], sizes = [2, 16], strides = [1, 1]} : vector<2x64xf32> to vector<2x16xf32>
    %115 = vector.extract_strided_slice %112 {offsets = [0, 16], sizes = [2, 16], strides = [1, 1]} : vector<2x64xf32> to vector<2x16xf32>
    %116 = vector.extract_strided_slice %113 {offsets = [0, 32], sizes = [2, 16], strides = [1, 1]} : vector<2x64xf32> to vector<2x16xf32>
    %117 = vector.extract_strided_slice %112 {offsets = [0, 48], sizes = [2, 16], strides = [1, 1]} : vector<2x64xf32> to vector<2x16xf32>
    %118 = arith.mulf %115, %101 : vector<2x16xf32>
    %119 = arith.mulf %114, %116 : vector<2x16xf32>
    %120 = arith.addf %118, %119 : vector<2x16xf32>
    %121 = math.tanh %120 : vector<2x16xf32>
    %122 = arith.mulf %117, %121 : vector<2x16xf32>
    %c10_40 = arith.constant 10 : index
    %c0_41 = arith.constant 0 : index
    %123 = vector.load %arg16[%c10_40, %c0_41] : memref<96x16xf32, #tpu.memory_space<vmem>>, vector<2x16xf32>
    tpu.vector_store %arg16[%c10_40, %c0_41], %122 {strides = array<i32>} : memref<96x16xf32, #tpu.memory_space<vmem>>, vector<2x16xf32>,
    %c12 = arith.constant 12 : index
    %c0_42 = arith.constant 0 : index
    %124 = vector.load %arg15[%c12, %c0_42] : memref<96x64xf32, #tpu.memory_space<vmem>>, vector<2x64xf32>
    %cst_43 = arith.constant dense<0.000000e+00> : vector<2x64xf32>
    %125 = tpu.matmul %122, %7, %cst_43 {dimension_numbers = #tpu.dot_dimension_numbers<[1], [0], [0], [1], [0, 0, 1, 1], [], []>} : vector<2x16xf32>, vector<16x64xf32>, vector<2x64xf32> -> vector<2x64xf32>
    %126 = arith.addf %124, %125 : vector<2x64xf32>
    %127 = arith.negf %126 : vector<2x64xf32>
    %128 = math.exp %127 : vector<2x64xf32>
    %cst_44 = arith.constant 1.000000e+00 : f32
    %129 = vector.broadcast %cst_44 : f32 to vector<2x64xf32>
    %130 = arith.addf %129, %128 : vector<2x64xf32>
    %131 = arith.divf %129, %130 : vector<2x64xf32>
    %132 = math.tanh %126 : vector<2x64xf32>
    %133 = vector.extract_strided_slice %131 {offsets = [0, 0], sizes = [2, 16], strides = [1, 1]} : vector<2x64xf32> to vector<2x16xf32>
    %134 = vector.extract_strided_slice %131 {offsets = [0, 16], sizes = [2, 16], strides = [1, 1]} : vector<2x64xf32> to vector<2x16xf32>
    %135 = vector.extract_strided_slice %132 {offsets = [0, 32], sizes = [2, 16], strides = [1, 1]} : vector<2x64xf32> to vector<2x16xf32>
    %136 = vector.extract_strided_slice %131 {offsets = [0, 48], sizes = [2, 16], strides = [1, 1]} : vector<2x64xf32> to vector<2x16xf32>
    %137 = arith.mulf %134, %120 : vector<2x16xf32>
    %138 = arith.mulf %133, %135 : vector<2x16xf32>
    %139 = arith.addf %137, %138 : vector<2x16xf32>
    %140 = math.tanh %139 : vector<2x16xf32>
    %141 = arith.mulf %136, %140 : vector<2x16xf32>
    %c12_45 = arith.constant 12 : index
    %c0_46 = arith.constant 0 : index
    %142 = vector.load %arg16[%c12_45, %c0_46] : memref<96x16xf32, #tpu.memory_space<vmem>>, vector<2x16xf32>
    tpu.vector_store %arg16[%c12_45, %c0_46], %141 {strides = array<i32>} : memref<96x16xf32, #tpu.memory_space<vmem>>, vector<2x16xf32>,
    %c14 = arith.constant 14 : index
    %c0_47 = arith.constant 0 : index
    %143 = vector.load %arg15[%c14, %c0_47] : memref<96x64xf32, #tpu.memory_space<vmem>>, vector<2x64xf32>
    %cst_48 = arith.constant dense<0.000000e+00> : vector<2x64xf32>
    %144 = tpu.matmul %141, %7, %cst_48 {dimension_numbers = #tpu.dot_dimension_numbers<[1], [0], [0], [1], [0, 0, 1, 1], [], []>} : vector<2x16xf32>, vector<16x64xf32>, vector<2x64xf32> -> vector<2x64xf32>
    %145 = arith.addf %143, %144 : vector<2x64xf32>
    %146 = arith.negf %145 : vector<2x64xf32>
    %147 = math.exp %146 : vector<2x64xf32>
    %cst_49 = arith.constant 1.000000e+00 : f32
    %148 = vector.broadcast %cst_49 : f32 to vector<2x64xf32>
    %149 = arith.addf %148, %147 : vector<2x64xf32>
    %150 = arith.divf %148, %149 : vector<2x64xf32>
    %151 = math.tanh %145 : vector<2x64xf32>
    %152 = vector.extract_strided_slice %150 {offsets = [0, 0], sizes = [2, 16], strides = [1, 1]} : vector<2x64xf32> to vector<2x16xf32>
    %153 = vector.extract_strided_slice %150 {offsets = [0, 16], sizes = [2, 16], strides = [1, 1]} : vector<2x64xf32> to vector<2x16xf32>
    %154 = vector.extract_strided_slice %151 {offsets = [0, 32], sizes = [2, 16], strides = [1, 1]} : vector<2x64xf32> to vector<2x16xf32>
    %155 = vector.extract_strided_slice %150 {offsets = [0, 48], sizes = [2, 16], strides = [1, 1]} : vector<2x64xf32> to vector<2x16xf32>
    %156 = arith.mulf %153, %139 : vector<2x16xf32>
    %157 = arith.mulf %152, %154 : vector<2x16xf32>
    %158 = arith.addf %156, %157 : vector<2x16xf32>
    %159 = math.tanh %158 : vector<2x16xf32>
    %160 = arith.mulf %155, %159 : vector<2x16xf32>
    %c14_50 = arith.constant 14 : index
    %c0_51 = arith.constant 0 : index
    %161 = vector.load %arg16[%c14_50, %c0_51] : memref<96x16xf32, #tpu.memory_space<vmem>>, vector<2x16xf32>
    tpu.vector_store %arg16[%c14_50, %c0_51], %160 {strides = array<i32>} : memref<96x16xf32, #tpu.memory_space<vmem>>, vector<2x16xf32>,
    %c16 = arith.constant 16 : index
    %c0_52 = arith.constant 0 : index
    %162 = vector.load %arg15[%c16, %c0_52] : memref<96x64xf32, #tpu.memory_space<vmem>>, vector<2x64xf32>
    %cst_53 = arith.constant dense<0.000000e+00> : vector<2x64xf32>
    %163 = tpu.matmul %160, %7, %cst_53 {dimension_numbers = #tpu.dot_dimension_numbers<[1], [0], [0], [1], [0, 0, 1, 1], [], []>} : vector<2x16xf32>, vector<16x64xf32>, vector<2x64xf32> -> vector<2x64xf32>
    %164 = arith.addf %162, %163 : vector<2x64xf32>
    %165 = arith.negf %164 : vector<2x64xf32>
    %166 = math.exp %165 : vector<2x64xf32>
    %cst_54 = arith.constant 1.000000e+00 : f32
    %167 = vector.broadcast %cst_54 : f32 to vector<2x64xf32>
    %168 = arith.addf %167, %166 : vector<2x64xf32>
    %169 = arith.divf %167, %168 : vector<2x64xf32>
    %170 = math.tanh %164 : vector<2x64xf32>
    %171 = vector.extract_strided_slice %169 {offsets = [0, 0], sizes = [2, 16], strides = [1, 1]} : vector<2x64xf32> to vector<2x16xf32>
    %172 = vector.extract_strided_slice %169 {offsets = [0, 16], sizes = [2, 16], strides = [1, 1]} : vector<2x64xf32> to vector<2x16xf32>
    %173 = vector.extract_strided_slice %170 {offsets = [0, 32], sizes = [2, 16], strides = [1, 1]} : vector<2x64xf32> to vector<2x16xf32>
    %174 = vector.extract_strided_slice %169 {offsets = [0, 48], sizes = [2, 16], strides = [1, 1]} : vector<2x64xf32> to vector<2x16xf32>
    %175 = arith.mulf %172, %158 : vector<2x16xf32>
    %176 = arith.mulf %171, %173 : vector<2x16xf32>
    %177 = arith.addf %175, %176 : vector<2x16xf32>
    %178 = math.tanh %177 : vector<2x16xf32>
    %179 = arith.mulf %174, %178 : vector<2x16xf32>
    %c16_55 = arith.constant 16 : index
    %c0_56 = arith.constant 0 : index
    %180 = vector.load %arg16[%c16_55, %c0_56] : memref<96x16xf32, #tpu.memory_space<vmem>>, vector<2x16xf32>
    tpu.vector_store %arg16[%c16_55, %c0_56], %179 {strides = array<i32>} : memref<96x16xf32, #tpu.memory_space<vmem>>, vector<2x16xf32>,
    %c18 = arith.constant 18 : index
    %c0_57 = arith.constant 0 : index
    %181 = vector.load %arg15[%c18, %c0_57] : memref<96x64xf32, #tpu.memory_space<vmem>>, vector<2x64xf32>
    %cst_58 = arith.constant dense<0.000000e+00> : vector<2x64xf32>
    %182 = tpu.matmul %179, %7, %cst_58 {dimension_numbers = #tpu.dot_dimension_numbers<[1], [0], [0], [1], [0, 0, 1, 1], [], []>} : vector<2x16xf32>, vector<16x64xf32>, vector<2x64xf32> -> vector<2x64xf32>
    %183 = arith.addf %181, %182 : vector<2x64xf32>
    %184 = arith.negf %183 : vector<2x64xf32>
    %185 = math.exp %184 : vector<2x64xf32>
    %cst_59 = arith.constant 1.000000e+00 : f32
    %186 = vector.broadcast %cst_59 : f32 to vector<2x64xf32>
    %187 = arith.addf %186, %185 : vector<2x64xf32>
    %188 = arith.divf %186, %187 : vector<2x64xf32>
    %189 = math.tanh %183 : vector<2x64xf32>
    %190 = vector.extract_strided_slice %188 {offsets = [0, 0], sizes = [2, 16], strides = [1, 1]} : vector<2x64xf32> to vector<2x16xf32>
    %191 = vector.extract_strided_slice %188 {offsets = [0, 16], sizes = [2, 16], strides = [1, 1]} : vector<2x64xf32> to vector<2x16xf32>
    %192 = vector.extract_strided_slice %189 {offsets = [0, 32], sizes = [2, 16], strides = [1, 1]} : vector<2x64xf32> to vector<2x16xf32>
    %193 = vector.extract_strided_slice %188 {offsets = [0, 48], sizes = [2, 16], strides = [1, 1]} : vector<2x64xf32> to vector<2x16xf32>
    %194 = arith.mulf %191, %177 : vector<2x16xf32>
    %195 = arith.mulf %190, %192 : vector<2x16xf32>
    %196 = arith.addf %194, %195 : vector<2x16xf32>
    %197 = math.tanh %196 : vector<2x16xf32>
    %198 = arith.mulf %193, %197 : vector<2x16xf32>
    %c18_60 = arith.constant 18 : index
    %c0_61 = arith.constant 0 : index
    %199 = vector.load %arg16[%c18_60, %c0_61] : memref<96x16xf32, #tpu.memory_space<vmem>>, vector<2x16xf32>
    tpu.vector_store %arg16[%c18_60, %c0_61], %198 {strides = array<i32>} : memref<96x16xf32, #tpu.memory_space<vmem>>, vector<2x16xf32>,
    %c20 = arith.constant 20 : index
    %c0_62 = arith.constant 0 : index
    %200 = vector.load %arg15[%c20, %c0_62] : memref<96x64xf32, #tpu.memory_space<vmem>>, vector<2x64xf32>
    %cst_63 = arith.constant dense<0.000000e+00> : vector<2x64xf32>
    %201 = tpu.matmul %198, %7, %cst_63 {dimension_numbers = #tpu.dot_dimension_numbers<[1], [0], [0], [1], [0, 0, 1, 1], [], []>} : vector<2x16xf32>, vector<16x64xf32>, vector<2x64xf32> -> vector<2x64xf32>
    %202 = arith.addf %200, %201 : vector<2x64xf32>
    %203 = arith.negf %202 : vector<2x64xf32>
    %204 = math.exp %203 : vector<2x64xf32>
    %cst_64 = arith.constant 1.000000e+00 : f32
    %205 = vector.broadcast %cst_64 : f32 to vector<2x64xf32>
    %206 = arith.addf %205, %204 : vector<2x64xf32>
    %207 = arith.divf %205, %206 : vector<2x64xf32>
    %208 = math.tanh %202 : vector<2x64xf32>
    %209 = vector.extract_strided_slice %207 {offsets = [0, 0], sizes = [2, 16], strides = [1, 1]} : vector<2x64xf32> to vector<2x16xf32>
    %210 = vector.extract_strided_slice %207 {offsets = [0, 16], sizes = [2, 16], strides = [1, 1]} : vector<2x64xf32> to vector<2x16xf32>
    %211 = vector.extract_strided_slice %208 {offsets = [0, 32], sizes = [2, 16], strides = [1, 1]} : vector<2x64xf32> to vector<2x16xf32>
    %212 = vector.extract_strided_slice %207 {offsets = [0, 48], sizes = [2, 16], strides = [1, 1]} : vector<2x64xf32> to vector<2x16xf32>
    %213 = arith.mulf %210, %196 : vector<2x16xf32>
    %214 = arith.mulf %209, %211 : vector<2x16xf32>
    %215 = arith.addf %213, %214 : vector<2x16xf32>
    %216 = math.tanh %215 : vector<2x16xf32>
    %217 = arith.mulf %212, %216 : vector<2x16xf32>
    %c20_65 = arith.constant 20 : index
    %c0_66 = arith.constant 0 : index
    %218 = vector.load %arg16[%c20_65, %c0_66] : memref<96x16xf32, #tpu.memory_space<vmem>>, vector<2x16xf32>
    tpu.vector_store %arg16[%c20_65, %c0_66], %217 {strides = array<i32>} : memref<96x16xf32, #tpu.memory_space<vmem>>, vector<2x16xf32>,
    %c22 = arith.constant 22 : index
    %c0_67 = arith.constant 0 : index
    %219 = vector.load %arg15[%c22, %c0_67] : memref<96x64xf32, #tpu.memory_space<vmem>>, vector<2x64xf32>
    %cst_68 = arith.constant dense<0.000000e+00> : vector<2x64xf32>
    %220 = tpu.matmul %217, %7, %cst_68 {dimension_numbers = #tpu.dot_dimension_numbers<[1], [0], [0], [1], [0, 0, 1, 1], [], []>} : vector<2x16xf32>, vector<16x64xf32>, vector<2x64xf32> -> vector<2x64xf32>
    %221 = arith.addf %219, %220 : vector<2x64xf32>
    %222 = arith.negf %221 : vector<2x64xf32>
    %223 = math.exp %222 : vector<2x64xf32>
    %cst_69 = arith.constant 1.000000e+00 : f32
    %224 = vector.broadcast %cst_69 : f32 to vector<2x64xf32>
    %225 = arith.addf %224, %223 : vector<2x64xf32>
    %226 = arith.divf %224, %225 : vector<2x64xf32>
    %227 = math.tanh %221 : vector<2x64xf32>
    %228 = vector.extract_strided_slice %226 {offsets = [0, 0], sizes = [2, 16], strides = [1, 1]} : vector<2x64xf32> to vector<2x16xf32>
    %229 = vector.extract_strided_slice %226 {offsets = [0, 16], sizes = [2, 16], strides = [1, 1]} : vector<2x64xf32> to vector<2x16xf32>
    %230 = vector.extract_strided_slice %227 {offsets = [0, 32], sizes = [2, 16], strides = [1, 1]} : vector<2x64xf32> to vector<2x16xf32>
    %231 = vector.extract_strided_slice %226 {offsets = [0, 48], sizes = [2, 16], strides = [1, 1]} : vector<2x64xf32> to vector<2x16xf32>
    %232 = arith.mulf %229, %215 : vector<2x16xf32>
    %233 = arith.mulf %228, %230 : vector<2x16xf32>
    %234 = arith.addf %232, %233 : vector<2x16xf32>
    %235 = math.tanh %234 : vector<2x16xf32>
    %236 = arith.mulf %231, %235 : vector<2x16xf32>
    %c22_70 = arith.constant 22 : index
    %c0_71 = arith.constant 0 : index
    %237 = vector.load %arg16[%c22_70, %c0_71] : memref<96x16xf32, #tpu.memory_space<vmem>>, vector<2x16xf32>
    tpu.vector_store %arg16[%c22_70, %c0_71], %236 {strides = array<i32>} : memref<96x16xf32, #tpu.memory_space<vmem>>, vector<2x16xf32>,
    %c24 = arith.constant 24 : index
    %c0_72 = arith.constant 0 : index
    %238 = vector.load %arg15[%c24, %c0_72] : memref<96x64xf32, #tpu.memory_space<vmem>>, vector<2x64xf32>
    %cst_73 = arith.constant dense<0.000000e+00> : vector<2x64xf32>
    %239 = tpu.matmul %236, %7, %cst_73 {dimension_numbers = #tpu.dot_dimension_numbers<[1], [0], [0], [1], [0, 0, 1, 1], [], []>} : vector<2x16xf32>, vector<16x64xf32>, vector<2x64xf32> -> vector<2x64xf32>
    %240 = arith.addf %238, %239 : vector<2x64xf32>
    %241 = arith.negf %240 : vector<2x64xf32>
    %242 = math.exp %241 : vector<2x64xf32>
    %cst_74 = arith.constant 1.000000e+00 : f32
    %243 = vector.broadcast %cst_74 : f32 to vector<2x64xf32>
    %244 = arith.addf %243, %242 : vector<2x64xf32>
    %245 = arith.divf %243, %244 : vector<2x64xf32>
    %246 = math.tanh %240 : vector<2x64xf32>
    %247 = vector.extract_strided_slice %245 {offsets = [0, 0], sizes = [2, 16], strides = [1, 1]} : vector<2x64xf32> to vector<2x16xf32>
    %248 = vector.extract_strided_slice %245 {offsets = [0, 16], sizes = [2, 16], strides = [1, 1]} : vector<2x64xf32> to vector<2x16xf32>
    %249 = vector.extract_strided_slice %246 {offsets = [0, 32], sizes = [2, 16], strides = [1, 1]} : vector<2x64xf32> to vector<2x16xf32>
    %250 = vector.extract_strided_slice %245 {offsets = [0, 48], sizes = [2, 16], strides = [1, 1]} : vector<2x64xf32> to vector<2x16xf32>
    %251 = arith.mulf %248, %234 : vector<2x16xf32>
    %252 = arith.mulf %247, %249 : vector<2x16xf32>
    %253 = arith.addf %251, %252 : vector<2x16xf32>
    %254 = math.tanh %253 : vector<2x16xf32>
    %255 = arith.mulf %250, %254 : vector<2x16xf32>
    %c24_75 = arith.constant 24 : index
    %c0_76 = arith.constant 0 : index
    %256 = vector.load %arg16[%c24_75, %c0_76] : memref<96x16xf32, #tpu.memory_space<vmem>>, vector<2x16xf32>
    tpu.vector_store %arg16[%c24_75, %c0_76], %255 {strides = array<i32>} : memref<96x16xf32, #tpu.memory_space<vmem>>, vector<2x16xf32>,
    %c26 = arith.constant 26 : index
    %c0_77 = arith.constant 0 : index
    %257 = vector.load %arg15[%c26, %c0_77] : memref<96x64xf32, #tpu.memory_space<vmem>>, vector<2x64xf32>
    %cst_78 = arith.constant dense<0.000000e+00> : vector<2x64xf32>
    %258 = tpu.matmul %255, %7, %cst_78 {dimension_numbers = #tpu.dot_dimension_numbers<[1], [0], [0], [1], [0, 0, 1, 1], [], []>} : vector<2x16xf32>, vector<16x64xf32>, vector<2x64xf32> -> vector<2x64xf32>
    %259 = arith.addf %257, %258 : vector<2x64xf32>
    %260 = arith.negf %259 : vector<2x64xf32>
    %261 = math.exp %260 : vector<2x64xf32>
    %cst_79 = arith.constant 1.000000e+00 : f32
    %262 = vector.broadcast %cst_79 : f32 to vector<2x64xf32>
    %263 = arith.addf %262, %261 : vector<2x64xf32>
    %264 = arith.divf %262, %263 : vector<2x64xf32>
    %265 = math.tanh %259 : vector<2x64xf32>
    %266 = vector.extract_strided_slice %264 {offsets = [0, 0], sizes = [2, 16], strides = [1, 1]} : vector<2x64xf32> to vector<2x16xf32>
    %267 = vector.extract_strided_slice %264 {offsets = [0, 16], sizes = [2, 16], strides = [1, 1]} : vector<2x64xf32> to vector<2x16xf32>
    %268 = vector.extract_strided_slice %265 {offsets = [0, 32], sizes = [2, 16], strides = [1, 1]} : vector<2x64xf32> to vector<2x16xf32>
    %269 = vector.extract_strided_slice %264 {offsets = [0, 48], sizes = [2, 16], strides = [1, 1]} : vector<2x64xf32> to vector<2x16xf32>
    %270 = arith.mulf %267, %253 : vector<2x16xf32>
    %271 = arith.mulf %266, %268 : vector<2x16xf32>
    %272 = arith.addf %270, %271 : vector<2x16xf32>
    %273 = math.tanh %272 : vector<2x16xf32>
    %274 = arith.mulf %269, %273 : vector<2x16xf32>
    %c26_80 = arith.constant 26 : index
    %c0_81 = arith.constant 0 : index
    %275 = vector.load %arg16[%c26_80, %c0_81] : memref<96x16xf32, #tpu.memory_space<vmem>>, vector<2x16xf32>
    tpu.vector_store %arg16[%c26_80, %c0_81], %274 {strides = array<i32>} : memref<96x16xf32, #tpu.memory_space<vmem>>, vector<2x16xf32>,
    %c28 = arith.constant 28 : index
    %c0_82 = arith.constant 0 : index
    %276 = vector.load %arg15[%c28, %c0_82] : memref<96x64xf32, #tpu.memory_space<vmem>>, vector<2x64xf32>
    %cst_83 = arith.constant dense<0.000000e+00> : vector<2x64xf32>
    %277 = tpu.matmul %274, %7, %cst_83 {dimension_numbers = #tpu.dot_dimension_numbers<[1], [0], [0], [1], [0, 0, 1, 1], [], []>} : vector<2x16xf32>, vector<16x64xf32>, vector<2x64xf32> -> vector<2x64xf32>
    %278 = arith.addf %276, %277 : vector<2x64xf32>
    %279 = arith.negf %278 : vector<2x64xf32>
    %280 = math.exp %279 : vector<2x64xf32>
    %cst_84 = arith.constant 1.000000e+00 : f32
    %281 = vector.broadcast %cst_84 : f32 to vector<2x64xf32>
    %282 = arith.addf %281, %280 : vector<2x64xf32>
    %283 = arith.divf %281, %282 : vector<2x64xf32>
    %284 = math.tanh %278 : vector<2x64xf32>
    %285 = vector.extract_strided_slice %283 {offsets = [0, 0], sizes = [2, 16], strides = [1, 1]} : vector<2x64xf32> to vector<2x16xf32>
    %286 = vector.extract_strided_slice %283 {offsets = [0, 16], sizes = [2, 16], strides = [1, 1]} : vector<2x64xf32> to vector<2x16xf32>
    %287 = vector.extract_strided_slice %284 {offsets = [0, 32], sizes = [2, 16], strides = [1, 1]} : vector<2x64xf32> to vector<2x16xf32>
    %288 = vector.extract_strided_slice %283 {offsets = [0, 48], sizes = [2, 16], strides = [1, 1]} : vector<2x64xf32> to vector<2x16xf32>
    %289 = arith.mulf %286, %272 : vector<2x16xf32>
    %290 = arith.mulf %285, %287 : vector<2x16xf32>
    %291 = arith.addf %289, %290 : vector<2x16xf32>
    %292 = math.tanh %291 : vector<2x16xf32>
    %293 = arith.mulf %288, %292 : vector<2x16xf32>
    %c28_85 = arith.constant 28 : index
    %c0_86 = arith.constant 0 : index
    %294 = vector.load %arg16[%c28_85, %c0_86] : memref<96x16xf32, #tpu.memory_space<vmem>>, vector<2x16xf32>
    tpu.vector_store %arg16[%c28_85, %c0_86], %293 {strides = array<i32>} : memref<96x16xf32, #tpu.memory_space<vmem>>, vector<2x16xf32>,
    %c30 = arith.constant 30 : index
    %c0_87 = arith.constant 0 : index
    %295 = vector.load %arg15[%c30, %c0_87] : memref<96x64xf32, #tpu.memory_space<vmem>>, vector<2x64xf32>
    %cst_88 = arith.constant dense<0.000000e+00> : vector<2x64xf32>
    %296 = tpu.matmul %293, %7, %cst_88 {dimension_numbers = #tpu.dot_dimension_numbers<[1], [0], [0], [1], [0, 0, 1, 1], [], []>} : vector<2x16xf32>, vector<16x64xf32>, vector<2x64xf32> -> vector<2x64xf32>
    %297 = arith.addf %295, %296 : vector<2x64xf32>
    %298 = arith.negf %297 : vector<2x64xf32>
    %299 = math.exp %298 : vector<2x64xf32>
    %cst_89 = arith.constant 1.000000e+00 : f32
    %300 = vector.broadcast %cst_89 : f32 to vector<2x64xf32>
    %301 = arith.addf %300, %299 : vector<2x64xf32>
    %302 = arith.divf %300, %301 : vector<2x64xf32>
    %303 = math.tanh %297 : vector<2x64xf32>
    %304 = vector.extract_strided_slice %302 {offsets = [0, 0], sizes = [2, 16], strides = [1, 1]} : vector<2x64xf32> to vector<2x16xf32>
    %305 = vector.extract_strided_slice %302 {offsets = [0, 16], sizes = [2, 16], strides = [1, 1]} : vector<2x64xf32> to vector<2x16xf32>
    %306 = vector.extract_strided_slice %303 {offsets = [0, 32], sizes = [2, 16], strides = [1, 1]} : vector<2x64xf32> to vector<2x16xf32>
    %307 = vector.extract_strided_slice %302 {offsets = [0, 48], sizes = [2, 16], strides = [1, 1]} : vector<2x64xf32> to vector<2x16xf32>
    %308 = arith.mulf %305, %291 : vector<2x16xf32>
    %309 = arith.mulf %304, %306 : vector<2x16xf32>
    %310 = arith.addf %308, %309 : vector<2x16xf32>
    %311 = math.tanh %310 : vector<2x16xf32>
    %312 = arith.mulf %307, %311 : vector<2x16xf32>
    %c30_90 = arith.constant 30 : index
    %c0_91 = arith.constant 0 : index
    %313 = vector.load %arg16[%c30_90, %c0_91] : memref<96x16xf32, #tpu.memory_space<vmem>>, vector<2x16xf32>
    tpu.vector_store %arg16[%c30_90, %c0_91], %312 {strides = array<i32>} : memref<96x16xf32, #tpu.memory_space<vmem>>, vector<2x16xf32>,
    %c32 = arith.constant 32 : index
    %c0_92 = arith.constant 0 : index
    %314 = vector.load %arg15[%c32, %c0_92] : memref<96x64xf32, #tpu.memory_space<vmem>>, vector<2x64xf32>
    %cst_93 = arith.constant dense<0.000000e+00> : vector<2x64xf32>
    %315 = tpu.matmul %312, %7, %cst_93 {dimension_numbers = #tpu.dot_dimension_numbers<[1], [0], [0], [1], [0, 0, 1, 1], [], []>} : vector<2x16xf32>, vector<16x64xf32>, vector<2x64xf32> -> vector<2x64xf32>
    %316 = arith.addf %314, %315 : vector<2x64xf32>
    %317 = arith.negf %316 : vector<2x64xf32>
    %318 = math.exp %317 : vector<2x64xf32>
    %cst_94 = arith.constant 1.000000e+00 : f32
    %319 = vector.broadcast %cst_94 : f32 to vector<2x64xf32>
    %320 = arith.addf %319, %318 : vector<2x64xf32>
    %321 = arith.divf %319, %320 : vector<2x64xf32>
    %322 = math.tanh %316 : vector<2x64xf32>
    %323 = vector.extract_strided_slice %321 {offsets = [0, 0], sizes = [2, 16], strides = [1, 1]} : vector<2x64xf32> to vector<2x16xf32>
    %324 = vector.extract_strided_slice %321 {offsets = [0, 16], sizes = [2, 16], strides = [1, 1]} : vector<2x64xf32> to vector<2x16xf32>
    %325 = vector.extract_strided_slice %322 {offsets = [0, 32], sizes = [2, 16], strides = [1, 1]} : vector<2x64xf32> to vector<2x16xf32>
    %326 = vector.extract_strided_slice %321 {offsets = [0, 48], sizes = [2, 16], strides = [1, 1]} : vector<2x64xf32> to vector<2x16xf32>
    %327 = arith.mulf %324, %310 : vector<2x16xf32>
    %328 = arith.mulf %323, %325 : vector<2x16xf32>
    %329 = arith.addf %327, %328 : vector<2x16xf32>
    %330 = math.tanh %329 : vector<2x16xf32>
    %331 = arith.mulf %326, %330 : vector<2x16xf32>
    %c32_95 = arith.constant 32 : index
    %c0_96 = arith.constant 0 : index
    %332 = vector.load %arg16[%c32_95, %c0_96] : memref<96x16xf32, #tpu.memory_space<vmem>>, vector<2x16xf32>
    tpu.vector_store %arg16[%c32_95, %c0_96], %331 {strides = array<i32>} : memref<96x16xf32, #tpu.memory_space<vmem>>, vector<2x16xf32>,
    %c34 = arith.constant 34 : index
    %c0_97 = arith.constant 0 : index
    %333 = vector.load %arg15[%c34, %c0_97] : memref<96x64xf32, #tpu.memory_space<vmem>>, vector<2x64xf32>
    %cst_98 = arith.constant dense<0.000000e+00> : vector<2x64xf32>
    %334 = tpu.matmul %331, %7, %cst_98 {dimension_numbers = #tpu.dot_dimension_numbers<[1], [0], [0], [1], [0, 0, 1, 1], [], []>} : vector<2x16xf32>, vector<16x64xf32>, vector<2x64xf32> -> vector<2x64xf32>
    %335 = arith.addf %333, %334 : vector<2x64xf32>
    %336 = arith.negf %335 : vector<2x64xf32>
    %337 = math.exp %336 : vector<2x64xf32>
    %cst_99 = arith.constant 1.000000e+00 : f32
    %338 = vector.broadcast %cst_99 : f32 to vector<2x64xf32>
    %339 = arith.addf %338, %337 : vector<2x64xf32>
    %340 = arith.divf %338, %339 : vector<2x64xf32>
    %341 = math.tanh %335 : vector<2x64xf32>
    %342 = vector.extract_strided_slice %340 {offsets = [0, 0], sizes = [2, 16], strides = [1, 1]} : vector<2x64xf32> to vector<2x16xf32>
    %343 = vector.extract_strided_slice %340 {offsets = [0, 16], sizes = [2, 16], strides = [1, 1]} : vector<2x64xf32> to vector<2x16xf32>
    %344 = vector.extract_strided_slice %341 {offsets = [0, 32], sizes = [2, 16], strides = [1, 1]} : vector<2x64xf32> to vector<2x16xf32>
    %345 = vector.extract_strided_slice %340 {offsets = [0, 48], sizes = [2, 16], strides = [1, 1]} : vector<2x64xf32> to vector<2x16xf32>
    %346 = arith.mulf %343, %329 : vector<2x16xf32>
    %347 = arith.mulf %342, %344 : vector<2x16xf32>
    %348 = arith.addf %346, %347 : vector<2x16xf32>
    %349 = math.tanh %348 : vector<2x16xf32>
    %350 = arith.mulf %345, %349 : vector<2x16xf32>
    %c34_100 = arith.constant 34 : index
    %c0_101 = arith.constant 0 : index
    %351 = vector.load %arg16[%c34_100, %c0_101] : memref<96x16xf32, #tpu.memory_space<vmem>>, vector<2x16xf32>
    tpu.vector_store %arg16[%c34_100, %c0_101], %350 {strides = array<i32>} : memref<96x16xf32, #tpu.memory_space<vmem>>, vector<2x16xf32>,
    %c36 = arith.constant 36 : index
    %c0_102 = arith.constant 0 : index
    %352 = vector.load %arg15[%c36, %c0_102] : memref<96x64xf32, #tpu.memory_space<vmem>>, vector<2x64xf32>
    %cst_103 = arith.constant dense<0.000000e+00> : vector<2x64xf32>
    %353 = tpu.matmul %350, %7, %cst_103 {dimension_numbers = #tpu.dot_dimension_numbers<[1], [0], [0], [1], [0, 0, 1, 1], [], []>} : vector<2x16xf32>, vector<16x64xf32>, vector<2x64xf32> -> vector<2x64xf32>
    %354 = arith.addf %352, %353 : vector<2x64xf32>
    %355 = arith.negf %354 : vector<2x64xf32>
    %356 = math.exp %355 : vector<2x64xf32>
    %cst_104 = arith.constant 1.000000e+00 : f32
    %357 = vector.broadcast %cst_104 : f32 to vector<2x64xf32>
    %358 = arith.addf %357, %356 : vector<2x64xf32>
    %359 = arith.divf %357, %358 : vector<2x64xf32>
    %360 = math.tanh %354 : vector<2x64xf32>
    %361 = vector.extract_strided_slice %359 {offsets = [0, 0], sizes = [2, 16], strides = [1, 1]} : vector<2x64xf32> to vector<2x16xf32>
    %362 = vector.extract_strided_slice %359 {offsets = [0, 16], sizes = [2, 16], strides = [1, 1]} : vector<2x64xf32> to vector<2x16xf32>
    %363 = vector.extract_strided_slice %360 {offsets = [0, 32], sizes = [2, 16], strides = [1, 1]} : vector<2x64xf32> to vector<2x16xf32>
    %364 = vector.extract_strided_slice %359 {offsets = [0, 48], sizes = [2, 16], strides = [1, 1]} : vector<2x64xf32> to vector<2x16xf32>
    %365 = arith.mulf %362, %348 : vector<2x16xf32>
    %366 = arith.mulf %361, %363 : vector<2x16xf32>
    %367 = arith.addf %365, %366 : vector<2x16xf32>
    %368 = math.tanh %367 : vector<2x16xf32>
    %369 = arith.mulf %364, %368 : vector<2x16xf32>
    %c36_105 = arith.constant 36 : index
    %c0_106 = arith.constant 0 : index
    %370 = vector.load %arg16[%c36_105, %c0_106] : memref<96x16xf32, #tpu.memory_space<vmem>>, vector<2x16xf32>
    tpu.vector_store %arg16[%c36_105, %c0_106], %369 {strides = array<i32>} : memref<96x16xf32, #tpu.memory_space<vmem>>, vector<2x16xf32>,
    %c38 = arith.constant 38 : index
    %c0_107 = arith.constant 0 : index
    %371 = vector.load %arg15[%c38, %c0_107] : memref<96x64xf32, #tpu.memory_space<vmem>>, vector<2x64xf32>
    %cst_108 = arith.constant dense<0.000000e+00> : vector<2x64xf32>
    %372 = tpu.matmul %369, %7, %cst_108 {dimension_numbers = #tpu.dot_dimension_numbers<[1], [0], [0], [1], [0, 0, 1, 1], [], []>} : vector<2x16xf32>, vector<16x64xf32>, vector<2x64xf32> -> vector<2x64xf32>
    %373 = arith.addf %371, %372 : vector<2x64xf32>
    %374 = arith.negf %373 : vector<2x64xf32>
    %375 = math.exp %374 : vector<2x64xf32>
    %cst_109 = arith.constant 1.000000e+00 : f32
    %376 = vector.broadcast %cst_109 : f32 to vector<2x64xf32>
    %377 = arith.addf %376, %375 : vector<2x64xf32>
    %378 = arith.divf %376, %377 : vector<2x64xf32>
    %379 = math.tanh %373 : vector<2x64xf32>
    %380 = vector.extract_strided_slice %378 {offsets = [0, 0], sizes = [2, 16], strides = [1, 1]} : vector<2x64xf32> to vector<2x16xf32>
    %381 = vector.extract_strided_slice %378 {offsets = [0, 16], sizes = [2, 16], strides = [1, 1]} : vector<2x64xf32> to vector<2x16xf32>
    %382 = vector.extract_strided_slice %379 {offsets = [0, 32], sizes = [2, 16], strides = [1, 1]} : vector<2x64xf32> to vector<2x16xf32>
    %383 = vector.extract_strided_slice %378 {offsets = [0, 48], sizes = [2, 16], strides = [1, 1]} : vector<2x64xf32> to vector<2x16xf32>
    %384 = arith.mulf %381, %367 : vector<2x16xf32>
    %385 = arith.mulf %380, %382 : vector<2x16xf32>
    %386 = arith.addf %384, %385 : vector<2x16xf32>
    %387 = math.tanh %386 : vector<2x16xf32>
    %388 = arith.mulf %383, %387 : vector<2x16xf32>
    %c38_110 = arith.constant 38 : index
    %c0_111 = arith.constant 0 : index
    %389 = vector.load %arg16[%c38_110, %c0_111] : memref<96x16xf32, #tpu.memory_space<vmem>>, vector<2x16xf32>
    tpu.vector_store %arg16[%c38_110, %c0_111], %388 {strides = array<i32>} : memref<96x16xf32, #tpu.memory_space<vmem>>, vector<2x16xf32>,
    %c40 = arith.constant 40 : index
    %c0_112 = arith.constant 0 : index
    %390 = vector.load %arg15[%c40, %c0_112] : memref<96x64xf32, #tpu.memory_space<vmem>>, vector<2x64xf32>
    %cst_113 = arith.constant dense<0.000000e+00> : vector<2x64xf32>
    %391 = tpu.matmul %388, %7, %cst_113 {dimension_numbers = #tpu.dot_dimension_numbers<[1], [0], [0], [1], [0, 0, 1, 1], [], []>} : vector<2x16xf32>, vector<16x64xf32>, vector<2x64xf32> -> vector<2x64xf32>
    %392 = arith.addf %390, %391 : vector<2x64xf32>
    %393 = arith.negf %392 : vector<2x64xf32>
    %394 = math.exp %393 : vector<2x64xf32>
    %cst_114 = arith.constant 1.000000e+00 : f32
    %395 = vector.broadcast %cst_114 : f32 to vector<2x64xf32>
    %396 = arith.addf %395, %394 : vector<2x64xf32>
    %397 = arith.divf %395, %396 : vector<2x64xf32>
    %398 = math.tanh %392 : vector<2x64xf32>
    %399 = vector.extract_strided_slice %397 {offsets = [0, 0], sizes = [2, 16], strides = [1, 1]} : vector<2x64xf32> to vector<2x16xf32>
    %400 = vector.extract_strided_slice %397 {offsets = [0, 16], sizes = [2, 16], strides = [1, 1]} : vector<2x64xf32> to vector<2x16xf32>
    %401 = vector.extract_strided_slice %398 {offsets = [0, 32], sizes = [2, 16], strides = [1, 1]} : vector<2x64xf32> to vector<2x16xf32>
    %402 = vector.extract_strided_slice %397 {offsets = [0, 48], sizes = [2, 16], strides = [1, 1]} : vector<2x64xf32> to vector<2x16xf32>
    %403 = arith.mulf %400, %386 : vector<2x16xf32>
    %404 = arith.mulf %399, %401 : vector<2x16xf32>
    %405 = arith.addf %403, %404 : vector<2x16xf32>
    %406 = math.tanh %405 : vector<2x16xf32>
    %407 = arith.mulf %402, %406 : vector<2x16xf32>
    %c40_115 = arith.constant 40 : index
    %c0_116 = arith.constant 0 : index
    %408 = vector.load %arg16[%c40_115, %c0_116] : memref<96x16xf32, #tpu.memory_space<vmem>>, vector<2x16xf32>
    tpu.vector_store %arg16[%c40_115, %c0_116], %407 {strides = array<i32>} : memref<96x16xf32, #tpu.memory_space<vmem>>, vector<2x16xf32>,
    %c42 = arith.constant 42 : index
    %c0_117 = arith.constant 0 : index
    %409 = vector.load %arg15[%c42, %c0_117] : memref<96x64xf32, #tpu.memory_space<vmem>>, vector<2x64xf32>
    %cst_118 = arith.constant dense<0.000000e+00> : vector<2x64xf32>
    %410 = tpu.matmul %407, %7, %cst_118 {dimension_numbers = #tpu.dot_dimension_numbers<[1], [0], [0], [1], [0, 0, 1, 1], [], []>} : vector<2x16xf32>, vector<16x64xf32>, vector<2x64xf32> -> vector<2x64xf32>
    %411 = arith.addf %409, %410 : vector<2x64xf32>
    %412 = arith.negf %411 : vector<2x64xf32>
    %413 = math.exp %412 : vector<2x64xf32>
    %cst_119 = arith.constant 1.000000e+00 : f32
    %414 = vector.broadcast %cst_119 : f32 to vector<2x64xf32>
    %415 = arith.addf %414, %413 : vector<2x64xf32>
    %416 = arith.divf %414, %415 : vector<2x64xf32>
    %417 = math.tanh %411 : vector<2x64xf32>
    %418 = vector.extract_strided_slice %416 {offsets = [0, 0], sizes = [2, 16], strides = [1, 1]} : vector<2x64xf32> to vector<2x16xf32>
    %419 = vector.extract_strided_slice %416 {offsets = [0, 16], sizes = [2, 16], strides = [1, 1]} : vector<2x64xf32> to vector<2x16xf32>
    %420 = vector.extract_strided_slice %417 {offsets = [0, 32], sizes = [2, 16], strides = [1, 1]} : vector<2x64xf32> to vector<2x16xf32>
    %421 = vector.extract_strided_slice %416 {offsets = [0, 48], sizes = [2, 16], strides = [1, 1]} : vector<2x64xf32> to vector<2x16xf32>
    %422 = arith.mulf %419, %405 : vector<2x16xf32>
    %423 = arith.mulf %418, %420 : vector<2x16xf32>
    %424 = arith.addf %422, %423 : vector<2x16xf32>
    %425 = math.tanh %424 : vector<2x16xf32>
    %426 = arith.mulf %421, %425 : vector<2x16xf32>
    %c42_120 = arith.constant 42 : index
    %c0_121 = arith.constant 0 : index
    %427 = vector.load %arg16[%c42_120, %c0_121] : memref<96x16xf32, #tpu.memory_space<vmem>>, vector<2x16xf32>
    tpu.vector_store %arg16[%c42_120, %c0_121], %426 {strides = array<i32>} : memref<96x16xf32, #tpu.memory_space<vmem>>, vector<2x16xf32>,
    %c44 = arith.constant 44 : index
    %c0_122 = arith.constant 0 : index
    %428 = vector.load %arg15[%c44, %c0_122] : memref<96x64xf32, #tpu.memory_space<vmem>>, vector<2x64xf32>
    %cst_123 = arith.constant dense<0.000000e+00> : vector<2x64xf32>
    %429 = tpu.matmul %426, %7, %cst_123 {dimension_numbers = #tpu.dot_dimension_numbers<[1], [0], [0], [1], [0, 0, 1, 1], [], []>} : vector<2x16xf32>, vector<16x64xf32>, vector<2x64xf32> -> vector<2x64xf32>
    %430 = arith.addf %428, %429 : vector<2x64xf32>
    %431 = arith.negf %430 : vector<2x64xf32>
    %432 = math.exp %431 : vector<2x64xf32>
    %cst_124 = arith.constant 1.000000e+00 : f32
    %433 = vector.broadcast %cst_124 : f32 to vector<2x64xf32>
    %434 = arith.addf %433, %432 : vector<2x64xf32>
    %435 = arith.divf %433, %434 : vector<2x64xf32>
    %436 = math.tanh %430 : vector<2x64xf32>
    %437 = vector.extract_strided_slice %435 {offsets = [0, 0], sizes = [2, 16], strides = [1, 1]} : vector<2x64xf32> to vector<2x16xf32>
    %438 = vector.extract_strided_slice %435 {offsets = [0, 16], sizes = [2, 16], strides = [1, 1]} : vector<2x64xf32> to vector<2x16xf32>
    %439 = vector.extract_strided_slice %436 {offsets = [0, 32], sizes = [2, 16], strides = [1, 1]} : vector<2x64xf32> to vector<2x16xf32>
    %440 = vector.extract_strided_slice %435 {offsets = [0, 48], sizes = [2, 16], strides = [1, 1]} : vector<2x64xf32> to vector<2x16xf32>
    %441 = arith.mulf %438, %424 : vector<2x16xf32>
    %442 = arith.mulf %437, %439 : vector<2x16xf32>
    %443 = arith.addf %441, %442 : vector<2x16xf32>
    %444 = math.tanh %443 : vector<2x16xf32>
    %445 = arith.mulf %440, %444 : vector<2x16xf32>
    %c44_125 = arith.constant 44 : index
    %c0_126 = arith.constant 0 : index
    %446 = vector.load %arg16[%c44_125, %c0_126] : memref<96x16xf32, #tpu.memory_space<vmem>>, vector<2x16xf32>
    tpu.vector_store %arg16[%c44_125, %c0_126], %445 {strides = array<i32>} : memref<96x16xf32, #tpu.memory_space<vmem>>, vector<2x16xf32>,
    %c46 = arith.constant 46 : index
    %c0_127 = arith.constant 0 : index
    %447 = vector.load %arg15[%c46, %c0_127] : memref<96x64xf32, #tpu.memory_space<vmem>>, vector<2x64xf32>
    %cst_128 = arith.constant dense<0.000000e+00> : vector<2x64xf32>
    %448 = tpu.matmul %445, %7, %cst_128 {dimension_numbers = #tpu.dot_dimension_numbers<[1], [0], [0], [1], [0, 0, 1, 1], [], []>} : vector<2x16xf32>, vector<16x64xf32>, vector<2x64xf32> -> vector<2x64xf32>
    %449 = arith.addf %447, %448 : vector<2x64xf32>
    %450 = arith.negf %449 : vector<2x64xf32>
    %451 = math.exp %450 : vector<2x64xf32>
    %cst_129 = arith.constant 1.000000e+00 : f32
    %452 = vector.broadcast %cst_129 : f32 to vector<2x64xf32>
    %453 = arith.addf %452, %451 : vector<2x64xf32>
    %454 = arith.divf %452, %453 : vector<2x64xf32>
    %455 = math.tanh %449 : vector<2x64xf32>
    %456 = vector.extract_strided_slice %454 {offsets = [0, 0], sizes = [2, 16], strides = [1, 1]} : vector<2x64xf32> to vector<2x16xf32>
    %457 = vector.extract_strided_slice %454 {offsets = [0, 16], sizes = [2, 16], strides = [1, 1]} : vector<2x64xf32> to vector<2x16xf32>
    %458 = vector.extract_strided_slice %455 {offsets = [0, 32], sizes = [2, 16], strides = [1, 1]} : vector<2x64xf32> to vector<2x16xf32>
    %459 = vector.extract_strided_slice %454 {offsets = [0, 48], sizes = [2, 16], strides = [1, 1]} : vector<2x64xf32> to vector<2x16xf32>
    %460 = arith.mulf %457, %443 : vector<2x16xf32>
    %461 = arith.mulf %456, %458 : vector<2x16xf32>
    %462 = arith.addf %460, %461 : vector<2x16xf32>
    %463 = math.tanh %462 : vector<2x16xf32>
    %464 = arith.mulf %459, %463 : vector<2x16xf32>
    %c46_130 = arith.constant 46 : index
    %c0_131 = arith.constant 0 : index
    %465 = vector.load %arg16[%c46_130, %c0_131] : memref<96x16xf32, #tpu.memory_space<vmem>>, vector<2x16xf32>
    tpu.vector_store %arg16[%c46_130, %c0_131], %464 {strides = array<i32>} : memref<96x16xf32, #tpu.memory_space<vmem>>, vector<2x16xf32>,
    %c48 = arith.constant 48 : index
    %c0_132 = arith.constant 0 : index
    %466 = vector.load %arg15[%c48, %c0_132] : memref<96x64xf32, #tpu.memory_space<vmem>>, vector<2x64xf32>
    %cst_133 = arith.constant dense<0.000000e+00> : vector<2x64xf32>
    %467 = tpu.matmul %464, %7, %cst_133 {dimension_numbers = #tpu.dot_dimension_numbers<[1], [0], [0], [1], [0, 0, 1, 1], [], []>} : vector<2x16xf32>, vector<16x64xf32>, vector<2x64xf32> -> vector<2x64xf32>
    %468 = arith.addf %466, %467 : vector<2x64xf32>
    %469 = arith.negf %468 : vector<2x64xf32>
    %470 = math.exp %469 : vector<2x64xf32>
    %cst_134 = arith.constant 1.000000e+00 : f32
    %471 = vector.broadcast %cst_134 : f32 to vector<2x64xf32>
    %472 = arith.addf %471, %470 : vector<2x64xf32>
    %473 = arith.divf %471, %472 : vector<2x64xf32>
    %474 = math.tanh %468 : vector<2x64xf32>
    %475 = vector.extract_strided_slice %473 {offsets = [0, 0], sizes = [2, 16], strides = [1, 1]} : vector<2x64xf32> to vector<2x16xf32>
    %476 = vector.extract_strided_slice %473 {offsets = [0, 16], sizes = [2, 16], strides = [1, 1]} : vector<2x64xf32> to vector<2x16xf32>
    %477 = vector.extract_strided_slice %474 {offsets = [0, 32], sizes = [2, 16], strides = [1, 1]} : vector<2x64xf32> to vector<2x16xf32>
    %478 = vector.extract_strided_slice %473 {offsets = [0, 48], sizes = [2, 16], strides = [1, 1]} : vector<2x64xf32> to vector<2x16xf32>
    %479 = arith.mulf %476, %462 : vector<2x16xf32>
    %480 = arith.mulf %475, %477 : vector<2x16xf32>
    %481 = arith.addf %479, %480 : vector<2x16xf32>
    %482 = math.tanh %481 : vector<2x16xf32>
    %483 = arith.mulf %478, %482 : vector<2x16xf32>
    %c48_135 = arith.constant 48 : index
    %c0_136 = arith.constant 0 : index
    %484 = vector.load %arg16[%c48_135, %c0_136] : memref<96x16xf32, #tpu.memory_space<vmem>>, vector<2x16xf32>
    tpu.vector_store %arg16[%c48_135, %c0_136], %483 {strides = array<i32>} : memref<96x16xf32, #tpu.memory_space<vmem>>, vector<2x16xf32>,
    %c50 = arith.constant 50 : index
    %c0_137 = arith.constant 0 : index
    %485 = vector.load %arg15[%c50, %c0_137] : memref<96x64xf32, #tpu.memory_space<vmem>>, vector<2x64xf32>
    %cst_138 = arith.constant dense<0.000000e+00> : vector<2x64xf32>
    %486 = tpu.matmul %483, %7, %cst_138 {dimension_numbers = #tpu.dot_dimension_numbers<[1], [0], [0], [1], [0, 0, 1, 1], [], []>} : vector<2x16xf32>, vector<16x64xf32>, vector<2x64xf32> -> vector<2x64xf32>
    %487 = arith.addf %485, %486 : vector<2x64xf32>
    %488 = arith.negf %487 : vector<2x64xf32>
    %489 = math.exp %488 : vector<2x64xf32>
    %cst_139 = arith.constant 1.000000e+00 : f32
    %490 = vector.broadcast %cst_139 : f32 to vector<2x64xf32>
    %491 = arith.addf %490, %489 : vector<2x64xf32>
    %492 = arith.divf %490, %491 : vector<2x64xf32>
    %493 = math.tanh %487 : vector<2x64xf32>
    %494 = vector.extract_strided_slice %492 {offsets = [0, 0], sizes = [2, 16], strides = [1, 1]} : vector<2x64xf32> to vector<2x16xf32>
    %495 = vector.extract_strided_slice %492 {offsets = [0, 16], sizes = [2, 16], strides = [1, 1]} : vector<2x64xf32> to vector<2x16xf32>
    %496 = vector.extract_strided_slice %493 {offsets = [0, 32], sizes = [2, 16], strides = [1, 1]} : vector<2x64xf32> to vector<2x16xf32>
    %497 = vector.extract_strided_slice %492 {offsets = [0, 48], sizes = [2, 16], strides = [1, 1]} : vector<2x64xf32> to vector<2x16xf32>
    %498 = arith.mulf %495, %481 : vector<2x16xf32>
    %499 = arith.mulf %494, %496 : vector<2x16xf32>
    %500 = arith.addf %498, %499 : vector<2x16xf32>
    %501 = math.tanh %500 : vector<2x16xf32>
    %502 = arith.mulf %497, %501 : vector<2x16xf32>
    %c50_140 = arith.constant 50 : index
    %c0_141 = arith.constant 0 : index
    %503 = vector.load %arg16[%c50_140, %c0_141] : memref<96x16xf32, #tpu.memory_space<vmem>>, vector<2x16xf32>
    tpu.vector_store %arg16[%c50_140, %c0_141], %502 {strides = array<i32>} : memref<96x16xf32, #tpu.memory_space<vmem>>, vector<2x16xf32>,
    %c52 = arith.constant 52 : index
    %c0_142 = arith.constant 0 : index
    %504 = vector.load %arg15[%c52, %c0_142] : memref<96x64xf32, #tpu.memory_space<vmem>>, vector<2x64xf32>
    %cst_143 = arith.constant dense<0.000000e+00> : vector<2x64xf32>
    %505 = tpu.matmul %502, %7, %cst_143 {dimension_numbers = #tpu.dot_dimension_numbers<[1], [0], [0], [1], [0, 0, 1, 1], [], []>} : vector<2x16xf32>, vector<16x64xf32>, vector<2x64xf32> -> vector<2x64xf32>
    %506 = arith.addf %504, %505 : vector<2x64xf32>
    %507 = arith.negf %506 : vector<2x64xf32>
    %508 = math.exp %507 : vector<2x64xf32>
    %cst_144 = arith.constant 1.000000e+00 : f32
    %509 = vector.broadcast %cst_144 : f32 to vector<2x64xf32>
    %510 = arith.addf %509, %508 : vector<2x64xf32>
    %511 = arith.divf %509, %510 : vector<2x64xf32>
    %512 = math.tanh %506 : vector<2x64xf32>
    %513 = vector.extract_strided_slice %511 {offsets = [0, 0], sizes = [2, 16], strides = [1, 1]} : vector<2x64xf32> to vector<2x16xf32>
    %514 = vector.extract_strided_slice %511 {offsets = [0, 16], sizes = [2, 16], strides = [1, 1]} : vector<2x64xf32> to vector<2x16xf32>
    %515 = vector.extract_strided_slice %512 {offsets = [0, 32], sizes = [2, 16], strides = [1, 1]} : vector<2x64xf32> to vector<2x16xf32>
    %516 = vector.extract_strided_slice %511 {offsets = [0, 48], sizes = [2, 16], strides = [1, 1]} : vector<2x64xf32> to vector<2x16xf32>
    %517 = arith.mulf %514, %500 : vector<2x16xf32>
    %518 = arith.mulf %513, %515 : vector<2x16xf32>
    %519 = arith.addf %517, %518 : vector<2x16xf32>
    %520 = math.tanh %519 : vector<2x16xf32>
    %521 = arith.mulf %516, %520 : vector<2x16xf32>
    %c52_145 = arith.constant 52 : index
    %c0_146 = arith.constant 0 : index
    %522 = vector.load %arg16[%c52_145, %c0_146] : memref<96x16xf32, #tpu.memory_space<vmem>>, vector<2x16xf32>
    tpu.vector_store %arg16[%c52_145, %c0_146], %521 {strides = array<i32>} : memref<96x16xf32, #tpu.memory_space<vmem>>, vector<2x16xf32>,
    %c54 = arith.constant 54 : index
    %c0_147 = arith.constant 0 : index
    %523 = vector.load %arg15[%c54, %c0_147] : memref<96x64xf32, #tpu.memory_space<vmem>>, vector<2x64xf32>
    %cst_148 = arith.constant dense<0.000000e+00> : vector<2x64xf32>
    %524 = tpu.matmul %521, %7, %cst_148 {dimension_numbers = #tpu.dot_dimension_numbers<[1], [0], [0], [1], [0, 0, 1, 1], [], []>} : vector<2x16xf32>, vector<16x64xf32>, vector<2x64xf32> -> vector<2x64xf32>
    %525 = arith.addf %523, %524 : vector<2x64xf32>
    %526 = arith.negf %525 : vector<2x64xf32>
    %527 = math.exp %526 : vector<2x64xf32>
    %cst_149 = arith.constant 1.000000e+00 : f32
    %528 = vector.broadcast %cst_149 : f32 to vector<2x64xf32>
    %529 = arith.addf %528, %527 : vector<2x64xf32>
    %530 = arith.divf %528, %529 : vector<2x64xf32>
    %531 = math.tanh %525 : vector<2x64xf32>
    %532 = vector.extract_strided_slice %530 {offsets = [0, 0], sizes = [2, 16], strides = [1, 1]} : vector<2x64xf32> to vector<2x16xf32>
    %533 = vector.extract_strided_slice %530 {offsets = [0, 16], sizes = [2, 16], strides = [1, 1]} : vector<2x64xf32> to vector<2x16xf32>
    %534 = vector.extract_strided_slice %531 {offsets = [0, 32], sizes = [2, 16], strides = [1, 1]} : vector<2x64xf32> to vector<2x16xf32>
    %535 = vector.extract_strided_slice %530 {offsets = [0, 48], sizes = [2, 16], strides = [1, 1]} : vector<2x64xf32> to vector<2x16xf32>
    %536 = arith.mulf %533, %519 : vector<2x16xf32>
    %537 = arith.mulf %532, %534 : vector<2x16xf32>
    %538 = arith.addf %536, %537 : vector<2x16xf32>
    %539 = math.tanh %538 : vector<2x16xf32>
    %540 = arith.mulf %535, %539 : vector<2x16xf32>
    %c54_150 = arith.constant 54 : index
    %c0_151 = arith.constant 0 : index
    %541 = vector.load %arg16[%c54_150, %c0_151] : memref<96x16xf32, #tpu.memory_space<vmem>>, vector<2x16xf32>
    tpu.vector_store %arg16[%c54_150, %c0_151], %540 {strides = array<i32>} : memref<96x16xf32, #tpu.memory_space<vmem>>, vector<2x16xf32>,
    %c56 = arith.constant 56 : index
    %c0_152 = arith.constant 0 : index
    %542 = vector.load %arg15[%c56, %c0_152] : memref<96x64xf32, #tpu.memory_space<vmem>>, vector<2x64xf32>
    %cst_153 = arith.constant dense<0.000000e+00> : vector<2x64xf32>
    %543 = tpu.matmul %540, %7, %cst_153 {dimension_numbers = #tpu.dot_dimension_numbers<[1], [0], [0], [1], [0, 0, 1, 1], [], []>} : vector<2x16xf32>, vector<16x64xf32>, vector<2x64xf32> -> vector<2x64xf32>
    %544 = arith.addf %542, %543 : vector<2x64xf32>
    %545 = arith.negf %544 : vector<2x64xf32>
    %546 = math.exp %545 : vector<2x64xf32>
    %cst_154 = arith.constant 1.000000e+00 : f32
    %547 = vector.broadcast %cst_154 : f32 to vector<2x64xf32>
    %548 = arith.addf %547, %546 : vector<2x64xf32>
    %549 = arith.divf %547, %548 : vector<2x64xf32>
    %550 = math.tanh %544 : vector<2x64xf32>
    %551 = vector.extract_strided_slice %549 {offsets = [0, 0], sizes = [2, 16], strides = [1, 1]} : vector<2x64xf32> to vector<2x16xf32>
    %552 = vector.extract_strided_slice %549 {offsets = [0, 16], sizes = [2, 16], strides = [1, 1]} : vector<2x64xf32> to vector<2x16xf32>
    %553 = vector.extract_strided_slice %550 {offsets = [0, 32], sizes = [2, 16], strides = [1, 1]} : vector<2x64xf32> to vector<2x16xf32>
    %554 = vector.extract_strided_slice %549 {offsets = [0, 48], sizes = [2, 16], strides = [1, 1]} : vector<2x64xf32> to vector<2x16xf32>
    %555 = arith.mulf %552, %538 : vector<2x16xf32>
    %556 = arith.mulf %551, %553 : vector<2x16xf32>
    %557 = arith.addf %555, %556 : vector<2x16xf32>
    %558 = math.tanh %557 : vector<2x16xf32>
    %559 = arith.mulf %554, %558 : vector<2x16xf32>
    %c56_155 = arith.constant 56 : index
    %c0_156 = arith.constant 0 : index
    %560 = vector.load %arg16[%c56_155, %c0_156] : memref<96x16xf32, #tpu.memory_space<vmem>>, vector<2x16xf32>
    tpu.vector_store %arg16[%c56_155, %c0_156], %559 {strides = array<i32>} : memref<96x16xf32, #tpu.memory_space<vmem>>, vector<2x16xf32>,
    %c58 = arith.constant 58 : index
    %c0_157 = arith.constant 0 : index
    %561 = vector.load %arg15[%c58, %c0_157] : memref<96x64xf32, #tpu.memory_space<vmem>>, vector<2x64xf32>
    %cst_158 = arith.constant dense<0.000000e+00> : vector<2x64xf32>
    %562 = tpu.matmul %559, %7, %cst_158 {dimension_numbers = #tpu.dot_dimension_numbers<[1], [0], [0], [1], [0, 0, 1, 1], [], []>} : vector<2x16xf32>, vector<16x64xf32>, vector<2x64xf32> -> vector<2x64xf32>
    %563 = arith.addf %561, %562 : vector<2x64xf32>
    %564 = arith.negf %563 : vector<2x64xf32>
    %565 = math.exp %564 : vector<2x64xf32>
    %cst_159 = arith.constant 1.000000e+00 : f32
    %566 = vector.broadcast %cst_159 : f32 to vector<2x64xf32>
    %567 = arith.addf %566, %565 : vector<2x64xf32>
    %568 = arith.divf %566, %567 : vector<2x64xf32>
    %569 = math.tanh %563 : vector<2x64xf32>
    %570 = vector.extract_strided_slice %568 {offsets = [0, 0], sizes = [2, 16], strides = [1, 1]} : vector<2x64xf32> to vector<2x16xf32>
    %571 = vector.extract_strided_slice %568 {offsets = [0, 16], sizes = [2, 16], strides = [1, 1]} : vector<2x64xf32> to vector<2x16xf32>
    %572 = vector.extract_strided_slice %569 {offsets = [0, 32], sizes = [2, 16], strides = [1, 1]} : vector<2x64xf32> to vector<2x16xf32>
    %573 = vector.extract_strided_slice %568 {offsets = [0, 48], sizes = [2, 16], strides = [1, 1]} : vector<2x64xf32> to vector<2x16xf32>
    %574 = arith.mulf %571, %557 : vector<2x16xf32>
    %575 = arith.mulf %570, %572 : vector<2x16xf32>
    %576 = arith.addf %574, %575 : vector<2x16xf32>
    %577 = math.tanh %576 : vector<2x16xf32>
    %578 = arith.mulf %573, %577 : vector<2x16xf32>
    %c58_160 = arith.constant 58 : index
    %c0_161 = arith.constant 0 : index
    %579 = vector.load %arg16[%c58_160, %c0_161] : memref<96x16xf32, #tpu.memory_space<vmem>>, vector<2x16xf32>
    tpu.vector_store %arg16[%c58_160, %c0_161], %578 {strides = array<i32>} : memref<96x16xf32, #tpu.memory_space<vmem>>, vector<2x16xf32>,
    %c60 = arith.constant 60 : index
    %c0_162 = arith.constant 0 : index
    %580 = vector.load %arg15[%c60, %c0_162] : memref<96x64xf32, #tpu.memory_space<vmem>>, vector<2x64xf32>
    %cst_163 = arith.constant dense<0.000000e+00> : vector<2x64xf32>
    %581 = tpu.matmul %578, %7, %cst_163 {dimension_numbers = #tpu.dot_dimension_numbers<[1], [0], [0], [1], [0, 0, 1, 1], [], []>} : vector<2x16xf32>, vector<16x64xf32>, vector<2x64xf32> -> vector<2x64xf32>
    %582 = arith.addf %580, %581 : vector<2x64xf32>
    %583 = arith.negf %582 : vector<2x64xf32>
    %584 = math.exp %583 : vector<2x64xf32>
    %cst_164 = arith.constant 1.000000e+00 : f32
    %585 = vector.broadcast %cst_164 : f32 to vector<2x64xf32>
    %586 = arith.addf %585, %584 : vector<2x64xf32>
    %587 = arith.divf %585, %586 : vector<2x64xf32>
    %588 = math.tanh %582 : vector<2x64xf32>
    %589 = vector.extract_strided_slice %587 {offsets = [0, 0], sizes = [2, 16], strides = [1, 1]} : vector<2x64xf32> to vector<2x16xf32>
    %590 = vector.extract_strided_slice %587 {offsets = [0, 16], sizes = [2, 16], strides = [1, 1]} : vector<2x64xf32> to vector<2x16xf32>
    %591 = vector.extract_strided_slice %588 {offsets = [0, 32], sizes = [2, 16], strides = [1, 1]} : vector<2x64xf32> to vector<2x16xf32>
    %592 = vector.extract_strided_slice %587 {offsets = [0, 48], sizes = [2, 16], strides = [1, 1]} : vector<2x64xf32> to vector<2x16xf32>
    %593 = arith.mulf %590, %576 : vector<2x16xf32>
    %594 = arith.mulf %589, %591 : vector<2x16xf32>
    %595 = arith.addf %593, %594 : vector<2x16xf32>
    %596 = math.tanh %595 : vector<2x16xf32>
    %597 = arith.mulf %592, %596 : vector<2x16xf32>
    %c60_165 = arith.constant 60 : index
    %c0_166 = arith.constant 0 : index
    %598 = vector.load %arg16[%c60_165, %c0_166] : memref<96x16xf32, #tpu.memory_space<vmem>>, vector<2x16xf32>
    tpu.vector_store %arg16[%c60_165, %c0_166], %597 {strides = array<i32>} : memref<96x16xf32, #tpu.memory_space<vmem>>, vector<2x16xf32>,
    %c62 = arith.constant 62 : index
    %c0_167 = arith.constant 0 : index
    %599 = vector.load %arg15[%c62, %c0_167] : memref<96x64xf32, #tpu.memory_space<vmem>>, vector<2x64xf32>
    %cst_168 = arith.constant dense<0.000000e+00> : vector<2x64xf32>
    %600 = tpu.matmul %597, %7, %cst_168 {dimension_numbers = #tpu.dot_dimension_numbers<[1], [0], [0], [1], [0, 0, 1, 1], [], []>} : vector<2x16xf32>, vector<16x64xf32>, vector<2x64xf32> -> vector<2x64xf32>
    %601 = arith.addf %599, %600 : vector<2x64xf32>
    %602 = arith.negf %601 : vector<2x64xf32>
    %603 = math.exp %602 : vector<2x64xf32>
    %cst_169 = arith.constant 1.000000e+00 : f32
    %604 = vector.broadcast %cst_169 : f32 to vector<2x64xf32>
    %605 = arith.addf %604, %603 : vector<2x64xf32>
    %606 = arith.divf %604, %605 : vector<2x64xf32>
    %607 = math.tanh %601 : vector<2x64xf32>
    %608 = vector.extract_strided_slice %606 {offsets = [0, 0], sizes = [2, 16], strides = [1, 1]} : vector<2x64xf32> to vector<2x16xf32>
    %609 = vector.extract_strided_slice %606 {offsets = [0, 16], sizes = [2, 16], strides = [1, 1]} : vector<2x64xf32> to vector<2x16xf32>
    %610 = vector.extract_strided_slice %607 {offsets = [0, 32], sizes = [2, 16], strides = [1, 1]} : vector<2x64xf32> to vector<2x16xf32>
    %611 = vector.extract_strided_slice %606 {offsets = [0, 48], sizes = [2, 16], strides = [1, 1]} : vector<2x64xf32> to vector<2x16xf32>
    %612 = arith.mulf %609, %595 : vector<2x16xf32>
    %613 = arith.mulf %608, %610 : vector<2x16xf32>
    %614 = arith.addf %612, %613 : vector<2x16xf32>
    %615 = math.tanh %614 : vector<2x16xf32>
    %616 = arith.mulf %611, %615 : vector<2x16xf32>
    %c62_170 = arith.constant 62 : index
    %c0_171 = arith.constant 0 : index
    %617 = vector.load %arg16[%c62_170, %c0_171] : memref<96x16xf32, #tpu.memory_space<vmem>>, vector<2x16xf32>
    tpu.vector_store %arg16[%c62_170, %c0_171], %616 {strides = array<i32>} : memref<96x16xf32, #tpu.memory_space<vmem>>, vector<2x16xf32>,
    %c64 = arith.constant 64 : index
    %c0_172 = arith.constant 0 : index
    %618 = vector.load %arg15[%c64, %c0_172] : memref<96x64xf32, #tpu.memory_space<vmem>>, vector<2x64xf32>
    %cst_173 = arith.constant dense<0.000000e+00> : vector<2x64xf32>
    %619 = tpu.matmul %616, %7, %cst_173 {dimension_numbers = #tpu.dot_dimension_numbers<[1], [0], [0], [1], [0, 0, 1, 1], [], []>} : vector<2x16xf32>, vector<16x64xf32>, vector<2x64xf32> -> vector<2x64xf32>
    %620 = arith.addf %618, %619 : vector<2x64xf32>
    %621 = arith.negf %620 : vector<2x64xf32>
    %622 = math.exp %621 : vector<2x64xf32>
    %cst_174 = arith.constant 1.000000e+00 : f32
    %623 = vector.broadcast %cst_174 : f32 to vector<2x64xf32>
    %624 = arith.addf %623, %622 : vector<2x64xf32>
    %625 = arith.divf %623, %624 : vector<2x64xf32>
    %626 = math.tanh %620 : vector<2x64xf32>
    %627 = vector.extract_strided_slice %625 {offsets = [0, 0], sizes = [2, 16], strides = [1, 1]} : vector<2x64xf32> to vector<2x16xf32>
    %628 = vector.extract_strided_slice %625 {offsets = [0, 16], sizes = [2, 16], strides = [1, 1]} : vector<2x64xf32> to vector<2x16xf32>
    %629 = vector.extract_strided_slice %626 {offsets = [0, 32], sizes = [2, 16], strides = [1, 1]} : vector<2x64xf32> to vector<2x16xf32>
    %630 = vector.extract_strided_slice %625 {offsets = [0, 48], sizes = [2, 16], strides = [1, 1]} : vector<2x64xf32> to vector<2x16xf32>
    %631 = arith.mulf %628, %614 : vector<2x16xf32>
    %632 = arith.mulf %627, %629 : vector<2x16xf32>
    %633 = arith.addf %631, %632 : vector<2x16xf32>
    %634 = math.tanh %633 : vector<2x16xf32>
    %635 = arith.mulf %630, %634 : vector<2x16xf32>
    %c64_175 = arith.constant 64 : index
    %c0_176 = arith.constant 0 : index
    %636 = vector.load %arg16[%c64_175, %c0_176] : memref<96x16xf32, #tpu.memory_space<vmem>>, vector<2x16xf32>
    tpu.vector_store %arg16[%c64_175, %c0_176], %635 {strides = array<i32>} : memref<96x16xf32, #tpu.memory_space<vmem>>, vector<2x16xf32>,
    %c66 = arith.constant 66 : index
    %c0_177 = arith.constant 0 : index
    %637 = vector.load %arg15[%c66, %c0_177] : memref<96x64xf32, #tpu.memory_space<vmem>>, vector<2x64xf32>
    %cst_178 = arith.constant dense<0.000000e+00> : vector<2x64xf32>
    %638 = tpu.matmul %635, %7, %cst_178 {dimension_numbers = #tpu.dot_dimension_numbers<[1], [0], [0], [1], [0, 0, 1, 1], [], []>} : vector<2x16xf32>, vector<16x64xf32>, vector<2x64xf32> -> vector<2x64xf32>
    %639 = arith.addf %637, %638 : vector<2x64xf32>
    %640 = arith.negf %639 : vector<2x64xf32>
    %641 = math.exp %640 : vector<2x64xf32>
    %cst_179 = arith.constant 1.000000e+00 : f32
    %642 = vector.broadcast %cst_179 : f32 to vector<2x64xf32>
    %643 = arith.addf %642, %641 : vector<2x64xf32>
    %644 = arith.divf %642, %643 : vector<2x64xf32>
    %645 = math.tanh %639 : vector<2x64xf32>
    %646 = vector.extract_strided_slice %644 {offsets = [0, 0], sizes = [2, 16], strides = [1, 1]} : vector<2x64xf32> to vector<2x16xf32>
    %647 = vector.extract_strided_slice %644 {offsets = [0, 16], sizes = [2, 16], strides = [1, 1]} : vector<2x64xf32> to vector<2x16xf32>
    %648 = vector.extract_strided_slice %645 {offsets = [0, 32], sizes = [2, 16], strides = [1, 1]} : vector<2x64xf32> to vector<2x16xf32>
    %649 = vector.extract_strided_slice %644 {offsets = [0, 48], sizes = [2, 16], strides = [1, 1]} : vector<2x64xf32> to vector<2x16xf32>
    %650 = arith.mulf %647, %633 : vector<2x16xf32>
    %651 = arith.mulf %646, %648 : vector<2x16xf32>
    %652 = arith.addf %650, %651 : vector<2x16xf32>
    %653 = math.tanh %652 : vector<2x16xf32>
    %654 = arith.mulf %649, %653 : vector<2x16xf32>
    %c66_180 = arith.constant 66 : index
    %c0_181 = arith.constant 0 : index
    %655 = vector.load %arg16[%c66_180, %c0_181] : memref<96x16xf32, #tpu.memory_space<vmem>>, vector<2x16xf32>
    tpu.vector_store %arg16[%c66_180, %c0_181], %654 {strides = array<i32>} : memref<96x16xf32, #tpu.memory_space<vmem>>, vector<2x16xf32>,
    %c68 = arith.constant 68 : index
    %c0_182 = arith.constant 0 : index
    %656 = vector.load %arg15[%c68, %c0_182] : memref<96x64xf32, #tpu.memory_space<vmem>>, vector<2x64xf32>
    %cst_183 = arith.constant dense<0.000000e+00> : vector<2x64xf32>
    %657 = tpu.matmul %654, %7, %cst_183 {dimension_numbers = #tpu.dot_dimension_numbers<[1], [0], [0], [1], [0, 0, 1, 1], [], []>} : vector<2x16xf32>, vector<16x64xf32>, vector<2x64xf32> -> vector<2x64xf32>
    %658 = arith.addf %656, %657 : vector<2x64xf32>
    %659 = arith.negf %658 : vector<2x64xf32>
    %660 = math.exp %659 : vector<2x64xf32>
    %cst_184 = arith.constant 1.000000e+00 : f32
    %661 = vector.broadcast %cst_184 : f32 to vector<2x64xf32>
    %662 = arith.addf %661, %660 : vector<2x64xf32>
    %663 = arith.divf %661, %662 : vector<2x64xf32>
    %664 = math.tanh %658 : vector<2x64xf32>
    %665 = vector.extract_strided_slice %663 {offsets = [0, 0], sizes = [2, 16], strides = [1, 1]} : vector<2x64xf32> to vector<2x16xf32>
    %666 = vector.extract_strided_slice %663 {offsets = [0, 16], sizes = [2, 16], strides = [1, 1]} : vector<2x64xf32> to vector<2x16xf32>
    %667 = vector.extract_strided_slice %664 {offsets = [0, 32], sizes = [2, 16], strides = [1, 1]} : vector<2x64xf32> to vector<2x16xf32>
    %668 = vector.extract_strided_slice %663 {offsets = [0, 48], sizes = [2, 16], strides = [1, 1]} : vector<2x64xf32> to vector<2x16xf32>
    %669 = arith.mulf %666, %652 : vector<2x16xf32>
    %670 = arith.mulf %665, %667 : vector<2x16xf32>
    %671 = arith.addf %669, %670 : vector<2x16xf32>
    %672 = math.tanh %671 : vector<2x16xf32>
    %673 = arith.mulf %668, %672 : vector<2x16xf32>
    %c68_185 = arith.constant 68 : index
    %c0_186 = arith.constant 0 : index
    %674 = vector.load %arg16[%c68_185, %c0_186] : memref<96x16xf32, #tpu.memory_space<vmem>>, vector<2x16xf32>
    tpu.vector_store %arg16[%c68_185, %c0_186], %673 {strides = array<i32>} : memref<96x16xf32, #tpu.memory_space<vmem>>, vector<2x16xf32>,
    %c70 = arith.constant 70 : index
    %c0_187 = arith.constant 0 : index
    %675 = vector.load %arg15[%c70, %c0_187] : memref<96x64xf32, #tpu.memory_space<vmem>>, vector<2x64xf32>
    %cst_188 = arith.constant dense<0.000000e+00> : vector<2x64xf32>
    %676 = tpu.matmul %673, %7, %cst_188 {dimension_numbers = #tpu.dot_dimension_numbers<[1], [0], [0], [1], [0, 0, 1, 1], [], []>} : vector<2x16xf32>, vector<16x64xf32>, vector<2x64xf32> -> vector<2x64xf32>
    %677 = arith.addf %675, %676 : vector<2x64xf32>
    %678 = arith.negf %677 : vector<2x64xf32>
    %679 = math.exp %678 : vector<2x64xf32>
    %cst_189 = arith.constant 1.000000e+00 : f32
    %680 = vector.broadcast %cst_189 : f32 to vector<2x64xf32>
    %681 = arith.addf %680, %679 : vector<2x64xf32>
    %682 = arith.divf %680, %681 : vector<2x64xf32>
    %683 = math.tanh %677 : vector<2x64xf32>
    %684 = vector.extract_strided_slice %682 {offsets = [0, 0], sizes = [2, 16], strides = [1, 1]} : vector<2x64xf32> to vector<2x16xf32>
    %685 = vector.extract_strided_slice %682 {offsets = [0, 16], sizes = [2, 16], strides = [1, 1]} : vector<2x64xf32> to vector<2x16xf32>
    %686 = vector.extract_strided_slice %683 {offsets = [0, 32], sizes = [2, 16], strides = [1, 1]} : vector<2x64xf32> to vector<2x16xf32>
    %687 = vector.extract_strided_slice %682 {offsets = [0, 48], sizes = [2, 16], strides = [1, 1]} : vector<2x64xf32> to vector<2x16xf32>
    %688 = arith.mulf %685, %671 : vector<2x16xf32>
    %689 = arith.mulf %684, %686 : vector<2x16xf32>
    %690 = arith.addf %688, %689 : vector<2x16xf32>
    %691 = math.tanh %690 : vector<2x16xf32>
    %692 = arith.mulf %687, %691 : vector<2x16xf32>
    %c70_190 = arith.constant 70 : index
    %c0_191 = arith.constant 0 : index
    %693 = vector.load %arg16[%c70_190, %c0_191] : memref<96x16xf32, #tpu.memory_space<vmem>>, vector<2x16xf32>
    tpu.vector_store %arg16[%c70_190, %c0_191], %692 {strides = array<i32>} : memref<96x16xf32, #tpu.memory_space<vmem>>, vector<2x16xf32>,
    %c72 = arith.constant 72 : index
    %c0_192 = arith.constant 0 : index
    %694 = vector.load %arg15[%c72, %c0_192] : memref<96x64xf32, #tpu.memory_space<vmem>>, vector<2x64xf32>
    %cst_193 = arith.constant dense<0.000000e+00> : vector<2x64xf32>
    %695 = tpu.matmul %692, %7, %cst_193 {dimension_numbers = #tpu.dot_dimension_numbers<[1], [0], [0], [1], [0, 0, 1, 1], [], []>} : vector<2x16xf32>, vector<16x64xf32>, vector<2x64xf32> -> vector<2x64xf32>
    %696 = arith.addf %694, %695 : vector<2x64xf32>
    %697 = arith.negf %696 : vector<2x64xf32>
    %698 = math.exp %697 : vector<2x64xf32>
    %cst_194 = arith.constant 1.000000e+00 : f32
    %699 = vector.broadcast %cst_194 : f32 to vector<2x64xf32>
    %700 = arith.addf %699, %698 : vector<2x64xf32>
    %701 = arith.divf %699, %700 : vector<2x64xf32>
    %702 = math.tanh %696 : vector<2x64xf32>
    %703 = vector.extract_strided_slice %701 {offsets = [0, 0], sizes = [2, 16], strides = [1, 1]} : vector<2x64xf32> to vector<2x16xf32>
    %704 = vector.extract_strided_slice %701 {offsets = [0, 16], sizes = [2, 16], strides = [1, 1]} : vector<2x64xf32> to vector<2x16xf32>
    %705 = vector.extract_strided_slice %702 {offsets = [0, 32], sizes = [2, 16], strides = [1, 1]} : vector<2x64xf32> to vector<2x16xf32>
    %706 = vector.extract_strided_slice %701 {offsets = [0, 48], sizes = [2, 16], strides = [1, 1]} : vector<2x64xf32> to vector<2x16xf32>
    %707 = arith.mulf %704, %690 : vector<2x16xf32>
    %708 = arith.mulf %703, %705 : vector<2x16xf32>
    %709 = arith.addf %707, %708 : vector<2x16xf32>
    %710 = math.tanh %709 : vector<2x16xf32>
    %711 = arith.mulf %706, %710 : vector<2x16xf32>
    %c72_195 = arith.constant 72 : index
    %c0_196 = arith.constant 0 : index
    %712 = vector.load %arg16[%c72_195, %c0_196] : memref<96x16xf32, #tpu.memory_space<vmem>>, vector<2x16xf32>
    tpu.vector_store %arg16[%c72_195, %c0_196], %711 {strides = array<i32>} : memref<96x16xf32, #tpu.memory_space<vmem>>, vector<2x16xf32>,
    %c74 = arith.constant 74 : index
    %c0_197 = arith.constant 0 : index
    %713 = vector.load %arg15[%c74, %c0_197] : memref<96x64xf32, #tpu.memory_space<vmem>>, vector<2x64xf32>
    %cst_198 = arith.constant dense<0.000000e+00> : vector<2x64xf32>
    %714 = tpu.matmul %711, %7, %cst_198 {dimension_numbers = #tpu.dot_dimension_numbers<[1], [0], [0], [1], [0, 0, 1, 1], [], []>} : vector<2x16xf32>, vector<16x64xf32>, vector<2x64xf32> -> vector<2x64xf32>
    %715 = arith.addf %713, %714 : vector<2x64xf32>
    %716 = arith.negf %715 : vector<2x64xf32>
    %717 = math.exp %716 : vector<2x64xf32>
    %cst_199 = arith.constant 1.000000e+00 : f32
    %718 = vector.broadcast %cst_199 : f32 to vector<2x64xf32>
    %719 = arith.addf %718, %717 : vector<2x64xf32>
    %720 = arith.divf %718, %719 : vector<2x64xf32>
    %721 = math.tanh %715 : vector<2x64xf32>
    %722 = vector.extract_strided_slice %720 {offsets = [0, 0], sizes = [2, 16], strides = [1, 1]} : vector<2x64xf32> to vector<2x16xf32>
    %723 = vector.extract_strided_slice %720 {offsets = [0, 16], sizes = [2, 16], strides = [1, 1]} : vector<2x64xf32> to vector<2x16xf32>
    %724 = vector.extract_strided_slice %721 {offsets = [0, 32], sizes = [2, 16], strides = [1, 1]} : vector<2x64xf32> to vector<2x16xf32>
    %725 = vector.extract_strided_slice %720 {offsets = [0, 48], sizes = [2, 16], strides = [1, 1]} : vector<2x64xf32> to vector<2x16xf32>
    %726 = arith.mulf %723, %709 : vector<2x16xf32>
    %727 = arith.mulf %722, %724 : vector<2x16xf32>
    %728 = arith.addf %726, %727 : vector<2x16xf32>
    %729 = math.tanh %728 : vector<2x16xf32>
    %730 = arith.mulf %725, %729 : vector<2x16xf32>
    %c74_200 = arith.constant 74 : index
    %c0_201 = arith.constant 0 : index
    %731 = vector.load %arg16[%c74_200, %c0_201] : memref<96x16xf32, #tpu.memory_space<vmem>>, vector<2x16xf32>
    tpu.vector_store %arg16[%c74_200, %c0_201], %730 {strides = array<i32>} : memref<96x16xf32, #tpu.memory_space<vmem>>, vector<2x16xf32>,
    %c76 = arith.constant 76 : index
    %c0_202 = arith.constant 0 : index
    %732 = vector.load %arg15[%c76, %c0_202] : memref<96x64xf32, #tpu.memory_space<vmem>>, vector<2x64xf32>
    %cst_203 = arith.constant dense<0.000000e+00> : vector<2x64xf32>
    %733 = tpu.matmul %730, %7, %cst_203 {dimension_numbers = #tpu.dot_dimension_numbers<[1], [0], [0], [1], [0, 0, 1, 1], [], []>} : vector<2x16xf32>, vector<16x64xf32>, vector<2x64xf32> -> vector<2x64xf32>
    %734 = arith.addf %732, %733 : vector<2x64xf32>
    %735 = arith.negf %734 : vector<2x64xf32>
    %736 = math.exp %735 : vector<2x64xf32>
    %cst_204 = arith.constant 1.000000e+00 : f32
    %737 = vector.broadcast %cst_204 : f32 to vector<2x64xf32>
    %738 = arith.addf %737, %736 : vector<2x64xf32>
    %739 = arith.divf %737, %738 : vector<2x64xf32>
    %740 = math.tanh %734 : vector<2x64xf32>
    %741 = vector.extract_strided_slice %739 {offsets = [0, 0], sizes = [2, 16], strides = [1, 1]} : vector<2x64xf32> to vector<2x16xf32>
    %742 = vector.extract_strided_slice %739 {offsets = [0, 16], sizes = [2, 16], strides = [1, 1]} : vector<2x64xf32> to vector<2x16xf32>
    %743 = vector.extract_strided_slice %740 {offsets = [0, 32], sizes = [2, 16], strides = [1, 1]} : vector<2x64xf32> to vector<2x16xf32>
    %744 = vector.extract_strided_slice %739 {offsets = [0, 48], sizes = [2, 16], strides = [1, 1]} : vector<2x64xf32> to vector<2x16xf32>
    %745 = arith.mulf %742, %728 : vector<2x16xf32>
    %746 = arith.mulf %741, %743 : vector<2x16xf32>
    %747 = arith.addf %745, %746 : vector<2x16xf32>
    %748 = math.tanh %747 : vector<2x16xf32>
    %749 = arith.mulf %744, %748 : vector<2x16xf32>
    %c76_205 = arith.constant 76 : index
    %c0_206 = arith.constant 0 : index
    %750 = vector.load %arg16[%c76_205, %c0_206] : memref<96x16xf32, #tpu.memory_space<vmem>>, vector<2x16xf32>
    tpu.vector_store %arg16[%c76_205, %c0_206], %749 {strides = array<i32>} : memref<96x16xf32, #tpu.memory_space<vmem>>, vector<2x16xf32>,
    %c78 = arith.constant 78 : index
    %c0_207 = arith.constant 0 : index
    %751 = vector.load %arg15[%c78, %c0_207] : memref<96x64xf32, #tpu.memory_space<vmem>>, vector<2x64xf32>
    %cst_208 = arith.constant dense<0.000000e+00> : vector<2x64xf32>
    %752 = tpu.matmul %749, %7, %cst_208 {dimension_numbers = #tpu.dot_dimension_numbers<[1], [0], [0], [1], [0, 0, 1, 1], [], []>} : vector<2x16xf32>, vector<16x64xf32>, vector<2x64xf32> -> vector<2x64xf32>
    %753 = arith.addf %751, %752 : vector<2x64xf32>
    %754 = arith.negf %753 : vector<2x64xf32>
    %755 = math.exp %754 : vector<2x64xf32>
    %cst_209 = arith.constant 1.000000e+00 : f32
    %756 = vector.broadcast %cst_209 : f32 to vector<2x64xf32>
    %757 = arith.addf %756, %755 : vector<2x64xf32>
    %758 = arith.divf %756, %757 : vector<2x64xf32>
    %759 = math.tanh %753 : vector<2x64xf32>
    %760 = vector.extract_strided_slice %758 {offsets = [0, 0], sizes = [2, 16], strides = [1, 1]} : vector<2x64xf32> to vector<2x16xf32>
    %761 = vector.extract_strided_slice %758 {offsets = [0, 16], sizes = [2, 16], strides = [1, 1]} : vector<2x64xf32> to vector<2x16xf32>
    %762 = vector.extract_strided_slice %759 {offsets = [0, 32], sizes = [2, 16], strides = [1, 1]} : vector<2x64xf32> to vector<2x16xf32>
    %763 = vector.extract_strided_slice %758 {offsets = [0, 48], sizes = [2, 16], strides = [1, 1]} : vector<2x64xf32> to vector<2x16xf32>
    %764 = arith.mulf %761, %747 : vector<2x16xf32>
    %765 = arith.mulf %760, %762 : vector<2x16xf32>
    %766 = arith.addf %764, %765 : vector<2x16xf32>
    %767 = math.tanh %766 : vector<2x16xf32>
    %768 = arith.mulf %763, %767 : vector<2x16xf32>
    %c78_210 = arith.constant 78 : index
    %c0_211 = arith.constant 0 : index
    %769 = vector.load %arg16[%c78_210, %c0_211] : memref<96x16xf32, #tpu.memory_space<vmem>>, vector<2x16xf32>
    tpu.vector_store %arg16[%c78_210, %c0_211], %768 {strides = array<i32>} : memref<96x16xf32, #tpu.memory_space<vmem>>, vector<2x16xf32>,
    %c80 = arith.constant 80 : index
    %c0_212 = arith.constant 0 : index
    %770 = vector.load %arg15[%c80, %c0_212] : memref<96x64xf32, #tpu.memory_space<vmem>>, vector<2x64xf32>
    %cst_213 = arith.constant dense<0.000000e+00> : vector<2x64xf32>
    %771 = tpu.matmul %768, %7, %cst_213 {dimension_numbers = #tpu.dot_dimension_numbers<[1], [0], [0], [1], [0, 0, 1, 1], [], []>} : vector<2x16xf32>, vector<16x64xf32>, vector<2x64xf32> -> vector<2x64xf32>
    %772 = arith.addf %770, %771 : vector<2x64xf32>
    %773 = arith.negf %772 : vector<2x64xf32>
    %774 = math.exp %773 : vector<2x64xf32>
    %cst_214 = arith.constant 1.000000e+00 : f32
    %775 = vector.broadcast %cst_214 : f32 to vector<2x64xf32>
    %776 = arith.addf %775, %774 : vector<2x64xf32>
    %777 = arith.divf %775, %776 : vector<2x64xf32>
    %778 = math.tanh %772 : vector<2x64xf32>
    %779 = vector.extract_strided_slice %777 {offsets = [0, 0], sizes = [2, 16], strides = [1, 1]} : vector<2x64xf32> to vector<2x16xf32>
    %780 = vector.extract_strided_slice %777 {offsets = [0, 16], sizes = [2, 16], strides = [1, 1]} : vector<2x64xf32> to vector<2x16xf32>
    %781 = vector.extract_strided_slice %778 {offsets = [0, 32], sizes = [2, 16], strides = [1, 1]} : vector<2x64xf32> to vector<2x16xf32>
    %782 = vector.extract_strided_slice %777 {offsets = [0, 48], sizes = [2, 16], strides = [1, 1]} : vector<2x64xf32> to vector<2x16xf32>
    %783 = arith.mulf %780, %766 : vector<2x16xf32>
    %784 = arith.mulf %779, %781 : vector<2x16xf32>
    %785 = arith.addf %783, %784 : vector<2x16xf32>
    %786 = math.tanh %785 : vector<2x16xf32>
    %787 = arith.mulf %782, %786 : vector<2x16xf32>
    %c80_215 = arith.constant 80 : index
    %c0_216 = arith.constant 0 : index
    %788 = vector.load %arg16[%c80_215, %c0_216] : memref<96x16xf32, #tpu.memory_space<vmem>>, vector<2x16xf32>
    tpu.vector_store %arg16[%c80_215, %c0_216], %787 {strides = array<i32>} : memref<96x16xf32, #tpu.memory_space<vmem>>, vector<2x16xf32>,
    %c82 = arith.constant 82 : index
    %c0_217 = arith.constant 0 : index
    %789 = vector.load %arg15[%c82, %c0_217] : memref<96x64xf32, #tpu.memory_space<vmem>>, vector<2x64xf32>
    %cst_218 = arith.constant dense<0.000000e+00> : vector<2x64xf32>
    %790 = tpu.matmul %787, %7, %cst_218 {dimension_numbers = #tpu.dot_dimension_numbers<[1], [0], [0], [1], [0, 0, 1, 1], [], []>} : vector<2x16xf32>, vector<16x64xf32>, vector<2x64xf32> -> vector<2x64xf32>
    %791 = arith.addf %789, %790 : vector<2x64xf32>
    %792 = arith.negf %791 : vector<2x64xf32>
    %793 = math.exp %792 : vector<2x64xf32>
    %cst_219 = arith.constant 1.000000e+00 : f32
    %794 = vector.broadcast %cst_219 : f32 to vector<2x64xf32>
    %795 = arith.addf %794, %793 : vector<2x64xf32>
    %796 = arith.divf %794, %795 : vector<2x64xf32>
    %797 = math.tanh %791 : vector<2x64xf32>
    %798 = vector.extract_strided_slice %796 {offsets = [0, 0], sizes = [2, 16], strides = [1, 1]} : vector<2x64xf32> to vector<2x16xf32>
    %799 = vector.extract_strided_slice %796 {offsets = [0, 16], sizes = [2, 16], strides = [1, 1]} : vector<2x64xf32> to vector<2x16xf32>
    %800 = vector.extract_strided_slice %797 {offsets = [0, 32], sizes = [2, 16], strides = [1, 1]} : vector<2x64xf32> to vector<2x16xf32>
    %801 = vector.extract_strided_slice %796 {offsets = [0, 48], sizes = [2, 16], strides = [1, 1]} : vector<2x64xf32> to vector<2x16xf32>
    %802 = arith.mulf %799, %785 : vector<2x16xf32>
    %803 = arith.mulf %798, %800 : vector<2x16xf32>
    %804 = arith.addf %802, %803 : vector<2x16xf32>
    %805 = math.tanh %804 : vector<2x16xf32>
    %806 = arith.mulf %801, %805 : vector<2x16xf32>
    %c82_220 = arith.constant 82 : index
    %c0_221 = arith.constant 0 : index
    %807 = vector.load %arg16[%c82_220, %c0_221] : memref<96x16xf32, #tpu.memory_space<vmem>>, vector<2x16xf32>
    tpu.vector_store %arg16[%c82_220, %c0_221], %806 {strides = array<i32>} : memref<96x16xf32, #tpu.memory_space<vmem>>, vector<2x16xf32>,
    %c84 = arith.constant 84 : index
    %c0_222 = arith.constant 0 : index
    %808 = vector.load %arg15[%c84, %c0_222] : memref<96x64xf32, #tpu.memory_space<vmem>>, vector<2x64xf32>
    %cst_223 = arith.constant dense<0.000000e+00> : vector<2x64xf32>
    %809 = tpu.matmul %806, %7, %cst_223 {dimension_numbers = #tpu.dot_dimension_numbers<[1], [0], [0], [1], [0, 0, 1, 1], [], []>} : vector<2x16xf32>, vector<16x64xf32>, vector<2x64xf32> -> vector<2x64xf32>
    %810 = arith.addf %808, %809 : vector<2x64xf32>
    %811 = arith.negf %810 : vector<2x64xf32>
    %812 = math.exp %811 : vector<2x64xf32>
    %cst_224 = arith.constant 1.000000e+00 : f32
    %813 = vector.broadcast %cst_224 : f32 to vector<2x64xf32>
    %814 = arith.addf %813, %812 : vector<2x64xf32>
    %815 = arith.divf %813, %814 : vector<2x64xf32>
    %816 = math.tanh %810 : vector<2x64xf32>
    %817 = vector.extract_strided_slice %815 {offsets = [0, 0], sizes = [2, 16], strides = [1, 1]} : vector<2x64xf32> to vector<2x16xf32>
    %818 = vector.extract_strided_slice %815 {offsets = [0, 16], sizes = [2, 16], strides = [1, 1]} : vector<2x64xf32> to vector<2x16xf32>
    %819 = vector.extract_strided_slice %816 {offsets = [0, 32], sizes = [2, 16], strides = [1, 1]} : vector<2x64xf32> to vector<2x16xf32>
    %820 = vector.extract_strided_slice %815 {offsets = [0, 48], sizes = [2, 16], strides = [1, 1]} : vector<2x64xf32> to vector<2x16xf32>
    %821 = arith.mulf %818, %804 : vector<2x16xf32>
    %822 = arith.mulf %817, %819 : vector<2x16xf32>
    %823 = arith.addf %821, %822 : vector<2x16xf32>
    %824 = math.tanh %823 : vector<2x16xf32>
    %825 = arith.mulf %820, %824 : vector<2x16xf32>
    %c84_225 = arith.constant 84 : index
    %c0_226 = arith.constant 0 : index
    %826 = vector.load %arg16[%c84_225, %c0_226] : memref<96x16xf32, #tpu.memory_space<vmem>>, vector<2x16xf32>
    tpu.vector_store %arg16[%c84_225, %c0_226], %825 {strides = array<i32>} : memref<96x16xf32, #tpu.memory_space<vmem>>, vector<2x16xf32>,
    %c86 = arith.constant 86 : index
    %c0_227 = arith.constant 0 : index
    %827 = vector.load %arg15[%c86, %c0_227] : memref<96x64xf32, #tpu.memory_space<vmem>>, vector<2x64xf32>
    %cst_228 = arith.constant dense<0.000000e+00> : vector<2x64xf32>
    %828 = tpu.matmul %825, %7, %cst_228 {dimension_numbers = #tpu.dot_dimension_numbers<[1], [0], [0], [1], [0, 0, 1, 1], [], []>} : vector<2x16xf32>, vector<16x64xf32>, vector<2x64xf32> -> vector<2x64xf32>
    %829 = arith.addf %827, %828 : vector<2x64xf32>
    %830 = arith.negf %829 : vector<2x64xf32>
    %831 = math.exp %830 : vector<2x64xf32>
    %cst_229 = arith.constant 1.000000e+00 : f32
    %832 = vector.broadcast %cst_229 : f32 to vector<2x64xf32>
    %833 = arith.addf %832, %831 : vector<2x64xf32>
    %834 = arith.divf %832, %833 : vector<2x64xf32>
    %835 = math.tanh %829 : vector<2x64xf32>
    %836 = vector.extract_strided_slice %834 {offsets = [0, 0], sizes = [2, 16], strides = [1, 1]} : vector<2x64xf32> to vector<2x16xf32>
    %837 = vector.extract_strided_slice %834 {offsets = [0, 16], sizes = [2, 16], strides = [1, 1]} : vector<2x64xf32> to vector<2x16xf32>
    %838 = vector.extract_strided_slice %835 {offsets = [0, 32], sizes = [2, 16], strides = [1, 1]} : vector<2x64xf32> to vector<2x16xf32>
    %839 = vector.extract_strided_slice %834 {offsets = [0, 48], sizes = [2, 16], strides = [1, 1]} : vector<2x64xf32> to vector<2x16xf32>
    %840 = arith.mulf %837, %823 : vector<2x16xf32>
    %841 = arith.mulf %836, %838 : vector<2x16xf32>
    %842 = arith.addf %840, %841 : vector<2x16xf32>
    %843 = math.tanh %842 : vector<2x16xf32>
    %844 = arith.mulf %839, %843 : vector<2x16xf32>
    %c86_230 = arith.constant 86 : index
    %c0_231 = arith.constant 0 : index
    %845 = vector.load %arg16[%c86_230, %c0_231] : memref<96x16xf32, #tpu.memory_space<vmem>>, vector<2x16xf32>
    tpu.vector_store %arg16[%c86_230, %c0_231], %844 {strides = array<i32>} : memref<96x16xf32, #tpu.memory_space<vmem>>, vector<2x16xf32>,
    %c88 = arith.constant 88 : index
    %c0_232 = arith.constant 0 : index
    %846 = vector.load %arg15[%c88, %c0_232] : memref<96x64xf32, #tpu.memory_space<vmem>>, vector<2x64xf32>
    %cst_233 = arith.constant dense<0.000000e+00> : vector<2x64xf32>
    %847 = tpu.matmul %844, %7, %cst_233 {dimension_numbers = #tpu.dot_dimension_numbers<[1], [0], [0], [1], [0, 0, 1, 1], [], []>} : vector<2x16xf32>, vector<16x64xf32>, vector<2x64xf32> -> vector<2x64xf32>
    %848 = arith.addf %846, %847 : vector<2x64xf32>
    %849 = arith.negf %848 : vector<2x64xf32>
    %850 = math.exp %849 : vector<2x64xf32>
    %cst_234 = arith.constant 1.000000e+00 : f32
    %851 = vector.broadcast %cst_234 : f32 to vector<2x64xf32>
    %852 = arith.addf %851, %850 : vector<2x64xf32>
    %853 = arith.divf %851, %852 : vector<2x64xf32>
    %854 = math.tanh %848 : vector<2x64xf32>
    %855 = vector.extract_strided_slice %853 {offsets = [0, 0], sizes = [2, 16], strides = [1, 1]} : vector<2x64xf32> to vector<2x16xf32>
    %856 = vector.extract_strided_slice %853 {offsets = [0, 16], sizes = [2, 16], strides = [1, 1]} : vector<2x64xf32> to vector<2x16xf32>
    %857 = vector.extract_strided_slice %854 {offsets = [0, 32], sizes = [2, 16], strides = [1, 1]} : vector<2x64xf32> to vector<2x16xf32>
    %858 = vector.extract_strided_slice %853 {offsets = [0, 48], sizes = [2, 16], strides = [1, 1]} : vector<2x64xf32> to vector<2x16xf32>
    %859 = arith.mulf %856, %842 : vector<2x16xf32>
    %860 = arith.mulf %855, %857 : vector<2x16xf32>
    %861 = arith.addf %859, %860 : vector<2x16xf32>
    %862 = math.tanh %861 : vector<2x16xf32>
    %863 = arith.mulf %858, %862 : vector<2x16xf32>
    %c88_235 = arith.constant 88 : index
    %c0_236 = arith.constant 0 : index
    %864 = vector.load %arg16[%c88_235, %c0_236] : memref<96x16xf32, #tpu.memory_space<vmem>>, vector<2x16xf32>
    tpu.vector_store %arg16[%c88_235, %c0_236], %863 {strides = array<i32>} : memref<96x16xf32, #tpu.memory_space<vmem>>, vector<2x16xf32>,
    %c90 = arith.constant 90 : index
    %c0_237 = arith.constant 0 : index
    %865 = vector.load %arg15[%c90, %c0_237] : memref<96x64xf32, #tpu.memory_space<vmem>>, vector<2x64xf32>
    %cst_238 = arith.constant dense<0.000000e+00> : vector<2x64xf32>
    %866 = tpu.matmul %863, %7, %cst_238 {dimension_numbers = #tpu.dot_dimension_numbers<[1], [0], [0], [1], [0, 0, 1, 1], [], []>} : vector<2x16xf32>, vector<16x64xf32>, vector<2x64xf32> -> vector<2x64xf32>
    %867 = arith.addf %865, %866 : vector<2x64xf32>
    %868 = arith.negf %867 : vector<2x64xf32>
    %869 = math.exp %868 : vector<2x64xf32>
    %cst_239 = arith.constant 1.000000e+00 : f32
    %870 = vector.broadcast %cst_239 : f32 to vector<2x64xf32>
    %871 = arith.addf %870, %869 : vector<2x64xf32>
    %872 = arith.divf %870, %871 : vector<2x64xf32>
    %873 = math.tanh %867 : vector<2x64xf32>
    %874 = vector.extract_strided_slice %872 {offsets = [0, 0], sizes = [2, 16], strides = [1, 1]} : vector<2x64xf32> to vector<2x16xf32>
    %875 = vector.extract_strided_slice %872 {offsets = [0, 16], sizes = [2, 16], strides = [1, 1]} : vector<2x64xf32> to vector<2x16xf32>
    %876 = vector.extract_strided_slice %873 {offsets = [0, 32], sizes = [2, 16], strides = [1, 1]} : vector<2x64xf32> to vector<2x16xf32>
    %877 = vector.extract_strided_slice %872 {offsets = [0, 48], sizes = [2, 16], strides = [1, 1]} : vector<2x64xf32> to vector<2x16xf32>
    %878 = arith.mulf %875, %861 : vector<2x16xf32>
    %879 = arith.mulf %874, %876 : vector<2x16xf32>
    %880 = arith.addf %878, %879 : vector<2x16xf32>
    %881 = math.tanh %880 : vector<2x16xf32>
    %882 = arith.mulf %877, %881 : vector<2x16xf32>
    %c90_240 = arith.constant 90 : index
    %c0_241 = arith.constant 0 : index
    %883 = vector.load %arg16[%c90_240, %c0_241] : memref<96x16xf32, #tpu.memory_space<vmem>>, vector<2x16xf32>
    tpu.vector_store %arg16[%c90_240, %c0_241], %882 {strides = array<i32>} : memref<96x16xf32, #tpu.memory_space<vmem>>, vector<2x16xf32>,
    %c92 = arith.constant 92 : index
    %c0_242 = arith.constant 0 : index
    %884 = vector.load %arg15[%c92, %c0_242] : memref<96x64xf32, #tpu.memory_space<vmem>>, vector<2x64xf32>
    %cst_243 = arith.constant dense<0.000000e+00> : vector<2x64xf32>
    %885 = tpu.matmul %882, %7, %cst_243 {dimension_numbers = #tpu.dot_dimension_numbers<[1], [0], [0], [1], [0, 0, 1, 1], [], []>} : vector<2x16xf32>, vector<16x64xf32>, vector<2x64xf32> -> vector<2x64xf32>
    %886 = arith.addf %884, %885 : vector<2x64xf32>
    %887 = arith.negf %886 : vector<2x64xf32>
    %888 = math.exp %887 : vector<2x64xf32>
    %cst_244 = arith.constant 1.000000e+00 : f32
    %889 = vector.broadcast %cst_244 : f32 to vector<2x64xf32>
    %890 = arith.addf %889, %888 : vector<2x64xf32>
    %891 = arith.divf %889, %890 : vector<2x64xf32>
    %892 = math.tanh %886 : vector<2x64xf32>
    %893 = vector.extract_strided_slice %891 {offsets = [0, 0], sizes = [2, 16], strides = [1, 1]} : vector<2x64xf32> to vector<2x16xf32>
    %894 = vector.extract_strided_slice %891 {offsets = [0, 16], sizes = [2, 16], strides = [1, 1]} : vector<2x64xf32> to vector<2x16xf32>
    %895 = vector.extract_strided_slice %892 {offsets = [0, 32], sizes = [2, 16], strides = [1, 1]} : vector<2x64xf32> to vector<2x16xf32>
    %896 = vector.extract_strided_slice %891 {offsets = [0, 48], sizes = [2, 16], strides = [1, 1]} : vector<2x64xf32> to vector<2x16xf32>
    %897 = arith.mulf %894, %880 : vector<2x16xf32>
    %898 = arith.mulf %893, %895 : vector<2x16xf32>
    %899 = arith.addf %897, %898 : vector<2x16xf32>
    %900 = math.tanh %899 : vector<2x16xf32>
    %901 = arith.mulf %896, %900 : vector<2x16xf32>
    %c92_245 = arith.constant 92 : index
    %c0_246 = arith.constant 0 : index
    %902 = vector.load %arg16[%c92_245, %c0_246] : memref<96x16xf32, #tpu.memory_space<vmem>>, vector<2x16xf32>
    tpu.vector_store %arg16[%c92_245, %c0_246], %901 {strides = array<i32>} : memref<96x16xf32, #tpu.memory_space<vmem>>, vector<2x16xf32>,
    %c94 = arith.constant 94 : index
    %c0_247 = arith.constant 0 : index
    %903 = vector.load %arg15[%c94, %c0_247] : memref<96x64xf32, #tpu.memory_space<vmem>>, vector<2x64xf32>
    %cst_248 = arith.constant dense<0.000000e+00> : vector<2x64xf32>
    %904 = tpu.matmul %901, %7, %cst_248 {dimension_numbers = #tpu.dot_dimension_numbers<[1], [0], [0], [1], [0, 0, 1, 1], [], []>} : vector<2x16xf32>, vector<16x64xf32>, vector<2x64xf32> -> vector<2x64xf32>
    %905 = arith.addf %903, %904 : vector<2x64xf32>
    %906 = arith.negf %905 : vector<2x64xf32>
    %907 = math.exp %906 : vector<2x64xf32>
    %cst_249 = arith.constant 1.000000e+00 : f32
    %908 = vector.broadcast %cst_249 : f32 to vector<2x64xf32>
    %909 = arith.addf %908, %907 : vector<2x64xf32>
    %910 = arith.divf %908, %909 : vector<2x64xf32>
    %911 = math.tanh %905 : vector<2x64xf32>
    %912 = vector.extract_strided_slice %910 {offsets = [0, 0], sizes = [2, 16], strides = [1, 1]} : vector<2x64xf32> to vector<2x16xf32>
    %913 = vector.extract_strided_slice %910 {offsets = [0, 16], sizes = [2, 16], strides = [1, 1]} : vector<2x64xf32> to vector<2x16xf32>
    %914 = vector.extract_strided_slice %911 {offsets = [0, 32], sizes = [2, 16], strides = [1, 1]} : vector<2x64xf32> to vector<2x16xf32>
    %915 = vector.extract_strided_slice %910 {offsets = [0, 48], sizes = [2, 16], strides = [1, 1]} : vector<2x64xf32> to vector<2x16xf32>
    %916 = arith.mulf %913, %899 : vector<2x16xf32>
    %917 = arith.mulf %912, %914 : vector<2x16xf32>
    %918 = arith.addf %916, %917 : vector<2x16xf32>
    %919 = math.tanh %918 : vector<2x16xf32>
    %920 = arith.mulf %915, %919 : vector<2x16xf32>
    %c94_250 = arith.constant 94 : index
    %c0_251 = arith.constant 0 : index
    %921 = vector.load %arg16[%c94_250, %c0_251] : memref<96x16xf32, #tpu.memory_space<vmem>>, vector<2x16xf32>
    tpu.vector_store %arg16[%c94_250, %c0_251], %920 {strides = array<i32>} : memref<96x16xf32, #tpu.memory_space<vmem>>, vector<2x16xf32>,
    %cst_252 = arith.constant 0.000000e+00 : f32
    %922 = vector.broadcast %cst_252 : f32 to vector<2x1xf32>
    %c0_253 = arith.constant 0 : index
    %c0_254 = arith.constant 0 : index
    %923 = vector.load %arg16[%c0_253, %c0_254] : memref<96x16xf32, #tpu.memory_space<vmem>>, vector<94x16xf32>
    %c0_255 = arith.constant 0 : index
    %c0_256 = arith.constant 0 : index
    %924 = vector.load %arg4[%c0_255, %c0_256] : memref<32x128xf32, #tpu.memory_space<vmem>>, vector<16x128xf32>
    %cst_257 = arith.constant dense<0.000000e+00> : vector<94x128xf32>
    %925 = tpu.matmul %923, %924, %cst_257 {dimension_numbers = #tpu.dot_dimension_numbers<[1], [0], [0], [1], [0, 0, 1, 1], [], []>} : vector<94x16xf32>, vector<16x128xf32>, vector<94x128xf32> -> vector<94x128xf32>
    %c2_258 = arith.constant 2 : index
    %c0_259 = arith.constant 0 : index
    %926 = vector.load %arg16[%c2_258, %c0_259] : memref<96x16xf32, #tpu.memory_space<vmem>>, vector<94x16xf32>
    %c16_260 = arith.constant 16 : index
    %c0_261 = arith.constant 0 : index
    %927 = vector.load %arg4[%c16_260, %c0_261] : memref<32x128xf32, #tpu.memory_space<vmem>>, vector<16x128xf32>
    %cst_262 = arith.constant dense<0.000000e+00> : vector<94x128xf32>
    %928 = tpu.matmul %926, %927, %cst_262 {dimension_numbers = #tpu.dot_dimension_numbers<[1], [0], [0], [1], [0, 0, 1, 1], [], []>} : vector<94x16xf32>, vector<16x128xf32>, vector<94x128xf32> -> vector<94x128xf32>
    %929 = arith.addf %925, %928 : vector<94x128xf32>
    %c0_263 = arith.constant 0 : index
    %c0_264 = arith.constant 0 : index
    %930 = vector.load %arg5[%c0_263, %c0_264] : memref<1x128xf32, #tpu.memory_space<vmem>>, vector<1x128xf32>
    %931 = vector.broadcast %930 : vector<1x128xf32> to vector<94x128xf32>
    %932 = arith.addf %929, %931 : vector<94x128xf32>
    %cst_265 = arith.constant 0.000000e+00 : f32
    %933 = vector.broadcast %cst_265 : f32 to vector<94x128xf32>
    %934 = arith.maximumf %932, %933 : vector<94x128xf32>
    %935 = vector.extract_strided_slice %934 {offsets = [0, 0], sizes = [92, 128], strides = [1, 1]} : vector<94x128xf32> to vector<92x128xf32>
    %936 = vector.shape_cast %935 : vector<92x128xf32> to vector<23x2x2x128xf32>
    %cst_266 = arith.constant dense<0xFF800000> : vector<23x2x128xf32>
    %937 = vector.multi_reduction <maximumf>, %936, %cst_266 [1] : vector<23x2x2x128xf32> to vector<23x2x128xf32>
    %c0_267 = arith.constant 0 : index
    %c0_268 = arith.constant 0 : index
    %c0_269 = arith.constant 0 : index
    %938 = vector.load %arg6[%c0_267, %c0_268, %c0_269] : memref<23x1x128xf32, #tpu.memory_space<vmem>>, vector<23x1x128xf32>
    %939 = vector.broadcast %938 : vector<23x1x128xf32> to vector<23x2x128xf32>
    %940 = arith.mulf %937, %939 : vector<23x2x128xf32>
    %cst_270 = arith.constant dense<0.000000e+00> : vector<2x128xf32>
    %941 = vector.multi_reduction <add>, %940, %cst_270 [0] : vector<23x2x128xf32> to vector<2x128xf32>
    %cst_271 = arith.constant dense<0.000000e+00> : vector<2xf32>
    %942 = vector.multi_reduction <add>, %941, %cst_271 [1] : vector<2x128xf32> to vector<2xf32>
    %943 = vector.shape_cast %942 : vector<2xf32> to vector<2x1xf32>
    %944 = arith.addf %922, %943 : vector<2x1xf32>
    %c0_272 = arith.constant 0 : index
    %c0_273 = arith.constant 0 : index
    %945 = vector.load %arg16[%c0_272, %c0_273] : memref<96x16xf32, #tpu.memory_space<vmem>>, vector<92x16xf32>
    %c0_274 = arith.constant 0 : index
    %c0_275 = arith.constant 0 : index
    %946 = vector.load %arg7[%c0_274, %c0_275] : memref<48x128xf32, #tpu.memory_space<vmem>>, vector<16x128xf32>
    %cst_276 = arith.constant dense<0.000000e+00> : vector<92x128xf32>
    %947 = tpu.matmul %945, %946, %cst_276 {dimension_numbers = #tpu.dot_dimension_numbers<[1], [0], [0], [1], [0, 0, 1, 1], [], []>} : vector<92x16xf32>, vector<16x128xf32>, vector<92x128xf32> -> vector<92x128xf32>
    %c2_277 = arith.constant 2 : index
    %c0_278 = arith.constant 0 : index
    %948 = vector.load %arg16[%c2_277, %c0_278] : memref<96x16xf32, #tpu.memory_space<vmem>>, vector<92x16xf32>
    %c16_279 = arith.constant 16 : index
    %c0_280 = arith.constant 0 : index
    %949 = vector.load %arg7[%c16_279, %c0_280] : memref<48x128xf32, #tpu.memory_space<vmem>>, vector<16x128xf32>
    %cst_281 = arith.constant dense<0.000000e+00> : vector<92x128xf32>
    %950 = tpu.matmul %948, %949, %cst_281 {dimension_numbers = #tpu.dot_dimension_numbers<[1], [0], [0], [1], [0, 0, 1, 1], [], []>} : vector<92x16xf32>, vector<16x128xf32>, vector<92x128xf32> -> vector<92x128xf32>
    %951 = arith.addf %947, %950 : vector<92x128xf32>
    %c4_282 = arith.constant 4 : index
    %c0_283 = arith.constant 0 : index
    %952 = vector.load %arg16[%c4_282, %c0_283] : memref<96x16xf32, #tpu.memory_space<vmem>>, vector<92x16xf32>
    %c32_284 = arith.constant 32 : index
    %c0_285 = arith.constant 0 : index
    %953 = vector.load %arg7[%c32_284, %c0_285] : memref<48x128xf32, #tpu.memory_space<vmem>>, vector<16x128xf32>
    %cst_286 = arith.constant dense<0.000000e+00> : vector<92x128xf32>
    %954 = tpu.matmul %952, %953, %cst_286 {dimension_numbers = #tpu.dot_dimension_numbers<[1], [0], [0], [1], [0, 0, 1, 1], [], []>} : vector<92x16xf32>, vector<16x128xf32>, vector<92x128xf32> -> vector<92x128xf32>
    %955 = arith.addf %951, %954 : vector<92x128xf32>
    %c0_287 = arith.constant 0 : index
    %c0_288 = arith.constant 0 : index
    %956 = vector.load %arg8[%c0_287, %c0_288] : memref<1x128xf32, #tpu.memory_space<vmem>>, vector<1x128xf32>
    %957 = vector.broadcast %956 : vector<1x128xf32> to vector<92x128xf32>
    %958 = arith.addf %955, %957 : vector<92x128xf32>
    %cst_289 = arith.constant 0.000000e+00 : f32
    %959 = vector.broadcast %cst_289 : f32 to vector<92x128xf32>
    %960 = arith.maximumf %958, %959 : vector<92x128xf32>
    %961 = vector.shape_cast %960 : vector<92x128xf32> to vector<23x2x2x128xf32>
    %cst_290 = arith.constant dense<0xFF800000> : vector<23x2x128xf32>
    %962 = vector.multi_reduction <maximumf>, %961, %cst_290 [1] : vector<23x2x2x128xf32> to vector<23x2x128xf32>
    %c0_291 = arith.constant 0 : index
    %c0_292 = arith.constant 0 : index
    %c0_293 = arith.constant 0 : index
    %963 = vector.load %arg9[%c0_291, %c0_292, %c0_293] : memref<23x1x128xf32, #tpu.memory_space<vmem>>, vector<23x1x128xf32>
    %964 = vector.broadcast %963 : vector<23x1x128xf32> to vector<23x2x128xf32>
    %965 = arith.mulf %962, %964 : vector<23x2x128xf32>
    %cst_294 = arith.constant dense<0.000000e+00> : vector<2x128xf32>
    %966 = vector.multi_reduction <add>, %965, %cst_294 [0] : vector<23x2x128xf32> to vector<2x128xf32>
    %cst_295 = arith.constant dense<0.000000e+00> : vector<2xf32>
    %967 = vector.multi_reduction <add>, %966, %cst_295 [1] : vector<2x128xf32> to vector<2xf32>
    %968 = vector.shape_cast %967 : vector<2xf32> to vector<2x1xf32>
    %969 = arith.addf %944, %968 : vector<2x1xf32>
    %c0_296 = arith.constant 0 : index
    %c0_297 = arith.constant 0 : index
    %970 = vector.load %arg16[%c0_296, %c0_297] : memref<96x16xf32, #tpu.memory_space<vmem>>, vector<90x16xf32>
    %c0_298 = arith.constant 0 : index
    %c0_299 = arith.constant 0 : index
    %971 = vector.load %arg10[%c0_298, %c0_299] : memref<64x128xf32, #tpu.memory_space<vmem>>, vector<16x128xf32>
    %cst_300 = arith.constant dense<0.000000e+00> : vector<90x128xf32>
    %972 = tpu.matmul %970, %971, %cst_300 {dimension_numbers = #tpu.dot_dimension_numbers<[1], [0], [0], [1], [0, 0, 1, 1], [], []>} : vector<90x16xf32>, vector<16x128xf32>, vector<90x128xf32> -> vector<90x128xf32>
    %c2_301 = arith.constant 2 : index
    %c0_302 = arith.constant 0 : index
    %973 = vector.load %arg16[%c2_301, %c0_302] : memref<96x16xf32, #tpu.memory_space<vmem>>, vector<90x16xf32>
    %c16_303 = arith.constant 16 : index
    %c0_304 = arith.constant 0 : index
    %974 = vector.load %arg10[%c16_303, %c0_304] : memref<64x128xf32, #tpu.memory_space<vmem>>, vector<16x128xf32>
    %cst_305 = arith.constant dense<0.000000e+00> : vector<90x128xf32>
    %975 = tpu.matmul %973, %974, %cst_305 {dimension_numbers = #tpu.dot_dimension_numbers<[1], [0], [0], [1], [0, 0, 1, 1], [], []>} : vector<90x16xf32>, vector<16x128xf32>, vector<90x128xf32> -> vector<90x128xf32>
    %976 = arith.addf %972, %975 : vector<90x128xf32>
    %c4_306 = arith.constant 4 : index
    %c0_307 = arith.constant 0 : index
    %977 = vector.load %arg16[%c4_306, %c0_307] : memref<96x16xf32, #tpu.memory_space<vmem>>, vector<90x16xf32>
    %c32_308 = arith.constant 32 : index
    %c0_309 = arith.constant 0 : index
    %978 = vector.load %arg10[%c32_308, %c0_309] : memref<64x128xf32, #tpu.memory_space<vmem>>, vector<16x128xf32>
    %cst_310 = arith.constant dense<0.000000e+00> : vector<90x128xf32>
    %979 = tpu.matmul %977, %978, %cst_310 {dimension_numbers = #tpu.dot_dimension_numbers<[1], [0], [0], [1], [0, 0, 1, 1], [], []>} : vector<90x16xf32>, vector<16x128xf32>, vector<90x128xf32> -> vector<90x128xf32>
    %980 = arith.addf %976, %979 : vector<90x128xf32>
    %c6_311 = arith.constant 6 : index
    %c0_312 = arith.constant 0 : index
    %981 = vector.load %arg16[%c6_311, %c0_312] : memref<96x16xf32, #tpu.memory_space<vmem>>, vector<90x16xf32>
    %c48_313 = arith.constant 48 : index
    %c0_314 = arith.constant 0 : index
    %982 = vector.load %arg10[%c48_313, %c0_314] : memref<64x128xf32, #tpu.memory_space<vmem>>, vector<16x128xf32>
    %cst_315 = arith.constant dense<0.000000e+00> : vector<90x128xf32>
    %983 = tpu.matmul %981, %982, %cst_315 {dimension_numbers = #tpu.dot_dimension_numbers<[1], [0], [0], [1], [0, 0, 1, 1], [], []>} : vector<90x16xf32>, vector<16x128xf32>, vector<90x128xf32> -> vector<90x128xf32>
    %984 = arith.addf %980, %983 : vector<90x128xf32>
    %c0_316 = arith.constant 0 : index
    %c0_317 = arith.constant 0 : index
    %985 = vector.load %arg11[%c0_316, %c0_317] : memref<1x128xf32, #tpu.memory_space<vmem>>, vector<1x128xf32>
    %986 = vector.broadcast %985 : vector<1x128xf32> to vector<90x128xf32>
    %987 = arith.addf %984, %986 : vector<90x128xf32>
    %cst_318 = arith.constant 0.000000e+00 : f32
    %988 = vector.broadcast %cst_318 : f32 to vector<90x128xf32>
    %989 = arith.maximumf %987, %988 : vector<90x128xf32>
    %990 = vector.extract_strided_slice %989 {offsets = [0, 0], sizes = [88, 128], strides = [1, 1]} : vector<90x128xf32> to vector<88x128xf32>
    %991 = vector.shape_cast %990 : vector<88x128xf32> to vector<22x2x2x128xf32>
    %cst_319 = arith.constant dense<0xFF800000> : vector<22x2x128xf32>
    %992 = vector.multi_reduction <maximumf>, %991, %cst_319 [1] : vector<22x2x2x128xf32> to vector<22x2x128xf32>
    %c0_320 = arith.constant 0 : index
    %c0_321 = arith.constant 0 : index
    %c0_322 = arith.constant 0 : index
    %993 = vector.load %arg12[%c0_320, %c0_321, %c0_322] : memref<22x1x128xf32, #tpu.memory_space<vmem>>, vector<22x1x128xf32>
    %994 = vector.broadcast %993 : vector<22x1x128xf32> to vector<22x2x128xf32>
    %995 = arith.mulf %992, %994 : vector<22x2x128xf32>
    %cst_323 = arith.constant dense<0.000000e+00> : vector<2x128xf32>
    %996 = vector.multi_reduction <add>, %995, %cst_323 [0] : vector<22x2x128xf32> to vector<2x128xf32>
    %cst_324 = arith.constant dense<0.000000e+00> : vector<2xf32>
    %997 = vector.multi_reduction <add>, %996, %cst_324 [1] : vector<2x128xf32> to vector<2xf32>
    %998 = vector.shape_cast %997 : vector<2xf32> to vector<2x1xf32>
    %999 = arith.addf %969, %998 : vector<2x1xf32>
    %c0_325 = arith.constant 0 : index
    %c0_326 = arith.constant 0 : index
    %1000 = vector.load %arg13[%c0_325, %c0_326] : memref<1x1xf32, #tpu.memory_space<vmem>>, vector<1x1xf32>
    %1001 = vector.broadcast %1000 : vector<1x1xf32> to vector<2x1xf32>
    %1002 = arith.addf %999, %1001 : vector<2x1xf32>
    %c0_327 = arith.constant 0 : index
    %c0_328 = arith.constant 0 : index
    %1003 = vector.load %arg14[%c0_327, %c0_328] : memref<2x1xf32, #tpu.memory_space<vmem>>, vector<2x1xf32>
    tpu.vector_store %arg14[%c0_327, %c0_328], %1002 {strides = array<i32>} : memref<2x1xf32, #tpu.memory_space<vmem>>, vector<2x1xf32>,
    return
  }
}

</mosaic_0001>

<llo_original>
// kernel: lstm_cnn4_forward.1
$region0: #{lstm_cnn4_forward.1}
  #allocation0 [shape = 'u32[]', space=smem, size = 0x4, offset = 0x4, fixed_abs, tag = 'smem constant byte address 0x4 - core index']
  #allocation1 [shape = 'u32[72,128]{1,0:T(1,128)}', space=vmem, size = 0x9000, scoped, tag = 'internal scratch']
  #allocation2 [shape = 'f32[96,64]{1,0:T(8,128)}', space=vmem, size = 0xc000, scoped, tag = 'scratch operand']
  #allocation3 [shape = 'f32[96,16]{1,0:T(8,128)}', space=vmem, size = 0xc000, scoped, tag = 'scratch operand']
  #allocation4 [shape = 'f32[1,1]{1,0:T(1,128)S(1)}', space=vmem, size = 0x200, scoped, tag = 'scoped memory for lstm_cnn4_forward.1']
  %s0 = inlined_call_operand.vmem [shape: f32[96,390], index: 0, kind: input, shape index: {}]
  %s1 = inlined_call_operand.vmem [shape: f32[390,64], index: 1, kind: input, shape index: {}]
  %s2 = inlined_call_operand.vmem [shape: f32[16,64], index: 2, kind: input, shape index: {}]
  %s3 = inlined_call_operand.vmem [shape: f32[1,64], index: 3, kind: input, shape index: {}]
  %s4 = inlined_call_operand.vmem [shape: f32[32,128], index: 4, kind: input, shape index: {}]
  %s5 = inlined_call_operand.vmem [shape: f32[1,128], index: 5, kind: input, shape index: {}]
  %s6 = inlined_call_operand.vmem [shape: f32[23,1,128], index: 6, kind: input, shape index: {}]
  %s7 = inlined_call_operand.vmem [shape: f32[48,128], index: 7, kind: input, shape index: {}]
  %s8 = inlined_call_operand.vmem [shape: f32[1,128], index: 8, kind: input, shape index: {}]
  %s9 = inlined_call_operand.vmem [shape: f32[23,1,128], index: 9, kind: input, shape index: {}]
  %s10 = inlined_call_operand.vmem [shape: f32[64,128], index: 10, kind: input, shape index: {}]
  %s11 = inlined_call_operand.vmem [shape: f32[1,128], index: 11, kind: input, shape index: {}]
  %s12 = inlined_call_operand.vmem [shape: f32[22,1,128], index: 12, kind: input, shape index: {}]
  %s13 = inlined_call_operand.<no memory space> [shape: f32[1,1], index: 13, kind: input, shape index: {}]
  %s14 = inlined_call_operand.vmem [shape: f32[2,1], index: 14, kind: output, shape index: {}]
  %s15 = sld [smem:[#allocation0]]
  $region66: #{lstm_cnn4_forward.1} parent=0
    _
  %s17 = ssub.s32 1, %s15
  %s18 = scalar_select 0, %s17, %s15
  %v19 = vstv %s13
  %20 = vst [vmem:[#allocation4] sm:$0x1] %v19
  // Predicated region
  $region2: #{lstm_cnn4_forward.1} parent=0 // pred_check
    _
  $region3: #{lstm_cnn4_forward.1} parent=0 // pred_check_branch
    %22 = sbr.rel (0) target = $region5
  $region4: #{lstm_cnn4_forward.1} parent=0 // pred_region
    _
  $region5: #{lstm_cnn4_forward.1} parent=0 // pred_fallthru
    _
  // Predicated region
  $region6: #{lstm_cnn4_forward.1} parent=0 // pred_check
    _
  $region7: #{lstm_cnn4_forward.1} parent=0 // pred_check_branch
    %24 = sbr.rel (0) target = $region9
  $region8: #{lstm_cnn4_forward.1} parent=0 // pred_region
    _
  $region9: #{lstm_cnn4_forward.1} parent=0 // pred_fallthru
    _
  // Predicated region
  $region10: #{lstm_cnn4_forward.1} parent=0 // pred_check
    _
  $region11: #{lstm_cnn4_forward.1} parent=0 // pred_check_branch
    %26 = sbr.rel (0) target = $region13
  $region12: #{lstm_cnn4_forward.1} parent=0 // pred_region
    _
  $region13: #{lstm_cnn4_forward.1} parent=0 // pred_fallthru
    _
  // Predicated region
  $region14: #{lstm_cnn4_forward.1} parent=0 // pred_check
    _
  $region15: #{lstm_cnn4_forward.1} parent=0 // pred_check_branch
    %28 = sbr.rel (0) target = $region17
  $region16: #{lstm_cnn4_forward.1} parent=0 // pred_region
    _
  $region17: #{lstm_cnn4_forward.1} parent=0 // pred_fallthru
    _
  // Predicated region
  $region18: #{lstm_cnn4_forward.1} parent=0 // pred_check
    _
  $region19: #{lstm_cnn4_forward.1} parent=0 // pred_check_branch
    %30 = sbr.rel (0) target = $region21
  $region20: #{lstm_cnn4_forward.1} parent=0 // pred_region
    _
  $region21: #{lstm_cnn4_forward.1} parent=0 // pred_fallthru
    _
  // Predicated region
  $region22: #{lstm_cnn4_forward.1} parent=0 // pred_check
    _
  $region23: #{lstm_cnn4_forward.1} parent=0 // pred_check_branch
    %32 = sbr.rel (0) target = $region25
  $region24: #{lstm_cnn4_forward.1} parent=0 // pred_region
    _
  $region25: #{lstm_cnn4_forward.1} parent=0 // pred_fallthru
    _
  // Predicated region
  $region26: #{lstm_cnn4_forward.1} parent=0 // pred_check
    _
  $region27: #{lstm_cnn4_forward.1} parent=0 // pred_check_branch
    %34 = sbr.rel (0) target = $region29
  $region28: #{lstm_cnn4_forward.1} parent=0 // pred_region
    _
  $region29: #{lstm_cnn4_forward.1} parent=0 // pred_fallthru
    _
  // Predicated region
  $region30: #{lstm_cnn4_forward.1} parent=0 // pred_check
    _
  $region31: #{lstm_cnn4_forward.1} parent=0 // pred_check_branch
    %36 = sbr.rel (0) target = $region33
  $region32: #{lstm_cnn4_forward.1} parent=0 // pred_region
    _
  $region33: #{lstm_cnn4_forward.1} parent=0 // pred_fallthru
    _
  // Predicated region
  $region34: #{lstm_cnn4_forward.1} parent=0 // pred_check
    _
  $region35: #{lstm_cnn4_forward.1} parent=0 // pred_check_branch
    %38 = sbr.rel (0) target = $region37
  $region36: #{lstm_cnn4_forward.1} parent=0 // pred_region
    _
  $region37: #{lstm_cnn4_forward.1} parent=0 // pred_fallthru
    _
  // Predicated region
  $region38: #{lstm_cnn4_forward.1} parent=0 // pred_check
    _
  $region39: #{lstm_cnn4_forward.1} parent=0 // pred_check_branch
    %40 = sbr.rel (0) target = $region41
  $region40: #{lstm_cnn4_forward.1} parent=0 // pred_region
    _
  $region41: #{lstm_cnn4_forward.1} parent=0 // pred_fallthru
    _
  // Predicated region
  $region42: #{lstm_cnn4_forward.1} parent=0 // pred_check
    _
  $region43: #{lstm_cnn4_forward.1} parent=0 // pred_check_branch
    %42 = sbr.rel (0) target = $region45
  $region44: #{lstm_cnn4_forward.1} parent=0 // pred_region
    _
  $region45: #{lstm_cnn4_forward.1} parent=0 // pred_fallthru
    _
  // Predicated region
  $region46: #{lstm_cnn4_forward.1} parent=0 // pred_check
    _
  $region47: #{lstm_cnn4_forward.1} parent=0 // pred_check_branch
    %44 = sbr.rel (0) target = $region49
  $region48: #{lstm_cnn4_forward.1} parent=0 // pred_region
    _
  $region49: #{lstm_cnn4_forward.1} parent=0 // pred_fallthru
    _
  // Predicated region
  $region50: #{lstm_cnn4_forward.1} parent=0 // pred_check
    _
  $region51: #{lstm_cnn4_forward.1} parent=0 // pred_check_branch
    %46 = sbr.rel (0) target = $region53
  $region52: #{lstm_cnn4_forward.1} parent=0 // pred_region
    _
  $region53: #{lstm_cnn4_forward.1} parent=0 // pred_fallthru
    _
  // Predicated region
  $region54: #{lstm_cnn4_forward.1} parent=0 // pred_check
    _
  $region55: #{lstm_cnn4_forward.1} parent=0 // pred_check_branch
    %48 = sbr.rel (0) target = $region57
  $region56: #{lstm_cnn4_forward.1} parent=0 // pred_region
    _
  $region57: #{lstm_cnn4_forward.1} parent=0 // pred_fallthru
    _
  %v49 = vld [vmem:[%s0] sm:$0xff]
  %v50 = vld [vmem:[%s0 + $0x8] sm:$0xff]
  %v51 = vld [vmem:[%s0 + $0x10] sm:$0xff]
  %v52 = vld [vmem:[%s0 + $0x18] sm:$0xff]
  %v53 = vld [vmem:[%s0 + $0x20] sm:$0xff]
  %v54 = vld [vmem:[%s0 + $0x28] sm:$0xff]
  %v55 = vld [vmem:[%s0 + $0x30] sm:$0xff]
  %v56 = vld [vmem:[%s0 + $0x38] sm:$0xff]
  %v57 = vld [vmem:[%s0 + $0x40] sm:$0xff]
  %v58 = vld [vmem:[%s0 + $0x48] sm:$0xff]
  %v59 = vld [vmem:[%s0 + $0x50] sm:$0xff]
  %v60 = vld [vmem:[%s0 + $0x58] sm:$0xff]
  %v61 = vld [vmem:[%s0 + $0x60] sm:$0xff]
  %v62 = vld [vmem:[%s0 + $0x68] sm:$0xff]
  %v63 = vld [vmem:[%s0 + $0x70] sm:$0xff]
  %v64 = vld [vmem:[%s0 + $0x78] sm:$0xff]
  %v65 = vld [vmem:[%s0 + $0x80] sm:$0xff]
  %v66 = vld [vmem:[%s0 + $0x88] sm:$0xff]
  %v67 = vld [vmem:[%s0 + $0x90] sm:$0xff]
  %v68 = vld [vmem:[%s0 + $0x98] sm:$0xff]
  %v69 = vld [vmem:[%s0 + $0xa0] sm:$0xff]
  %v70 = vld [vmem:[%s0 + $0xa8] sm:$0xff]
  %v71 = vld [vmem:[%s0 + $0xb0] sm:$0xff]
  %v72 = vld [vmem:[%s0 + $0xb8] sm:$0xff]
  %v73 = vld [vmem:[%s0 + $0xc0] sm:$0xff]
  %v74 = vld [vmem:[%s0 + $0xc8] sm:$0xff]
  %v75 = vld [vmem:[%s0 + $0xd0] sm:$0xff]
  %v76 = vld [vmem:[%s0 + $0xd8] sm:$0xff]
  %v77 = vld [vmem:[%s0 + $0xe0] sm:$0xff]
  %v78 = vld [vmem:[%s0 + $0xe8] sm:$0xff]
  %v79 = vld [vmem:[%s0 + $0xf0] sm:$0xff]
  %v80 = vld [vmem:[%s0 + $0xf8] sm:$0xff]
  %v81 = vld [vmem:[%s0 + $0x100] sm:$0xff]
  %v82 = vld [vmem:[%s0 + $0x108] sm:$0xff]
  %v83 = vld [vmem:[%s0 + $0x110] sm:$0xff]
  %v84 = vld [vmem:[%s0 + $0x118] sm:$0xff]
  %v85 = vld [vmem:[%s0 + $0x120] sm:$0xff]
  %v86 = vld [vmem:[%s0 + $0x128] sm:$0xff]
  %v87 = vld [vmem:[%s0 + $0x130] sm:$0xff]
  %v88 = vld [vmem:[%s0 + $0x138] sm:$0xff]
  %v89 = vld [vmem:[%s0 + $0x140] sm:$0xff]
  %v90 = vld [vmem:[%s0 + $0x148] sm:$0xff]
  %v91 = vld [vmem:[%s0 + $0x150] sm:$0xff]
  %v92 = vld [vmem:[%s0 + $0x158] sm:$0xff]
  %v93 = vld [vmem:[%s0 + $0x160] sm:$0xff]
  %v94 = vld [vmem:[%s0 + $0x168] sm:$0xff]
  %v95 = vld [vmem:[%s0 + $0x170] sm:$0xff]
  %v96 = vld [vmem:[%s0 + $0x178] sm:$0xff]
  %v97 = vld [vmem:[%s1] sm:$0xff]
  %v98 = vld [vmem:[%s1 + $0x8] sm:$0xff]
  %v99 = vld [vmem:[%s1 + $0x10] sm:$0xff]
  %v100 = vld [vmem:[%s1 + $0x18] sm:$0xff]
  %v101 = vld [vmem:[%s1 + $0x20] sm:$0xff]
  %v102 = vld [vmem:[%s1 + $0x28] sm:$0xff]
  %v103 = vld [vmem:[%s1 + $0x30] sm:$0xff]
  %v104 = vld [vmem:[%s1 + $0x38] sm:$0xff]
  %v105 = vld [vmem:[%s1 + $0x40] sm:$0xff]
  %v106 = vld [vmem:[%s1 + $0x48] sm:$0xff]
  %v107 = vld [vmem:[%s1 + $0x50] sm:$0xff]
  %v108 = vld [vmem:[%s1 + $0x58] sm:$0xff]
  %v109 = vld [vmem:[%s1 + $0x60] sm:$0xff]
  %v110 = vld [vmem:[%s1 + $0x68] sm:$0xff]
  %v111 = vld [vmem:[%s1 + $0x70] sm:$0xff]
  %v112 = vld [vmem:[%s1 + $0x78] sm:$0xff]
  %v113 = vld [vmem:[%s1 + $0x80] sm:$0xff]
  %v114 = vld [vmem:[%s1 + $0x88] sm:$0xff]
  %v115 = vld [vmem:[%s1 + $0x90] sm:$0xff]
  %v116 = vld [vmem:[%s1 + $0x98] sm:$0xff]
  %v117 = vld [vmem:[%s1 + $0xa0] sm:$0xff]
  %v118 = vld [vmem:[%s1 + $0xa8] sm:$0xff]
  %v119 = vld [vmem:[%s1 + $0xb0] sm:$0xff]
  %v120 = vld [vmem:[%s1 + $0xb8] sm:$0xff]
  %v121 = vld [vmem:[%s1 + $0xc0] sm:$0xff]
  %v122 = vld [vmem:[%s1 + $0xc8] sm:$0xff]
  %v123 = vld [vmem:[%s1 + $0xd0] sm:$0xff]
  %v124 = vld [vmem:[%s1 + $0xd8] sm:$0xff]
  %v125 = vld [vmem:[%s1 + $0xe0] sm:$0xff]
  %v126 = vld [vmem:[%s1 + $0xe8] sm:$0xff]
  %v127 = vld [vmem:[%s1 + $0xf0] sm:$0xff]
  %v128 = vld [vmem:[%s1 + $0xf8] sm:$0xff]
  %v129 = vld [vmem:[%s1 + $0x100] sm:$0xff]
  %v130 = vld [vmem:[%s1 + $0x108] sm:$0xff]
  %v131 = vld [vmem:[%s1 + $0x110] sm:$0xff]
  %v132 = vld [vmem:[%s1 + $0x118] sm:$0xff]
  %v133 = vld [vmem:[%s1 + $0x120] sm:$0xff]
  %v134 = vld [vmem:[%s1 + $0x128] sm:$0xff]
  %v135 = vld [vmem:[%s1 + $0x130] sm:$0xff]
  %v136 = vld [vmem:[%s1 + $0x138] sm:$0xff]
  %v137 = vld [vmem:[%s1 + $0x140] sm:$0xff]
  %v138 = vld [vmem:[%s1 + $0x148] sm:$0xff]
  %v139 = vld [vmem:[%s1 + $0x150] sm:$0xff]
  %v140 = vld [vmem:[%s1 + $0x158] sm:$0xff]
  %v141 = vld [vmem:[%s1 + $0x160] sm:$0xff]
  %v142 = vld [vmem:[%s1 + $0x168] sm:$0xff]
  %v143 = vld [vmem:[%s1 + $0x170] sm:$0xff]
  %v144 = vld [vmem:[%s1 + $0x178] sm:$0xff]
  %v145 = vld [vmem:[%s1 + $0x180] sm:$0x3f]
  %v146 = vld [vmem:[%s3] sm:$0x1]
  %v148 = vperm.slane %v146, 0
  %vm150 = vcmask 48128
  %v152 = vsel %vm150, %v52, 0
  %v155 = vsel %vm150, %v56, 0
  %v158 = vsel %vm150, %v60, 0
  %v161 = vsel %vm150, %v64, 0
  %v164 = vsel %vm150, %v68, 0
  %v167 = vsel %vm150, %v72, 0
  %v170 = vsel %vm150, %v76, 0
  %v173 = vsel %vm150, %v80, 0
  %v176 = vsel %vm150, %v84, 0
  %v179 = vsel %vm150, %v88, 0
  %v182 = vsel %vm150, %v92, 0
  %v185 = vsel %vm150, %v96, 0
  %vm187 = vcmask 1045504
  %v189 = vsel %vm187, %v145, 0
  %191 = vmatpush.msra.mxu0 %v112
  %192 = vmatpush.msra.mxu0 %v111
  %193 = vmatpush.msra.mxu0 %v110
  %194 = vmatpush.msra.mxu0 %v109
  %195 = vmatpush.msra.mxu0 %v108
  %196 = vmatpush.msra.mxu0 %v107
  %197 = vmatpush.msra.mxu0 %v106
  %198 = vmatpush.msra.mxu0 %v105
  %199 = vmatpush.msra.mxu0 %v104
  %200 = vmatpush.msra.mxu0 %v103
  %201 = vmatpush.msra.mxu0 %v102
  %202 = vmatpush.msra.mxu0 %v101
  %203 = vmatpush.msra.mxu0 %v100
  %204 = vmatpush.msra.mxu0 %v99
  %205 = vmatpush.msra.mxu0 %v98
  %206 = vmatpush.msra.mxu0 %v97
  %207 = vmatmul.f32.gmra.mxu0 %v49
  %v208 = vpop.f32.mrf.mxu0
  %v209 = vadd.f32 %v148, %v208
  %210 = vmatmul.f32.gmra.mxu0 %v53
  %v211 = vpop.f32.mrf.mxu0
  %v212 = vadd.f32 %v148, %v211
  %213 = vmatmul.f32.gmra.mxu0 %v57
  %v214 = vpop.f32.mrf.mxu0
  %v215 = vadd.f32 %v148, %v214
  %216 = vmatmul.f32.gmra.mxu0 %v61
  %v217 = vpop.f32.mrf.mxu0
  %v218 = vadd.f32 %v148, %v217
  %219 = vmatmul.f32.gmra.mxu0 %v65
  %v220 = vpop.f32.mrf.mxu0
  %v221 = vadd.f32 %v148, %v220
  %222 = vmatmul.f32.gmra.mxu0 %v69
  %v223 = vpop.f32.mrf.mxu0
  %v224 = vadd.f32 %v148, %v223
  %225 = vmatmul.f32.gmra.mxu0 %v73
  %v226 = vpop.f32.mrf.mxu0
  %v227 = vadd.f32 %v148, %v226
  %228 = vmatmul.f32.gmra.mxu0 %v77
  %v229 = vpop.f32.mrf.mxu0
  %v230 = vadd.f32 %v148, %v229
  %231 = vmatmul.f32.gmra.mxu0 %v81
  %v232 = vpop.f32.mrf.mxu0
  %v233 = vadd.f32 %v148, %v232
  %234 = vmatmul.f32.gmra.mxu0 %v85
  %v235 = vpop.f32.mrf.mxu0
  %v236 = vadd.f32 %v148, %v235
  %237 = vmatmul.f32.gmra.mxu0 %v89
  %v238 = vpop.f32.mrf.mxu0
  %v239 = vadd.f32 %v148, %v238
  %240 = vmatmul.f32.gmra.mxu0 %v93
  %v241 = vpop.f32.mrf.mxu0
  %v242 = vadd.f32 %v148, %v241
  %243 = vdwg.mxu0
  %244 = vmatpush.msra.mxu0 %v128
  %245 = vmatpush.msra.mxu0 %v127
  %246 = vmatpush.msra.mxu0 %v126
  %247 = vmatpush.msra.mxu0 %v125
  %248 = vmatpush.msra.mxu0 %v124
  %249 = vmatpush.msra.mxu0 %v123
  %250 = vmatpush.msra.mxu0 %v122
  %251 = vmatpush.msra.mxu0 %v121
  %252 = vmatpush.msra.mxu0 %v120
  %253 = vmatpush.msra.mxu0 %v119
  %254 = vmatpush.msra.mxu0 %v118
  %255 = vmatpush.msra.mxu0 %v117
  %256 = vmatpush.msra.mxu0 %v116
  %257 = vmatpush.msra.mxu0 %v115
  %258 = vmatpush.msra.mxu0 %v114
  %259 = vmatpush.msra.mxu0 %v113
  %260 = vmatmul.f32.gmra.mxu0 %v50
  %v261 = vpop.f32.mrf.mxu0
  %v262 = vadd.f32 %v209, %v261
  %263 = vmatmul.f32.gmra.mxu0 %v54
  %v264 = vpop.f32.mrf.mxu0
  %v265 = vadd.f32 %v212, %v264
  %266 = vmatmul.f32.gmra.mxu0 %v58
  %v267 = vpop.f32.mrf.mxu0
  %v268 = vadd.f32 %v215, %v267
  %269 = vmatmul.f32.gmra.mxu0 %v62
  %v270 = vpop.f32.mrf.mxu0
  %v271 = vadd.f32 %v218, %v270
  %272 = vmatmul.f32.gmra.mxu0 %v66
  %v273 = vpop.f32.mrf.mxu0
  %v274 = vadd.f32 %v221, %v273
  %275 = vmatmul.f32.gmra.mxu0 %v70
  %v276 = vpop.f32.mrf.mxu0
  %v277 = vadd.f32 %v224, %v276
  %278 = vmatmul.f32.gmra.mxu0 %v74
  %v279 = vpop.f32.mrf.mxu0
  %v280 = vadd.f32 %v227, %v279
  %281 = vmatmul.f32.gmra.mxu0 %v78
  %v282 = vpop.f32.mrf.mxu0
  %v283 = vadd.f32 %v230, %v282
  %284 = vmatmul.f32.gmra.mxu0 %v82
  %v285 = vpop.f32.mrf.mxu0
  %v286 = vadd.f32 %v233, %v285
  %287 = vmatmul.f32.gmra.mxu0 %v86
  %v288 = vpop.f32.mrf.mxu0
  %v289 = vadd.f32 %v236, %v288
  %290 = vmatmul.f32.gmra.mxu0 %v90
  %v291 = vpop.f32.mrf.mxu0
  %v292 = vadd.f32 %v239, %v291
  %293 = vmatmul.f32.gmra.mxu0 %v94
  %v294 = vpop.f32.mrf.mxu0
  %v295 = vadd.f32 %v242, %v294
  %296 = vdwg.mxu0
  %297 = vmatpush.msra.mxu0 %v144
  %298 = vmatpush.msra.mxu0 %v143
  %299 = vmatpush.msra.mxu0 %v142
  %300 = vmatpush.msra.mxu0 %v141
  %301 = vmatpush.msra.mxu0 %v140
  %302 = vmatpush.msra.mxu0 %v139
  %303 = vmatpush.msra.mxu0 %v138
  %304 = vmatpush.msra.mxu0 %v137
  %305 = vmatpush.msra.mxu0 %v136
  %306 = vmatpush.msra.mxu0 %v135
  %307 = vmatpush.msra.mxu0 %v134
  %308 = vmatpush.msra.mxu0 %v133
  %309 = vmatpush.msra.mxu0 %v132
  %310 = vmatpush.msra.mxu0 %v131
  %311 = vmatpush.msra.mxu0 %v130
  %312 = vmatpush.msra.mxu0 %v129
  %313 = vmatmul.f32.gmra.mxu0 %v51
  %v314 = vpop.f32.mrf.mxu0
  %v315 = vadd.f32 %v262, %v314
  %316 = vmatmul.f32.gmra.mxu0 %v55
  %v317 = vpop.f32.mrf.mxu0
  %v318 = vadd.f32 %v265, %v317
  %319 = vmatmul.f32.gmra.mxu0 %v59
  %v320 = vpop.f32.mrf.mxu0
  %v321 = vadd.f32 %v268, %v320
  %322 = vmatmul.f32.gmra.mxu0 %v63
  %v323 = vpop.f32.mrf.mxu0
  %v324 = vadd.f32 %v271, %v323
  %325 = vmatmul.f32.gmra.mxu0 %v67
  %v326 = vpop.f32.mrf.mxu0
  %v327 = vadd.f32 %v274, %v326
  %328 = vmatmul.f32.gmra.mxu0 %v71
  %v329 = vpop.f32.mrf.mxu0
  %v330 = vadd.f32 %v277, %v329
  %331 = vmatmul.f32.gmra.mxu0 %v75
  %v332 = vpop.f32.mrf.mxu0
  %v333 = vadd.f32 %v280, %v332
  %334 = vmatmul.f32.gmra.mxu0 %v79
  %v335 = vpop.f32.mrf.mxu0
  %v336 = vadd.f32 %v283, %v335
  %337 = vmatmul.f32.gmra.mxu0 %v83
  %v338 = vpop.f32.mrf.mxu0
  %v339 = vadd.f32 %v286, %v338
  %340 = vmatmul.f32.gmra.mxu0 %v87
  %v341 = vpop.f32.mrf.mxu0
  %v342 = vadd.f32 %v289, %v341
  %343 = vmatmul.f32.gmra.mxu0 %v91
  %v344 = vpop.f32.mrf.mxu0
  %v345 = vadd.f32 %v292, %v344
  %346 = vmatmul.f32.gmra.mxu0 %v95
  %v347 = vpop.f32.mrf.mxu0
  %v348 = vadd.f32 %v295, %v347
  %349 = vdwg.mxu0
  %350 = vmatpush.msra.mxu0 0.0
  %351 = vmatpush.msra.mxu0 0.0
  %352 = vmatpush.msra.mxu0 0.0
  %353 = vmatpush.msra.mxu0 0.0
  %354 = vmatpush.msra.mxu0 0.0
  %355 = vmatpush.msra.mxu0 0.0
  %356 = vmatpush.msra.mxu0 0.0
  %357 = vmatpush.msra.mxu0 0.0
  %358 = vmatpush.msra.mxu0 0.0
  %359 = vmatpush.msra.mxu0 0.0
  %360 = vmatpush.msra.mxu0 0.0
  %361 = vmatpush.msra.mxu0 0.0
  %362 = vmatpush.msra.mxu0 0.0
  %363 = vmatpush.msra.mxu0 0.0
  %364 = vmatpush.msra.mxu0 0.0
  %365 = vmatpush.msra.mxu0 %v189
  %366 = vmatmul.f32.gmra.mxu0 %v152
  %v367 = vpop.f32.mrf.mxu0
  %v368 = vadd.f32 %v315, %v367
  %369 = vmatmul.f32.gmra.mxu0 %v155
  %v370 = vpop.f32.mrf.mxu0
  %v371 = vadd.f32 %v318, %v370
  %372 = vmatmul.f32.gmra.mxu0 %v158
  %v373 = vpop.f32.mrf.mxu0
  %v374 = vadd.f32 %v321, %v373
  %375 = vmatmul.f32.gmra.mxu0 %v161
  %v376 = vpop.f32.mrf.mxu0
  %v377 = vadd.f32 %v324, %v376
  %378 = vmatmul.f32.gmra.mxu0 %v164
  %v379 = vpop.f32.mrf.mxu0
  %v380 = vadd.f32 %v327, %v379
  %381 = vmatmul.f32.gmra.mxu0 %v167
  %v382 = vpop.f32.mrf.mxu0
  %v383 = vadd.f32 %v330, %v382
  %384 = vmatmul.f32.gmra.mxu0 %v170
  %v385 = vpop.f32.mrf.mxu0
  %v386 = vadd.f32 %v333, %v385
  %387 = vmatmul.f32.gmra.mxu0 %v173
  %v388 = vpop.f32.mrf.mxu0
  %v389 = vadd.f32 %v336, %v388
  %390 = vmatmul.f32.gmra.mxu0 %v176
  %v391 = vpop.f32.mrf.mxu0
  %v392 = vadd.f32 %v339, %v391
  %393 = vmatmul.f32.gmra.mxu0 %v179
  %v394 = vpop.f32.mrf.mxu0
  %v395 = vadd.f32 %v342, %v394
  %396 = vmatmul.f32.gmra.mxu0 %v182
  %v397 = vpop.f32.mrf.mxu0
  %v398 = vadd.f32 %v345, %v397
  %399 = vmatmul.f32.gmra.mxu0 %v185
  %v400 = vpop.f32.mrf.mxu0
  %v401 = vadd.f32 %v348, %v400
  %402 = vdwg.mxu0
  %vm403 = vcmask 523264
  %404 = vst.msk [vmem:[#allocation2] sm:$0xff] %vm403, %v368
  %405 = vst.msk [vmem:[#allocation2 + $0x8] sm:$0xff] %vm403, %v371
  %406 = vst.msk [vmem:[#allocation2 + $0x10] sm:$0xff] %vm403, %v374
  %407 = vst.msk [vmem:[#allocation2 + $0x18] sm:$0xff] %vm403, %v377
  %408 = vst.msk [vmem:[#allocation2 + $0x20] sm:$0xff] %vm403, %v380
  %409 = vst.msk [vmem:[#allocation2 + $0x28] sm:$0xff] %vm403, %v383
  %410 = vst.msk [vmem:[#allocation2 + $0x30] sm:$0xff] %vm403, %v386
  %411 = vst.msk [vmem:[#allocation2 + $0x38] sm:$0xff] %vm403, %v389
  %412 = vst.msk [vmem:[#allocation2 + $0x40] sm:$0xff] %vm403, %v392
  %413 = vst.msk [vmem:[#allocation2 + $0x48] sm:$0xff] %vm403, %v395
  %414 = vst.msk [vmem:[#allocation2 + $0x50] sm:$0xff] %vm403, %v398
  %415 = vst.msk [vmem:[#allocation2 + $0x58] sm:$0xff] %vm403, %v401
  %v416 = vld [vmem:[%s2] sm:$0xff]
  %v417 = vld [vmem:[%s2 + $0x8] sm:$0xff]
  %v418 = vld [vmem:[#allocation2] sm:$0x3]
  %vm419 = vcmask 130048
  %v421 = vsel %vm419, 0.0, 0
  %423 = vmatpush.msra.mxu0 0.0
  %424 = vmatpush.msra.mxu0 0.0
  %425 = vmatpush.msra.mxu0 0.0
  %426 = vmatpush.msra.mxu0 0.0
  %427 = vmatpush.msra.mxu0 0.0
  %428 = vmatpush.msra.mxu0 0.0
  %429 = vmatpush.msra.mxu0 0.0
  %430 = vmatpush.msra.mxu0 0.0
  %431 = vmatpush.msra.mxu0 0.0
  %432 = vmatpush.msra.mxu0 0.0
  %433 = vmatpush.msra.mxu0 0.0
  %434 = vmatpush.msra.mxu0 0.0
  %435 = vmatpush.msra.mxu0 0.0
  %436 = vmatpush.msra.mxu0 0.0
  %437 = vmatpush.msra.mxu0 %v417
  %438 = vmatpush.msra.mxu0 %v416
  %439 = vmatmul.f32.gmra.mxu0 %v421
  %v440 = vpop.f32.mrf.mxu0
  %v441 = vadd.f32 0.0, %v440
  %442 = vdwg.mxu0
  %v443 = vadd.f32 %v418, %v441
  %v444 = vxor.u32 %v443, 2147483648
  %v445 = vmul.f32 %v444, 1.442695
  %v446 = vpow.pop %v445
  %v447 = vadd.f32 %v446, 1.0
  %v448 = vrcp.pop %v447
  %v449 = vmul.f32 %v447, %v448
  %v450 = vsub.f32 1.0, %v449
  %v451 = vmul.f32 %v448, %v450
  %v452 = vadd.f32 %v448, %v451
  %vm453 = vweird.f32 %v447
  %vm454 = vweird.f32 %v448
  %vm455 = vmor %vm453, %vm454
  %v456 = vsel %vm455, %v448, %v452
  %v457 = vand.u32 2147483647, %v447
  %vm458 = vcmp.eq.f32.partialorder %v457, 8.507059e+37
  %v459 = vand.u32 %v447, 2147483648
  %v460 = vor.u32 1.1754944e-38, %v459
  %v461 = vsel %vm458, %v460, %v456
  %v462 = vmul.f32 1.0, %v461
  %v463 = vtanh.pop %v443
  %v464 = vmul.f32 %v462, 0.0
  %466 = vrot.lane.b32.xlu0 %v463, 96
  %v467 = vpop.permute.xlu0 %466
  %v469 = vmul.f32 %v462, %v467
  %471 = vrot.lane.b32.xlu0 %v469, 16
  %v472 = vpop.permute.xlu0 %471
  %v474 = vadd.f32 %v464, %v472
  %v475 = vtanh.pop %v474
  %477 = vrot.lane.b32.xlu0 %v475, 32
  %v478 = vpop.permute.xlu0 %477
  %v480 = vmul.f32 %v462, %v478
  %482 = vrot.lane.b32.xlu0 %v480, 80
  %v483 = vpop.permute.xlu0 %482
  %vm485 = vcmask 123904
  %486 = vst.msk [vmem:[#allocation3] sm:$0x3] %vm485, %v483
  %v487 = vld [vmem:[#allocation2 + $0x2] sm:$0x3]
  %v488 = vsel %vm419, %v483, 0
  %490 = vmatpush.msra.mxu0 0.0
  %491 = vmatpush.msra.mxu0 0.0
  %492 = vmatpush.msra.mxu0 0.0
  %493 = vmatpush.msra.mxu0 0.0
  %494 = vmatpush.msra.mxu0 0.0
  %495 = vmatpush.msra.mxu0 0.0
  %496 = vmatpush.msra.mxu0 0.0
  %497 = vmatpush.msra.mxu0 0.0
  %498 = vmatpush.msra.mxu0 0.0
  %499 = vmatpush.msra.mxu0 0.0
  %500 = vmatpush.msra.mxu0 0.0
  %501 = vmatpush.msra.mxu0 0.0
  %502 = vmatpush.msra.mxu0 0.0
  %503 = vmatpush.msra.mxu0 0.0
  %504 = vmatpush.msra.mxu0 %v417
  %505 = vmatpush.msra.mxu0 %v416
  %506 = vmatmul.f32.gmra.mxu0 %v488
  %v507 = vpop.f32.mrf.mxu0
  %v508 = vadd.f32 0.0, %v507
  %509 = vdwg.mxu0
  %v510 = vadd.f32 %v487, %v508
  %v511 = vxor.u32 %v510, 2147483648
  %v512 = vmul.f32 %v511, 1.442695
  %v513 = vpow.pop %v512
  %v514 = vadd.f32 %v513, 1.0
  %v515 = vrcp.pop %v514
  %v516 = vmul.f32 %v514, %v515
  %v517 = vsub.f32 1.0, %v516
  %v518 = vmul.f32 %v515, %v517
  %v519 = vadd.f32 %v515, %v518
  %vm520 = vweird.f32 %v514
  %vm521 = vweird.f32 %v515
  %vm522 = vmor %vm520, %vm521
  %v523 = vsel %vm522, %v515, %v519
  %v524 = vand.u32 2147483647, %v514
  %vm525 = vcmp.eq.f32.partialorder %v524, 8.507059e+37
  %v526 = vand.u32 %v514, 2147483648
  %v527 = vor.u32 1.1754944e-38, %v526
  %v528 = vsel %vm525, %v527, %v523
  %v529 = vmul.f32 1.0, %v528
  %v530 = vtanh.pop %v510
  %v531 = vmul.f32 %v529, %v474
  %533 = vrot.lane.b32.xlu0 %v530, 96
  %v534 = vpop.permute.xlu0 %533
  %v536 = vmul.f32 %v529, %v534
  %538 = vrot.lane.b32.xlu0 %v536, 16
  %v539 = vpop.permute.xlu0 %538
  %v541 = vadd.f32 %v531, %v539
  %v542 = vtanh.pop %v541
  %544 = vrot.lane.b32.xlu0 %v542, 32
  %v545 = vpop.permute.xlu0 %544
  %v547 = vmul.f32 %v529, %v545
  %549 = vrot.lane.b32.xlu0 %v547, 80
  %v550 = vpop.permute.xlu0 %549
  %552 = vst.msk [vmem:[#allocation3 + $0x2] sm:$0x3] %vm485, %v550
  %v553 = vld [vmem:[#allocation2 + $0x4] sm:$0x3]
  %v554 = vsel %vm419, %v550, 0
  %556 = vmatpush.msra.mxu0 0.0
  %557 = vmatpush.msra.mxu0 0.0
  %558 = vmatpush.msra.mxu0 0.0
  %559 = vmatpush.msra.mxu0 0.0
  %560 = vmatpush.msra.mxu0 0.0
  %561 = vmatpush.msra.mxu0 0.0
  %562 = vmatpush.msra.mxu0 0.0
  %563 = vmatpush.msra.mxu0 0.0
  %564 = vmatpush.msra.mxu0 0.0
  %565 = vmatpush.msra.mxu0 0.0
  %566 = vmatpush.msra.mxu0 0.0
  %567 = vmatpush.msra.mxu0 0.0
  %568 = vmatpush.msra.mxu0 0.0
  %569 = vmatpush.msra.mxu0 0.0
  %570 = vmatpush.msra.mxu0 %v417
  %571 = vmatpush.msra.mxu0 %v416
  %572 = vmatmul.f32.gmra.mxu0 %v554
  %v573 = vpop.f32.mrf.mxu0
  %v574 = vadd.f32 0.0, %v573
  %575 = vdwg.mxu0
  %v576 = vadd.f32 %v553, %v574
  %v577 = vxor.u32 %v576, 2147483648
  %v578 = vmul.f32 %v577, 1.442695
  %v579 = vpow.pop %v578
  %v580 = vadd.f32 %v579, 1.0
  %v581 = vrcp.pop %v580
  %v582 = vmul.f32 %v580, %v581
  %v583 = vsub.f32 1.0, %v582
  %v584 = vmul.f32 %v581, %v583
  %v585 = vadd.f32 %v581, %v584
  %vm586 = vweird.f32 %v580
  %vm587 = vweird.f32 %v581
  %vm588 = vmor %vm586, %vm587
  %v589 = vsel %vm588, %v581, %v585
  %v590 = vand.u32 2147483647, %v580
  %vm591 = vcmp.eq.f32.partialorder %v590, 8.507059e+37
  %v592 = vand.u32 %v580, 2147483648
  %v593 = vor.u32 1.1754944e-38, %v592
  %v594 = vsel %vm591, %v593, %v589
  %v595 = vmul.f32 1.0, %v594
  %v596 = vtanh.pop %v576
  %v597 = vmul.f32 %v595, %v541
  %599 = vrot.lane.b32.xlu0 %v596, 96
  %v600 = vpop.permute.xlu0 %599
  %v602 = vmul.f32 %v595, %v600
  %604 = vrot.lane.b32.xlu0 %v602, 16
  %v605 = vpop.permute.xlu0 %604
  %v607 = vadd.f32 %v597, %v605
  %v608 = vtanh.pop %v607
  %610 = vrot.lane.b32.xlu0 %v608, 32
  %v611 = vpop.permute.xlu0 %610
  %v613 = vmul.f32 %v595, %v611
  %615 = vrot.lane.b32.xlu0 %v613, 80
  %v616 = vpop.permute.xlu0 %615
  %618 = vst.msk [vmem:[#allocation3 + $0x4] sm:$0x3] %vm485, %v616
  %v619 = vld [vmem:[#allocation2 + $0x6] sm:$0x3]
  %v620 = vsel %vm419, %v616, 0
  %622 = vmatpush.msra.mxu0 0.0
  %623 = vmatpush.msra.mxu0 0.0
  %624 = vmatpush.msra.mxu0 0.0
  %625 = vmatpush.msra.mxu0 0.0
  %626 = vmatpush.msra.mxu0 0.0
  %627 = vmatpush.msra.mxu0 0.0
  %628 = vmatpush.msra.mxu0 0.0
  %629 = vmatpush.msra.mxu0 0.0
  %630 = vmatpush.msra.mxu0 0.0
  %631 = vmatpush.msra.mxu0 0.0
  %632 = vmatpush.msra.mxu0 0.0
  %633 = vmatpush.msra.mxu0 0.0
  %634 = vmatpush.msra.mxu0 0.0
  %635 = vmatpush.msra.mxu0 0.0
  %636 = vmatpush.msra.mxu0 %v417
  %637 = vmatpush.msra.mxu0 %v416
  %638 = vmatmul.f32.gmra.mxu0 %v620
  %v639 = vpop.f32.mrf.mxu0
  %v640 = vadd.f32 0.0, %v639
  %641 = vdwg.mxu0
  %v642 = vadd.f32 %v619, %v640
  %v643 = vxor.u32 %v642, 2147483648
  %v644 = vmul.f32 %v643, 1.442695
  %v645 = vpow.pop %v644
  %v646 = vadd.f32 %v645, 1.0
  %v647 = vrcp.pop %v646
  %v648 = vmul.f32 %v646, %v647
  %v649 = vsub.f32 1.0, %v648
  %v650 = vmul.f32 %v647, %v649
  %v651 = vadd.f32 %v647, %v650
  %vm652 = vweird.f32 %v646
  %vm653 = vweird.f32 %v647
  %vm654 = vmor %vm652, %vm653
  %v655 = vsel %vm654, %v647, %v651
  %v656 = vand.u32 2147483647, %v646
  %vm657 = vcmp.eq.f32.partialorder %v656, 8.507059e+37
  %v658 = vand.u32 %v646, 2147483648
  %v659 = vor.u32 1.1754944e-38, %v658
  %v660 = vsel %vm657, %v659, %v655
  %v661 = vmul.f32 1.0, %v660
  %v662 = vtanh.pop %v642
  %v663 = vmul.f32 %v661, %v607
  %665 = vrot.lane.b32.xlu0 %v662, 96
  %v666 = vpop.permute.xlu0 %665
  %v668 = vmul.f32 %v661, %v666
  %670 = vrot.lane.b32.xlu0 %v668, 16
  %v671 = vpop.permute.xlu0 %670
  %v673 = vadd.f32 %v663, %v671
  %v674 = vtanh.pop %v673
  %676 = vrot.lane.b32.xlu0 %v674, 32
  %v677 = vpop.permute.xlu0 %676
  %v679 = vmul.f32 %v661, %v677
  %681 = vrot.lane.b32.xlu0 %v679, 80
  %v682 = vpop.permute.xlu0 %681
  %684 = vst.msk [vmem:[#allocation3 + $0x6] sm:$0x3] %vm485, %v682
  %v685 = vld [vmem:[#allocation2 + $0x8] sm:$0x3]
  %v686 = vsel %vm419, %v682, 0
  %688 = vmatpush.msra.mxu0 0.0
  %689 = vmatpush.msra.mxu0 0.0
  %690 = vmatpush.msra.mxu0 0.0
  %691 = vmatpush.msra.mxu0 0.0
  %692 = vmatpush.msra.mxu0 0.0
  %693 = vmatpush.msra.mxu0 0.0
  %694 = vmatpush.msra.mxu0 0.0
  %695 = vmatpush.msra.mxu0 0.0
  %696 = vmatpush.msra.mxu0 0.0
  %697 = vmatpush.msra.mxu0 0.0
  %698 = vmatpush.msra.mxu0 0.0
  %699 = vmatpush.msra.mxu0 0.0
  %700 = vmatpush.msra.mxu0 0.0
  %701 = vmatpush.msra.mxu0 0.0
  %702 = vmatpush.msra.mxu0 %v417
  %703 = vmatpush.msra.mxu0 %v416
  %704 = vmatmul.f32.gmra.mxu0 %v686
  %v705 = vpop.f32.mrf.mxu0
  %v706 = vadd.f32 0.0, %v705
  %707 = vdwg.mxu0
  %v708 = vadd.f32 %v685, %v706
  %v709 = vxor.u32 %v708, 2147483648
  %v710 = vmul.f32 %v709, 1.442695
  %v711 = vpow.pop %v710
  %v712 = vadd.f32 %v711, 1.0
  %v713 = vrcp.pop %v712
  %v714 = vmul.f32 %v712, %v713
  %v715 = vsub.f32 1.0, %v714
  %v716 = vmul.f32 %v713, %v715
  %v717 = vadd.f32 %v713, %v716
  %vm718 = vweird.f32 %v712
  %vm719 = vweird.f32 %v713
  %vm720 = vmor %vm718, %vm719
  %v721 = vsel %vm720, %v713, %v717
  %v722 = vand.u32 2147483647, %v712
  %vm723 = vcmp.eq.f32.partialorder %v722, 8.507059e+37
  %v724 = vand.u32 %v712, 2147483648
  %v725 = vor.u32 1.1754944e-38, %v724
  %v726 = vsel %vm723, %v725, %v721
  %v727 = vmul.f32 1.0, %v726
  %v728 = vtanh.pop %v708
  %v729 = vmul.f32 %v727, %v673
  %731 = vrot.lane.b32.xlu0 %v728, 96
  %v732 = vpop.permute.xlu0 %731
  %v734 = vmul.f32 %v727, %v732
  %736 = vrot.lane.b32.xlu0 %v734, 16
  %v737 = vpop.permute.xlu0 %736
  %v739 = vadd.f32 %v729, %v737
  %v740 = vtanh.pop %v739
  %742 = vrot.lane.b32.xlu0 %v740, 32
  %v743 = vpop.permute.xlu0 %742
  %v745 = vmul.f32 %v727, %v743
  %747 = vrot.lane.b32.xlu0 %v745, 80
  %v748 = vpop.permute.xlu0 %747
  %750 = vst.msk [vmem:[#allocation3 + $0x8] sm:$0x3] %vm485, %v748
  %v751 = vld [vmem:[#allocation2 + $0xa] sm:$0x3]
  %v752 = vsel %vm419, %v748, 0
  %754 = vmatpush.msra.mxu0 0.0
  %755 = vmatpush.msra.mxu0 0.0
  %756 = vmatpush.msra.mxu0 0.0
  %757 = vmatpush.msra.mxu0 0.0
  %758 = vmatpush.msra.mxu0 0.0
  %759 = vmatpush.msra.mxu0 0.0
  %760 = vmatpush.msra.mxu0 0.0
  %761 = vmatpush.msra.mxu0 0.0
  %762 = vmatpush.msra.mxu0 0.0
  %763 = vmatpush.msra.mxu0 0.0
  %764 = vmatpush.msra.mxu0 0.0
  %765 = vmatpush.msra.mxu0 0.0
  %766 = vmatpush.msra.mxu0 0.0
  %767 = vmatpush.msra.mxu0 0.0
  %768 = vmatpush.msra.mxu0 %v417
  %769 = vmatpush.msra.mxu0 %v416
  %770 = vmatmul.f32.gmra.mxu0 %v752
  %v771 = vpop.f32.mrf.mxu0
  %v772 = vadd.f32 0.0, %v771
  %773 = vdwg.mxu0
  %v774 = vadd.f32 %v751, %v772
  %v775 = vxor.u32 %v774, 2147483648
  %v776 = vmul.f32 %v775, 1.442695
  %v777 = vpow.pop %v776
  %v778 = vadd.f32 %v777, 1.0
  %v779 = vrcp.pop %v778
  %v780 = vmul.f32 %v778, %v779
  %v781 = vsub.f32 1.0, %v780
  %v782 = vmul.f32 %v779, %v781
  %v783 = vadd.f32 %v779, %v782
  %vm784 = vweird.f32 %v778
  %vm785 = vweird.f32 %v779
  %vm786 = vmor %vm784, %vm785
  %v787 = vsel %vm786, %v779, %v783
  %v788 = vand.u32 2147483647, %v778
  %vm789 = vcmp.eq.f32.partialorder %v788, 8.507059e+37
  %v790 = vand.u32 %v778, 2147483648
  %v791 = vor.u32 1.1754944e-38, %v790
  %v792 = vsel %vm789, %v791, %v787
  %v793 = vmul.f32 1.0, %v792
  %v794 = vtanh.pop %v774
  %v795 = vmul.f32 %v793, %v739
  %797 = vrot.lane.b32.xlu0 %v794, 96
  %v798 = vpop.permute.xlu0 %797
  %v800 = vmul.f32 %v793, %v798
  %802 = vrot.lane.b32.xlu0 %v800, 16
  %v803 = vpop.permute.xlu0 %802
  %v805 = vadd.f32 %v795, %v803
  %v806 = vtanh.pop %v805
  %808 = vrot.lane.b32.xlu0 %v806, 32
  %v809 = vpop.permute.xlu0 %808
  %v811 = vmul.f32 %v793, %v809
  %813 = vrot.lane.b32.xlu0 %v811, 80
  %v814 = vpop.permute.xlu0 %813
  %816 = vst.msk [vmem:[#allocation3 + $0xa] sm:$0x3] %vm485, %v814
  %v817 = vld [vmem:[#allocation2 + $0xc] sm:$0x3]
  %v818 = vsel %vm419, %v814, 0
  %820 = vmatpush.msra.mxu0 0.0
  %821 = vmatpush.msra.mxu0 0.0
  %822 = vmatpush.msra.mxu0 0.0
  %823 = vmatpush.msra.mxu0 0.0
  %824 = vmatpush.msra.mxu0 0.0
  %825 = vmatpush.msra.mxu0 0.0
  %826 = vmatpush.msra.mxu0 0.0
  %827 = vmatpush.msra.mxu0 0.0
  %828 = vmatpush.msra.mxu0 0.0
  %829 = vmatpush.msra.mxu0 0.0
  %830 = vmatpush.msra.mxu0 0.0
  %831 = vmatpush.msra.mxu0 0.0
  %832 = vmatpush.msra.mxu0 0.0
  %833 = vmatpush.msra.mxu0 0.0
  %834 = vmatpush.msra.mxu0 %v417
  %835 = vmatpush.msra.mxu0 %v416
  %836 = vmatmul.f32.gmra.mxu0 %v818
  %v837 = vpop.f32.mrf.mxu0
  %v838 = vadd.f32 0.0, %v837
  %839 = vdwg.mxu0
  %v840 = vadd.f32 %v817, %v838
  %v841 = vxor.u32 %v840, 2147483648
  %v842 = vmul.f32 %v841, 1.442695
  %v843 = vpow.pop %v842
  %v844 = vadd.f32 %v843, 1.0
  %v845 = vrcp.pop %v844
  %v846 = vmul.f32 %v844, %v845
  %v847 = vsub.f32 1.0, %v846
  %v848 = vmul.f32 %v845, %v847
  %v849 = vadd.f32 %v845, %v848
  %vm850 = vweird.f32 %v844
  %vm851 = vweird.f32 %v845
  %vm852 = vmor %vm850, %vm851
  %v853 = vsel %vm852, %v845, %v849
  %v854 = vand.u32 2147483647, %v844
  %vm855 = vcmp.eq.f32.partialorder %v854, 8.507059e+37
  %v856 = vand.u32 %v844, 2147483648
  %v857 = vor.u32 1.1754944e-38, %v856
  %v858 = vsel %vm855, %v857, %v853
  %v859 = vmul.f32 1.0, %v858
  %v860 = vtanh.pop %v840
  %v861 = vmul.f32 %v859, %v805
  %863 = vrot.lane.b32.xlu0 %v860, 96
  %v864 = vpop.permute.xlu0 %863
  %v866 = vmul.f32 %v859, %v864
  %868 = vrot.lane.b32.xlu0 %v866, 16
  %v869 = vpop.permute.xlu0 %868
  %v871 = vadd.f32 %v861, %v869
  %v872 = vtanh.pop %v871
  %874 = vrot.lane.b32.xlu0 %v872, 32
  %v875 = vpop.permute.xlu0 %874
  %v877 = vmul.f32 %v859, %v875
  %879 = vrot.lane.b32.xlu0 %v877, 80
  %v880 = vpop.permute.xlu0 %879
  %882 = vst.msk [vmem:[#allocation3 + $0xc] sm:$0x3] %vm485, %v880
  %v883 = vld [vmem:[#allocation2 + $0xe] sm:$0x3]
  %v884 = vsel %vm419, %v880, 0
  %886 = vmatpush.msra.mxu0 0.0
  %887 = vmatpush.msra.mxu0 0.0
  %888 = vmatpush.msra.mxu0 0.0
  %889 = vmatpush.msra.mxu0 0.0
  %890 = vmatpush.msra.mxu0 0.0
  %891 = vmatpush.msra.mxu0 0.0
  %892 = vmatpush.msra.mxu0 0.0
  %893 = vmatpush.msra.mxu0 0.0
  %894 = vmatpush.msra.mxu0 0.0
  %895 = vmatpush.msra.mxu0 0.0
  %896 = vmatpush.msra.mxu0 0.0
  %897 = vmatpush.msra.mxu0 0.0
  %898 = vmatpush.msra.mxu0 0.0
  %899 = vmatpush.msra.mxu0 0.0
  %900 = vmatpush.msra.mxu0 %v417
  %901 = vmatpush.msra.mxu0 %v416
  %902 = vmatmul.f32.gmra.mxu0 %v884
  %v903 = vpop.f32.mrf.mxu0
  %v904 = vadd.f32 0.0, %v903
  %905 = vdwg.mxu0
  %v906 = vadd.f32 %v883, %v904
  %v907 = vxor.u32 %v906, 2147483648
  %v908 = vmul.f32 %v907, 1.442695
  %v909 = vpow.pop %v908
  %v910 = vadd.f32 %v909, 1.0
  %v911 = vrcp.pop %v910
  %v912 = vmul.f32 %v910, %v911
  %v913 = vsub.f32 1.0, %v912
  %v914 = vmul.f32 %v911, %v913
  %v915 = vadd.f32 %v911, %v914
  %vm916 = vweird.f32 %v910
  %vm917 = vweird.f32 %v911
  %vm918 = vmor %vm916, %vm917
  %v919 = vsel %vm918, %v911, %v915
  %v920 = vand.u32 2147483647, %v910
  %vm921 = vcmp.eq.f32.partialorder %v920, 8.507059e+37
  %v922 = vand.u32 %v910, 2147483648
  %v923 = vor.u32 1.1754944e-38, %v922
  %v924 = vsel %vm921, %v923, %v919
  %v925 = vmul.f32 1.0, %v924
  %v926 = vtanh.pop %v906
  %v927 = vmul.f32 %v925, %v871
  %929 = vrot.lane.b32.xlu0 %v926, 96
  %v930 = vpop.permute.xlu0 %929
  %v932 = vmul.f32 %v925, %v930
  %934 = vrot.lane.b32.xlu0 %v932, 16
  %v935 = vpop.permute.xlu0 %934
  %v937 = vadd.f32 %v927, %v935
  %v938 = vtanh.pop %v937
  %940 = vrot.lane.b32.xlu0 %v938, 32
  %v941 = vpop.permute.xlu0 %940
  %v943 = vmul.f32 %v925, %v941
  %945 = vrot.lane.b32.xlu0 %v943, 80
  %v946 = vpop.permute.xlu0 %945
  %948 = vst.msk [vmem:[#allocation3 + $0xe] sm:$0x3] %vm485, %v946
  %v949 = vld [vmem:[#allocation2 + $0x10] sm:$0x3]
  %v950 = vsel %vm419, %v946, 0
  %952 = vmatpush.msra.mxu0 0.0
  %953 = vmatpush.msra.mxu0 0.0
  %954 = vmatpush.msra.mxu0 0.0
  %955 = vmatpush.msra.mxu0 0.0
  %956 = vmatpush.msra.mxu0 0.0
  %957 = vmatpush.msra.mxu0 0.0
  %958 = vmatpush.msra.mxu0 0.0
  %959 = vmatpush.msra.mxu0 0.0
  %960 = vmatpush.msra.mxu0 0.0
  %961 = vmatpush.msra.mxu0 0.0
  %962 = vmatpush.msra.mxu0 0.0
  %963 = vmatpush.msra.mxu0 0.0
  %964 = vmatpush.msra.mxu0 0.0
  %965 = vmatpush.msra.mxu0 0.0
  %966 = vmatpush.msra.mxu0 %v417
  %967 = vmatpush.msra.mxu0 %v416
  %968 = vmatmul.f32.gmra.mxu0 %v950
  %v969 = vpop.f32.mrf.mxu0
  %v970 = vadd.f32 0.0, %v969
  %971 = vdwg.mxu0
  %v972 = vadd.f32 %v949, %v970
  %v973 = vxor.u32 %v972, 2147483648
  %v974 = vmul.f32 %v973, 1.442695
  %v975 = vpow.pop %v974
  %v976 = vadd.f32 %v975, 1.0
  %v977 = vrcp.pop %v976
  %v978 = vmul.f32 %v976, %v977
  %v979 = vsub.f32 1.0, %v978
  %v980 = vmul.f32 %v977, %v979
  %v981 = vadd.f32 %v977, %v980
  %vm982 = vweird.f32 %v976
  %vm983 = vweird.f32 %v977
  %vm984 = vmor %vm982, %vm983
  %v985 = vsel %vm984, %v977, %v981
  %v986 = vand.u32 2147483647, %v976
  %vm987 = vcmp.eq.f32.partialorder %v986, 8.507059e+37
  %v988 = vand.u32 %v976, 2147483648
  %v989 = vor.u32 1.1754944e-38, %v988
  %v990 = vsel %vm987, %v989, %v985
  %v991 = vmul.f32 1.0, %v990
  %v992 = vtanh.pop %v972
  %v993 = vmul.f32 %v991, %v937
  %995 = vrot.lane.b32.xlu0 %v992, 96
  %v996 = vpop.permute.xlu0 %995
  %v998 = vmul.f32 %v991, %v996
  %1000 = vrot.lane.b32.xlu0 %v998, 16
  %v1001 = vpop.permute.xlu0 %1000
  %v1003 = vadd.f32 %v993, %v1001
  %v1004 = vtanh.pop %v1003
  %1006 = vrot.lane.b32.xlu0 %v1004, 32
  %v1007 = vpop.permute.xlu0 %1006
  %v1009 = vmul.f32 %v991, %v1007
  %1011 = vrot.lane.b32.xlu0 %v1009, 80
  %v1012 = vpop.permute.xlu0 %1011
  %1014 = vst.msk [vmem:[#allocation3 + $0x10] sm:$0x3] %vm485, %v1012
  %v1015 = vld [vmem:[#allocation2 + $0x12] sm:$0x3]
  %v1016 = vsel %vm419, %v1012, 0
  %1018 = vmatpush.msra.mxu0 0.0
  %1019 = vmatpush.msra.mxu0 0.0
  %1020 = vmatpush.msra.mxu0 0.0
  %1021 = vmatpush.msra.mxu0 0.0
  %1022 = vmatpush.msra.mxu0 0.0
  %1023 = vmatpush.msra.mxu0 0.0
  %1024 = vmatpush.msra.mxu0 0.0
  %1025 = vmatpush.msra.mxu0 0.0
  %1026 = vmatpush.msra.mxu0 0.0
  %1027 = vmatpush.msra.mxu0 0.0
  %1028 = vmatpush.msra.mxu0 0.0
  %1029 = vmatpush.msra.mxu0 0.0
  %1030 = vmatpush.msra.mxu0 0.0
  %1031 = vmatpush.msra.mxu0 0.0
  %1032 = vmatpush.msra.mxu0 %v417
  %1033 = vmatpush.msra.mxu0 %v416
  %1034 = vmatmul.f32.gmra.mxu0 %v1016
  %v1035 = vpop.f32.mrf.mxu0
  %v1036 = vadd.f32 0.0, %v1035
  %1037 = vdwg.mxu0
  %v1038 = vadd.f32 %v1015, %v1036
  %v1039 = vxor.u32 %v1038, 2147483648
  %v1040 = vmul.f32 %v1039, 1.442695
  %v1041 = vpow.pop %v1040
  %v1042 = vadd.f32 %v1041, 1.0
  %v1043 = vrcp.pop %v1042
  %v1044 = vmul.f32 %v1042, %v1043
  %v1045 = vsub.f32 1.0, %v1044
  %v1046 = vmul.f32 %v1043, %v1045
  %v1047 = vadd.f32 %v1043, %v1046
  %vm1048 = vweird.f32 %v1042
  %vm1049 = vweird.f32 %v1043
  %vm1050 = vmor %vm1048, %vm1049
  %v1051 = vsel %vm1050, %v1043, %v1047
  %v1052 = vand.u32 2147483647, %v1042
  %vm1053 = vcmp.eq.f32.partialorder %v1052, 8.507059e+37
  %v1054 = vand.u32 %v1042, 2147483648
  %v1055 = vor.u32 1.1754944e-38, %v1054
  %v1056 = vsel %vm1053, %v1055, %v1051
  %v1057 = vmul.f32 1.0, %v1056
  %v1058 = vtanh.pop %v1038
  %v1059 = vmul.f32 %v1057, %v1003
  %1061 = vrot.lane.b32.xlu0 %v1058, 96
  %v1062 = vpop.permute.xlu0 %1061
  %v1064 = vmul.f32 %v1057, %v1062
  %1066 = vrot.lane.b32.xlu0 %v1064, 16
  %v1067 = vpop.permute.xlu0 %1066
  %v1069 = vadd.f32 %v1059, %v1067
  %v1070 = vtanh.pop %v1069
  %1072 = vrot.lane.b32.xlu0 %v1070, 32
  %v1073 = vpop.permute.xlu0 %1072
  %v1075 = vmul.f32 %v1057, %v1073
  %1077 = vrot.lane.b32.xlu0 %v1075, 80
  %v1078 = vpop.permute.xlu0 %1077
  %1080 = vst.msk [vmem:[#allocation3 + $0x12] sm:$0x3] %vm485, %v1078
  %v1081 = vld [vmem:[#allocation2 + $0x14] sm:$0x3]
  %v1082 = vsel %vm419, %v1078, 0
  %1084 = vmatpush.msra.mxu0 0.0
  %1085 = vmatpush.msra.mxu0 0.0
  %1086 = vmatpush.msra.mxu0 0.0
  %1087 = vmatpush.msra.mxu0 0.0
  %1088 = vmatpush.msra.mxu0 0.0
  %1089 = vmatpush.msra.mxu0 0.0
  %1090 = vmatpush.msra.mxu0 0.0
  %1091 = vmatpush.msra.mxu0 0.0
  %1092 = vmatpush.msra.mxu0 0.0
  %1093 = vmatpush.msra.mxu0 0.0
  %1094 = vmatpush.msra.mxu0 0.0
  %1095 = vmatpush.msra.mxu0 0.0
  %1096 = vmatpush.msra.mxu0 0.0
  %1097 = vmatpush.msra.mxu0 0.0
  %1098 = vmatpush.msra.mxu0 %v417
  %1099 = vmatpush.msra.mxu0 %v416
  %1100 = vmatmul.f32.gmra.mxu0 %v1082
  %v1101 = vpop.f32.mrf.mxu0
  %v1102 = vadd.f32 0.0, %v1101
  %1103 = vdwg.mxu0
  %v1104 = vadd.f32 %v1081, %v1102
  %v1105 = vxor.u32 %v1104, 2147483648
  %v1106 = vmul.f32 %v1105, 1.442695
  %v1107 = vpow.pop %v1106
  %v1108 = vadd.f32 %v1107, 1.0
  %v1109 = vrcp.pop %v1108
  %v1110 = vmul.f32 %v1108, %v1109
  %v1111 = vsub.f32 1.0, %v1110
  %v1112 = vmul.f32 %v1109, %v1111
  %v1113 = vadd.f32 %v1109, %v1112
  %vm1114 = vweird.f32 %v1108
  %vm1115 = vweird.f32 %v1109
  %vm1116 = vmor %vm1114, %vm1115
  %v1117 = vsel %vm1116, %v1109, %v1113
  %v1118 = vand.u32 2147483647, %v1108
  %vm1119 = vcmp.eq.f32.partialorder %v1118, 8.507059e+37
  %v1120 = vand.u32 %v1108, 2147483648
  %v1121 = vor.u32 1.1754944e-38, %v1120
  %v1122 = vsel %vm1119, %v1121, %v1117
  %v1123 = vmul.f32 1.0, %v1122
  %v1124 = vtanh.pop %v1104
  %v1125 = vmul.f32 %v1123, %v1069
  %1127 = vrot.lane.b32.xlu0 %v1124, 96
  %v1128 = vpop.permute.xlu0 %1127
  %v1130 = vmul.f32 %v1123, %v1128
  %1132 = vrot.lane.b32.xlu0 %v1130, 16
  %v1133 = vpop.permute.xlu0 %1132
  %v1135 = vadd.f32 %v1125, %v1133
  %v1136 = vtanh.pop %v1135
  %1138 = vrot.lane.b32.xlu0 %v1136, 32
  %v1139 = vpop.permute.xlu0 %1138
  %v1141 = vmul.f32 %v1123, %v1139
  %1143 = vrot.lane.b32.xlu0 %v1141, 80
  %v1144 = vpop.permute.xlu0 %1143
  %1146 = vst.msk [vmem:[#allocation3 + $0x14] sm:$0x3] %vm485, %v1144
  %v1147 = vld [vmem:[#allocation2 + $0x16] sm:$0x3]
  %v1148 = vsel %vm419, %v1144, 0
  %1150 = vmatpush.msra.mxu0 0.0
  %1151 = vmatpush.msra.mxu0 0.0
  %1152 = vmatpush.msra.mxu0 0.0
  %1153 = vmatpush.msra.mxu0 0.0
  %1154 = vmatpush.msra.mxu0 0.0
  %1155 = vmatpush.msra.mxu0 0.0
  %1156 = vmatpush.msra.mxu0 0.0
  %1157 = vmatpush.msra.mxu0 0.0
  %1158 = vmatpush.msra.mxu0 0.0
  %1159 = vmatpush.msra.mxu0 0.0
  %1160 = vmatpush.msra.mxu0 0.0
  %1161 = vmatpush.msra.mxu0 0.0
  %1162 = vmatpush.msra.mxu0 0.0
  %1163 = vmatpush.msra.mxu0 0.0
  %1164 = vmatpush.msra.mxu0 %v417
  %1165 = vmatpush.msra.mxu0 %v416
  %1166 = vmatmul.f32.gmra.mxu0 %v1148
  %v1167 = vpop.f32.mrf.mxu0
  %v1168 = vadd.f32 0.0, %v1167
  %1169 = vdwg.mxu0
  %v1170 = vadd.f32 %v1147, %v1168
  %v1171 = vxor.u32 %v1170, 2147483648
  %v1172 = vmul.f32 %v1171, 1.442695
  %v1173 = vpow.pop %v1172
  %v1174 = vadd.f32 %v1173, 1.0
  %v1175 = vrcp.pop %v1174
  %v1176 = vmul.f32 %v1174, %v1175
  %v1177 = vsub.f32 1.0, %v1176
  %v1178 = vmul.f32 %v1175, %v1177
  %v1179 = vadd.f32 %v1175, %v1178
  %vm1180 = vweird.f32 %v1174
  %vm1181 = vweird.f32 %v1175
  %vm1182 = vmor %vm1180, %vm1181
  %v1183 = vsel %vm1182, %v1175, %v1179
  %v1184 = vand.u32 2147483647, %v1174
  %vm1185 = vcmp.eq.f32.partialorder %v1184, 8.507059e+37
  %v1186 = vand.u32 %v1174, 2147483648
  %v1187 = vor.u32 1.1754944e-38, %v1186
  %v1188 = vsel %vm1185, %v1187, %v1183
  %v1189 = vmul.f32 1.0, %v1188
  %v1190 = vtanh.pop %v1170
  %v1191 = vmul.f32 %v1189, %v1135
  %1193 = vrot.lane.b32.xlu0 %v1190, 96
  %v1194 = vpop.permute.xlu0 %1193
  %v1196 = vmul.f32 %v1189, %v1194
  %1198 = vrot.lane.b32.xlu0 %v1196, 16
  %v1199 = vpop.permute.xlu0 %1198
  %v1201 = vadd.f32 %v1191, %v1199
  %v1202 = vtanh.pop %v1201
  %1204 = vrot.lane.b32.xlu0 %v1202, 32
  %v1205 = vpop.permute.xlu0 %1204
  %v1207 = vmul.f32 %v1189, %v1205
  %1209 = vrot.lane.b32.xlu0 %v1207, 80
  %v1210 = vpop.permute.xlu0 %1209
  %1212 = vst.msk [vmem:[#allocation3 + $0x16] sm:$0x3] %vm485, %v1210
  %v1213 = vld [vmem:[#allocation2 + $0x18] sm:$0x3]
  %v1214 = vsel %vm419, %v1210, 0
  %1216 = vmatpush.msra.mxu0 0.0
  %1217 = vmatpush.msra.mxu0 0.0
  %1218 = vmatpush.msra.mxu0 0.0
  %1219 = vmatpush.msra.mxu0 0.0
  %1220 = vmatpush.msra.mxu0 0.0
  %1221 = vmatpush.msra.mxu0 0.0
  %1222 = vmatpush.msra.mxu0 0.0
  %1223 = vmatpush.msra.mxu0 0.0
  %1224 = vmatpush.msra.mxu0 0.0
  %1225 = vmatpush.msra.mxu0 0.0
  %1226 = vmatpush.msra.mxu0 0.0
  %1227 = vmatpush.msra.mxu0 0.0
  %1228 = vmatpush.msra.mxu0 0.0
  %1229 = vmatpush.msra.mxu0 0.0
  %1230 = vmatpush.msra.mxu0 %v417
  %1231 = vmatpush.msra.mxu0 %v416
  %1232 = vmatmul.f32.gmra.mxu0 %v1214
  %v1233 = vpop.f32.mrf.mxu0
  %v1234 = vadd.f32 0.0, %v1233
  %1235 = vdwg.mxu0
  %v1236 = vadd.f32 %v1213, %v1234
  %v1237 = vxor.u32 %v1236, 2147483648
  %v1238 = vmul.f32 %v1237, 1.442695
  %v1239 = vpow.pop %v1238
  %v1240 = vadd.f32 %v1239, 1.0
  %v1241 = vrcp.pop %v1240
  %v1242 = vmul.f32 %v1240, %v1241
  %v1243 = vsub.f32 1.0, %v1242
  %v1244 = vmul.f32 %v1241, %v1243
  %v1245 = vadd.f32 %v1241, %v1244
  %vm1246 = vweird.f32 %v1240
  %vm1247 = vweird.f32 %v1241
  %vm1248 = vmor %vm1246, %vm1247
  %v1249 = vsel %vm1248, %v1241, %v1245
  %v1250 = vand.u32 2147483647, %v1240
  %vm1251 = vcmp.eq.f32.partialorder %v1250, 8.507059e+37
  %v1252 = vand.u32 %v1240, 2147483648
  %v1253 = vor.u32 1.1754944e-38, %v1252
  %v1254 = vsel %vm1251, %v1253, %v1249
  %v1255 = vmul.f32 1.0, %v1254
  %v1256 = vtanh.pop %v1236
  %v1257 = vmul.f32 %v1255, %v1201
  %1259 = vrot.lane.b32.xlu0 %v1256, 96
  %v1260 = vpop.permute.xlu0 %1259
  %v1262 = vmul.f32 %v1255, %v1260
  %1264 = vrot.lane.b32.xlu0 %v1262, 16
  %v1265 = vpop.permute.xlu0 %1264
  %v1267 = vadd.f32 %v1257, %v1265
  %v1268 = vtanh.pop %v1267
  %1270 = vrot.lane.b32.xlu0 %v1268, 32
  %v1271 = vpop.permute.xlu0 %1270
  %v1273 = vmul.f32 %v1255, %v1271
  %1275 = vrot.lane.b32.xlu0 %v1273, 80
  %v1276 = vpop.permute.xlu0 %1275
  %1278 = vst.msk [vmem:[#allocation3 + $0x18] sm:$0x3] %vm485, %v1276
  %v1279 = vld [vmem:[#allocation2 + $0x1a] sm:$0x3]
  %v1280 = vsel %vm419, %v1276, 0
  %1282 = vmatpush.msra.mxu0 0.0
  %1283 = vmatpush.msra.mxu0 0.0
  %1284 = vmatpush.msra.mxu0 0.0
  %1285 = vmatpush.msra.mxu0 0.0
  %1286 = vmatpush.msra.mxu0 0.0
  %1287 = vmatpush.msra.mxu0 0.0
  %1288 = vmatpush.msra.mxu0 0.0
  %1289 = vmatpush.msra.mxu0 0.0
  %1290 = vmatpush.msra.mxu0 0.0
  %1291 = vmatpush.msra.mxu0 0.0
  %1292 = vmatpush.msra.mxu0 0.0
  %1293 = vmatpush.msra.mxu0 0.0
  %1294 = vmatpush.msra.mxu0 0.0
  %1295 = vmatpush.msra.mxu0 0.0
  %1296 = vmatpush.msra.mxu0 %v417
  %1297 = vmatpush.msra.mxu0 %v416
  %1298 = vmatmul.f32.gmra.mxu0 %v1280
  %v1299 = vpop.f32.mrf.mxu0
  %v1300 = vadd.f32 0.0, %v1299
  %1301 = vdwg.mxu0
  %v1302 = vadd.f32 %v1279, %v1300
  %v1303 = vxor.u32 %v1302, 2147483648
  %v1304 = vmul.f32 %v1303, 1.442695
  %v1305 = vpow.pop %v1304
  %v1306 = vadd.f32 %v1305, 1.0
  %v1307 = vrcp.pop %v1306
  %v1308 = vmul.f32 %v1306, %v1307
  %v1309 = vsub.f32 1.0, %v1308
  %v1310 = vmul.f32 %v1307, %v1309
  %v1311 = vadd.f32 %v1307, %v1310
  %vm1312 = vweird.f32 %v1306
  %vm1313 = vweird.f32 %v1307
  %vm1314 = vmor %vm1312, %vm1313
  %v1315 = vsel %vm1314, %v1307, %v1311
  %v1316 = vand.u32 2147483647, %v1306
  %vm1317 = vcmp.eq.f32.partialorder %v1316, 8.507059e+37
  %v1318 = vand.u32 %v1306, 2147483648
  %v1319 = vor.u32 1.1754944e-38, %v1318
  %v1320 = vsel %vm1317, %v1319, %v1315
  %v1321 = vmul.f32 1.0, %v1320
  %v1322 = vtanh.pop %v1302
  %v1323 = vmul.f32 %v1321, %v1267
  %1325 = vrot.lane.b32.xlu0 %v1322, 96
  %v1326 = vpop.permute.xlu0 %1325
  %v1328 = vmul.f32 %v1321, %v1326
  %1330 = vrot.lane.b32.xlu0 %v1328, 16
  %v1331 = vpop.permute.xlu0 %1330
  %v1333 = vadd.f32 %v1323, %v1331
  %v1334 = vtanh.pop %v1333
  %1336 = vrot.lane.b32.xlu0 %v1334, 32
  %v1337 = vpop.permute.xlu0 %1336
  %v1339 = vmul.f32 %v1321, %v1337
  %1341 = vrot.lane.b32.xlu0 %v1339, 80
  %v1342 = vpop.permute.xlu0 %1341
  %1344 = vst.msk [vmem:[#allocation3 + $0x1a] sm:$0x3] %vm485, %v1342
  %v1345 = vld [vmem:[#allocation2 + $0x1c] sm:$0x3]
  %v1346 = vsel %vm419, %v1342, 0
  %1348 = vmatpush.msra.mxu0 0.0
  %1349 = vmatpush.msra.mxu0 0.0
  %1350 = vmatpush.msra.mxu0 0.0
  %1351 = vmatpush.msra.mxu0 0.0
  %1352 = vmatpush.msra.mxu0 0.0
  %1353 = vmatpush.msra.mxu0 0.0
  %1354 = vmatpush.msra.mxu0 0.0
  %1355 = vmatpush.msra.mxu0 0.0
  %1356 = vmatpush.msra.mxu0 0.0
  %1357 = vmatpush.msra.mxu0 0.0
  %1358 = vmatpush.msra.mxu0 0.0
  %1359 = vmatpush.msra.mxu0 0.0
  %1360 = vmatpush.msra.mxu0 0.0
  %1361 = vmatpush.msra.mxu0 0.0
  %1362 = vmatpush.msra.mxu0 %v417
  %1363 = vmatpush.msra.mxu0 %v416
  %1364 = vmatmul.f32.gmra.mxu0 %v1346
  %v1365 = vpop.f32.mrf.mxu0
  %v1366 = vadd.f32 0.0, %v1365
  %1367 = vdwg.mxu0
  %v1368 = vadd.f32 %v1345, %v1366
  %v1369 = vxor.u32 %v1368, 2147483648
  %v1370 = vmul.f32 %v1369, 1.442695
  %v1371 = vpow.pop %v1370
  %v1372 = vadd.f32 %v1371, 1.0
  %v1373 = vrcp.pop %v1372
  %v1374 = vmul.f32 %v1372, %v1373
  %v1375 = vsub.f32 1.0, %v1374
  %v1376 = vmul.f32 %v1373, %v1375
  %v1377 = vadd.f32 %v1373, %v1376
  %vm1378 = vweird.f32 %v1372
  %vm1379 = vweird.f32 %v1373
  %vm1380 = vmor %vm1378, %vm1379
  %v1381 = vsel %vm1380, %v1373, %v1377
  %v1382 = vand.u32 2147483647, %v1372
  %vm1383 = vcmp.eq.f32.partialorder %v1382, 8.507059e+37
  %v1384 = vand.u32 %v1372, 2147483648
  %v1385 = vor.u32 1.1754944e-38, %v1384
  %v1386 = vsel %vm1383, %v1385, %v1381
  %v1387 = vmul.f32 1.0, %v1386
  %v1388 = vtanh.pop %v1368
  %v1389 = vmul.f32 %v1387, %v1333
  %1391 = vrot.lane.b32.xlu0 %v1388, 96
  %v1392 = vpop.permute.xlu0 %1391
  %v1394 = vmul.f32 %v1387, %v1392
  %1396 = vrot.lane.b32.xlu0 %v1394, 16
  %v1397 = vpop.permute.xlu0 %1396
  %v1399 = vadd.f32 %v1389, %v1397
  %v1400 = vtanh.pop %v1399
  %1402 = vrot.lane.b32.xlu0 %v1400, 32
  %v1403 = vpop.permute.xlu0 %1402
  %v1405 = vmul.f32 %v1387, %v1403
  %1407 = vrot.lane.b32.xlu0 %v1405, 80
  %v1408 = vpop.permute.xlu0 %1407
  %1410 = vst.msk [vmem:[#allocation3 + $0x1c] sm:$0x3] %vm485, %v1408
  %v1411 = vld [vmem:[#allocation2 + $0x1e] sm:$0x3]
  %v1412 = vsel %vm419, %v1408, 0
  %1414 = vmatpush.msra.mxu0 0.0
  %1415 = vmatpush.msra.mxu0 0.0
  %1416 = vmatpush.msra.mxu0 0.0
  %1417 = vmatpush.msra.mxu0 0.0
  %1418 = vmatpush.msra.mxu0 0.0
  %1419 = vmatpush.msra.mxu0 0.0
  %1420 = vmatpush.msra.mxu0 0.0
  %1421 = vmatpush.msra.mxu0 0.0
  %1422 = vmatpush.msra.mxu0 0.0
  %1423 = vmatpush.msra.mxu0 0.0
  %1424 = vmatpush.msra.mxu0 0.0
  %1425 = vmatpush.msra.mxu0 0.0
  %1426 = vmatpush.msra.mxu0 0.0
  %1427 = vmatpush.msra.mxu0 0.0
  %1428 = vmatpush.msra.mxu0 %v417
  %1429 = vmatpush.msra.mxu0 %v416
  %1430 = vmatmul.f32.gmra.mxu0 %v1412
  %v1431 = vpop.f32.mrf.mxu0
  %v1432 = vadd.f32 0.0, %v1431
  %1433 = vdwg.mxu0
  %v1434 = vadd.f32 %v1411, %v1432
  %v1435 = vxor.u32 %v1434, 2147483648
  %v1436 = vmul.f32 %v1435, 1.442695
  %v1437 = vpow.pop %v1436
  %v1438 = vadd.f32 %v1437, 1.0
  %v1439 = vrcp.pop %v1438
  %v1440 = vmul.f32 %v1438, %v1439
  %v1441 = vsub.f32 1.0, %v1440
  %v1442 = vmul.f32 %v1439, %v1441
  %v1443 = vadd.f32 %v1439, %v1442
  %vm1444 = vweird.f32 %v1438
  %vm1445 = vweird.f32 %v1439
  %vm1446 = vmor %vm1444, %vm1445
  %v1447 = vsel %vm1446, %v1439, %v1443
  %v1448 = vand.u32 2147483647, %v1438
  %vm1449 = vcmp.eq.f32.partialorder %v1448, 8.507059e+37
  %v1450 = vand.u32 %v1438, 2147483648
  %v1451 = vor.u32 1.1754944e-38, %v1450
  %v1452 = vsel %vm1449, %v1451, %v1447
  %v1453 = vmul.f32 1.0, %v1452
  %v1454 = vtanh.pop %v1434
  %v1455 = vmul.f32 %v1453, %v1399
  %1457 = vrot.lane.b32.xlu0 %v1454, 96
  %v1458 = vpop.permute.xlu0 %1457
  %v1460 = vmul.f32 %v1453, %v1458
  %1462 = vrot.lane.b32.xlu0 %v1460, 16
  %v1463 = vpop.permute.xlu0 %1462
  %v1465 = vadd.f32 %v1455, %v1463
  %v1466 = vtanh.pop %v1465
  %1468 = vrot.lane.b32.xlu0 %v1466, 32
  %v1469 = vpop.permute.xlu0 %1468
  %v1471 = vmul.f32 %v1453, %v1469
  %1473 = vrot.lane.b32.xlu0 %v1471, 80
  %v1474 = vpop.permute.xlu0 %1473
  %1476 = vst.msk [vmem:[#allocation3 + $0x1e] sm:$0x3] %vm485, %v1474
  %v1477 = vld [vmem:[#allocation2 + $0x20] sm:$0x3]
  %v1478 = vsel %vm419, %v1474, 0
  %1480 = vmatpush.msra.mxu0 0.0
  %1481 = vmatpush.msra.mxu0 0.0
  %1482 = vmatpush.msra.mxu0 0.0
  %1483 = vmatpush.msra.mxu0 0.0
  %1484 = vmatpush.msra.mxu0 0.0
  %1485 = vmatpush.msra.mxu0 0.0
  %1486 = vmatpush.msra.mxu0 0.0
  %1487 = vmatpush.msra.mxu0 0.0
  %1488 = vmatpush.msra.mxu0 0.0
  %1489 = vmatpush.msra.mxu0 0.0
  %1490 = vmatpush.msra.mxu0 0.0
  %1491 = vmatpush.msra.mxu0 0.0
  %1492 = vmatpush.msra.mxu0 0.0
  %1493 = vmatpush.msra.mxu0 0.0
  %1494 = vmatpush.msra.mxu0 %v417
  %1495 = vmatpush.msra.mxu0 %v416
  %1496 = vmatmul.f32.gmra.mxu0 %v1478
  %v1497 = vpop.f32.mrf.mxu0
  %v1498 = vadd.f32 0.0, %v1497
  %1499 = vdwg.mxu0
  %v1500 = vadd.f32 %v1477, %v1498
  %v1501 = vxor.u32 %v1500, 2147483648
  %v1502 = vmul.f32 %v1501, 1.442695
  %v1503 = vpow.pop %v1502
  %v1504 = vadd.f32 %v1503, 1.0
  %v1505 = vrcp.pop %v1504
  %v1506 = vmul.f32 %v1504, %v1505
  %v1507 = vsub.f32 1.0, %v1506
  %v1508 = vmul.f32 %v1505, %v1507
  %v1509 = vadd.f32 %v1505, %v1508
  %vm1510 = vweird.f32 %v1504
  %vm1511 = vweird.f32 %v1505
  %vm1512 = vmor %vm1510, %vm1511
  %v1513 = vsel %vm1512, %v1505, %v1509
  %v1514 = vand.u32 2147483647, %v1504
  %vm1515 = vcmp.eq.f32.partialorder %v1514, 8.507059e+37
  %v1516 = vand.u32 %v1504, 2147483648
  %v1517 = vor.u32 1.1754944e-38, %v1516
  %v1518 = vsel %vm1515, %v1517, %v1513
  %v1519 = vmul.f32 1.0, %v1518
  %v1520 = vtanh.pop %v1500
  %v1521 = vmul.f32 %v1519, %v1465
  %1523 = vrot.lane.b32.xlu0 %v1520, 96
  %v1524 = vpop.permute.xlu0 %1523
  %v1526 = vmul.f32 %v1519, %v1524
  %1528 = vrot.lane.b32.xlu0 %v1526, 16
  %v1529 = vpop.permute.xlu0 %1528
  %v1531 = vadd.f32 %v1521, %v1529
  %v1532 = vtanh.pop %v1531
  %1534 = vrot.lane.b32.xlu0 %v1532, 32
  %v1535 = vpop.permute.xlu0 %1534
  %v1537 = vmul.f32 %v1519, %v1535
  %1539 = vrot.lane.b32.xlu0 %v1537, 80
  %v1540 = vpop.permute.xlu0 %1539
  %1542 = vst.msk [vmem:[#allocation3 + $0x20] sm:$0x3] %vm485, %v1540
  %v1543 = vld [vmem:[#allocation2 + $0x22] sm:$0x3]
  %v1544 = vsel %vm419, %v1540, 0
  %1546 = vmatpush.msra.mxu0 0.0
  %1547 = vmatpush.msra.mxu0 0.0
  %1548 = vmatpush.msra.mxu0 0.0
  %1549 = vmatpush.msra.mxu0 0.0
  %1550 = vmatpush.msra.mxu0 0.0
  %1551 = vmatpush.msra.mxu0 0.0
  %1552 = vmatpush.msra.mxu0 0.0
  %1553 = vmatpush.msra.mxu0 0.0
  %1554 = vmatpush.msra.mxu0 0.0
  %1555 = vmatpush.msra.mxu0 0.0
  %1556 = vmatpush.msra.mxu0 0.0
  %1557 = vmatpush.msra.mxu0 0.0
  %1558 = vmatpush.msra.mxu0 0.0
  %1559 = vmatpush.msra.mxu0 0.0
  %1560 = vmatpush.msra.mxu0 %v417
  %1561 = vmatpush.msra.mxu0 %v416
  %1562 = vmatmul.f32.gmra.mxu0 %v1544
  %v1563 = vpop.f32.mrf.mxu0
  %v1564 = vadd.f32 0.0, %v1563
  %1565 = vdwg.mxu0
  %v1566 = vadd.f32 %v1543, %v1564
  %v1567 = vxor.u32 %v1566, 2147483648
  %v1568 = vmul.f32 %v1567, 1.442695
  %v1569 = vpow.pop %v1568
  %v1570 = vadd.f32 %v1569, 1.0
  %v1571 = vrcp.pop %v1570
  %v1572 = vmul.f32 %v1570, %v1571
  %v1573 = vsub.f32 1.0, %v1572
  %v1574 = vmul.f32 %v1571, %v1573
  %v1575 = vadd.f32 %v1571, %v1574
  %vm1576 = vweird.f32 %v1570
  %vm1577 = vweird.f32 %v1571
  %vm1578 = vmor %vm1576, %vm1577
  %v1579 = vsel %vm1578, %v1571, %v1575
  %v1580 = vand.u32 2147483647, %v1570
  %vm1581 = vcmp.eq.f32.partialorder %v1580, 8.507059e+37
  %v1582 = vand.u32 %v1570, 2147483648
  %v1583 = vor.u32 1.1754944e-38, %v1582
  %v1584 = vsel %vm1581, %v1583, %v1579
  %v1585 = vmul.f32 1.0, %v1584
  %v1586 = vtanh.pop %v1566
  %v1587 = vmul.f32 %v1585, %v1531
  %1589 = vrot.lane.b32.xlu0 %v1586, 96
  %v1590 = vpop.permute.xlu0 %1589
  %v1592 = vmul.f32 %v1585, %v1590
  %1594 = vrot.lane.b32.xlu0 %v1592, 16
  %v1595 = vpop.permute.xlu0 %1594
  %v1597 = vadd.f32 %v1587, %v1595
  %v1598 = vtanh.pop %v1597
  %1600 = vrot.lane.b32.xlu0 %v1598, 32
  %v1601 = vpop.permute.xlu0 %1600
  %v1603 = vmul.f32 %v1585, %v1601
  %1605 = vrot.lane.b32.xlu0 %v1603, 80
  %v1606 = vpop.permute.xlu0 %1605
  %1608 = vst.msk [vmem:[#allocation3 + $0x22] sm:$0x3] %vm485, %v1606
  %v1609 = vld [vmem:[#allocation2 + $0x24] sm:$0x3]
  %v1610 = vsel %vm419, %v1606, 0
  %1612 = vmatpush.msra.mxu0 0.0
  %1613 = vmatpush.msra.mxu0 0.0
  %1614 = vmatpush.msra.mxu0 0.0
  %1615 = vmatpush.msra.mxu0 0.0
  %1616 = vmatpush.msra.mxu0 0.0
  %1617 = vmatpush.msra.mxu0 0.0
  %1618 = vmatpush.msra.mxu0 0.0
  %1619 = vmatpush.msra.mxu0 0.0
  %1620 = vmatpush.msra.mxu0 0.0
  %1621 = vmatpush.msra.mxu0 0.0
  %1622 = vmatpush.msra.mxu0 0.0
  %1623 = vmatpush.msra.mxu0 0.0
  %1624 = vmatpush.msra.mxu0 0.0
  %1625 = vmatpush.msra.mxu0 0.0
  %1626 = vmatpush.msra.mxu0 %v417
  %1627 = vmatpush.msra.mxu0 %v416
  %1628 = vmatmul.f32.gmra.mxu0 %v1610
  %v1629 = vpop.f32.mrf.mxu0
  %v1630 = vadd.f32 0.0, %v1629
  %1631 = vdwg.mxu0
  %v1632 = vadd.f32 %v1609, %v1630
  %v1633 = vxor.u32 %v1632, 2147483648
  %v1634 = vmul.f32 %v1633, 1.442695
  %v1635 = vpow.pop %v1634
  %v1636 = vadd.f32 %v1635, 1.0
  %v1637 = vrcp.pop %v1636
  %v1638 = vmul.f32 %v1636, %v1637
  %v1639 = vsub.f32 1.0, %v1638
  %v1640 = vmul.f32 %v1637, %v1639
  %v1641 = vadd.f32 %v1637, %v1640
  %vm1642 = vweird.f32 %v1636
  %vm1643 = vweird.f32 %v1637
  %vm1644 = vmor %vm1642, %vm1643
  %v1645 = vsel %vm1644, %v1637, %v1641
  %v1646 = vand.u32 2147483647, %v1636
  %vm1647 = vcmp.eq.f32.partialorder %v1646, 8.507059e+37
  %v1648 = vand.u32 %v1636, 2147483648
  %v1649 = vor.u32 1.1754944e-38, %v1648
  %v1650 = vsel %vm1647, %v1649, %v1645
  %v1651 = vmul.f32 1.0, %v1650
  %v1652 = vtanh.pop %v1632
  %v1653 = vmul.f32 %v1651, %v1597
  %1655 = vrot.lane.b32.xlu0 %v1652, 96
  %v1656 = vpop.permute.xlu0 %1655
  %v1658 = vmul.f32 %v1651, %v1656
  %1660 = vrot.lane.b32.xlu0 %v1658, 16
  %v1661 = vpop.permute.xlu0 %1660
  %v1663 = vadd.f32 %v1653, %v1661
  %v1664 = vtanh.pop %v1663
  %1666 = vrot.lane.b32.xlu0 %v1664, 32
  %v1667 = vpop.permute.xlu0 %1666
  %v1669 = vmul.f32 %v1651, %v1667
  %1671 = vrot.lane.b32.xlu0 %v1669, 80
  %v1672 = vpop.permute.xlu0 %1671
  %1674 = vst.msk [vmem:[#allocation3 + $0x24] sm:$0x3] %vm485, %v1672
  %v1675 = vld [vmem:[#allocation2 + $0x26] sm:$0x3]
  %v1676 = vsel %vm419, %v1672, 0
  %1678 = vmatpush.msra.mxu0 0.0
  %1679 = vmatpush.msra.mxu0 0.0
  %1680 = vmatpush.msra.mxu0 0.0
  %1681 = vmatpush.msra.mxu0 0.0
  %1682 = vmatpush.msra.mxu0 0.0
  %1683 = vmatpush.msra.mxu0 0.0
  %1684 = vmatpush.msra.mxu0 0.0
  %1685 = vmatpush.msra.mxu0 0.0
  %1686 = vmatpush.msra.mxu0 0.0
  %1687 = vmatpush.msra.mxu0 0.0
  %1688 = vmatpush.msra.mxu0 0.0
  %1689 = vmatpush.msra.mxu0 0.0
  %1690 = vmatpush.msra.mxu0 0.0
  %1691 = vmatpush.msra.mxu0 0.0
  %1692 = vmatpush.msra.mxu0 %v417
  %1693 = vmatpush.msra.mxu0 %v416
  %1694 = vmatmul.f32.gmra.mxu0 %v1676
  %v1695 = vpop.f32.mrf.mxu0
  %v1696 = vadd.f32 0.0, %v1695
  %1697 = vdwg.mxu0
  %v1698 = vadd.f32 %v1675, %v1696
  %v1699 = vxor.u32 %v1698, 2147483648
  %v1700 = vmul.f32 %v1699, 1.442695
  %v1701 = vpow.pop %v1700
  %v1702 = vadd.f32 %v1701, 1.0
  %v1703 = vrcp.pop %v1702
  %v1704 = vmul.f32 %v1702, %v1703
  %v1705 = vsub.f32 1.0, %v1704
  %v1706 = vmul.f32 %v1703, %v1705
  %v1707 = vadd.f32 %v1703, %v1706
  %vm1708 = vweird.f32 %v1702
  %vm1709 = vweird.f32 %v1703
  %vm1710 = vmor %vm1708, %vm1709
  %v1711 = vsel %vm1710, %v1703, %v1707
  %v1712 = vand.u32 2147483647, %v1702
  %vm1713 = vcmp.eq.f32.partialorder %v1712, 8.507059e+37
  %v1714 = vand.u32 %v1702, 2147483648
  %v1715 = vor.u32 1.1754944e-38, %v1714
  %v1716 = vsel %vm1713, %v1715, %v1711
  %v1717 = vmul.f32 1.0, %v1716
  %v1718 = vtanh.pop %v1698
  %v1719 = vmul.f32 %v1717, %v1663
  %1721 = vrot.lane.b32.xlu0 %v1718, 96
  %v1722 = vpop.permute.xlu0 %1721
  %v1724 = vmul.f32 %v1717, %v1722
  %1726 = vrot.lane.b32.xlu0 %v1724, 16
  %v1727 = vpop.permute.xlu0 %1726
  %v1729 = vadd.f32 %v1719, %v1727
  %v1730 = vtanh.pop %v1729
  %1732 = vrot.lane.b32.xlu0 %v1730, 32
  %v1733 = vpop.permute.xlu0 %1732
  %v1735 = vmul.f32 %v1717, %v1733
  %1737 = vrot.lane.b32.xlu0 %v1735, 80
  %v1738 = vpop.permute.xlu0 %1737
  %1740 = vst.msk [vmem:[#allocation3 + $0x26] sm:$0x3] %vm485, %v1738
  %v1741 = vld [vmem:[#allocation2 + $0x28] sm:$0x3]
  %v1742 = vsel %vm419, %v1738, 0
  %1744 = vmatpush.msra.mxu0 0.0
  %1745 = vmatpush.msra.mxu0 0.0
  %1746 = vmatpush.msra.mxu0 0.0
  %1747 = vmatpush.msra.mxu0 0.0
  %1748 = vmatpush.msra.mxu0 0.0
  %1749 = vmatpush.msra.mxu0 0.0
  %1750 = vmatpush.msra.mxu0 0.0
  %1751 = vmatpush.msra.mxu0 0.0
  %1752 = vmatpush.msra.mxu0 0.0
  %1753 = vmatpush.msra.mxu0 0.0
  %1754 = vmatpush.msra.mxu0 0.0
  %1755 = vmatpush.msra.mxu0 0.0
  %1756 = vmatpush.msra.mxu0 0.0
  %1757 = vmatpush.msra.mxu0 0.0
  %1758 = vmatpush.msra.mxu0 %v417
  %1759 = vmatpush.msra.mxu0 %v416
  %1760 = vmatmul.f32.gmra.mxu0 %v1742
  %v1761 = vpop.f32.mrf.mxu0
  %v1762 = vadd.f32 0.0, %v1761
  %1763 = vdwg.mxu0
  %v1764 = vadd.f32 %v1741, %v1762
  %v1765 = vxor.u32 %v1764, 2147483648
  %v1766 = vmul.f32 %v1765, 1.442695
  %v1767 = vpow.pop %v1766
  %v1768 = vadd.f32 %v1767, 1.0
  %v1769 = vrcp.pop %v1768
  %v1770 = vmul.f32 %v1768, %v1769
  %v1771 = vsub.f32 1.0, %v1770
  %v1772 = vmul.f32 %v1769, %v1771
  %v1773 = vadd.f32 %v1769, %v1772
  %vm1774 = vweird.f32 %v1768
  %vm1775 = vweird.f32 %v1769
  %vm1776 = vmor %vm1774, %vm1775
  %v1777 = vsel %vm1776, %v1769, %v1773
  %v1778 = vand.u32 2147483647, %v1768
  %vm1779 = vcmp.eq.f32.partialorder %v1778, 8.507059e+37
  %v1780 = vand.u32 %v1768, 2147483648
  %v1781 = vor.u32 1.1754944e-38, %v1780
  %v1782 = vsel %vm1779, %v1781, %v1777
  %v1783 = vmul.f32 1.0, %v1782
  %v1784 = vtanh.pop %v1764
  %v1785 = vmul.f32 %v1783, %v1729
  %1787 = vrot.lane.b32.xlu0 %v1784, 96
  %v1788 = vpop.permute.xlu0 %1787
  %v1790 = vmul.f32 %v1783, %v1788
  %1792 = vrot.lane.b32.xlu0 %v1790, 16
  %v1793 = vpop.permute.xlu0 %1792
  %v1795 = vadd.f32 %v1785, %v1793
  %v1796 = vtanh.pop %v1795
  %1798 = vrot.lane.b32.xlu0 %v1796, 32
  %v1799 = vpop.permute.xlu0 %1798
  %v1801 = vmul.f32 %v1783, %v1799
  %1803 = vrot.lane.b32.xlu0 %v1801, 80
  %v1804 = vpop.permute.xlu0 %1803
  %1806 = vst.msk [vmem:[#allocation3 + $0x28] sm:$0x3] %vm485, %v1804
  %v1807 = vld [vmem:[#allocation2 + $0x2a] sm:$0x3]
  %v1808 = vsel %vm419, %v1804, 0
  %1810 = vmatpush.msra.mxu0 0.0
  %1811 = vmatpush.msra.mxu0 0.0
  %1812 = vmatpush.msra.mxu0 0.0
  %1813 = vmatpush.msra.mxu0 0.0
  %1814 = vmatpush.msra.mxu0 0.0
  %1815 = vmatpush.msra.mxu0 0.0
  %1816 = vmatpush.msra.mxu0 0.0
  %1817 = vmatpush.msra.mxu0 0.0
  %1818 = vmatpush.msra.mxu0 0.0
  %1819 = vmatpush.msra.mxu0 0.0
  %1820 = vmatpush.msra.mxu0 0.0
  %1821 = vmatpush.msra.mxu0 0.0
  %1822 = vmatpush.msra.mxu0 0.0
  %1823 = vmatpush.msra.mxu0 0.0
  %1824 = vmatpush.msra.mxu0 %v417
  %1825 = vmatpush.msra.mxu0 %v416
  %1826 = vmatmul.f32.gmra.mxu0 %v1808
  %v1827 = vpop.f32.mrf.mxu0
  %v1828 = vadd.f32 0.0, %v1827
  %1829 = vdwg.mxu0
  %v1830 = vadd.f32 %v1807, %v1828
  %v1831 = vxor.u32 %v1830, 2147483648
  %v1832 = vmul.f32 %v1831, 1.442695
  %v1833 = vpow.pop %v1832
  %v1834 = vadd.f32 %v1833, 1.0
  %v1835 = vrcp.pop %v1834
  %v1836 = vmul.f32 %v1834, %v1835
  %v1837 = vsub.f32 1.0, %v1836
  %v1838 = vmul.f32 %v1835, %v1837
  %v1839 = vadd.f32 %v1835, %v1838
  %vm1840 = vweird.f32 %v1834
  %vm1841 = vweird.f32 %v1835
  %vm1842 = vmor %vm1840, %vm1841
  %v1843 = vsel %vm1842, %v1835, %v1839
  %v1844 = vand.u32 2147483647, %v1834
  %vm1845 = vcmp.eq.f32.partialorder %v1844, 8.507059e+37
  %v1846 = vand.u32 %v1834, 2147483648
  %v1847 = vor.u32 1.1754944e-38, %v1846
  %v1848 = vsel %vm1845, %v1847, %v1843
  %v1849 = vmul.f32 1.0, %v1848
  %v1850 = vtanh.pop %v1830
  %v1851 = vmul.f32 %v1849, %v1795
  %1853 = vrot.lane.b32.xlu0 %v1850, 96
  %v1854 = vpop.permute.xlu0 %1853
  %v1856 = vmul.f32 %v1849, %v1854
  %1858 = vrot.lane.b32.xlu0 %v1856, 16
  %v1859 = vpop.permute.xlu0 %1858
  %v1861 = vadd.f32 %v1851, %v1859
  %v1862 = vtanh.pop %v1861
  %1864 = vrot.lane.b32.xlu0 %v1862, 32
  %v1865 = vpop.permute.xlu0 %1864
  %v1867 = vmul.f32 %v1849, %v1865
  %1869 = vrot.lane.b32.xlu0 %v1867, 80
  %v1870 = vpop.permute.xlu0 %1869
  %1872 = vst.msk [vmem:[#allocation3 + $0x2a] sm:$0x3] %vm485, %v1870
  %v1873 = vld [vmem:[#allocation2 + $0x2c] sm:$0x3]
  %v1874 = vsel %vm419, %v1870, 0
  %1876 = vmatpush.msra.mxu0 0.0
  %1877 = vmatpush.msra.mxu0 0.0
  %1878 = vmatpush.msra.mxu0 0.0
  %1879 = vmatpush.msra.mxu0 0.0
  %1880 = vmatpush.msra.mxu0 0.0
  %1881 = vmatpush.msra.mxu0 0.0
  %1882 = vmatpush.msra.mxu0 0.0
  %1883 = vmatpush.msra.mxu0 0.0
  %1884 = vmatpush.msra.mxu0 0.0
  %1885 = vmatpush.msra.mxu0 0.0
  %1886 = vmatpush.msra.mxu0 0.0
  %1887 = vmatpush.msra.mxu0 0.0
  %1888 = vmatpush.msra.mxu0 0.0
  %1889 = vmatpush.msra.mxu0 0.0
  %1890 = vmatpush.msra.mxu0 %v417
  %1891 = vmatpush.msra.mxu0 %v416
  %1892 = vmatmul.f32.gmra.mxu0 %v1874
  %v1893 = vpop.f32.mrf.mxu0
  %v1894 = vadd.f32 0.0, %v1893
  %1895 = vdwg.mxu0
  %v1896 = vadd.f32 %v1873, %v1894
  %v1897 = vxor.u32 %v1896, 2147483648
  %v1898 = vmul.f32 %v1897, 1.442695
  %v1899 = vpow.pop %v1898
  %v1900 = vadd.f32 %v1899, 1.0
  %v1901 = vrcp.pop %v1900
  %v1902 = vmul.f32 %v1900, %v1901
  %v1903 = vsub.f32 1.0, %v1902
  %v1904 = vmul.f32 %v1901, %v1903
  %v1905 = vadd.f32 %v1901, %v1904
  %vm1906 = vweird.f32 %v1900
  %vm1907 = vweird.f32 %v1901
  %vm1908 = vmor %vm1906, %vm1907
  %v1909 = vsel %vm1908, %v1901, %v1905
  %v1910 = vand.u32 2147483647, %v1900
  %vm1911 = vcmp.eq.f32.partialorder %v1910, 8.507059e+37
  %v1912 = vand.u32 %v1900, 2147483648
  %v1913 = vor.u32 1.1754944e-38, %v1912
  %v1914 = vsel %vm1911, %v1913, %v1909
  %v1915 = vmul.f32 1.0, %v1914
  %v1916 = vtanh.pop %v1896
  %v1917 = vmul.f32 %v1915, %v1861
  %1919 = vrot.lane.b32.xlu0 %v1916, 96
  %v1920 = vpop.permute.xlu0 %1919
  %v1922 = vmul.f32 %v1915, %v1920
  %1924 = vrot.lane.b32.xlu0 %v1922, 16
  %v1925 = vpop.permute.xlu0 %1924
  %v1927 = vadd.f32 %v1917, %v1925
  %v1928 = vtanh.pop %v1927
  %1930 = vrot.lane.b32.xlu0 %v1928, 32
  %v1931 = vpop.permute.xlu0 %1930
  %v1933 = vmul.f32 %v1915, %v1931
  %1935 = vrot.lane.b32.xlu0 %v1933, 80
  %v1936 = vpop.permute.xlu0 %1935
  %1938 = vst.msk [vmem:[#allocation3 + $0x2c] sm:$0x3] %vm485, %v1936
  %v1939 = vld [vmem:[#allocation2 + $0x2e] sm:$0x3]
  %v1940 = vsel %vm419, %v1936, 0
  %1942 = vmatpush.msra.mxu0 0.0
  %1943 = vmatpush.msra.mxu0 0.0
  %1944 = vmatpush.msra.mxu0 0.0
  %1945 = vmatpush.msra.mxu0 0.0
  %1946 = vmatpush.msra.mxu0 0.0
  %1947 = vmatpush.msra.mxu0 0.0
  %1948 = vmatpush.msra.mxu0 0.0
  %1949 = vmatpush.msra.mxu0 0.0
  %1950 = vmatpush.msra.mxu0 0.0
  %1951 = vmatpush.msra.mxu0 0.0
  %1952 = vmatpush.msra.mxu0 0.0
  %1953 = vmatpush.msra.mxu0 0.0
  %1954 = vmatpush.msra.mxu0 0.0
  %1955 = vmatpush.msra.mxu0 0.0
  %1956 = vmatpush.msra.mxu0 %v417
  %1957 = vmatpush.msra.mxu0 %v416
  %1958 = vmatmul.f32.gmra.mxu0 %v1940
  %v1959 = vpop.f32.mrf.mxu0
  %v1960 = vadd.f32 0.0, %v1959
  %1961 = vdwg.mxu0
  %v1962 = vadd.f32 %v1939, %v1960
  %v1963 = vxor.u32 %v1962, 2147483648
  %v1964 = vmul.f32 %v1963, 1.442695
  %v1965 = vpow.pop %v1964
  %v1966 = vadd.f32 %v1965, 1.0
  %v1967 = vrcp.pop %v1966
  %v1968 = vmul.f32 %v1966, %v1967
  %v1969 = vsub.f32 1.0, %v1968
  %v1970 = vmul.f32 %v1967, %v1969
  %v1971 = vadd.f32 %v1967, %v1970
  %vm1972 = vweird.f32 %v1966
  %vm1973 = vweird.f32 %v1967
  %vm1974 = vmor %vm1972, %vm1973
  %v1975 = vsel %vm1974, %v1967, %v1971
  %v1976 = vand.u32 2147483647, %v1966
  %vm1977 = vcmp.eq.f32.partialorder %v1976, 8.507059e+37
  %v1978 = vand.u32 %v1966, 2147483648
  %v1979 = vor.u32 1.1754944e-38, %v1978
  %v1980 = vsel %vm1977, %v1979, %v1975
  %v1981 = vmul.f32 1.0, %v1980
  %v1982 = vtanh.pop %v1962
  %v1983 = vmul.f32 %v1981, %v1927
  %1985 = vrot.lane.b32.xlu0 %v1982, 96
  %v1986 = vpop.permute.xlu0 %1985
  %v1988 = vmul.f32 %v1981, %v1986
  %1990 = vrot.lane.b32.xlu0 %v1988, 16
  %v1991 = vpop.permute.xlu0 %1990
  %v1993 = vadd.f32 %v1983, %v1991
  %v1994 = vtanh.pop %v1993
  %1996 = vrot.lane.b32.xlu0 %v1994, 32
  %v1997 = vpop.permute.xlu0 %1996
  %v1999 = vmul.f32 %v1981, %v1997
  %2001 = vrot.lane.b32.xlu0 %v1999, 80
  %v2002 = vpop.permute.xlu0 %2001
  %2004 = vst.msk [vmem:[#allocation3 + $0x2e] sm:$0x3] %vm485, %v2002
  %v2005 = vld [vmem:[#allocation2 + $0x30] sm:$0x3]
  %v2006 = vsel %vm419, %v2002, 0
  %2008 = vmatpush.msra.mxu0 0.0
  %2009 = vmatpush.msra.mxu0 0.0
  %2010 = vmatpush.msra.mxu0 0.0
  %2011 = vmatpush.msra.mxu0 0.0
  %2012 = vmatpush.msra.mxu0 0.0
  %2013 = vmatpush.msra.mxu0 0.0
  %2014 = vmatpush.msra.mxu0 0.0
  %2015 = vmatpush.msra.mxu0 0.0
  %2016 = vmatpush.msra.mxu0 0.0
  %2017 = vmatpush.msra.mxu0 0.0
  %2018 = vmatpush.msra.mxu0 0.0
  %2019 = vmatpush.msra.mxu0 0.0
  %2020 = vmatpush.msra.mxu0 0.0
  %2021 = vmatpush.msra.mxu0 0.0
  %2022 = vmatpush.msra.mxu0 %v417
  %2023 = vmatpush.msra.mxu0 %v416
  %2024 = vmatmul.f32.gmra.mxu0 %v2006
  %v2025 = vpop.f32.mrf.mxu0
  %v2026 = vadd.f32 0.0, %v2025
  %2027 = vdwg.mxu0
  %v2028 = vadd.f32 %v2005, %v2026
  %v2029 = vxor.u32 %v2028, 2147483648
  %v2030 = vmul.f32 %v2029, 1.442695
  %v2031 = vpow.pop %v2030
  %v2032 = vadd.f32 %v2031, 1.0
  %v2033 = vrcp.pop %v2032
  %v2034 = vmul.f32 %v2032, %v2033
  %v2035 = vsub.f32 1.0, %v2034
  %v2036 = vmul.f32 %v2033, %v2035
  %v2037 = vadd.f32 %v2033, %v2036
  %vm2038 = vweird.f32 %v2032
  %vm2039 = vweird.f32 %v2033
  %vm2040 = vmor %vm2038, %vm2039
  %v2041 = vsel %vm2040, %v2033, %v2037
  %v2042 = vand.u32 2147483647, %v2032
  %vm2043 = vcmp.eq.f32.partialorder %v2042, 8.507059e+37
  %v2044 = vand.u32 %v2032, 2147483648
  %v2045 = vor.u32 1.1754944e-38, %v2044
  %v2046 = vsel %vm2043, %v2045, %v2041
  %v2047 = vmul.f32 1.0, %v2046
  %v2048 = vtanh.pop %v2028
  %v2049 = vmul.f32 %v2047, %v1993
  %2051 = vrot.lane.b32.xlu0 %v2048, 96
  %v2052 = vpop.permute.xlu0 %2051
  %v2054 = vmul.f32 %v2047, %v2052
  %2056 = vrot.lane.b32.xlu0 %v2054, 16
  %v2057 = vpop.permute.xlu0 %2056
  %v2059 = vadd.f32 %v2049, %v2057
  %v2060 = vtanh.pop %v2059
  %2062 = vrot.lane.b32.xlu0 %v2060, 32
  %v2063 = vpop.permute.xlu0 %2062
  %v2065 = vmul.f32 %v2047, %v2063
  %2067 = vrot.lane.b32.xlu0 %v2065, 80
  %v2068 = vpop.permute.xlu0 %2067
  %2070 = vst.msk [vmem:[#allocation3 + $0x30] sm:$0x3] %vm485, %v2068
  %v2071 = vld [vmem:[#allocation2 + $0x32] sm:$0x3]
  %v2072 = vsel %vm419, %v2068, 0
  %2074 = vmatpush.msra.mxu0 0.0
  %2075 = vmatpush.msra.mxu0 0.0
  %2076 = vmatpush.msra.mxu0 0.0
  %2077 = vmatpush.msra.mxu0 0.0
  %2078 = vmatpush.msra.mxu0 0.0
  %2079 = vmatpush.msra.mxu0 0.0
  %2080 = vmatpush.msra.mxu0 0.0
  %2081 = vmatpush.msra.mxu0 0.0
  %2082 = vmatpush.msra.mxu0 0.0
  %2083 = vmatpush.msra.mxu0 0.0
  %2084 = vmatpush.msra.mxu0 0.0
  %2085 = vmatpush.msra.mxu0 0.0
  %2086 = vmatpush.msra.mxu0 0.0
  %2087 = vmatpush.msra.mxu0 0.0
  %2088 = vmatpush.msra.mxu0 %v417
  %2089 = vmatpush.msra.mxu0 %v416
  %2090 = vmatmul.f32.gmra.mxu0 %v2072
  %v2091 = vpop.f32.mrf.mxu0
  %v2092 = vadd.f32 0.0, %v2091
  %2093 = vdwg.mxu0
  %v2094 = vadd.f32 %v2071, %v2092
  %v2095 = vxor.u32 %v2094, 2147483648
  %v2096 = vmul.f32 %v2095, 1.442695
  %v2097 = vpow.pop %v2096
  %v2098 = vadd.f32 %v2097, 1.0
  %v2099 = vrcp.pop %v2098
  %v2100 = vmul.f32 %v2098, %v2099
  %v2101 = vsub.f32 1.0, %v2100
  %v2102 = vmul.f32 %v2099, %v2101
  %v2103 = vadd.f32 %v2099, %v2102
  %vm2104 = vweird.f32 %v2098
  %vm2105 = vweird.f32 %v2099
  %vm2106 = vmor %vm2104, %vm2105
  %v2107 = vsel %vm2106, %v2099, %v2103
  %v2108 = vand.u32 2147483647, %v2098
  %vm2109 = vcmp.eq.f32.partialorder %v2108, 8.507059e+37
  %v2110 = vand.u32 %v2098, 2147483648
  %v2111 = vor.u32 1.1754944e-38, %v2110
  %v2112 = vsel %vm2109, %v2111, %v2107
  %v2113 = vmul.f32 1.0, %v2112
  %v2114 = vtanh.pop %v2094
  %v2115 = vmul.f32 %v2113, %v2059
  %2117 = vrot.lane.b32.xlu0 %v2114, 96
  %v2118 = vpop.permute.xlu0 %2117
  %v2120 = vmul.f32 %v2113, %v2118
  %2122 = vrot.lane.b32.xlu0 %v2120, 16
  %v2123 = vpop.permute.xlu0 %2122
  %v2125 = vadd.f32 %v2115, %v2123
  %v2126 = vtanh.pop %v2125
  %2128 = vrot.lane.b32.xlu0 %v2126, 32
  %v2129 = vpop.permute.xlu0 %2128
  %v2131 = vmul.f32 %v2113, %v2129
  %2133 = vrot.lane.b32.xlu0 %v2131, 80
  %v2134 = vpop.permute.xlu0 %2133
  %2136 = vst.msk [vmem:[#allocation3 + $0x32] sm:$0x3] %vm485, %v2134
  %v2137 = vld [vmem:[#allocation2 + $0x34] sm:$0x3]
  %v2138 = vsel %vm419, %v2134, 0
  %2140 = vmatpush.msra.mxu0 0.0
  %2141 = vmatpush.msra.mxu0 0.0
  %2142 = vmatpush.msra.mxu0 0.0
  %2143 = vmatpush.msra.mxu0 0.0
  %2144 = vmatpush.msra.mxu0 0.0
  %2145 = vmatpush.msra.mxu0 0.0
  %2146 = vmatpush.msra.mxu0 0.0
  %2147 = vmatpush.msra.mxu0 0.0
  %2148 = vmatpush.msra.mxu0 0.0
  %2149 = vmatpush.msra.mxu0 0.0
  %2150 = vmatpush.msra.mxu0 0.0
  %2151 = vmatpush.msra.mxu0 0.0
  %2152 = vmatpush.msra.mxu0 0.0
  %2153 = vmatpush.msra.mxu0 0.0
  %2154 = vmatpush.msra.mxu0 %v417
  %2155 = vmatpush.msra.mxu0 %v416
  %2156 = vmatmul.f32.gmra.mxu0 %v2138
  %v2157 = vpop.f32.mrf.mxu0
  %v2158 = vadd.f32 0.0, %v2157
  %2159 = vdwg.mxu0
  %v2160 = vadd.f32 %v2137, %v2158
  %v2161 = vxor.u32 %v2160, 2147483648
  %v2162 = vmul.f32 %v2161, 1.442695
  %v2163 = vpow.pop %v2162
  %v2164 = vadd.f32 %v2163, 1.0
  %v2165 = vrcp.pop %v2164
  %v2166 = vmul.f32 %v2164, %v2165
  %v2167 = vsub.f32 1.0, %v2166
  %v2168 = vmul.f32 %v2165, %v2167
  %v2169 = vadd.f32 %v2165, %v2168
  %vm2170 = vweird.f32 %v2164
  %vm2171 = vweird.f32 %v2165
  %vm2172 = vmor %vm2170, %vm2171
  %v2173 = vsel %vm2172, %v2165, %v2169
  %v2174 = vand.u32 2147483647, %v2164
  %vm2175 = vcmp.eq.f32.partialorder %v2174, 8.507059e+37
  %v2176 = vand.u32 %v2164, 2147483648
  %v2177 = vor.u32 1.1754944e-38, %v2176
  %v2178 = vsel %vm2175, %v2177, %v2173
  %v2179 = vmul.f32 1.0, %v2178
  %v2180 = vtanh.pop %v2160
  %v2181 = vmul.f32 %v2179, %v2125
  %2183 = vrot.lane.b32.xlu0 %v2180, 96
  %v2184 = vpop.permute.xlu0 %2183
  %v2186 = vmul.f32 %v2179, %v2184
  %2188 = vrot.lane.b32.xlu0 %v2186, 16
  %v2189 = vpop.permute.xlu0 %2188
  %v2191 = vadd.f32 %v2181, %v2189
  %v2192 = vtanh.pop %v2191
  %2194 = vrot.lane.b32.xlu0 %v2192, 32
  %v2195 = vpop.permute.xlu0 %2194
  %v2197 = vmul.f32 %v2179, %v2195
  %2199 = vrot.lane.b32.xlu0 %v2197, 80
  %v2200 = vpop.permute.xlu0 %2199
  %2202 = vst.msk [vmem:[#allocation3 + $0x34] sm:$0x3] %vm485, %v2200
  %v2203 = vld [vmem:[#allocation2 + $0x36] sm:$0x3]
  %v2204 = vsel %vm419, %v2200, 0
  %2206 = vmatpush.msra.mxu0 0.0
  %2207 = vmatpush.msra.mxu0 0.0
  %2208 = vmatpush.msra.mxu0 0.0
  %2209 = vmatpush.msra.mxu0 0.0
  %2210 = vmatpush.msra.mxu0 0.0
  %2211 = vmatpush.msra.mxu0 0.0
  %2212 = vmatpush.msra.mxu0 0.0
  %2213 = vmatpush.msra.mxu0 0.0
  %2214 = vmatpush.msra.mxu0 0.0
  %2215 = vmatpush.msra.mxu0 0.0
  %2216 = vmatpush.msra.mxu0 0.0
  %2217 = vmatpush.msra.mxu0 0.0
  %2218 = vmatpush.msra.mxu0 0.0
  %2219 = vmatpush.msra.mxu0 0.0
  %2220 = vmatpush.msra.mxu0 %v417
  %2221 = vmatpush.msra.mxu0 %v416
  %2222 = vmatmul.f32.gmra.mxu0 %v2204
  %v2223 = vpop.f32.mrf.mxu0
  %v2224 = vadd.f32 0.0, %v2223
  %2225 = vdwg.mxu0
  %v2226 = vadd.f32 %v2203, %v2224
  %v2227 = vxor.u32 %v2226, 2147483648
  %v2228 = vmul.f32 %v2227, 1.442695
  %v2229 = vpow.pop %v2228
  %v2230 = vadd.f32 %v2229, 1.0
  %v2231 = vrcp.pop %v2230
  %v2232 = vmul.f32 %v2230, %v2231
  %v2233 = vsub.f32 1.0, %v2232
  %v2234 = vmul.f32 %v2231, %v2233
  %v2235 = vadd.f32 %v2231, %v2234
  %vm2236 = vweird.f32 %v2230
  %vm2237 = vweird.f32 %v2231
  %vm2238 = vmor %vm2236, %vm2237
  %v2239 = vsel %vm2238, %v2231, %v2235
  %v2240 = vand.u32 2147483647, %v2230
  %vm2241 = vcmp.eq.f32.partialorder %v2240, 8.507059e+37
  %v2242 = vand.u32 %v2230, 2147483648
  %v2243 = vor.u32 1.1754944e-38, %v2242
  %v2244 = vsel %vm2241, %v2243, %v2239
  %v2245 = vmul.f32 1.0, %v2244
  %v2246 = vtanh.pop %v2226
  %v2247 = vmul.f32 %v2245, %v2191
  %2249 = vrot.lane.b32.xlu0 %v2246, 96
  %v2250 = vpop.permute.xlu0 %2249
  %v2252 = vmul.f32 %v2245, %v2250
  %2254 = vrot.lane.b32.xlu0 %v2252, 16
  %v2255 = vpop.permute.xlu0 %2254
  %v2257 = vadd.f32 %v2247, %v2255
  %v2258 = vtanh.pop %v2257
  %2260 = vrot.lane.b32.xlu0 %v2258, 32
  %v2261 = vpop.permute.xlu0 %2260
  %v2263 = vmul.f32 %v2245, %v2261
  %2265 = vrot.lane.b32.xlu0 %v2263, 80
  %v2266 = vpop.permute.xlu0 %2265
  %2268 = vst.msk [vmem:[#allocation3 + $0x36] sm:$0x3] %vm485, %v2266
  %v2269 = vld [vmem:[#allocation2 + $0x38] sm:$0x3]
  %v2270 = vsel %vm419, %v2266, 0
  %2272 = vmatpush.msra.mxu0 0.0
  %2273 = vmatpush.msra.mxu0 0.0
  %2274 = vmatpush.msra.mxu0 0.0
  %2275 = vmatpush.msra.mxu0 0.0
  %2276 = vmatpush.msra.mxu0 0.0
  %2277 = vmatpush.msra.mxu0 0.0
  %2278 = vmatpush.msra.mxu0 0.0
  %2279 = vmatpush.msra.mxu0 0.0
  %2280 = vmatpush.msra.mxu0 0.0
  %2281 = vmatpush.msra.mxu0 0.0
  %2282 = vmatpush.msra.mxu0 0.0
  %2283 = vmatpush.msra.mxu0 0.0
  %2284 = vmatpush.msra.mxu0 0.0
  %2285 = vmatpush.msra.mxu0 0.0
  %2286 = vmatpush.msra.mxu0 %v417
  %2287 = vmatpush.msra.mxu0 %v416
  %2288 = vmatmul.f32.gmra.mxu0 %v2270
  %v2289 = vpop.f32.mrf.mxu0
  %v2290 = vadd.f32 0.0, %v2289
  %2291 = vdwg.mxu0
  %v2292 = vadd.f32 %v2269, %v2290
  %v2293 = vxor.u32 %v2292, 2147483648
  %v2294 = vmul.f32 %v2293, 1.442695
  %v2295 = vpow.pop %v2294
  %v2296 = vadd.f32 %v2295, 1.0
  %v2297 = vrcp.pop %v2296
  %v2298 = vmul.f32 %v2296, %v2297
  %v2299 = vsub.f32 1.0, %v2298
  %v2300 = vmul.f32 %v2297, %v2299
  %v2301 = vadd.f32 %v2297, %v2300
  %vm2302 = vweird.f32 %v2296
  %vm2303 = vweird.f32 %v2297
  %vm2304 = vmor %vm2302, %vm2303
  %v2305 = vsel %vm2304, %v2297, %v2301
  %v2306 = vand.u32 2147483647, %v2296
  %vm2307 = vcmp.eq.f32.partialorder %v2306, 8.507059e+37
  %v2308 = vand.u32 %v2296, 2147483648
  %v2309 = vor.u32 1.1754944e-38, %v2308
  %v2310 = vsel %vm2307, %v2309, %v2305
  %v2311 = vmul.f32 1.0, %v2310
  %v2312 = vtanh.pop %v2292
  %v2313 = vmul.f32 %v2311, %v2257
  %2315 = vrot.lane.b32.xlu0 %v2312, 96
  %v2316 = vpop.permute.xlu0 %2315
  %v2318 = vmul.f32 %v2311, %v2316
  %2320 = vrot.lane.b32.xlu0 %v2318, 16
  %v2321 = vpop.permute.xlu0 %2320
  %v2323 = vadd.f32 %v2313, %v2321
  %v2324 = vtanh.pop %v2323
  %2326 = vrot.lane.b32.xlu0 %v2324, 32
  %v2327 = vpop.permute.xlu0 %2326
  %v2329 = vmul.f32 %v2311, %v2327
  %2331 = vrot.lane.b32.xlu0 %v2329, 80
  %v2332 = vpop.permute.xlu0 %2331
  %2334 = vst.msk [vmem:[#allocation3 + $0x38] sm:$0x3] %vm485, %v2332
  %v2335 = vld [vmem:[#allocation2 + $0x3a] sm:$0x3]
  %v2336 = vsel %vm419, %v2332, 0
  %2338 = vmatpush.msra.mxu0 0.0
  %2339 = vmatpush.msra.mxu0 0.0
  %2340 = vmatpush.msra.mxu0 0.0
  %2341 = vmatpush.msra.mxu0 0.0
  %2342 = vmatpush.msra.mxu0 0.0
  %2343 = vmatpush.msra.mxu0 0.0
  %2344 = vmatpush.msra.mxu0 0.0
  %2345 = vmatpush.msra.mxu0 0.0
  %2346 = vmatpush.msra.mxu0 0.0
  %2347 = vmatpush.msra.mxu0 0.0
  %2348 = vmatpush.msra.mxu0 0.0
  %2349 = vmatpush.msra.mxu0 0.0
  %2350 = vmatpush.msra.mxu0 0.0
  %2351 = vmatpush.msra.mxu0 0.0
  %2352 = vmatpush.msra.mxu0 %v417
  %2353 = vmatpush.msra.mxu0 %v416
  %2354 = vmatmul.f32.gmra.mxu0 %v2336
  %v2355 = vpop.f32.mrf.mxu0
  %v2356 = vadd.f32 0.0, %v2355
  %2357 = vdwg.mxu0
  %v2358 = vadd.f32 %v2335, %v2356
  %v2359 = vxor.u32 %v2358, 2147483648
  %v2360 = vmul.f32 %v2359, 1.442695
  %v2361 = vpow.pop %v2360
  %v2362 = vadd.f32 %v2361, 1.0
  %v2363 = vrcp.pop %v2362
  %v2364 = vmul.f32 %v2362, %v2363
  %v2365 = vsub.f32 1.0, %v2364
  %v2366 = vmul.f32 %v2363, %v2365
  %v2367 = vadd.f32 %v2363, %v2366
  %vm2368 = vweird.f32 %v2362
  %vm2369 = vweird.f32 %v2363
  %vm2370 = vmor %vm2368, %vm2369
  %v2371 = vsel %vm2370, %v2363, %v2367
  %v2372 = vand.u32 2147483647, %v2362
  %vm2373 = vcmp.eq.f32.partialorder %v2372, 8.507059e+37
  %v2374 = vand.u32 %v2362, 2147483648
  %v2375 = vor.u32 1.1754944e-38, %v2374
  %v2376 = vsel %vm2373, %v2375, %v2371
  %v2377 = vmul.f32 1.0, %v2376
  %v2378 = vtanh.pop %v2358
  %v2379 = vmul.f32 %v2377, %v2323
  %2381 = vrot.lane.b32.xlu0 %v2378, 96
  %v2382 = vpop.permute.xlu0 %2381
  %v2384 = vmul.f32 %v2377, %v2382
  %2386 = vrot.lane.b32.xlu0 %v2384, 16
  %v2387 = vpop.permute.xlu0 %2386
  %v2389 = vadd.f32 %v2379, %v2387
  %v2390 = vtanh.pop %v2389
  %2392 = vrot.lane.b32.xlu0 %v2390, 32
  %v2393 = vpop.permute.xlu0 %2392
  %v2395 = vmul.f32 %v2377, %v2393
  %2397 = vrot.lane.b32.xlu0 %v2395, 80
  %v2398 = vpop.permute.xlu0 %2397
  %2400 = vst.msk [vmem:[#allocation3 + $0x3a] sm:$0x3] %vm485, %v2398
  %v2401 = vld [vmem:[#allocation2 + $0x3c] sm:$0x3]
  %v2402 = vsel %vm419, %v2398, 0
  %2404 = vmatpush.msra.mxu0 0.0
  %2405 = vmatpush.msra.mxu0 0.0
  %2406 = vmatpush.msra.mxu0 0.0
  %2407 = vmatpush.msra.mxu0 0.0
  %2408 = vmatpush.msra.mxu0 0.0
  %2409 = vmatpush.msra.mxu0 0.0
  %2410 = vmatpush.msra.mxu0 0.0
  %2411 = vmatpush.msra.mxu0 0.0
  %2412 = vmatpush.msra.mxu0 0.0
  %2413 = vmatpush.msra.mxu0 0.0
  %2414 = vmatpush.msra.mxu0 0.0
  %2415 = vmatpush.msra.mxu0 0.0
  %2416 = vmatpush.msra.mxu0 0.0
  %2417 = vmatpush.msra.mxu0 0.0
  %2418 = vmatpush.msra.mxu0 %v417
  %2419 = vmatpush.msra.mxu0 %v416
  %2420 = vmatmul.f32.gmra.mxu0 %v2402
  %v2421 = vpop.f32.mrf.mxu0
  %v2422 = vadd.f32 0.0, %v2421
  %2423 = vdwg.mxu0
  %v2424 = vadd.f32 %v2401, %v2422
  %v2425 = vxor.u32 %v2424, 2147483648
  %v2426 = vmul.f32 %v2425, 1.442695
  %v2427 = vpow.pop %v2426
  %v2428 = vadd.f32 %v2427, 1.0
  %v2429 = vrcp.pop %v2428
  %v2430 = vmul.f32 %v2428, %v2429
  %v2431 = vsub.f32 1.0, %v2430
  %v2432 = vmul.f32 %v2429, %v2431
  %v2433 = vadd.f32 %v2429, %v2432
  %vm2434 = vweird.f32 %v2428
  %vm2435 = vweird.f32 %v2429
  %vm2436 = vmor %vm2434, %vm2435
  %v2437 = vsel %vm2436, %v2429, %v2433
  %v2438 = vand.u32 2147483647, %v2428
  %vm2439 = vcmp.eq.f32.partialorder %v2438, 8.507059e+37
  %v2440 = vand.u32 %v2428, 2147483648
  %v2441 = vor.u32 1.1754944e-38, %v2440
  %v2442 = vsel %vm2439, %v2441, %v2437
  %v2443 = vmul.f32 1.0, %v2442
  %v2444 = vtanh.pop %v2424
  %v2445 = vmul.f32 %v2443, %v2389
  %2447 = vrot.lane.b32.xlu0 %v2444, 96
  %v2448 = vpop.permute.xlu0 %2447
  %v2450 = vmul.f32 %v2443, %v2448
  %2452 = vrot.lane.b32.xlu0 %v2450, 16
  %v2453 = vpop.permute.xlu0 %2452
  %v2455 = vadd.f32 %v2445, %v2453
  %v2456 = vtanh.pop %v2455
  %2458 = vrot.lane.b32.xlu0 %v2456, 32
  %v2459 = vpop.permute.xlu0 %2458
  %v2461 = vmul.f32 %v2443, %v2459
  %2463 = vrot.lane.b32.xlu0 %v2461, 80
  %v2464 = vpop.permute.xlu0 %2463
  %2466 = vst.msk [vmem:[#allocation3 + $0x3c] sm:$0x3] %vm485, %v2464
  %v2467 = vld [vmem:[#allocation2 + $0x3e] sm:$0x3]
  %v2468 = vsel %vm419, %v2464, 0
  %2470 = vmatpush.msra.mxu0 0.0
  %2471 = vmatpush.msra.mxu0 0.0
  %2472 = vmatpush.msra.mxu0 0.0
  %2473 = vmatpush.msra.mxu0 0.0
  %2474 = vmatpush.msra.mxu0 0.0
  %2475 = vmatpush.msra.mxu0 0.0
  %2476 = vmatpush.msra.mxu0 0.0
  %2477 = vmatpush.msra.mxu0 0.0
  %2478 = vmatpush.msra.mxu0 0.0
  %2479 = vmatpush.msra.mxu0 0.0
  %2480 = vmatpush.msra.mxu0 0.0
  %2481 = vmatpush.msra.mxu0 0.0
  %2482 = vmatpush.msra.mxu0 0.0
  %2483 = vmatpush.msra.mxu0 0.0
  %2484 = vmatpush.msra.mxu0 %v417
  %2485 = vmatpush.msra.mxu0 %v416
  %2486 = vmatmul.f32.gmra.mxu0 %v2468
  %v2487 = vpop.f32.mrf.mxu0
  %v2488 = vadd.f32 0.0, %v2487
  %2489 = vdwg.mxu0
  %v2490 = vadd.f32 %v2467, %v2488
  %v2491 = vxor.u32 %v2490, 2147483648
  %v2492 = vmul.f32 %v2491, 1.442695
  %v2493 = vpow.pop %v2492
  %v2494 = vadd.f32 %v2493, 1.0
  %v2495 = vrcp.pop %v2494
  %v2496 = vmul.f32 %v2494, %v2495
  %v2497 = vsub.f32 1.0, %v2496
  %v2498 = vmul.f32 %v2495, %v2497
  %v2499 = vadd.f32 %v2495, %v2498
  %vm2500 = vweird.f32 %v2494
  %vm2501 = vweird.f32 %v2495
  %vm2502 = vmor %vm2500, %vm2501
  %v2503 = vsel %vm2502, %v2495, %v2499
  %v2504 = vand.u32 2147483647, %v2494
  %vm2505 = vcmp.eq.f32.partialorder %v2504, 8.507059e+37
  %v2506 = vand.u32 %v2494, 2147483648
  %v2507 = vor.u32 1.1754944e-38, %v2506
  %v2508 = vsel %vm2505, %v2507, %v2503
  %v2509 = vmul.f32 1.0, %v2508
  %v2510 = vtanh.pop %v2490
  %v2511 = vmul.f32 %v2509, %v2455
  %2513 = vrot.lane.b32.xlu0 %v2510, 96
  %v2514 = vpop.permute.xlu0 %2513
  %v2516 = vmul.f32 %v2509, %v2514
  %2518 = vrot.lane.b32.xlu0 %v2516, 16
  %v2519 = vpop.permute.xlu0 %2518
  %v2521 = vadd.f32 %v2511, %v2519
  %v2522 = vtanh.pop %v2521
  %2524 = vrot.lane.b32.xlu0 %v2522, 32
  %v2525 = vpop.permute.xlu0 %2524
  %v2527 = vmul.f32 %v2509, %v2525
  %2529 = vrot.lane.b32.xlu0 %v2527, 80
  %v2530 = vpop.permute.xlu0 %2529
  %2532 = vst.msk [vmem:[#allocation3 + $0x3e] sm:$0x3] %vm485, %v2530
  %v2533 = vld [vmem:[#allocation2 + $0x40] sm:$0x3]
  %v2534 = vsel %vm419, %v2530, 0
  %2536 = vmatpush.msra.mxu0 0.0
  %2537 = vmatpush.msra.mxu0 0.0
  %2538 = vmatpush.msra.mxu0 0.0
  %2539 = vmatpush.msra.mxu0 0.0
  %2540 = vmatpush.msra.mxu0 0.0
  %2541 = vmatpush.msra.mxu0 0.0
  %2542 = vmatpush.msra.mxu0 0.0
  %2543 = vmatpush.msra.mxu0 0.0
  %2544 = vmatpush.msra.mxu0 0.0
  %2545 = vmatpush.msra.mxu0 0.0
  %2546 = vmatpush.msra.mxu0 0.0
  %2547 = vmatpush.msra.mxu0 0.0
  %2548 = vmatpush.msra.mxu0 0.0
  %2549 = vmatpush.msra.mxu0 0.0
  %2550 = vmatpush.msra.mxu0 %v417
  %2551 = vmatpush.msra.mxu0 %v416
  %2552 = vmatmul.f32.gmra.mxu0 %v2534
  %v2553 = vpop.f32.mrf.mxu0
  %v2554 = vadd.f32 0.0, %v2553
  %2555 = vdwg.mxu0
  %v2556 = vadd.f32 %v2533, %v2554
  %v2557 = vxor.u32 %v2556, 2147483648
  %v2558 = vmul.f32 %v2557, 1.442695
  %v2559 = vpow.pop %v2558
  %v2560 = vadd.f32 %v2559, 1.0
  %v2561 = vrcp.pop %v2560
  %v2562 = vmul.f32 %v2560, %v2561
  %v2563 = vsub.f32 1.0, %v2562
  %v2564 = vmul.f32 %v2561, %v2563
  %v2565 = vadd.f32 %v2561, %v2564
  %vm2566 = vweird.f32 %v2560
  %vm2567 = vweird.f32 %v2561
  %vm2568 = vmor %vm2566, %vm2567
  %v2569 = vsel %vm2568, %v2561, %v2565
  %v2570 = vand.u32 2147483647, %v2560
  %vm2571 = vcmp.eq.f32.partialorder %v2570, 8.507059e+37
  %v2572 = vand.u32 %v2560, 2147483648
  %v2573 = vor.u32 1.1754944e-38, %v2572
  %v2574 = vsel %vm2571, %v2573, %v2569
  %v2575 = vmul.f32 1.0, %v2574
  %v2576 = vtanh.pop %v2556
  %v2577 = vmul.f32 %v2575, %v2521
  %2579 = vrot.lane.b32.xlu0 %v2576, 96
  %v2580 = vpop.permute.xlu0 %2579
  %v2582 = vmul.f32 %v2575, %v2580
  %2584 = vrot.lane.b32.xlu0 %v2582, 16
  %v2585 = vpop.permute.xlu0 %2584
  %v2587 = vadd.f32 %v2577, %v2585
  %v2588 = vtanh.pop %v2587
  %2590 = vrot.lane.b32.xlu0 %v2588, 32
  %v2591 = vpop.permute.xlu0 %2590
  %v2593 = vmul.f32 %v2575, %v2591
  %2595 = vrot.lane.b32.xlu0 %v2593, 80
  %v2596 = vpop.permute.xlu0 %2595
  %2598 = vst.msk [vmem:[#allocation3 + $0x40] sm:$0x3] %vm485, %v2596
  %v2599 = vld [vmem:[#allocation2 + $0x42] sm:$0x3]
  %v2600 = vsel %vm419, %v2596, 0
  %2602 = vmatpush.msra.mxu0 0.0
  %2603 = vmatpush.msra.mxu0 0.0
  %2604 = vmatpush.msra.mxu0 0.0
  %2605 = vmatpush.msra.mxu0 0.0
  %2606 = vmatpush.msra.mxu0 0.0
  %2607 = vmatpush.msra.mxu0 0.0
  %2608 = vmatpush.msra.mxu0 0.0
  %2609 = vmatpush.msra.mxu0 0.0
  %2610 = vmatpush.msra.mxu0 0.0
  %2611 = vmatpush.msra.mxu0 0.0
  %2612 = vmatpush.msra.mxu0 0.0
  %2613 = vmatpush.msra.mxu0 0.0
  %2614 = vmatpush.msra.mxu0 0.0
  %2615 = vmatpush.msra.mxu0 0.0
  %2616 = vmatpush.msra.mxu0 %v417
  %2617 = vmatpush.msra.mxu0 %v416
  %2618 = vmatmul.f32.gmra.mxu0 %v2600
  %v2619 = vpop.f32.mrf.mxu0
  %v2620 = vadd.f32 0.0, %v2619
  %2621 = vdwg.mxu0
  %v2622 = vadd.f32 %v2599, %v2620
  %v2623 = vxor.u32 %v2622, 2147483648
  %v2624 = vmul.f32 %v2623, 1.442695
  %v2625 = vpow.pop %v2624
  %v2626 = vadd.f32 %v2625, 1.0
  %v2627 = vrcp.pop %v2626
  %v2628 = vmul.f32 %v2626, %v2627
  %v2629 = vsub.f32 1.0, %v2628
  %v2630 = vmul.f32 %v2627, %v2629
  %v2631 = vadd.f32 %v2627, %v2630
  %vm2632 = vweird.f32 %v2626
  %vm2633 = vweird.f32 %v2627
  %vm2634 = vmor %vm2632, %vm2633
  %v2635 = vsel %vm2634, %v2627, %v2631
  %v2636 = vand.u32 2147483647, %v2626
  %vm2637 = vcmp.eq.f32.partialorder %v2636, 8.507059e+37
  %v2638 = vand.u32 %v2626, 2147483648
  %v2639 = vor.u32 1.1754944e-38, %v2638
  %v2640 = vsel %vm2637, %v2639, %v2635
  %v2641 = vmul.f32 1.0, %v2640
  %v2642 = vtanh.pop %v2622
  %v2643 = vmul.f32 %v2641, %v2587
  %2645 = vrot.lane.b32.xlu0 %v2642, 96
  %v2646 = vpop.permute.xlu0 %2645
  %v2648 = vmul.f32 %v2641, %v2646
  %2650 = vrot.lane.b32.xlu0 %v2648, 16
  %v2651 = vpop.permute.xlu0 %2650
  %v2653 = vadd.f32 %v2643, %v2651
  %v2654 = vtanh.pop %v2653
  %2656 = vrot.lane.b32.xlu0 %v2654, 32
  %v2657 = vpop.permute.xlu0 %2656
  %v2659 = vmul.f32 %v2641, %v2657
  %2661 = vrot.lane.b32.xlu0 %v2659, 80
  %v2662 = vpop.permute.xlu0 %2661
  %2664 = vst.msk [vmem:[#allocation3 + $0x42] sm:$0x3] %vm485, %v2662
  %v2665 = vld [vmem:[#allocation2 + $0x44] sm:$0x3]
  %v2666 = vsel %vm419, %v2662, 0
  %2668 = vmatpush.msra.mxu0 0.0
  %2669 = vmatpush.msra.mxu0 0.0
  %2670 = vmatpush.msra.mxu0 0.0
  %2671 = vmatpush.msra.mxu0 0.0
  %2672 = vmatpush.msra.mxu0 0.0
  %2673 = vmatpush.msra.mxu0 0.0
  %2674 = vmatpush.msra.mxu0 0.0
  %2675 = vmatpush.msra.mxu0 0.0
  %2676 = vmatpush.msra.mxu0 0.0
  %2677 = vmatpush.msra.mxu0 0.0
  %2678 = vmatpush.msra.mxu0 0.0
  %2679 = vmatpush.msra.mxu0 0.0
  %2680 = vmatpush.msra.mxu0 0.0
  %2681 = vmatpush.msra.mxu0 0.0
  %2682 = vmatpush.msra.mxu0 %v417
  %2683 = vmatpush.msra.mxu0 %v416
  %2684 = vmatmul.f32.gmra.mxu0 %v2666
  %v2685 = vpop.f32.mrf.mxu0
  %v2686 = vadd.f32 0.0, %v2685
  %2687 = vdwg.mxu0
  %v2688 = vadd.f32 %v2665, %v2686
  %v2689 = vxor.u32 %v2688, 2147483648
  %v2690 = vmul.f32 %v2689, 1.442695
  %v2691 = vpow.pop %v2690
  %v2692 = vadd.f32 %v2691, 1.0
  %v2693 = vrcp.pop %v2692
  %v2694 = vmul.f32 %v2692, %v2693
  %v2695 = vsub.f32 1.0, %v2694
  %v2696 = vmul.f32 %v2693, %v2695
  %v2697 = vadd.f32 %v2693, %v2696
  %vm2698 = vweird.f32 %v2692
  %vm2699 = vweird.f32 %v2693
  %vm2700 = vmor %vm2698, %vm2699
  %v2701 = vsel %vm2700, %v2693, %v2697
  %v2702 = vand.u32 2147483647, %v2692
  %vm2703 = vcmp.eq.f32.partialorder %v2702, 8.507059e+37
  %v2704 = vand.u32 %v2692, 2147483648
  %v2705 = vor.u32 1.1754944e-38, %v2704
  %v2706 = vsel %vm2703, %v2705, %v2701
  %v2707 = vmul.f32 1.0, %v2706
  %v2708 = vtanh.pop %v2688
  %v2709 = vmul.f32 %v2707, %v2653
  %2711 = vrot.lane.b32.xlu0 %v2708, 96
  %v2712 = vpop.permute.xlu0 %2711
  %v2714 = vmul.f32 %v2707, %v2712
  %2716 = vrot.lane.b32.xlu0 %v2714, 16
  %v2717 = vpop.permute.xlu0 %2716
  %v2719 = vadd.f32 %v2709, %v2717
  %v2720 = vtanh.pop %v2719
  %2722 = vrot.lane.b32.xlu0 %v2720, 32
  %v2723 = vpop.permute.xlu0 %2722
  %v2725 = vmul.f32 %v2707, %v2723
  %2727 = vrot.lane.b32.xlu0 %v2725, 80
  %v2728 = vpop.permute.xlu0 %2727
  %2730 = vst.msk [vmem:[#allocation3 + $0x44] sm:$0x3] %vm485, %v2728
  %v2731 = vld [vmem:[#allocation2 + $0x46] sm:$0x3]
  %v2732 = vsel %vm419, %v2728, 0
  %2734 = vmatpush.msra.mxu0 0.0
  %2735 = vmatpush.msra.mxu0 0.0
  %2736 = vmatpush.msra.mxu0 0.0
  %2737 = vmatpush.msra.mxu0 0.0
  %2738 = vmatpush.msra.mxu0 0.0
  %2739 = vmatpush.msra.mxu0 0.0
  %2740 = vmatpush.msra.mxu0 0.0
  %2741 = vmatpush.msra.mxu0 0.0
  %2742 = vmatpush.msra.mxu0 0.0
  %2743 = vmatpush.msra.mxu0 0.0
  %2744 = vmatpush.msra.mxu0 0.0
  %2745 = vmatpush.msra.mxu0 0.0
  %2746 = vmatpush.msra.mxu0 0.0
  %2747 = vmatpush.msra.mxu0 0.0
  %2748 = vmatpush.msra.mxu0 %v417
  %2749 = vmatpush.msra.mxu0 %v416
  %2750 = vmatmul.f32.gmra.mxu0 %v2732
  %v2751 = vpop.f32.mrf.mxu0
  %v2752 = vadd.f32 0.0, %v2751
  %2753 = vdwg.mxu0
  %v2754 = vadd.f32 %v2731, %v2752
  %v2755 = vxor.u32 %v2754, 2147483648
  %v2756 = vmul.f32 %v2755, 1.442695
  %v2757 = vpow.pop %v2756
  %v2758 = vadd.f32 %v2757, 1.0
  %v2759 = vrcp.pop %v2758
  %v2760 = vmul.f32 %v2758, %v2759
  %v2761 = vsub.f32 1.0, %v2760
  %v2762 = vmul.f32 %v2759, %v2761
  %v2763 = vadd.f32 %v2759, %v2762
  %vm2764 = vweird.f32 %v2758
  %vm2765 = vweird.f32 %v2759
  %vm2766 = vmor %vm2764, %vm2765
  %v2767 = vsel %vm2766, %v2759, %v2763
  %v2768 = vand.u32 2147483647, %v2758
  %vm2769 = vcmp.eq.f32.partialorder %v2768, 8.507059e+37
  %v2770 = vand.u32 %v2758, 2147483648
  %v2771 = vor.u32 1.1754944e-38, %v2770
  %v2772 = vsel %vm2769, %v2771, %v2767
  %v2773 = vmul.f32 1.0, %v2772
  %v2774 = vtanh.pop %v2754
  %v2775 = vmul.f32 %v2773, %v2719
  %2777 = vrot.lane.b32.xlu0 %v2774, 96
  %v2778 = vpop.permute.xlu0 %2777
  %v2780 = vmul.f32 %v2773, %v2778
  %2782 = vrot.lane.b32.xlu0 %v2780, 16
  %v2783 = vpop.permute.xlu0 %2782
  %v2785 = vadd.f32 %v2775, %v2783
  %v2786 = vtanh.pop %v2785
  %2788 = vrot.lane.b32.xlu0 %v2786, 32
  %v2789 = vpop.permute.xlu0 %2788
  %v2791 = vmul.f32 %v2773, %v2789
  %2793 = vrot.lane.b32.xlu0 %v2791, 80
  %v2794 = vpop.permute.xlu0 %2793
  %2796 = vst.msk [vmem:[#allocation3 + $0x46] sm:$0x3] %vm485, %v2794
  %v2797 = vld [vmem:[#allocation2 + $0x48] sm:$0x3]
  %v2798 = vsel %vm419, %v2794, 0
  %2800 = vmatpush.msra.mxu0 0.0
  %2801 = vmatpush.msra.mxu0 0.0
  %2802 = vmatpush.msra.mxu0 0.0
  %2803 = vmatpush.msra.mxu0 0.0
  %2804 = vmatpush.msra.mxu0 0.0
  %2805 = vmatpush.msra.mxu0 0.0
  %2806 = vmatpush.msra.mxu0 0.0
  %2807 = vmatpush.msra.mxu0 0.0
  %2808 = vmatpush.msra.mxu0 0.0
  %2809 = vmatpush.msra.mxu0 0.0
  %2810 = vmatpush.msra.mxu0 0.0
  %2811 = vmatpush.msra.mxu0 0.0
  %2812 = vmatpush.msra.mxu0 0.0
  %2813 = vmatpush.msra.mxu0 0.0
  %2814 = vmatpush.msra.mxu0 %v417
  %2815 = vmatpush.msra.mxu0 %v416
  %2816 = vmatmul.f32.gmra.mxu0 %v2798
  %v2817 = vpop.f32.mrf.mxu0
  %v2818 = vadd.f32 0.0, %v2817
  %2819 = vdwg.mxu0
  %v2820 = vadd.f32 %v2797, %v2818
  %v2821 = vxor.u32 %v2820, 2147483648
  %v2822 = vmul.f32 %v2821, 1.442695
  %v2823 = vpow.pop %v2822
  %v2824 = vadd.f32 %v2823, 1.0
  %v2825 = vrcp.pop %v2824
  %v2826 = vmul.f32 %v2824, %v2825
  %v2827 = vsub.f32 1.0, %v2826
  %v2828 = vmul.f32 %v2825, %v2827
  %v2829 = vadd.f32 %v2825, %v2828
  %vm2830 = vweird.f32 %v2824
  %vm2831 = vweird.f32 %v2825
  %vm2832 = vmor %vm2830, %vm2831
  %v2833 = vsel %vm2832, %v2825, %v2829
  %v2834 = vand.u32 2147483647, %v2824
  %vm2835 = vcmp.eq.f32.partialorder %v2834, 8.507059e+37
  %v2836 = vand.u32 %v2824, 2147483648
  %v2837 = vor.u32 1.1754944e-38, %v2836
  %v2838 = vsel %vm2835, %v2837, %v2833
  %v2839 = vmul.f32 1.0, %v2838
  %v2840 = vtanh.pop %v2820
  %v2841 = vmul.f32 %v2839, %v2785
  %2843 = vrot.lane.b32.xlu0 %v2840, 96
  %v2844 = vpop.permute.xlu0 %2843
  %v2846 = vmul.f32 %v2839, %v2844
  %2848 = vrot.lane.b32.xlu0 %v2846, 16
  %v2849 = vpop.permute.xlu0 %2848
  %v2851 = vadd.f32 %v2841, %v2849
  %v2852 = vtanh.pop %v2851
  %2854 = vrot.lane.b32.xlu0 %v2852, 32
  %v2855 = vpop.permute.xlu0 %2854
  %v2857 = vmul.f32 %v2839, %v2855
  %2859 = vrot.lane.b32.xlu0 %v2857, 80
  %v2860 = vpop.permute.xlu0 %2859
  %2862 = vst.msk [vmem:[#allocation3 + $0x48] sm:$0x3] %vm485, %v2860
  %v2863 = vld [vmem:[#allocation2 + $0x4a] sm:$0x3]
  %v2864 = vsel %vm419, %v2860, 0
  %2866 = vmatpush.msra.mxu0 0.0
  %2867 = vmatpush.msra.mxu0 0.0
  %2868 = vmatpush.msra.mxu0 0.0
  %2869 = vmatpush.msra.mxu0 0.0
  %2870 = vmatpush.msra.mxu0 0.0
  %2871 = vmatpush.msra.mxu0 0.0
  %2872 = vmatpush.msra.mxu0 0.0
  %2873 = vmatpush.msra.mxu0 0.0
  %2874 = vmatpush.msra.mxu0 0.0
  %2875 = vmatpush.msra.mxu0 0.0
  %2876 = vmatpush.msra.mxu0 0.0
  %2877 = vmatpush.msra.mxu0 0.0
  %2878 = vmatpush.msra.mxu0 0.0
  %2879 = vmatpush.msra.mxu0 0.0
  %2880 = vmatpush.msra.mxu0 %v417
  %2881 = vmatpush.msra.mxu0 %v416
  %2882 = vmatmul.f32.gmra.mxu0 %v2864
  %v2883 = vpop.f32.mrf.mxu0
  %v2884 = vadd.f32 0.0, %v2883
  %2885 = vdwg.mxu0
  %v2886 = vadd.f32 %v2863, %v2884
  %v2887 = vxor.u32 %v2886, 2147483648
  %v2888 = vmul.f32 %v2887, 1.442695
  %v2889 = vpow.pop %v2888
  %v2890 = vadd.f32 %v2889, 1.0
  %v2891 = vrcp.pop %v2890
  %v2892 = vmul.f32 %v2890, %v2891
  %v2893 = vsub.f32 1.0, %v2892
  %v2894 = vmul.f32 %v2891, %v2893
  %v2895 = vadd.f32 %v2891, %v2894
  %vm2896 = vweird.f32 %v2890
  %vm2897 = vweird.f32 %v2891
  %vm2898 = vmor %vm2896, %vm2897
  %v2899 = vsel %vm2898, %v2891, %v2895
  %v2900 = vand.u32 2147483647, %v2890
  %vm2901 = vcmp.eq.f32.partialorder %v2900, 8.507059e+37
  %v2902 = vand.u32 %v2890, 2147483648
  %v2903 = vor.u32 1.1754944e-38, %v2902
  %v2904 = vsel %vm2901, %v2903, %v2899
  %v2905 = vmul.f32 1.0, %v2904
  %v2906 = vtanh.pop %v2886
  %v2907 = vmul.f32 %v2905, %v2851
  %2909 = vrot.lane.b32.xlu0 %v2906, 96
  %v2910 = vpop.permute.xlu0 %2909
  %v2912 = vmul.f32 %v2905, %v2910
  %2914 = vrot.lane.b32.xlu0 %v2912, 16
  %v2915 = vpop.permute.xlu0 %2914
  %v2917 = vadd.f32 %v2907, %v2915
  %v2918 = vtanh.pop %v2917
  %2920 = vrot.lane.b32.xlu0 %v2918, 32
  %v2921 = vpop.permute.xlu0 %2920
  %v2923 = vmul.f32 %v2905, %v2921
  %2925 = vrot.lane.b32.xlu0 %v2923, 80
  %v2926 = vpop.permute.xlu0 %2925
  %2928 = vst.msk [vmem:[#allocation3 + $0x4a] sm:$0x3] %vm485, %v2926
  %v2929 = vld [vmem:[#allocation2 + $0x4c] sm:$0x3]
  %v2930 = vsel %vm419, %v2926, 0
  %2932 = vmatpush.msra.mxu0 0.0
  %2933 = vmatpush.msra.mxu0 0.0
  %2934 = vmatpush.msra.mxu0 0.0
  %2935 = vmatpush.msra.mxu0 0.0
  %2936 = vmatpush.msra.mxu0 0.0
  %2937 = vmatpush.msra.mxu0 0.0
  %2938 = vmatpush.msra.mxu0 0.0
  %2939 = vmatpush.msra.mxu0 0.0
  %2940 = vmatpush.msra.mxu0 0.0
  %2941 = vmatpush.msra.mxu0 0.0
  %2942 = vmatpush.msra.mxu0 0.0
  %2943 = vmatpush.msra.mxu0 0.0
  %2944 = vmatpush.msra.mxu0 0.0
  %2945 = vmatpush.msra.mxu0 0.0
  %2946 = vmatpush.msra.mxu0 %v417
  %2947 = vmatpush.msra.mxu0 %v416
  %2948 = vmatmul.f32.gmra.mxu0 %v2930
  %v2949 = vpop.f32.mrf.mxu0
  %v2950 = vadd.f32 0.0, %v2949
  %2951 = vdwg.mxu0
  %v2952 = vadd.f32 %v2929, %v2950
  %v2953 = vxor.u32 %v2952, 2147483648
  %v2954 = vmul.f32 %v2953, 1.442695
  %v2955 = vpow.pop %v2954
  %v2956 = vadd.f32 %v2955, 1.0
  %v2957 = vrcp.pop %v2956
  %v2958 = vmul.f32 %v2956, %v2957
  %v2959 = vsub.f32 1.0, %v2958
  %v2960 = vmul.f32 %v2957, %v2959
  %v2961 = vadd.f32 %v2957, %v2960
  %vm2962 = vweird.f32 %v2956
  %vm2963 = vweird.f32 %v2957
  %vm2964 = vmor %vm2962, %vm2963
  %v2965 = vsel %vm2964, %v2957, %v2961
  %v2966 = vand.u32 2147483647, %v2956
  %vm2967 = vcmp.eq.f32.partialorder %v2966, 8.507059e+37
  %v2968 = vand.u32 %v2956, 2147483648
  %v2969 = vor.u32 1.1754944e-38, %v2968
  %v2970 = vsel %vm2967, %v2969, %v2965
  %v2971 = vmul.f32 1.0, %v2970
  %v2972 = vtanh.pop %v2952
  %v2973 = vmul.f32 %v2971, %v2917
  %2975 = vrot.lane.b32.xlu0 %v2972, 96
  %v2976 = vpop.permute.xlu0 %2975
  %v2978 = vmul.f32 %v2971, %v2976
  %2980 = vrot.lane.b32.xlu0 %v2978, 16
  %v2981 = vpop.permute.xlu0 %2980
  %v2983 = vadd.f32 %v2973, %v2981
  %v2984 = vtanh.pop %v2983
  %2986 = vrot.lane.b32.xlu0 %v2984, 32
  %v2987 = vpop.permute.xlu0 %2986
  %v2989 = vmul.f32 %v2971, %v2987
  %2991 = vrot.lane.b32.xlu0 %v2989, 80
  %v2992 = vpop.permute.xlu0 %2991
  %2994 = vst.msk [vmem:[#allocation3 + $0x4c] sm:$0x3] %vm485, %v2992
  %v2995 = vld [vmem:[#allocation2 + $0x4e] sm:$0x3]
  %v2996 = vsel %vm419, %v2992, 0
  %2998 = vmatpush.msra.mxu0 0.0
  %2999 = vmatpush.msra.mxu0 0.0
  %3000 = vmatpush.msra.mxu0 0.0
  %3001 = vmatpush.msra.mxu0 0.0
  %3002 = vmatpush.msra.mxu0 0.0
  %3003 = vmatpush.msra.mxu0 0.0
  %3004 = vmatpush.msra.mxu0 0.0
  %3005 = vmatpush.msra.mxu0 0.0
  %3006 = vmatpush.msra.mxu0 0.0
  %3007 = vmatpush.msra.mxu0 0.0
  %3008 = vmatpush.msra.mxu0 0.0
  %3009 = vmatpush.msra.mxu0 0.0
  %3010 = vmatpush.msra.mxu0 0.0
  %3011 = vmatpush.msra.mxu0 0.0
  %3012 = vmatpush.msra.mxu0 %v417
  %3013 = vmatpush.msra.mxu0 %v416
  %3014 = vmatmul.f32.gmra.mxu0 %v2996
  %v3015 = vpop.f32.mrf.mxu0
  %v3016 = vadd.f32 0.0, %v3015
  %3017 = vdwg.mxu0
  %v3018 = vadd.f32 %v2995, %v3016
  %v3019 = vxor.u32 %v3018, 2147483648
  %v3020 = vmul.f32 %v3019, 1.442695
  %v3021 = vpow.pop %v3020
  %v3022 = vadd.f32 %v3021, 1.0
  %v3023 = vrcp.pop %v3022
  %v3024 = vmul.f32 %v3022, %v3023
  %v3025 = vsub.f32 1.0, %v3024
  %v3026 = vmul.f32 %v3023, %v3025
  %v3027 = vadd.f32 %v3023, %v3026
  %vm3028 = vweird.f32 %v3022
  %vm3029 = vweird.f32 %v3023
  %vm3030 = vmor %vm3028, %vm3029
  %v3031 = vsel %vm3030, %v3023, %v3027
  %v3032 = vand.u32 2147483647, %v3022
  %vm3033 = vcmp.eq.f32.partialorder %v3032, 8.507059e+37
  %v3034 = vand.u32 %v3022, 2147483648
  %v3035 = vor.u32 1.1754944e-38, %v3034
  %v3036 = vsel %vm3033, %v3035, %v3031
  %v3037 = vmul.f32 1.0, %v3036
  %v3038 = vtanh.pop %v3018
  %v3039 = vmul.f32 %v3037, %v2983
  %3041 = vrot.lane.b32.xlu0 %v3038, 96
  %v3042 = vpop.permute.xlu0 %3041
  %v3044 = vmul.f32 %v3037, %v3042
  %3046 = vrot.lane.b32.xlu0 %v3044, 16
  %v3047 = vpop.permute.xlu0 %3046
  %v3049 = vadd.f32 %v3039, %v3047
  %v3050 = vtanh.pop %v3049
  %3052 = vrot.lane.b32.xlu0 %v3050, 32
  %v3053 = vpop.permute.xlu0 %3052
  %v3055 = vmul.f32 %v3037, %v3053
  %3057 = vrot.lane.b32.xlu0 %v3055, 80
  %v3058 = vpop.permute.xlu0 %3057
  %3060 = vst.msk [vmem:[#allocation3 + $0x4e] sm:$0x3] %vm485, %v3058
  %v3061 = vld [vmem:[#allocation2 + $0x50] sm:$0x3]
  %v3062 = vsel %vm419, %v3058, 0
  %3064 = vmatpush.msra.mxu0 0.0
  %3065 = vmatpush.msra.mxu0 0.0
  %3066 = vmatpush.msra.mxu0 0.0
  %3067 = vmatpush.msra.mxu0 0.0
  %3068 = vmatpush.msra.mxu0 0.0
  %3069 = vmatpush.msra.mxu0 0.0
  %3070 = vmatpush.msra.mxu0 0.0
  %3071 = vmatpush.msra.mxu0 0.0
  %3072 = vmatpush.msra.mxu0 0.0
  %3073 = vmatpush.msra.mxu0 0.0
  %3074 = vmatpush.msra.mxu0 0.0
  %3075 = vmatpush.msra.mxu0 0.0
  %3076 = vmatpush.msra.mxu0 0.0
  %3077 = vmatpush.msra.mxu0 0.0
  %3078 = vmatpush.msra.mxu0 %v417
  %3079 = vmatpush.msra.mxu0 %v416
  %3080 = vmatmul.f32.gmra.mxu0 %v3062
  %v3081 = vpop.f32.mrf.mxu0
  %v3082 = vadd.f32 0.0, %v3081
  %3083 = vdwg.mxu0
  %v3084 = vadd.f32 %v3061, %v3082
  %v3085 = vxor.u32 %v3084, 2147483648
  %v3086 = vmul.f32 %v3085, 1.442695
  %v3087 = vpow.pop %v3086
  %v3088 = vadd.f32 %v3087, 1.0
  %v3089 = vrcp.pop %v3088
  %v3090 = vmul.f32 %v3088, %v3089
  %v3091 = vsub.f32 1.0, %v3090
  %v3092 = vmul.f32 %v3089, %v3091
  %v3093 = vadd.f32 %v3089, %v3092
  %vm3094 = vweird.f32 %v3088
  %vm3095 = vweird.f32 %v3089
  %vm3096 = vmor %vm3094, %vm3095
  %v3097 = vsel %vm3096, %v3089, %v3093
  %v3098 = vand.u32 2147483647, %v3088
  %vm3099 = vcmp.eq.f32.partialorder %v3098, 8.507059e+37
  %v3100 = vand.u32 %v3088, 2147483648
  %v3101 = vor.u32 1.1754944e-38, %v3100
  %v3102 = vsel %vm3099, %v3101, %v3097
  %v3103 = vmul.f32 1.0, %v3102
  %v3104 = vtanh.pop %v3084
  %v3105 = vmul.f32 %v3103, %v3049
  %3107 = vrot.lane.b32.xlu0 %v3104, 96
  %v3108 = vpop.permute.xlu0 %3107
  %v3110 = vmul.f32 %v3103, %v3108
  %3112 = vrot.lane.b32.xlu0 %v3110, 16
  %v3113 = vpop.permute.xlu0 %3112
  %v3115 = vadd.f32 %v3105, %v3113
  %v3116 = vtanh.pop %v3115
  %3118 = vrot.lane.b32.xlu0 %v3116, 32
  %v3119 = vpop.permute.xlu0 %3118
  %v3121 = vmul.f32 %v3103, %v3119
  %3123 = vrot.lane.b32.xlu0 %v3121, 80
  %v3124 = vpop.permute.xlu0 %3123
  %3126 = vst.msk [vmem:[#allocation3 + $0x50] sm:$0x3] %vm485, %v3124
  %v3127 = vld [vmem:[#allocation2 + $0x52] sm:$0x3]
  %v3128 = vsel %vm419, %v3124, 0
  %3130 = vmatpush.msra.mxu0 0.0
  %3131 = vmatpush.msra.mxu0 0.0
  %3132 = vmatpush.msra.mxu0 0.0
  %3133 = vmatpush.msra.mxu0 0.0
  %3134 = vmatpush.msra.mxu0 0.0
  %3135 = vmatpush.msra.mxu0 0.0
  %3136 = vmatpush.msra.mxu0 0.0
  %3137 = vmatpush.msra.mxu0 0.0
  %3138 = vmatpush.msra.mxu0 0.0
  %3139 = vmatpush.msra.mxu0 0.0
  %3140 = vmatpush.msra.mxu0 0.0
  %3141 = vmatpush.msra.mxu0 0.0
  %3142 = vmatpush.msra.mxu0 0.0
  %3143 = vmatpush.msra.mxu0 0.0
  %3144 = vmatpush.msra.mxu0 %v417
  %3145 = vmatpush.msra.mxu0 %v416
  %3146 = vmatmul.f32.gmra.mxu0 %v3128
  %v3147 = vpop.f32.mrf.mxu0
  %v3148 = vadd.f32 0.0, %v3147
  %3149 = vdwg.mxu0
  %v3150 = vadd.f32 %v3127, %v3148
  %v3151 = vxor.u32 %v3150, 2147483648
  %v3152 = vmul.f32 %v3151, 1.442695
  %v3153 = vpow.pop %v3152
  %v3154 = vadd.f32 %v3153, 1.0
  %v3155 = vrcp.pop %v3154
  %v3156 = vmul.f32 %v3154, %v3155
  %v3157 = vsub.f32 1.0, %v3156
  %v3158 = vmul.f32 %v3155, %v3157
  %v3159 = vadd.f32 %v3155, %v3158
  %vm3160 = vweird.f32 %v3154
  %vm3161 = vweird.f32 %v3155
  %vm3162 = vmor %vm3160, %vm3161
  %v3163 = vsel %vm3162, %v3155, %v3159
  %v3164 = vand.u32 2147483647, %v3154
  %vm3165 = vcmp.eq.f32.partialorder %v3164, 8.507059e+37
  %v3166 = vand.u32 %v3154, 2147483648
  %v3167 = vor.u32 1.1754944e-38, %v3166
  %v3168 = vsel %vm3165, %v3167, %v3163
  %v3169 = vmul.f32 1.0, %v3168
  %v3170 = vtanh.pop %v3150
  %v3171 = vmul.f32 %v3169, %v3115
  %3173 = vrot.lane.b32.xlu0 %v3170, 96
  %v3174 = vpop.permute.xlu0 %3173
  %v3176 = vmul.f32 %v3169, %v3174
  %3178 = vrot.lane.b32.xlu0 %v3176, 16
  %v3179 = vpop.permute.xlu0 %3178
  %v3181 = vadd.f32 %v3171, %v3179
  %v3182 = vtanh.pop %v3181
  %3184 = vrot.lane.b32.xlu0 %v3182, 32
  %v3185 = vpop.permute.xlu0 %3184
  %v3187 = vmul.f32 %v3169, %v3185
  %3189 = vrot.lane.b32.xlu0 %v3187, 80
  %v3190 = vpop.permute.xlu0 %3189
  %3192 = vst.msk [vmem:[#allocation3 + $0x52] sm:$0x3] %vm485, %v3190
  %v3193 = vld [vmem:[#allocation2 + $0x54] sm:$0x3]
  %v3194 = vsel %vm419, %v3190, 0
  %3196 = vmatpush.msra.mxu0 0.0
  %3197 = vmatpush.msra.mxu0 0.0
  %3198 = vmatpush.msra.mxu0 0.0
  %3199 = vmatpush.msra.mxu0 0.0
  %3200 = vmatpush.msra.mxu0 0.0
  %3201 = vmatpush.msra.mxu0 0.0
  %3202 = vmatpush.msra.mxu0 0.0
  %3203 = vmatpush.msra.mxu0 0.0
  %3204 = vmatpush.msra.mxu0 0.0
  %3205 = vmatpush.msra.mxu0 0.0
  %3206 = vmatpush.msra.mxu0 0.0
  %3207 = vmatpush.msra.mxu0 0.0
  %3208 = vmatpush.msra.mxu0 0.0
  %3209 = vmatpush.msra.mxu0 0.0
  %3210 = vmatpush.msra.mxu0 %v417
  %3211 = vmatpush.msra.mxu0 %v416
  %3212 = vmatmul.f32.gmra.mxu0 %v3194
  %v3213 = vpop.f32.mrf.mxu0
  %v3214 = vadd.f32 0.0, %v3213
  %3215 = vdwg.mxu0
  %v3216 = vadd.f32 %v3193, %v3214
  %v3217 = vxor.u32 %v3216, 2147483648
  %v3218 = vmul.f32 %v3217, 1.442695
  %v3219 = vpow.pop %v3218
  %v3220 = vadd.f32 %v3219, 1.0
  %v3221 = vrcp.pop %v3220
  %v3222 = vmul.f32 %v3220, %v3221
  %v3223 = vsub.f32 1.0, %v3222
  %v3224 = vmul.f32 %v3221, %v3223
  %v3225 = vadd.f32 %v3221, %v3224
  %vm3226 = vweird.f32 %v3220
  %vm3227 = vweird.f32 %v3221
  %vm3228 = vmor %vm3226, %vm3227
  %v3229 = vsel %vm3228, %v3221, %v3225
  %v3230 = vand.u32 2147483647, %v3220
  %vm3231 = vcmp.eq.f32.partialorder %v3230, 8.507059e+37
  %v3232 = vand.u32 %v3220, 2147483648
  %v3233 = vor.u32 1.1754944e-38, %v3232
  %v3234 = vsel %vm3231, %v3233, %v3229
  %v3235 = vmul.f32 1.0, %v3234
  %v3236 = vtanh.pop %v3216
  %v3237 = vmul.f32 %v3235, %v3181
  %3239 = vrot.lane.b32.xlu0 %v3236, 96
  %v3240 = vpop.permute.xlu0 %3239
  %v3242 = vmul.f32 %v3235, %v3240
  %3244 = vrot.lane.b32.xlu0 %v3242, 16
  %v3245 = vpop.permute.xlu0 %3244
  %v3247 = vadd.f32 %v3237, %v3245
  %v3248 = vtanh.pop %v3247
  %3250 = vrot.lane.b32.xlu0 %v3248, 32
  %v3251 = vpop.permute.xlu0 %3250
  %v3253 = vmul.f32 %v3235, %v3251
  %3255 = vrot.lane.b32.xlu0 %v3253, 80
  %v3256 = vpop.permute.xlu0 %3255
  %3258 = vst.msk [vmem:[#allocation3 + $0x54] sm:$0x3] %vm485, %v3256
  %v3259 = vld [vmem:[#allocation2 + $0x56] sm:$0x3]
  %v3260 = vsel %vm419, %v3256, 0
  %3262 = vmatpush.msra.mxu0 0.0
  %3263 = vmatpush.msra.mxu0 0.0
  %3264 = vmatpush.msra.mxu0 0.0
  %3265 = vmatpush.msra.mxu0 0.0
  %3266 = vmatpush.msra.mxu0 0.0
  %3267 = vmatpush.msra.mxu0 0.0
  %3268 = vmatpush.msra.mxu0 0.0
  %3269 = vmatpush.msra.mxu0 0.0
  %3270 = vmatpush.msra.mxu0 0.0
  %3271 = vmatpush.msra.mxu0 0.0
  %3272 = vmatpush.msra.mxu0 0.0
  %3273 = vmatpush.msra.mxu0 0.0
  %3274 = vmatpush.msra.mxu0 0.0
  %3275 = vmatpush.msra.mxu0 0.0
  %3276 = vmatpush.msra.mxu0 %v417
  %3277 = vmatpush.msra.mxu0 %v416
  %3278 = vmatmul.f32.gmra.mxu0 %v3260
  %v3279 = vpop.f32.mrf.mxu0
  %v3280 = vadd.f32 0.0, %v3279
  %3281 = vdwg.mxu0
  %v3282 = vadd.f32 %v3259, %v3280
  %v3283 = vxor.u32 %v3282, 2147483648
  %v3284 = vmul.f32 %v3283, 1.442695
  %v3285 = vpow.pop %v3284
  %v3286 = vadd.f32 %v3285, 1.0
  %v3287 = vrcp.pop %v3286
  %v3288 = vmul.f32 %v3286, %v3287
  %v3289 = vsub.f32 1.0, %v3288
  %v3290 = vmul.f32 %v3287, %v3289
  %v3291 = vadd.f32 %v3287, %v3290
  %vm3292 = vweird.f32 %v3286
  %vm3293 = vweird.f32 %v3287
  %vm3294 = vmor %vm3292, %vm3293
  %v3295 = vsel %vm3294, %v3287, %v3291
  %v3296 = vand.u32 2147483647, %v3286
  %vm3297 = vcmp.eq.f32.partialorder %v3296, 8.507059e+37
  %v3298 = vand.u32 %v3286, 2147483648
  %v3299 = vor.u32 1.1754944e-38, %v3298
  %v3300 = vsel %vm3297, %v3299, %v3295
  %v3301 = vmul.f32 1.0, %v3300
  %v3302 = vtanh.pop %v3282
  %v3303 = vmul.f32 %v3301, %v3247
  %3305 = vrot.lane.b32.xlu0 %v3302, 96
  %v3306 = vpop.permute.xlu0 %3305
  %v3308 = vmul.f32 %v3301, %v3306
  %3310 = vrot.lane.b32.xlu0 %v3308, 16
  %v3311 = vpop.permute.xlu0 %3310
  %v3313 = vadd.f32 %v3303, %v3311
  %v3314 = vtanh.pop %v3313
  %3316 = vrot.lane.b32.xlu0 %v3314, 32
  %v3317 = vpop.permute.xlu0 %3316
  %v3319 = vmul.f32 %v3301, %v3317
  %3321 = vrot.lane.b32.xlu0 %v3319, 80
  %v3322 = vpop.permute.xlu0 %3321
  %3324 = vst.msk [vmem:[#allocation3 + $0x56] sm:$0x3] %vm485, %v3322
  %v3325 = vld [vmem:[#allocation2 + $0x58] sm:$0x3]
  %v3326 = vsel %vm419, %v3322, 0
  %3328 = vmatpush.msra.mxu0 0.0
  %3329 = vmatpush.msra.mxu0 0.0
  %3330 = vmatpush.msra.mxu0 0.0
  %3331 = vmatpush.msra.mxu0 0.0
  %3332 = vmatpush.msra.mxu0 0.0
  %3333 = vmatpush.msra.mxu0 0.0
  %3334 = vmatpush.msra.mxu0 0.0
  %3335 = vmatpush.msra.mxu0 0.0
  %3336 = vmatpush.msra.mxu0 0.0
  %3337 = vmatpush.msra.mxu0 0.0
  %3338 = vmatpush.msra.mxu0 0.0
  %3339 = vmatpush.msra.mxu0 0.0
  %3340 = vmatpush.msra.mxu0 0.0
  %3341 = vmatpush.msra.mxu0 0.0
  %3342 = vmatpush.msra.mxu0 %v417
  %3343 = vmatpush.msra.mxu0 %v416
  %3344 = vmatmul.f32.gmra.mxu0 %v3326
  %v3345 = vpop.f32.mrf.mxu0
  %v3346 = vadd.f32 0.0, %v3345
  %3347 = vdwg.mxu0
  %v3348 = vadd.f32 %v3325, %v3346
  %v3349 = vxor.u32 %v3348, 2147483648
  %v3350 = vmul.f32 %v3349, 1.442695
  %v3351 = vpow.pop %v3350
  %v3352 = vadd.f32 %v3351, 1.0
  %v3353 = vrcp.pop %v3352
  %v3354 = vmul.f32 %v3352, %v3353
  %v3355 = vsub.f32 1.0, %v3354
  %v3356 = vmul.f32 %v3353, %v3355
  %v3357 = vadd.f32 %v3353, %v3356
  %vm3358 = vweird.f32 %v3352
  %vm3359 = vweird.f32 %v3353
  %vm3360 = vmor %vm3358, %vm3359
  %v3361 = vsel %vm3360, %v3353, %v3357
  %v3362 = vand.u32 2147483647, %v3352
  %vm3363 = vcmp.eq.f32.partialorder %v3362, 8.507059e+37
  %v3364 = vand.u32 %v3352, 2147483648
  %v3365 = vor.u32 1.1754944e-38, %v3364
  %v3366 = vsel %vm3363, %v3365, %v3361
  %v3367 = vmul.f32 1.0, %v3366
  %v3368 = vtanh.pop %v3348
  %v3369 = vmul.f32 %v3367, %v3313
  %3371 = vrot.lane.b32.xlu0 %v3368, 96
  %v3372 = vpop.permute.xlu0 %3371
  %v3374 = vmul.f32 %v3367, %v3372
  %3376 = vrot.lane.b32.xlu0 %v3374, 16
  %v3377 = vpop.permute.xlu0 %3376
  %v3379 = vadd.f32 %v3369, %v3377
  %v3380 = vtanh.pop %v3379
  %3382 = vrot.lane.b32.xlu0 %v3380, 32
  %v3383 = vpop.permute.xlu0 %3382
  %v3385 = vmul.f32 %v3367, %v3383
  %3387 = vrot.lane.b32.xlu0 %v3385, 80
  %v3388 = vpop.permute.xlu0 %3387
  %3390 = vst.msk [vmem:[#allocation3 + $0x58] sm:$0x3] %vm485, %v3388
  %v3391 = vld [vmem:[#allocation2 + $0x5a] sm:$0x3]
  %v3392 = vsel %vm419, %v3388, 0
  %3394 = vmatpush.msra.mxu0 0.0
  %3395 = vmatpush.msra.mxu0 0.0
  %3396 = vmatpush.msra.mxu0 0.0
  %3397 = vmatpush.msra.mxu0 0.0
  %3398 = vmatpush.msra.mxu0 0.0
  %3399 = vmatpush.msra.mxu0 0.0
  %3400 = vmatpush.msra.mxu0 0.0
  %3401 = vmatpush.msra.mxu0 0.0
  %3402 = vmatpush.msra.mxu0 0.0
  %3403 = vmatpush.msra.mxu0 0.0
  %3404 = vmatpush.msra.mxu0 0.0
  %3405 = vmatpush.msra.mxu0 0.0
  %3406 = vmatpush.msra.mxu0 0.0
  %3407 = vmatpush.msra.mxu0 0.0
  %3408 = vmatpush.msra.mxu0 %v417
  %3409 = vmatpush.msra.mxu0 %v416
  %3410 = vmatmul.f32.gmra.mxu0 %v3392
  %v3411 = vpop.f32.mrf.mxu0
  %v3412 = vadd.f32 0.0, %v3411
  %3413 = vdwg.mxu0
  %v3414 = vadd.f32 %v3391, %v3412
  %v3415 = vxor.u32 %v3414, 2147483648
  %v3416 = vmul.f32 %v3415, 1.442695
  %v3417 = vpow.pop %v3416
  %v3418 = vadd.f32 %v3417, 1.0
  %v3419 = vrcp.pop %v3418
  %v3420 = vmul.f32 %v3418, %v3419
  %v3421 = vsub.f32 1.0, %v3420
  %v3422 = vmul.f32 %v3419, %v3421
  %v3423 = vadd.f32 %v3419, %v3422
  %vm3424 = vweird.f32 %v3418
  %vm3425 = vweird.f32 %v3419
  %vm3426 = vmor %vm3424, %vm3425
  %v3427 = vsel %vm3426, %v3419, %v3423
  %v3428 = vand.u32 2147483647, %v3418
  %vm3429 = vcmp.eq.f32.partialorder %v3428, 8.507059e+37
  %v3430 = vand.u32 %v3418, 2147483648
  %v3431 = vor.u32 1.1754944e-38, %v3430
  %v3432 = vsel %vm3429, %v3431, %v3427
  %v3433 = vmul.f32 1.0, %v3432
  %v3434 = vtanh.pop %v3414
  %v3435 = vmul.f32 %v3433, %v3379
  %3437 = vrot.lane.b32.xlu0 %v3434, 96
  %v3438 = vpop.permute.xlu0 %3437
  %v3440 = vmul.f32 %v3433, %v3438
  %3442 = vrot.lane.b32.xlu0 %v3440, 16
  %v3443 = vpop.permute.xlu0 %3442
  %v3445 = vadd.f32 %v3435, %v3443
  %v3446 = vtanh.pop %v3445
  %3448 = vrot.lane.b32.xlu0 %v3446, 32
  %v3449 = vpop.permute.xlu0 %3448
  %v3451 = vmul.f32 %v3433, %v3449
  %3453 = vrot.lane.b32.xlu0 %v3451, 80
  %v3454 = vpop.permute.xlu0 %3453
  %3456 = vst.msk [vmem:[#allocation3 + $0x5a] sm:$0x3] %vm485, %v3454
  %v3457 = vld [vmem:[#allocation2 + $0x5c] sm:$0x3]
  %v3458 = vsel %vm419, %v3454, 0
  %3460 = vmatpush.msra.mxu0 0.0
  %3461 = vmatpush.msra.mxu0 0.0
  %3462 = vmatpush.msra.mxu0 0.0
  %3463 = vmatpush.msra.mxu0 0.0
  %3464 = vmatpush.msra.mxu0 0.0
  %3465 = vmatpush.msra.mxu0 0.0
  %3466 = vmatpush.msra.mxu0 0.0
  %3467 = vmatpush.msra.mxu0 0.0
  %3468 = vmatpush.msra.mxu0 0.0
  %3469 = vmatpush.msra.mxu0 0.0
  %3470 = vmatpush.msra.mxu0 0.0
  %3471 = vmatpush.msra.mxu0 0.0
  %3472 = vmatpush.msra.mxu0 0.0
  %3473 = vmatpush.msra.mxu0 0.0
  %3474 = vmatpush.msra.mxu0 %v417
  %3475 = vmatpush.msra.mxu0 %v416
  %3476 = vmatmul.f32.gmra.mxu0 %v3458
  %v3477 = vpop.f32.mrf.mxu0
  %v3478 = vadd.f32 0.0, %v3477
  %3479 = vdwg.mxu0
  %v3480 = vadd.f32 %v3457, %v3478
  %v3481 = vxor.u32 %v3480, 2147483648
  %v3482 = vmul.f32 %v3481, 1.442695
  %v3483 = vpow.pop %v3482
  %v3484 = vadd.f32 %v3483, 1.0
  %v3485 = vrcp.pop %v3484
  %v3486 = vmul.f32 %v3484, %v3485
  %v3487 = vsub.f32 1.0, %v3486
  %v3488 = vmul.f32 %v3485, %v3487
  %v3489 = vadd.f32 %v3485, %v3488
  %vm3490 = vweird.f32 %v3484
  %vm3491 = vweird.f32 %v3485
  %vm3492 = vmor %vm3490, %vm3491
  %v3493 = vsel %vm3492, %v3485, %v3489
  %v3494 = vand.u32 2147483647, %v3484
  %vm3495 = vcmp.eq.f32.partialorder %v3494, 8.507059e+37
  %v3496 = vand.u32 %v3484, 2147483648
  %v3497 = vor.u32 1.1754944e-38, %v3496
  %v3498 = vsel %vm3495, %v3497, %v3493
  %v3499 = vmul.f32 1.0, %v3498
  %v3500 = vtanh.pop %v3480
  %v3501 = vmul.f32 %v3499, %v3445
  %3503 = vrot.lane.b32.xlu0 %v3500, 96
  %v3504 = vpop.permute.xlu0 %3503
  %v3506 = vmul.f32 %v3499, %v3504
  %3508 = vrot.lane.b32.xlu0 %v3506, 16
  %v3509 = vpop.permute.xlu0 %3508
  %v3511 = vadd.f32 %v3501, %v3509
  %v3512 = vtanh.pop %v3511
  %3514 = vrot.lane.b32.xlu0 %v3512, 32
  %v3515 = vpop.permute.xlu0 %3514
  %v3517 = vmul.f32 %v3499, %v3515
  %3519 = vrot.lane.b32.xlu0 %v3517, 80
  %v3520 = vpop.permute.xlu0 %3519
  %3522 = vst.msk [vmem:[#allocation3 + $0x5c] sm:$0x3] %vm485, %v3520
  %v3523 = vld [vmem:[#allocation2 + $0x5e] sm:$0x3]
  %v3524 = vsel %vm419, %v3520, 0
  %3526 = vmatpush.msra.mxu0 0.0
  %3527 = vmatpush.msra.mxu0 0.0
  %3528 = vmatpush.msra.mxu0 0.0
  %3529 = vmatpush.msra.mxu0 0.0
  %3530 = vmatpush.msra.mxu0 0.0
  %3531 = vmatpush.msra.mxu0 0.0
  %3532 = vmatpush.msra.mxu0 0.0
  %3533 = vmatpush.msra.mxu0 0.0
  %3534 = vmatpush.msra.mxu0 0.0
  %3535 = vmatpush.msra.mxu0 0.0
  %3536 = vmatpush.msra.mxu0 0.0
  %3537 = vmatpush.msra.mxu0 0.0
  %3538 = vmatpush.msra.mxu0 0.0
  %3539 = vmatpush.msra.mxu0 0.0
  %3540 = vmatpush.msra.mxu0 %v417
  %3541 = vmatpush.msra.mxu0 %v416
  %3542 = vmatmul.f32.gmra.mxu0 %v3524
  %v3543 = vpop.f32.mrf.mxu0
  %v3544 = vadd.f32 0.0, %v3543
  %3545 = vdwg.mxu0
  %v3546 = vadd.f32 %v3523, %v3544
  %v3547 = vxor.u32 %v3546, 2147483648
  %v3548 = vmul.f32 %v3547, 1.442695
  %v3549 = vpow.pop %v3548
  %v3550 = vadd.f32 %v3549, 1.0
  %v3551 = vrcp.pop %v3550
  %v3552 = vmul.f32 %v3550, %v3551
  %v3553 = vsub.f32 1.0, %v3552
  %v3554 = vmul.f32 %v3551, %v3553
  %v3555 = vadd.f32 %v3551, %v3554
  %vm3556 = vweird.f32 %v3550
  %vm3557 = vweird.f32 %v3551
  %vm3558 = vmor %vm3556, %vm3557
  %v3559 = vsel %vm3558, %v3551, %v3555
  %v3560 = vand.u32 2147483647, %v3550
  %vm3561 = vcmp.eq.f32.partialorder %v3560, 8.507059e+37
  %v3562 = vand.u32 %v3550, 2147483648
  %v3563 = vor.u32 1.1754944e-38, %v3562
  %v3564 = vsel %vm3561, %v3563, %v3559
  %v3565 = vmul.f32 1.0, %v3564
  %v3566 = vtanh.pop %v3546
  %v3567 = vmul.f32 %v3565, %v3511
  %3569 = vrot.lane.b32.xlu0 %v3566, 96
  %v3570 = vpop.permute.xlu0 %3569
  %v3572 = vmul.f32 %v3565, %v3570
  %3574 = vrot.lane.b32.xlu0 %v3572, 16
  %v3575 = vpop.permute.xlu0 %3574
  %v3577 = vadd.f32 %v3567, %v3575
  %v3578 = vtanh.pop %v3577
  %3580 = vrot.lane.b32.xlu0 %v3578, 32
  %v3581 = vpop.permute.xlu0 %3580
  %v3583 = vmul.f32 %v3565, %v3581
  %3585 = vrot.lane.b32.xlu0 %v3583, 80
  %v3586 = vpop.permute.xlu0 %3585
  %3588 = vst.msk [vmem:[#allocation3 + $0x5e] sm:$0x3] %vm485, %v3586
  %v3589 = vld [vmem:[#allocation3] sm:$0xff]
  %v3590 = vld [vmem:[#allocation3 + $0x8] sm:$0xff]
  %v3591 = vld [vmem:[#allocation3 + $0x10] sm:$0xff]
  %v3592 = vld [vmem:[#allocation3 + $0x18] sm:$0xff]
  %v3593 = vld [vmem:[#allocation3 + $0x20] sm:$0xff]
  %v3594 = vld [vmem:[#allocation3 + $0x28] sm:$0xff]
  %v3595 = vld [vmem:[#allocation3 + $0x30] sm:$0xff]
  %v3596 = vld [vmem:[#allocation3 + $0x38] sm:$0xff]
  %v3597 = vld [vmem:[#allocation3 + $0x40] sm:$0xff]
  %v3598 = vld [vmem:[#allocation3 + $0x48] sm:$0xff]
  %v3599 = vld [vmem:[#allocation3 + $0x50] sm:$0xff]
  %v3600 = vld [vmem:[#allocation3 + $0x58] sm:$0x3f]
  %v3601 = vld [vmem:[%s4] sm:$0xff]
  %v3602 = vld [vmem:[%s4 + $0x8] sm:$0xff]
  %v3603 = vld [vmem:[#allocation3 + $0x2] sm:$0xff]
  %v3604 = vld [vmem:[#allocation3 + $0xa] sm:$0xff]
  %v3605 = vld [vmem:[#allocation3 + $0x12] sm:$0xff]
  %v3606 = vld [vmem:[#allocation3 + $0x1a] sm:$0xff]
  %v3607 = vld [vmem:[#allocation3 + $0x22] sm:$0xff]
  %v3608 = vld [vmem:[#allocation3 + $0x2a] sm:$0xff]
  %v3609 = vld [vmem:[#allocation3 + $0x32] sm:$0xff]
  %v3610 = vld [vmem:[#allocation3 + $0x3a] sm:$0xff]
  %v3611 = vld [vmem:[#allocation3 + $0x42] sm:$0xff]
  %v3612 = vld [vmem:[#allocation3 + $0x4a] sm:$0xff]
  %v3613 = vld [vmem:[#allocation3 + $0x52] sm:$0xff]
  %v3614 = vld [vmem:[#allocation3 + $0x5a] sm:$0x3f]
  %v3615 = vld [vmem:[%s4 + $0x10] sm:$0xff]
  %v3616 = vld [vmem:[%s4 + $0x18] sm:$0xff]
  %v3618 = vsel %vm419, %v3603, 0
  %v3621 = vsel %vm419, %v3604, 0
  %v3624 = vsel %vm419, %v3605, 0
  %v3627 = vsel %vm419, %v3606, 0
  %v3630 = vsel %vm419, %v3607, 0
  %v3633 = vsel %vm419, %v3608, 0
  %v3636 = vsel %vm419, %v3609, 0
  %v3639 = vsel %vm419, %v3610, 0
  %v3642 = vsel %vm419, %v3611, 0
  %v3645 = vsel %vm419, %v3612, 0
  %v3648 = vsel %vm419, %v3613, 0
  %v3651 = vsel %vm419, %v3614, 0
  %3653 = vmatpush.msra.mxu0 0.0
  %3654 = vmatpush.msra.mxu0 0.0
  %3655 = vmatpush.msra.mxu0 0.0
  %3656 = vmatpush.msra.mxu0 0.0
  %3657 = vmatpush.msra.mxu0 0.0
  %3658 = vmatpush.msra.mxu0 0.0
  %3659 = vmatpush.msra.mxu0 0.0
  %3660 = vmatpush.msra.mxu0 0.0
  %3661 = vmatpush.msra.mxu0 0.0
  %3662 = vmatpush.msra.mxu0 0.0
  %3663 = vmatpush.msra.mxu0 0.0
  %3664 = vmatpush.msra.mxu0 0.0
  %3665 = vmatpush.msra.mxu0 0.0
  %3666 = vmatpush.msra.mxu0 0.0
  %3667 = vmatpush.msra.mxu0 %v3616
  %3668 = vmatpush.msra.mxu0 %v3615
  %3669 = vmatmul.f32.gmra.mxu0 %v3618
  %v3670 = vpop.f32.mrf.mxu0
  %v3671 = vadd.f32 0.0, %v3670
  %3672 = vmatmul.f32.gmra.mxu0 %v3621
  %v3673 = vpop.f32.mrf.mxu0
  %v3674 = vadd.f32 0.0, %v3673
  %3675 = vmatmul.f32.gmra.mxu0 %v3624
  %v3676 = vpop.f32.mrf.mxu0
  %v3677 = vadd.f32 0.0, %v3676
  %3678 = vmatmul.f32.gmra.mxu0 %v3627
  %v3679 = vpop.f32.mrf.mxu0
  %v3680 = vadd.f32 0.0, %v3679
  %3681 = vmatmul.f32.gmra.mxu0 %v3630
  %v3682 = vpop.f32.mrf.mxu0
  %v3683 = vadd.f32 0.0, %v3682
  %3684 = vmatmul.f32.gmra.mxu0 %v3633
  %v3685 = vpop.f32.mrf.mxu0
  %v3686 = vadd.f32 0.0, %v3685
  %3687 = vmatmul.f32.gmra.mxu0 %v3636
  %v3688 = vpop.f32.mrf.mxu0
  %v3689 = vadd.f32 0.0, %v3688
  %3690 = vmatmul.f32.gmra.mxu0 %v3639
  %v3691 = vpop.f32.mrf.mxu0
  %v3692 = vadd.f32 0.0, %v3691
  %3693 = vmatmul.f32.gmra.mxu0 %v3642
  %v3694 = vpop.f32.mrf.mxu0
  %v3695 = vadd.f32 0.0, %v3694
  %3696 = vmatmul.f32.gmra.mxu0 %v3645
  %v3697 = vpop.f32.mrf.mxu0
  %v3698 = vadd.f32 0.0, %v3697
  %3699 = vmatmul.f32.gmra.mxu0 %v3648
  %v3700 = vpop.f32.mrf.mxu0
  %v3701 = vadd.f32 0.0, %v3700
  %3702 = vmatmul.f32.gmra.mxu0 %v3651
  %v3703 = vpop.f32.mrf.mxu0
  %v3704 = vadd.f32 0.0, %v3703
  %3705 = vdwg.mxu0
  %v3707 = vsel %vm419, %v3589, 0
  %v3710 = vsel %vm419, %v3590, 0
  %v3713 = vsel %vm419, %v3591, 0
  %v3716 = vsel %vm419, %v3592, 0
  %v3719 = vsel %vm419, %v3593, 0
  %v3722 = vsel %vm419, %v3594, 0
  %v3725 = vsel %vm419, %v3595, 0
  %v3728 = vsel %vm419, %v3596, 0
  %v3731 = vsel %vm419, %v3597, 0
  %v3734 = vsel %vm419, %v3598, 0
  %v3737 = vsel %vm419, %v3599, 0
  %v3740 = vsel %vm419, %v3600, 0
  %3742 = vmatpush.msra.mxu0 0.0
  %3743 = vmatpush.msra.mxu0 0.0
  %3744 = vmatpush.msra.mxu0 0.0
  %3745 = vmatpush.msra.mxu0 0.0
  %3746 = vmatpush.msra.mxu0 0.0
  %3747 = vmatpush.msra.mxu0 0.0
  %3748 = vmatpush.msra.mxu0 0.0
  %3749 = vmatpush.msra.mxu0 0.0
  %3750 = vmatpush.msra.mxu0 0.0
  %3751 = vmatpush.msra.mxu0 0.0
  %3752 = vmatpush.msra.mxu0 0.0
  %3753 = vmatpush.msra.mxu0 0.0
  %3754 = vmatpush.msra.mxu0 0.0
  %3755 = vmatpush.msra.mxu0 0.0
  %3756 = vmatpush.msra.mxu0 %v3602
  %3757 = vmatpush.msra.mxu0 %v3601
  %3758 = vmatmul.f32.gmra.mxu0 %v3707
  %v3759 = vpop.f32.mrf.mxu0
  %v3760 = vadd.f32 %v3671, %v3759
  %3761 = vmatmul.f32.gmra.mxu0 %v3710
  %v3762 = vpop.f32.mrf.mxu0
  %v3763 = vadd.f32 %v3674, %v3762
  %3764 = vmatmul.f32.gmra.mxu0 %v3713
  %v3765 = vpop.f32.mrf.mxu0
  %v3766 = vadd.f32 %v3677, %v3765
  %3767 = vmatmul.f32.gmra.mxu0 %v3716
  %v3768 = vpop.f32.mrf.mxu0
  %v3769 = vadd.f32 %v3680, %v3768
  %3770 = vmatmul.f32.gmra.mxu0 %v3719
  %v3771 = vpop.f32.mrf.mxu0
  %v3772 = vadd.f32 %v3683, %v3771
  %3773 = vmatmul.f32.gmra.mxu0 %v3722
  %v3774 = vpop.f32.mrf.mxu0
  %v3775 = vadd.f32 %v3686, %v3774
  %3776 = vmatmul.f32.gmra.mxu0 %v3725
  %v3777 = vpop.f32.mrf.mxu0
  %v3778 = vadd.f32 %v3689, %v3777
  %3779 = vmatmul.f32.gmra.mxu0 %v3728
  %v3780 = vpop.f32.mrf.mxu0
  %v3781 = vadd.f32 %v3692, %v3780
  %3782 = vmatmul.f32.gmra.mxu0 %v3731
  %v3783 = vpop.f32.mrf.mxu0
  %v3784 = vadd.f32 %v3695, %v3783
  %3785 = vmatmul.f32.gmra.mxu0 %v3734
  %v3786 = vpop.f32.mrf.mxu0
  %v3787 = vadd.f32 %v3698, %v3786
  %3788 = vmatmul.f32.gmra.mxu0 %v3737
  %v3789 = vpop.f32.mrf.mxu0
  %v3790 = vadd.f32 %v3701, %v3789
  %3791 = vmatmul.f32.gmra.mxu0 %v3740
  %v3792 = vpop.f32.mrf.mxu0
  %v3793 = vadd.f32 %v3704, %v3792
  %3794 = vdwg.mxu0
  %v3795 = vld [vmem:[%s5] sm:$0x1]
  %v3797 = vperm.slane %v3795, 0
  %v3799 = vadd.f32 %v3760, %v3797
  %v3800 = vadd.f32 %v3763, %v3797
  %v3801 = vadd.f32 %v3766, %v3797
  %v3802 = vadd.f32 %v3769, %v3797
  %v3803 = vadd.f32 %v3772, %v3797
  %v3804 = vadd.f32 %v3775, %v3797
  %v3805 = vadd.f32 %v3778, %v3797
  %v3806 = vadd.f32 %v3781, %v3797
  %v3807 = vadd.f32 %v3784, %v3797
  %v3808 = vadd.f32 %v3787, %v3797
  %v3809 = vadd.f32 %v3790, %v3797
  %v3810 = vadd.f32 %v3793, %v3797
  %v3811 = vmax.f32 %v3799, 0.0
  %v3812 = vmax.f32 %v3800, 0.0
  %v3813 = vmax.f32 %v3801, 0.0
  %v3814 = vmax.f32 %v3802, 0.0
  %v3815 = vmax.f32 %v3803, 0.0
  %v3816 = vmax.f32 %v3804, 0.0
  %v3817 = vmax.f32 %v3805, 0.0
  %v3818 = vmax.f32 %v3806, 0.0
  %v3819 = vmax.f32 %v3807, 0.0
  %v3820 = vmax.f32 %v3808, 0.0
  %v3821 = vmax.f32 %v3809, 0.0
  %v3822 = vmax.f32 %v3810, 0.0
  %v3835 = vrot.slane %v3811, 2
  %v3836 = vrot.slane %v3811, 4
  %v3837 = vrot.slane %v3811, 6
  %v3838 = vrot.slane %v3812, 2
  %v3839 = vrot.slane %v3812, 4
  %v3840 = vrot.slane %v3812, 6
  %v3841 = vrot.slane %v3813, 2
  %v3842 = vrot.slane %v3813, 4
  %v3843 = vrot.slane %v3813, 6
  %v3844 = vrot.slane %v3814, 2
  %v3845 = vrot.slane %v3814, 4
  %v3846 = vrot.slane %v3814, 6
  %v3847 = vrot.slane %v3815, 2
  %v3848 = vrot.slane %v3815, 4
  %v3849 = vrot.slane %v3815, 6
  %v3850 = vrot.slane %v3816, 2
  %v3851 = vrot.slane %v3816, 4
  %v3852 = vrot.slane %v3816, 6
  %v3853 = vrot.slane %v3817, 2
  %v3854 = vrot.slane %v3817, 4
  %v3855 = vrot.slane %v3817, 6
  %v3856 = vrot.slane %v3818, 2
  %v3857 = vrot.slane %v3818, 4
  %v3858 = vrot.slane %v3818, 6
  %v3859 = vrot.slane %v3819, 2
  %v3860 = vrot.slane %v3819, 4
  %v3861 = vrot.slane %v3819, 6
  %v3862 = vrot.slane %v3820, 2
  %v3863 = vrot.slane %v3820, 4
  %v3864 = vrot.slane %v3820, 6
  %v3865 = vrot.slane %v3821, 2
  %v3866 = vrot.slane %v3821, 4
  %v3867 = vrot.slane %v3821, 6
  %v3868 = vrot.slane %v3822, 2
  %vm3903 = vcmask 1041408
  %v3904 = vsel %vm3903, %v3811, -inf
  %v3905 = vsel %vm3903, %v3835, -inf
  %v3906 = vmax.f32 %v3904, %v3905
  %v3907 = vsel %vm3903, %v3836, -inf
  %v3908 = vsel %vm3903, %v3837, -inf
  %v3909 = vmax.f32 %v3907, %v3908
  %v3910 = vsel %vm3903, %v3812, -inf
  %v3911 = vsel %vm3903, %v3838, -inf
  %v3912 = vmax.f32 %v3910, %v3911
  %v3913 = vsel %vm3903, %v3839, -inf
  %v3914 = vsel %vm3903, %v3840, -inf
  %v3915 = vmax.f32 %v3913, %v3914
  %v3916 = vsel %vm3903, %v3813, -inf
  %v3917 = vsel %vm3903, %v3841, -inf
  %v3918 = vmax.f32 %v3916, %v3917
  %v3919 = vsel %vm3903, %v3842, -inf
  %v3920 = vsel %vm3903, %v3843, -inf
  %v3921 = vmax.f32 %v3919, %v3920
  %v3922 = vsel %vm3903, %v3814, -inf
  %v3923 = vsel %vm3903, %v3844, -inf
  %v3924 = vmax.f32 %v3922, %v3923
  %v3925 = vsel %vm3903, %v3845, -inf
  %v3926 = vsel %vm3903, %v3846, -inf
  %v3927 = vmax.f32 %v3925, %v3926
  %v3928 = vsel %vm3903, %v3815, -inf
  %v3929 = vsel %vm3903, %v3847, -inf
  %v3930 = vmax.f32 %v3928, %v3929
  %v3931 = vsel %vm3903, %v3848, -inf
  %v3932 = vsel %vm3903, %v3849, -inf
  %v3933 = vmax.f32 %v3931, %v3932
  %v3934 = vsel %vm3903, %v3816, -inf
  %v3935 = vsel %vm3903, %v3850, -inf
  %v3936 = vmax.f32 %v3934, %v3935
  %v3937 = vsel %vm3903, %v3851, -inf
  %v3938 = vsel %vm3903, %v3852, -inf
  %v3939 = vmax.f32 %v3937, %v3938
  %v3940 = vsel %vm3903, %v3817, -inf
  %v3941 = vsel %vm3903, %v3853, -inf
  %v3942 = vmax.f32 %v3940, %v3941
  %v3943 = vsel %vm3903, %v3854, -inf
  %v3944 = vsel %vm3903, %v3855, -inf
  %v3945 = vmax.f32 %v3943, %v3944
  %v3946 = vsel %vm3903, %v3818, -inf
  %v3947 = vsel %vm3903, %v3856, -inf
  %v3948 = vmax.f32 %v3946, %v3947
  %v3949 = vsel %vm3903, %v3857, -inf
  %v3950 = vsel %vm3903, %v3858, -inf
  %v3951 = vmax.f32 %v3949, %v3950
  %v3952 = vsel %vm3903, %v3819, -inf
  %v3953 = vsel %vm3903, %v3859, -inf
  %v3954 = vmax.f32 %v3952, %v3953
  %v3955 = vsel %vm3903, %v3860, -inf
  %v3956 = vsel %vm3903, %v3861, -inf
  %v3957 = vmax.f32 %v3955, %v3956
  %v3958 = vsel %vm3903, %v3820, -inf
  %v3959 = vsel %vm3903, %v3862, -inf
  %v3960 = vmax.f32 %v3958, %v3959
  %v3961 = vsel %vm3903, %v3863, -inf
  %v3962 = vsel %vm3903, %v3864, -inf
  %v3963 = vmax.f32 %v3961, %v3962
  %v3964 = vsel %vm3903, %v3821, -inf
  %v3965 = vsel %vm3903, %v3865, -inf
  %v3966 = vmax.f32 %v3964, %v3965
  %v3967 = vsel %vm3903, %v3866, -inf
  %v3968 = vsel %vm3903, %v3867, -inf
  %v3969 = vmax.f32 %v3967, %v3968
  %v3970 = vsel %vm3903, %v3822, -inf
  %v3971 = vsel %vm3903, %v3868, -inf
  %v3972 = vmax.f32 %v3970, %v3971
  %v3973 = vld [vmem:[%s6] sm:$0x1]
  %v3974 = vld [vmem:[%s6 + $0x1] sm:$0x1]
  %v3975 = vld [vmem:[%s6 + $0x2] sm:$0x1]
  %v3976 = vld [vmem:[%s6 + $0x3] sm:$0x1]
  %v3977 = vld [vmem:[%s6 + $0x4] sm:$0x1]
  %v3978 = vld [vmem:[%s6 + $0x5] sm:$0x1]
  %v3979 = vld [vmem:[%s6 + $0x6] sm:$0x1]
  %v3980 = vld [vmem:[%s6 + $0x7] sm:$0x1]
  %v3981 = vld [vmem:[%s6 + $0x8] sm:$0x1]
  %v3982 = vld [vmem:[%s6 + $0x9] sm:$0x1]
  %v3983 = vld [vmem:[%s6 + $0xa] sm:$0x1]
  %v3984 = vld [vmem:[%s6 + $0xb] sm:$0x1]
  %v3985 = vld [vmem:[%s6 + $0xc] sm:$0x1]
  %v3986 = vld [vmem:[%s6 + $0xd] sm:$0x1]
  %v3987 = vld [vmem:[%s6 + $0xe] sm:$0x1]
  %v3988 = vld [vmem:[%s6 + $0xf] sm:$0x1]
  %v3989 = vld [vmem:[%s6 + $0x10] sm:$0x1]
  %v3990 = vld [vmem:[%s6 + $0x11] sm:$0x1]
  %v3991 = vld [vmem:[%s6 + $0x12] sm:$0x1]
  %v3992 = vld [vmem:[%s6 + $0x13] sm:$0x1]
  %v3993 = vld [vmem:[%s6 + $0x14] sm:$0x1]
  %v3994 = vld [vmem:[%s6 + $0x15] sm:$0x1]
  %v3995 = vld [vmem:[%s6 + $0x16] sm:$0x1]
  %v4019 = vperm.slane %v3973, 0
  %v4020 = vperm.slane %v3974, 0
  %v4021 = vperm.slane %v3975, 0
  %v4022 = vperm.slane %v3976, 0
  %v4023 = vperm.slane %v3977, 0
  %v4024 = vperm.slane %v3978, 0
  %v4025 = vperm.slane %v3979, 0
  %v4026 = vperm.slane %v3980, 0
  %v4027 = vperm.slane %v3981, 0
  %v4028 = vperm.slane %v3982, 0
  %v4029 = vperm.slane %v3983, 0
  %v4030 = vperm.slane %v3984, 0
  %v4031 = vperm.slane %v3985, 0
  %v4032 = vperm.slane %v3986, 0
  %v4033 = vperm.slane %v3987, 0
  %v4034 = vperm.slane %v3988, 0
  %v4035 = vperm.slane %v3989, 0
  %v4036 = vperm.slane %v3990, 0
  %v4037 = vperm.slane %v3991, 0
  %v4038 = vperm.slane %v3992, 0
  %v4039 = vperm.slane %v3993, 0
  %v4040 = vperm.slane %v3994, 0
  %v4041 = vperm.slane %v3995, 0
  %v4065 = vmul.f32 %v3906, %v4019
  %v4066 = vmul.f32 %v3909, %v4020
  %v4067 = vmul.f32 %v3912, %v4021
  %v4068 = vmul.f32 %v3915, %v4022
  %v4069 = vmul.f32 %v3918, %v4023
  %v4070 = vmul.f32 %v3921, %v4024
  %v4071 = vmul.f32 %v3924, %v4025
  %v4072 = vmul.f32 %v3927, %v4026
  %v4073 = vmul.f32 %v3930, %v4027
  %v4074 = vmul.f32 %v3933, %v4028
  %v4075 = vmul.f32 %v3936, %v4029
  %v4076 = vmul.f32 %v3939, %v4030
  %v4077 = vmul.f32 %v3942, %v4031
  %v4078 = vmul.f32 %v3945, %v4032
  %v4079 = vmul.f32 %v3948, %v4033
  %v4080 = vmul.f32 %v3951, %v4034
  %v4081 = vmul.f32 %v3954, %v4035
  %v4082 = vmul.f32 %v3957, %v4036
  %v4083 = vmul.f32 %v3960, %v4037
  %v4084 = vmul.f32 %v3963, %v4038
  %v4085 = vmul.f32 %v3966, %v4039
  %v4086 = vmul.f32 %v3969, %v4040
  %v4087 = vmul.f32 %v3972, %v4041
  %v4088 = vsel %vm3903, %v4065, 0.0
  %v4089 = vsel %vm3903, %v4066, 0.0
  %v4090 = vadd.f32 %v4088, %v4089
  %v4091 = vsel %vm3903, %v4067, 0.0
  %v4092 = vadd.f32 %v4090, %v4091
  %v4093 = vsel %vm3903, %v4068, 0.0
  %v4094 = vadd.f32 %v4092, %v4093
  %v4095 = vsel %vm3903, %v4069, 0.0
  %v4096 = vadd.f32 %v4094, %v4095
  %v4097 = vsel %vm3903, %v4070, 0.0
  %v4098 = vadd.f32 %v4096, %v4097
  %v4099 = vsel %vm3903, %v4071, 0.0
  %v4100 = vadd.f32 %v4098, %v4099
  %v4101 = vsel %vm3903, %v4072, 0.0
  %v4102 = vadd.f32 %v4100, %v4101
  %v4103 = vsel %vm3903, %v4073, 0.0
  %v4104 = vadd.f32 %v4102, %v4103
  %v4105 = vsel %vm3903, %v4074, 0.0
  %v4106 = vadd.f32 %v4104, %v4105
  %v4107 = vsel %vm3903, %v4075, 0.0
  %v4108 = vadd.f32 %v4106, %v4107
  %v4109 = vsel %vm3903, %v4076, 0.0
  %v4110 = vadd.f32 %v4108, %v4109
  %v4111 = vsel %vm3903, %v4077, 0.0
  %v4112 = vadd.f32 %v4110, %v4111
  %v4113 = vsel %vm3903, %v4078, 0.0
  %v4114 = vadd.f32 %v4112, %v4113
  %v4115 = vsel %vm3903, %v4079, 0.0
  %v4116 = vadd.f32 %v4114, %v4115
  %v4117 = vsel %vm3903, %v4080, 0.0
  %v4118 = vadd.f32 %v4116, %v4117
  %v4119 = vsel %vm3903, %v4081, 0.0
  %v4120 = vadd.f32 %v4118, %v4119
  %v4121 = vsel %vm3903, %v4082, 0.0
  %v4122 = vadd.f32 %v4120, %v4121
  %v4123 = vsel %vm3903, %v4083, 0.0
  %v4124 = vadd.f32 %v4122, %v4123
  %v4125 = vsel %vm3903, %v4084, 0.0
  %v4126 = vadd.f32 %v4124, %v4125
  %v4127 = vsel %vm3903, %v4085, 0.0
  %v4128 = vadd.f32 %v4126, %v4127
  %v4129 = vsel %vm3903, %v4086, 0.0
  %v4130 = vadd.f32 %v4128, %v4129
  %v4131 = vsel %vm3903, %v4087, 0.0
  %v4132 = vadd.f32 %v4130, %v4131
  %v4133 = vsel %vm3903, %v4132, 0.0
  %4134 = vadd.xlane.f32.xlu0 %v4133
  %v4135 = vpop.xlane.xlu0 %4134
  %v4136 = vadd.f32 %v4135, 0.0
  %v4137 = vld [vmem:[#allocation3] sm:$0xff]
  %v4138 = vld [vmem:[#allocation3 + $0x8] sm:$0xff]
  %v4139 = vld [vmem:[#allocation3 + $0x10] sm:$0xff]
  %v4140 = vld [vmem:[#allocation3 + $0x18] sm:$0xff]
  %v4141 = vld [vmem:[#allocation3 + $0x20] sm:$0xff]
  %v4142 = vld [vmem:[#allocation3 + $0x28] sm:$0xff]
  %v4143 = vld [vmem:[#allocation3 + $0x30] sm:$0xff]
  %v4144 = vld [vmem:[#allocation3 + $0x38] sm:$0xff]
  %v4145 = vld [vmem:[#allocation3 + $0x40] sm:$0xff]
  %v4146 = vld [vmem:[#allocation3 + $0x48] sm:$0xff]
  %v4147 = vld [vmem:[#allocation3 + $0x50] sm:$0xff]
  %v4148 = vld [vmem:[#allocation3 + $0x58] sm:$0xf]
  %v4149 = vld [vmem:[%s7] sm:$0xff]
  %v4150 = vld [vmem:[%s7 + $0x8] sm:$0xff]
  %v4151 = vld [vmem:[#allocation3 + $0x2] sm:$0xff]
  %v4152 = vld [vmem:[#allocation3 + $0xa] sm:$0xff]
  %v4153 = vld [vmem:[#allocation3 + $0x12] sm:$0xff]
  %v4154 = vld [vmem:[#allocation3 + $0x1a] sm:$0xff]
  %v4155 = vld [vmem:[#allocation3 + $0x22] sm:$0xff]
  %v4156 = vld [vmem:[#allocation3 + $0x2a] sm:$0xff]
  %v4157 = vld [vmem:[#allocation3 + $0x32] sm:$0xff]
  %v4158 = vld [vmem:[#allocation3 + $0x3a] sm:$0xff]
  %v4159 = vld [vmem:[#allocation3 + $0x42] sm:$0xff]
  %v4160 = vld [vmem:[#allocation3 + $0x4a] sm:$0xff]
  %v4161 = vld [vmem:[#allocation3 + $0x52] sm:$0xff]
  %v4162 = vld [vmem:[#allocation3 + $0x5a] sm:$0xf]
  %v4163 = vld [vmem:[%s7 + $0x10] sm:$0xff]
  %v4164 = vld [vmem:[%s7 + $0x18] sm:$0xff]
  %v4166 = vsel %vm419, %v4151, 0
  %v4169 = vsel %vm419, %v4152, 0
  %v4172 = vsel %vm419, %v4153, 0
  %v4175 = vsel %vm419, %v4154, 0
  %v4178 = vsel %vm419, %v4155, 0
  %v4181 = vsel %vm419, %v4156, 0
  %v4184 = vsel %vm419, %v4157, 0
  %v4187 = vsel %vm419, %v4158, 0
  %v4190 = vsel %vm419, %v4159, 0
  %v4193 = vsel %vm419, %v4160, 0
  %v4196 = vsel %vm419, %v4161, 0
  %v4199 = vsel %vm419, %v4162, 0
  %4201 = vmatpush.msra.mxu0 0.0
  %4202 = vmatpush.msra.mxu0 0.0
  %4203 = vmatpush.msra.mxu0 0.0
  %4204 = vmatpush.msra.mxu0 0.0
  %4205 = vmatpush.msra.mxu0 0.0
  %4206 = vmatpush.msra.mxu0 0.0
  %4207 = vmatpush.msra.mxu0 0.0
  %4208 = vmatpush.msra.mxu0 0.0
  %4209 = vmatpush.msra.mxu0 0.0
  %4210 = vmatpush.msra.mxu0 0.0
  %4211 = vmatpush.msra.mxu0 0.0
  %4212 = vmatpush.msra.mxu0 0.0
  %4213 = vmatpush.msra.mxu0 0.0
  %4214 = vmatpush.msra.mxu0 0.0
  %4215 = vmatpush.msra.mxu0 %v4164
  %4216 = vmatpush.msra.mxu0 %v4163
  %4217 = vmatmul.f32.gmra.mxu0 %v4166
  %v4218 = vpop.f32.mrf.mxu0
  %v4219 = vadd.f32 0.0, %v4218
  %4220 = vmatmul.f32.gmra.mxu0 %v4169
  %v4221 = vpop.f32.mrf.mxu0
  %v4222 = vadd.f32 0.0, %v4221
  %4223 = vmatmul.f32.gmra.mxu0 %v4172
  %v4224 = vpop.f32.mrf.mxu0
  %v4225 = vadd.f32 0.0, %v4224
  %4226 = vmatmul.f32.gmra.mxu0 %v4175
  %v4227 = vpop.f32.mrf.mxu0
  %v4228 = vadd.f32 0.0, %v4227
  %4229 = vmatmul.f32.gmra.mxu0 %v4178
  %v4230 = vpop.f32.mrf.mxu0
  %v4231 = vadd.f32 0.0, %v4230
  %4232 = vmatmul.f32.gmra.mxu0 %v4181
  %v4233 = vpop.f32.mrf.mxu0
  %v4234 = vadd.f32 0.0, %v4233
  %4235 = vmatmul.f32.gmra.mxu0 %v4184
  %v4236 = vpop.f32.mrf.mxu0
  %v4237 = vadd.f32 0.0, %v4236
  %4238 = vmatmul.f32.gmra.mxu0 %v4187
  %v4239 = vpop.f32.mrf.mxu0
  %v4240 = vadd.f32 0.0, %v4239
  %4241 = vmatmul.f32.gmra.mxu0 %v4190
  %v4242 = vpop.f32.mrf.mxu0
  %v4243 = vadd.f32 0.0, %v4242
  %4244 = vmatmul.f32.gmra.mxu0 %v4193
  %v4245 = vpop.f32.mrf.mxu0
  %v4246 = vadd.f32 0.0, %v4245
  %4247 = vmatmul.f32.gmra.mxu0 %v4196
  %v4248 = vpop.f32.mrf.mxu0
  %v4249 = vadd.f32 0.0, %v4248
  %4250 = vmatmul.f32.gmra.mxu0 %v4199
  %v4251 = vpop.f32.mrf.mxu0
  %v4252 = vadd.f32 0.0, %v4251
  %4253 = vdwg.mxu0
  %v4255 = vsel %vm419, %v4137, 0
  %v4258 = vsel %vm419, %v4138, 0
  %v4261 = vsel %vm419, %v4139, 0
  %v4264 = vsel %vm419, %v4140, 0
  %v4267 = vsel %vm419, %v4141, 0
  %v4270 = vsel %vm419, %v4142, 0
  %v4273 = vsel %vm419, %v4143, 0
  %v4276 = vsel %vm419, %v4144, 0
  %v4279 = vsel %vm419, %v4145, 0
  %v4282 = vsel %vm419, %v4146, 0
  %v4285 = vsel %vm419, %v4147, 0
  %v4288 = vsel %vm419, %v4148, 0
  %4290 = vmatpush.msra.mxu0 0.0
  %4291 = vmatpush.msra.mxu0 0.0
  %4292 = vmatpush.msra.mxu0 0.0
  %4293 = vmatpush.msra.mxu0 0.0
  %4294 = vmatpush.msra.mxu0 0.0
  %4295 = vmatpush.msra.mxu0 0.0
  %4296 = vmatpush.msra.mxu0 0.0
  %4297 = vmatpush.msra.mxu0 0.0
  %4298 = vmatpush.msra.mxu0 0.0
  %4299 = vmatpush.msra.mxu0 0.0
  %4300 = vmatpush.msra.mxu0 0.0
  %4301 = vmatpush.msra.mxu0 0.0
  %4302 = vmatpush.msra.mxu0 0.0
  %4303 = vmatpush.msra.mxu0 0.0
  %4304 = vmatpush.msra.mxu0 %v4150
  %4305 = vmatpush.msra.mxu0 %v4149
  %4306 = vmatmul.f32.gmra.mxu0 %v4255
  %v4307 = vpop.f32.mrf.mxu0
  %v4308 = vadd.f32 %v4219, %v4307
  %4309 = vmatmul.f32.gmra.mxu0 %v4258
  %v4310 = vpop.f32.mrf.mxu0
  %v4311 = vadd.f32 %v4222, %v4310
  %4312 = vmatmul.f32.gmra.mxu0 %v4261
  %v4313 = vpop.f32.mrf.mxu0
  %v4314 = vadd.f32 %v4225, %v4313
  %4315 = vmatmul.f32.gmra.mxu0 %v4264
  %v4316 = vpop.f32.mrf.mxu0
  %v4317 = vadd.f32 %v4228, %v4316
  %4318 = vmatmul.f32.gmra.mxu0 %v4267
  %v4319 = vpop.f32.mrf.mxu0
  %v4320 = vadd.f32 %v4231, %v4319
  %4321 = vmatmul.f32.gmra.mxu0 %v4270
  %v4322 = vpop.f32.mrf.mxu0
  %v4323 = vadd.f32 %v4234, %v4322
  %4324 = vmatmul.f32.gmra.mxu0 %v4273
  %v4325 = vpop.f32.mrf.mxu0
  %v4326 = vadd.f32 %v4237, %v4325
  %4327 = vmatmul.f32.gmra.mxu0 %v4276
  %v4328 = vpop.f32.mrf.mxu0
  %v4329 = vadd.f32 %v4240, %v4328
  %4330 = vmatmul.f32.gmra.mxu0 %v4279
  %v4331 = vpop.f32.mrf.mxu0
  %v4332 = vadd.f32 %v4243, %v4331
  %4333 = vmatmul.f32.gmra.mxu0 %v4282
  %v4334 = vpop.f32.mrf.mxu0
  %v4335 = vadd.f32 %v4246, %v4334
  %4336 = vmatmul.f32.gmra.mxu0 %v4285
  %v4337 = vpop.f32.mrf.mxu0
  %v4338 = vadd.f32 %v4249, %v4337
  %4339 = vmatmul.f32.gmra.mxu0 %v4288
  %v4340 = vpop.f32.mrf.mxu0
  %v4341 = vadd.f32 %v4252, %v4340
  %4342 = vdwg.mxu0
  %v4343 = vld [vmem:[#allocation3 + $0x4] sm:$0xff]
  %v4344 = vld [vmem:[#allocation3 + $0xc] sm:$0xff]
  %v4345 = vld [vmem:[#allocation3 + $0x14] sm:$0xff]
  %v4346 = vld [vmem:[#allocation3 + $0x1c] sm:$0xff]
  %v4347 = vld [vmem:[#allocation3 + $0x24] sm:$0xff]
  %v4348 = vld [vmem:[#allocation3 + $0x2c] sm:$0xff]
  %v4349 = vld [vmem:[#allocation3 + $0x34] sm:$0xff]
  %v4350 = vld [vmem:[#allocation3 + $0x3c] sm:$0xff]
  %v4351 = vld [vmem:[#allocation3 + $0x44] sm:$0xff]
  %v4352 = vld [vmem:[#allocation3 + $0x4c] sm:$0xff]
  %v4353 = vld [vmem:[#allocation3 + $0x54] sm:$0xff]
  %v4354 = vld [vmem:[#allocation3 + $0x5c] sm:$0xf]
  %v4355 = vld [vmem:[%s7 + $0x20] sm:$0xff]
  %v4356 = vld [vmem:[%s7 + $0x28] sm:$0xff]
  %v4358 = vsel %vm419, %v4343, 0
  %v4361 = vsel %vm419, %v4344, 0
  %v4364 = vsel %vm419, %v4345, 0
  %v4367 = vsel %vm419, %v4346, 0
  %v4370 = vsel %vm419, %v4347, 0
  %v4373 = vsel %vm419, %v4348, 0
  %v4376 = vsel %vm419, %v4349, 0
  %v4379 = vsel %vm419, %v4350, 0
  %v4382 = vsel %vm419, %v4351, 0
  %v4385 = vsel %vm419, %v4352, 0
  %v4388 = vsel %vm419, %v4353, 0
  %v4391 = vsel %vm419, %v4354, 0
  %4393 = vmatpush.msra.mxu0 0.0
  %4394 = vmatpush.msra.mxu0 0.0
  %4395 = vmatpush.msra.mxu0 0.0
  %4396 = vmatpush.msra.mxu0 0.0
  %4397 = vmatpush.msra.mxu0 0.0
  %4398 = vmatpush.msra.mxu0 0.0
  %4399 = vmatpush.msra.mxu0 0.0
  %4400 = vmatpush.msra.mxu0 0.0
  %4401 = vmatpush.msra.mxu0 0.0
  %4402 = vmatpush.msra.mxu0 0.0
  %4403 = vmatpush.msra.mxu0 0.0
  %4404 = vmatpush.msra.mxu0 0.0
  %4405 = vmatpush.msra.mxu0 0.0
  %4406 = vmatpush.msra.mxu0 0.0
  %4407 = vmatpush.msra.mxu0 %v4356
  %4408 = vmatpush.msra.mxu0 %v4355
  %4409 = vmatmul.f32.gmra.mxu0 %v4358
  %v4410 = vpop.f32.mrf.mxu0
  %v4411 = vadd.f32 0.0, %v4410
  %4412 = vmatmul.f32.gmra.mxu0 %v4361
  %v4413 = vpop.f32.mrf.mxu0
  %v4414 = vadd.f32 0.0, %v4413
  %4415 = vmatmul.f32.gmra.mxu0 %v4364
  %v4416 = vpop.f32.mrf.mxu0
  %v4417 = vadd.f32 0.0, %v4416
  %4418 = vmatmul.f32.gmra.mxu0 %v4367
  %v4419 = vpop.f32.mrf.mxu0
  %v4420 = vadd.f32 0.0, %v4419
  %4421 = vmatmul.f32.gmra.mxu0 %v4370
  %v4422 = vpop.f32.mrf.mxu0
  %v4423 = vadd.f32 0.0, %v4422
  %4424 = vmatmul.f32.gmra.mxu0 %v4373
  %v4425 = vpop.f32.mrf.mxu0
  %v4426 = vadd.f32 0.0, %v4425
  %4427 = vmatmul.f32.gmra.mxu0 %v4376
  %v4428 = vpop.f32.mrf.mxu0
  %v4429 = vadd.f32 0.0, %v4428
  %4430 = vmatmul.f32.gmra.mxu0 %v4379
  %v4431 = vpop.f32.mrf.mxu0
  %v4432 = vadd.f32 0.0, %v4431
  %4433 = vmatmul.f32.gmra.mxu0 %v4382
  %v4434 = vpop.f32.mrf.mxu0
  %v4435 = vadd.f32 0.0, %v4434
  %4436 = vmatmul.f32.gmra.mxu0 %v4385
  %v4437 = vpop.f32.mrf.mxu0
  %v4438 = vadd.f32 0.0, %v4437
  %4439 = vmatmul.f32.gmra.mxu0 %v4388
  %v4440 = vpop.f32.mrf.mxu0
  %v4441 = vadd.f32 0.0, %v4440
  %4442 = vmatmul.f32.gmra.mxu0 %v4391
  %v4443 = vpop.f32.mrf.mxu0
  %v4444 = vadd.f32 0.0, %v4443
  %4445 = vdwg.mxu0
  %v4446 = vadd.f32 %v4308, %v4411
  %v4447 = vadd.f32 %v4311, %v4414
  %v4448 = vadd.f32 %v4314, %v4417
  %v4449 = vadd.f32 %v4317, %v4420
  %v4450 = vadd.f32 %v4320, %v4423
  %v4451 = vadd.f32 %v4323, %v4426
  %v4452 = vadd.f32 %v4326, %v4429
  %v4453 = vadd.f32 %v4329, %v4432
  %v4454 = vadd.f32 %v4332, %v4435
  %v4455 = vadd.f32 %v4335, %v4438
  %v4456 = vadd.f32 %v4338, %v4441
  %v4457 = vadd.f32 %v4341, %v4444
  %v4458 = vld [vmem:[%s8] sm:$0x1]
  %v4460 = vperm.slane %v4458, 0
  %v4462 = vadd.f32 %v4446, %v4460
  %v4463 = vadd.f32 %v4447, %v4460
  %v4464 = vadd.f32 %v4448, %v4460
  %v4465 = vadd.f32 %v4449, %v4460
  %v4466 = vadd.f32 %v4450, %v4460
  %v4467 = vadd.f32 %v4451, %v4460
  %v4468 = vadd.f32 %v4452, %v4460
  %v4469 = vadd.f32 %v4453, %v4460
  %v4470 = vadd.f32 %v4454, %v4460
  %v4471 = vadd.f32 %v4455, %v4460
  %v4472 = vadd.f32 %v4456, %v4460
  %v4473 = vadd.f32 %v4457, %v4460
  %v4474 = vmax.f32 %v4462, 0.0
  %v4475 = vmax.f32 %v4463, 0.0
  %v4476 = vmax.f32 %v4464, 0.0
  %v4477 = vmax.f32 %v4465, 0.0
  %v4478 = vmax.f32 %v4466, 0.0
  %v4479 = vmax.f32 %v4467, 0.0
  %v4480 = vmax.f32 %v4468, 0.0
  %v4481 = vmax.f32 %v4469, 0.0
  %v4482 = vmax.f32 %v4470, 0.0
  %v4483 = vmax.f32 %v4471, 0.0
  %v4484 = vmax.f32 %v4472, 0.0
  %v4485 = vmax.f32 %v4473, 0.0
  %v4498 = vrot.slane %v4474, 2
  %v4499 = vrot.slane %v4474, 4
  %v4500 = vrot.slane %v4474, 6
  %v4501 = vrot.slane %v4475, 2
  %v4502 = vrot.slane %v4475, 4
  %v4503 = vrot.slane %v4475, 6
  %v4504 = vrot.slane %v4476, 2
  %v4505 = vrot.slane %v4476, 4
  %v4506 = vrot.slane %v4476, 6
  %v4507 = vrot.slane %v4477, 2
  %v4508 = vrot.slane %v4477, 4
  %v4509 = vrot.slane %v4477, 6
  %v4510 = vrot.slane %v4478, 2
  %v4511 = vrot.slane %v4478, 4
  %v4512 = vrot.slane %v4478, 6
  %v4513 = vrot.slane %v4479, 2
  %v4514 = vrot.slane %v4479, 4
  %v4515 = vrot.slane %v4479, 6
  %v4516 = vrot.slane %v4480, 2
  %v4517 = vrot.slane %v4480, 4
  %v4518 = vrot.slane %v4480, 6
  %v4519 = vrot.slane %v4481, 2
  %v4520 = vrot.slane %v4481, 4
  %v4521 = vrot.slane %v4481, 6
  %v4522 = vrot.slane %v4482, 2
  %v4523 = vrot.slane %v4482, 4
  %v4524 = vrot.slane %v4482, 6
  %v4525 = vrot.slane %v4483, 2
  %v4526 = vrot.slane %v4483, 4
  %v4527 = vrot.slane %v4483, 6
  %v4528 = vrot.slane %v4484, 2
  %v4529 = vrot.slane %v4484, 4
  %v4530 = vrot.slane %v4484, 6
  %v4531 = vrot.slane %v4485, 2
  %v4566 = vsel %vm3903, %v4474, -inf
  %v4567 = vsel %vm3903, %v4498, -inf
  %v4568 = vmax.f32 %v4566, %v4567
  %v4569 = vsel %vm3903, %v4499, -inf
  %v4570 = vsel %vm3903, %v4500, -inf
  %v4571 = vmax.f32 %v4569, %v4570
  %v4572 = vsel %vm3903, %v4475, -inf
  %v4573 = vsel %vm3903, %v4501, -inf
  %v4574 = vmax.f32 %v4572, %v4573
  %v4575 = vsel %vm3903, %v4502, -inf
  %v4576 = vsel %vm3903, %v4503, -inf
  %v4577 = vmax.f32 %v4575, %v4576
  %v4578 = vsel %vm3903, %v4476, -inf
  %v4579 = vsel %vm3903, %v4504, -inf
  %v4580 = vmax.f32 %v4578, %v4579
  %v4581 = vsel %vm3903, %v4505, -inf
  %v4582 = vsel %vm3903, %v4506, -inf
  %v4583 = vmax.f32 %v4581, %v4582
  %v4584 = vsel %vm3903, %v4477, -inf
  %v4585 = vsel %vm3903, %v4507, -inf
  %v4586 = vmax.f32 %v4584, %v4585
  %v4587 = vsel %vm3903, %v4508, -inf
  %v4588 = vsel %vm3903, %v4509, -inf
  %v4589 = vmax.f32 %v4587, %v4588
  %v4590 = vsel %vm3903, %v4478, -inf
  %v4591 = vsel %vm3903, %v4510, -inf
  %v4592 = vmax.f32 %v4590, %v4591
  %v4593 = vsel %vm3903, %v4511, -inf
  %v4594 = vsel %vm3903, %v4512, -inf
  %v4595 = vmax.f32 %v4593, %v4594
  %v4596 = vsel %vm3903, %v4479, -inf
  %v4597 = vsel %vm3903, %v4513, -inf
  %v4598 = vmax.f32 %v4596, %v4597
  %v4599 = vsel %vm3903, %v4514, -inf
  %v4600 = vsel %vm3903, %v4515, -inf
  %v4601 = vmax.f32 %v4599, %v4600
  %v4602 = vsel %vm3903, %v4480, -inf
  %v4603 = vsel %vm3903, %v4516, -inf
  %v4604 = vmax.f32 %v4602, %v4603
  %v4605 = vsel %vm3903, %v4517, -inf
  %v4606 = vsel %vm3903, %v4518, -inf
  %v4607 = vmax.f32 %v4605, %v4606
  %v4608 = vsel %vm3903, %v4481, -inf
  %v4609 = vsel %vm3903, %v4519, -inf
  %v4610 = vmax.f32 %v4608, %v4609
  %v4611 = vsel %vm3903, %v4520, -inf
  %v4612 = vsel %vm3903, %v4521, -inf
  %v4613 = vmax.f32 %v4611, %v4612
  %v4614 = vsel %vm3903, %v4482, -inf
  %v4615 = vsel %vm3903, %v4522, -inf
  %v4616 = vmax.f32 %v4614, %v4615
  %v4617 = vsel %vm3903, %v4523, -inf
  %v4618 = vsel %vm3903, %v4524, -inf
  %v4619 = vmax.f32 %v4617, %v4618
  %v4620 = vsel %vm3903, %v4483, -inf
  %v4621 = vsel %vm3903, %v4525, -inf
  %v4622 = vmax.f32 %v4620, %v4621
  %v4623 = vsel %vm3903, %v4526, -inf
  %v4624 = vsel %vm3903, %v4527, -inf
  %v4625 = vmax.f32 %v4623, %v4624
  %v4626 = vsel %vm3903, %v4484, -inf
  %v4627 = vsel %vm3903, %v4528, -inf
  %v4628 = vmax.f32 %v4626, %v4627
  %v4629 = vsel %vm3903, %v4529, -inf
  %v4630 = vsel %vm3903, %v4530, -inf
  %v4631 = vmax.f32 %v4629, %v4630
  %v4632 = vsel %vm3903, %v4485, -inf
  %v4633 = vsel %vm3903, %v4531, -inf
  %v4634 = vmax.f32 %v4632, %v4633
  %v4635 = vld [vmem:[%s9] sm:$0x1]
  %v4636 = vld [vmem:[%s9 + $0x1] sm:$0x1]
  %v4637 = vld [vmem:[%s9 + $0x2] sm:$0x1]
  %v4638 = vld [vmem:[%s9 + $0x3] sm:$0x1]
  %v4639 = vld [vmem:[%s9 + $0x4] sm:$0x1]
  %v4640 = vld [vmem:[%s9 + $0x5] sm:$0x1]
  %v4641 = vld [vmem:[%s9 + $0x6] sm:$0x1]
  %v4642 = vld [vmem:[%s9 + $0x7] sm:$0x1]
  %v4643 = vld [vmem:[%s9 + $0x8] sm:$0x1]
  %v4644 = vld [vmem:[%s9 + $0x9] sm:$0x1]
  %v4645 = vld [vmem:[%s9 + $0xa] sm:$0x1]
  %v4646 = vld [vmem:[%s9 + $0xb] sm:$0x1]
  %v4647 = vld [vmem:[%s9 + $0xc] sm:$0x1]
  %v4648 = vld [vmem:[%s9 + $0xd] sm:$0x1]
  %v4649 = vld [vmem:[%s9 + $0xe] sm:$0x1]
  %v4650 = vld [vmem:[%s9 + $0xf] sm:$0x1]
  %v4651 = vld [vmem:[%s9 + $0x10] sm:$0x1]
  %v4652 = vld [vmem:[%s9 + $0x11] sm:$0x1]
  %v4653 = vld [vmem:[%s9 + $0x12] sm:$0x1]
  %v4654 = vld [vmem:[%s9 + $0x13] sm:$0x1]
  %v4655 = vld [vmem:[%s9 + $0x14] sm:$0x1]
  %v4656 = vld [vmem:[%s9 + $0x15] sm:$0x1]
  %v4657 = vld [vmem:[%s9 + $0x16] sm:$0x1]
  %v4681 = vperm.slane %v4635, 0
  %v4682 = vperm.slane %v4636, 0
  %v4683 = vperm.slane %v4637, 0
  %v4684 = vperm.slane %v4638, 0
  %v4685 = vperm.slane %v4639, 0
  %v4686 = vperm.slane %v4640, 0
  %v4687 = vperm.slane %v4641, 0
  %v4688 = vperm.slane %v4642, 0
  %v4689 = vperm.slane %v4643, 0
  %v4690 = vperm.slane %v4644, 0
  %v4691 = vperm.slane %v4645, 0
  %v4692 = vperm.slane %v4646, 0
  %v4693 = vperm.slane %v4647, 0
  %v4694 = vperm.slane %v4648, 0
  %v4695 = vperm.slane %v4649, 0
  %v4696 = vperm.slane %v4650, 0
  %v4697 = vperm.slane %v4651, 0
  %v4698 = vperm.slane %v4652, 0
  %v4699 = vperm.slane %v4653, 0
  %v4700 = vperm.slane %v4654, 0
  %v4701 = vperm.slane %v4655, 0
  %v4702 = vperm.slane %v4656, 0
  %v4703 = vperm.slane %v4657, 0
  %v4727 = vmul.f32 %v4568, %v4681
  %v4728 = vmul.f32 %v4571, %v4682
  %v4729 = vmul.f32 %v4574, %v4683
  %v4730 = vmul.f32 %v4577, %v4684
  %v4731 = vmul.f32 %v4580, %v4685
  %v4732 = vmul.f32 %v4583, %v4686
  %v4733 = vmul.f32 %v4586, %v4687
  %v4734 = vmul.f32 %v4589, %v4688
  %v4735 = vmul.f32 %v4592, %v4689
  %v4736 = vmul.f32 %v4595, %v4690
  %v4737 = vmul.f32 %v4598, %v4691
  %v4738 = vmul.f32 %v4601, %v4692
  %v4739 = vmul.f32 %v4604, %v4693
  %v4740 = vmul.f32 %v4607, %v4694
  %v4741 = vmul.f32 %v4610, %v4695
  %v4742 = vmul.f32 %v4613, %v4696
  %v4743 = vmul.f32 %v4616, %v4697
  %v4744 = vmul.f32 %v4619, %v4698
  %v4745 = vmul.f32 %v4622, %v4699
  %v4746 = vmul.f32 %v4625, %v4700
  %v4747 = vmul.f32 %v4628, %v4701
  %v4748 = vmul.f32 %v4631, %v4702
  %v4749 = vmul.f32 %v4634, %v4703
  %v4750 = vsel %vm3903, %v4727, 0.0
  %v4751 = vsel %vm3903, %v4728, 0.0
  %v4752 = vadd.f32 %v4750, %v4751
  %v4753 = vsel %vm3903, %v4729, 0.0
  %v4754 = vadd.f32 %v4752, %v4753
  %v4755 = vsel %vm3903, %v4730, 0.0
  %v4756 = vadd.f32 %v4754, %v4755
  %v4757 = vsel %vm3903, %v4731, 0.0
  %v4758 = vadd.f32 %v4756, %v4757
  %v4759 = vsel %vm3903, %v4732, 0.0
  %v4760 = vadd.f32 %v4758, %v4759
  %v4761 = vsel %vm3903, %v4733, 0.0
  %v4762 = vadd.f32 %v4760, %v4761
  %v4763 = vsel %vm3903, %v4734, 0.0
  %v4764 = vadd.f32 %v4762, %v4763
  %v4765 = vsel %vm3903, %v4735, 0.0
  %v4766 = vadd.f32 %v4764, %v4765
  %v4767 = vsel %vm3903, %v4736, 0.0
  %v4768 = vadd.f32 %v4766, %v4767
  %v4769 = vsel %vm3903, %v4737, 0.0
  %v4770 = vadd.f32 %v4768, %v4769
  %v4771 = vsel %vm3903, %v4738, 0.0
  %v4772 = vadd.f32 %v4770, %v4771
  %v4773 = vsel %vm3903, %v4739, 0.0
  %v4774 = vadd.f32 %v4772, %v4773
  %v4775 = vsel %vm3903, %v4740, 0.0
  %v4776 = vadd.f32 %v4774, %v4775
  %v4777 = vsel %vm3903, %v4741, 0.0
  %v4778 = vadd.f32 %v4776, %v4777
  %v4779 = vsel %vm3903, %v4742, 0.0
  %v4780 = vadd.f32 %v4778, %v4779
  %v4781 = vsel %vm3903, %v4743, 0.0
  %v4782 = vadd.f32 %v4780, %v4781
  %v4783 = vsel %vm3903, %v4744, 0.0
  %v4784 = vadd.f32 %v4782, %v4783
  %v4785 = vsel %vm3903, %v4745, 0.0
  %v4786 = vadd.f32 %v4784, %v4785
  %v4787 = vsel %vm3903, %v4746, 0.0
  %v4788 = vadd.f32 %v4786, %v4787
  %v4789 = vsel %vm3903, %v4747, 0.0
  %v4790 = vadd.f32 %v4788, %v4789
  %v4791 = vsel %vm3903, %v4748, 0.0
  %v4792 = vadd.f32 %v4790, %v4791
  %v4793 = vsel %vm3903, %v4749, 0.0
  %v4794 = vadd.f32 %v4792, %v4793
  %v4795 = vsel %vm3903, %v4794, 0.0
  %4796 = vadd.xlane.f32.xlu0 %v4795
  %v4797 = vpop.xlane.xlu0 %4796
  %v4798 = vadd.f32 %v4136, %v4797
  %v4799 = vld [vmem:[#allocation3] sm:$0xff]
  %v4800 = vld [vmem:[#allocation3 + $0x8] sm:$0xff]
  %v4801 = vld [vmem:[#allocation3 + $0x10] sm:$0xff]
  %v4802 = vld [vmem:[#allocation3 + $0x18] sm:$0xff]
  %v4803 = vld [vmem:[#allocation3 + $0x20] sm:$0xff]
  %v4804 = vld [vmem:[#allocation3 + $0x28] sm:$0xff]
  %v4805 = vld [vmem:[#allocation3 + $0x30] sm:$0xff]
  %v4806 = vld [vmem:[#allocation3 + $0x38] sm:$0xff]
  %v4807 = vld [vmem:[#allocation3 + $0x40] sm:$0xff]
  %v4808 = vld [vmem:[#allocation3 + $0x48] sm:$0xff]
  %v4809 = vld [vmem:[#allocation3 + $0x50] sm:$0xff]
  %v4810 = vld [vmem:[#allocation3 + $0x58] sm:$0x3]
  %v4811 = vld [vmem:[%s10] sm:$0xff]
  %v4812 = vld [vmem:[%s10 + $0x8] sm:$0xff]
  %v4813 = vld [vmem:[#allocation3 + $0x2] sm:$0xff]
  %v4814 = vld [vmem:[#allocation3 + $0xa] sm:$0xff]
  %v4815 = vld [vmem:[#allocation3 + $0x12] sm:$0xff]
  %v4816 = vld [vmem:[#allocation3 + $0x1a] sm:$0xff]
  %v4817 = vld [vmem:[#allocation3 + $0x22] sm:$0xff]
  %v4818 = vld [vmem:[#allocation3 + $0x2a] sm:$0xff]
  %v4819 = vld [vmem:[#allocation3 + $0x32] sm:$0xff]
  %v4820 = vld [vmem:[#allocation3 + $0x3a] sm:$0xff]
  %v4821 = vld [vmem:[#allocation3 + $0x42] sm:$0xff]
  %v4822 = vld [vmem:[#allocation3 + $0x4a] sm:$0xff]
  %v4823 = vld [vmem:[#allocation3 + $0x52] sm:$0xff]
  %v4824 = vld [vmem:[#allocation3 + $0x5a] sm:$0x3]
  %v4825 = vld [vmem:[%s10 + $0x10] sm:$0xff]
  %v4826 = vld [vmem:[%s10 + $0x18] sm:$0xff]
  %v4828 = vsel %vm419, %v4813, 0
  %v4831 = vsel %vm419, %v4814, 0
  %v4834 = vsel %vm419, %v4815, 0
  %v4837 = vsel %vm419, %v4816, 0
  %v4840 = vsel %vm419, %v4817, 0
  %v4843 = vsel %vm419, %v4818, 0
  %v4846 = vsel %vm419, %v4819, 0
  %v4849 = vsel %vm419, %v4820, 0
  %v4852 = vsel %vm419, %v4821, 0
  %v4855 = vsel %vm419, %v4822, 0
  %v4858 = vsel %vm419, %v4823, 0
  %v4861 = vsel %vm419, %v4824, 0
  %4863 = vmatpush.msra.mxu0 0.0
  %4864 = vmatpush.msra.mxu0 0.0
  %4865 = vmatpush.msra.mxu0 0.0
  %4866 = vmatpush.msra.mxu0 0.0
  %4867 = vmatpush.msra.mxu0 0.0
  %4868 = vmatpush.msra.mxu0 0.0
  %4869 = vmatpush.msra.mxu0 0.0
  %4870 = vmatpush.msra.mxu0 0.0
  %4871 = vmatpush.msra.mxu0 0.0
  %4872 = vmatpush.msra.mxu0 0.0
  %4873 = vmatpush.msra.mxu0 0.0
  %4874 = vmatpush.msra.mxu0 0.0
  %4875 = vmatpush.msra.mxu0 0.0
  %4876 = vmatpush.msra.mxu0 0.0
  %4877 = vmatpush.msra.mxu0 %v4826
  %4878 = vmatpush.msra.mxu0 %v4825
  %4879 = vmatmul.f32.gmra.mxu0 %v4828
  %v4880 = vpop.f32.mrf.mxu0
  %v4881 = vadd.f32 0.0, %v4880
  %4882 = vmatmul.f32.gmra.mxu0 %v4831
  %v4883 = vpop.f32.mrf.mxu0
  %v4884 = vadd.f32 0.0, %v4883
  %4885 = vmatmul.f32.gmra.mxu0 %v4834
  %v4886 = vpop.f32.mrf.mxu0
  %v4887 = vadd.f32 0.0, %v4886
  %4888 = vmatmul.f32.gmra.mxu0 %v4837
  %v4889 = vpop.f32.mrf.mxu0
  %v4890 = vadd.f32 0.0, %v4889
  %4891 = vmatmul.f32.gmra.mxu0 %v4840
  %v4892 = vpop.f32.mrf.mxu0
  %v4893 = vadd.f32 0.0, %v4892
  %4894 = vmatmul.f32.gmra.mxu0 %v4843
  %v4895 = vpop.f32.mrf.mxu0
  %v4896 = vadd.f32 0.0, %v4895
  %4897 = vmatmul.f32.gmra.mxu0 %v4846
  %v4898 = vpop.f32.mrf.mxu0
  %v4899 = vadd.f32 0.0, %v4898
  %4900 = vmatmul.f32.gmra.mxu0 %v4849
  %v4901 = vpop.f32.mrf.mxu0
  %v4902 = vadd.f32 0.0, %v4901
  %4903 = vmatmul.f32.gmra.mxu0 %v4852
  %v4904 = vpop.f32.mrf.mxu0
  %v4905 = vadd.f32 0.0, %v4904
  %4906 = vmatmul.f32.gmra.mxu0 %v4855
  %v4907 = vpop.f32.mrf.mxu0
  %v4908 = vadd.f32 0.0, %v4907
  %4909 = vmatmul.f32.gmra.mxu0 %v4858
  %v4910 = vpop.f32.mrf.mxu0
  %v4911 = vadd.f32 0.0, %v4910
  %4912 = vmatmul.f32.gmra.mxu0 %v4861
  %v4913 = vpop.f32.mrf.mxu0
  %4914 = vdwg.mxu0
  %v4916 = vsel %vm419, %v4799, 0
  %v4919 = vsel %vm419, %v4800, 0
  %v4922 = vsel %vm419, %v4801, 0
  %v4925 = vsel %vm419, %v4802, 0
  %v4928 = vsel %vm419, %v4803, 0
  %v4931 = vsel %vm419, %v4804, 0
  %v4934 = vsel %vm419, %v4805, 0
  %v4937 = vsel %vm419, %v4806, 0
  %v4940 = vsel %vm419, %v4807, 0
  %v4943 = vsel %vm419, %v4808, 0
  %v4946 = vsel %vm419, %v4809, 0
  %v4949 = vsel %vm419, %v4810, 0
  %4951 = vmatpush.msra.mxu0 0.0
  %4952 = vmatpush.msra.mxu0 0.0
  %4953 = vmatpush.msra.mxu0 0.0
  %4954 = vmatpush.msra.mxu0 0.0
  %4955 = vmatpush.msra.mxu0 0.0
  %4956 = vmatpush.msra.mxu0 0.0
  %4957 = vmatpush.msra.mxu0 0.0
  %4958 = vmatpush.msra.mxu0 0.0
  %4959 = vmatpush.msra.mxu0 0.0
  %4960 = vmatpush.msra.mxu0 0.0
  %4961 = vmatpush.msra.mxu0 0.0
  %4962 = vmatpush.msra.mxu0 0.0
  %4963 = vmatpush.msra.mxu0 0.0
  %4964 = vmatpush.msra.mxu0 0.0
  %4965 = vmatpush.msra.mxu0 %v4812
  %4966 = vmatpush.msra.mxu0 %v4811
  %4967 = vmatmul.f32.gmra.mxu0 %v4916
  %v4968 = vpop.f32.mrf.mxu0
  %v4969 = vadd.f32 %v4881, %v4968
  %4970 = vmatmul.f32.gmra.mxu0 %v4919
  %v4971 = vpop.f32.mrf.mxu0
  %v4972 = vadd.f32 %v4884, %v4971
  %4973 = vmatmul.f32.gmra.mxu0 %v4922
  %v4974 = vpop.f32.mrf.mxu0
  %v4975 = vadd.f32 %v4887, %v4974
  %4976 = vmatmul.f32.gmra.mxu0 %v4925
  %v4977 = vpop.f32.mrf.mxu0
  %v4978 = vadd.f32 %v4890, %v4977
  %4979 = vmatmul.f32.gmra.mxu0 %v4928
  %v4980 = vpop.f32.mrf.mxu0
  %v4981 = vadd.f32 %v4893, %v4980
  %4982 = vmatmul.f32.gmra.mxu0 %v4931
  %v4983 = vpop.f32.mrf.mxu0
  %v4984 = vadd.f32 %v4896, %v4983
  %4985 = vmatmul.f32.gmra.mxu0 %v4934
  %v4986 = vpop.f32.mrf.mxu0
  %v4987 = vadd.f32 %v4899, %v4986
  %4988 = vmatmul.f32.gmra.mxu0 %v4937
  %v4989 = vpop.f32.mrf.mxu0
  %v4990 = vadd.f32 %v4902, %v4989
  %4991 = vmatmul.f32.gmra.mxu0 %v4940
  %v4992 = vpop.f32.mrf.mxu0
  %v4993 = vadd.f32 %v4905, %v4992
  %4994 = vmatmul.f32.gmra.mxu0 %v4943
  %v4995 = vpop.f32.mrf.mxu0
  %v4996 = vadd.f32 %v4908, %v4995
  %4997 = vmatmul.f32.gmra.mxu0 %v4946
  %v4998 = vpop.f32.mrf.mxu0
  %v4999 = vadd.f32 %v4911, %v4998
  %5000 = vmatmul.f32.gmra.mxu0 %v4949
  %v5001 = vpop.f32.mrf.mxu0
  %5002 = vdwg.mxu0
  %v5003 = vld [vmem:[#allocation3 + $0x4] sm:$0xff]
  %v5004 = vld [vmem:[#allocation3 + $0xc] sm:$0xff]
  %v5005 = vld [vmem:[#allocation3 + $0x14] sm:$0xff]
  %v5006 = vld [vmem:[#allocation3 + $0x1c] sm:$0xff]
  %v5007 = vld [vmem:[#allocation3 + $0x24] sm:$0xff]
  %v5008 = vld [vmem:[#allocation3 + $0x2c] sm:$0xff]
  %v5009 = vld [vmem:[#allocation3 + $0x34] sm:$0xff]
  %v5010 = vld [vmem:[#allocation3 + $0x3c] sm:$0xff]
  %v5011 = vld [vmem:[#allocation3 + $0x44] sm:$0xff]
  %v5012 = vld [vmem:[#allocation3 + $0x4c] sm:$0xff]
  %v5013 = vld [vmem:[#allocation3 + $0x54] sm:$0xff]
  %v5014 = vld [vmem:[#allocation3 + $0x5c] sm:$0x3]
  %v5015 = vld [vmem:[%s10 + $0x20] sm:$0xff]
  %v5016 = vld [vmem:[%s10 + $0x28] sm:$0xff]
  %v5018 = vsel %vm419, %v5003, 0
  %v5021 = vsel %vm419, %v5004, 0
  %v5024 = vsel %vm419, %v5005, 0
  %v5027 = vsel %vm419, %v5006, 0
  %v5030 = vsel %vm419, %v5007, 0
  %v5033 = vsel %vm419, %v5008, 0
  %v5036 = vsel %vm419, %v5009, 0
  %v5039 = vsel %vm419, %v5010, 0
  %v5042 = vsel %vm419, %v5011, 0
  %v5045 = vsel %vm419, %v5012, 0
  %v5048 = vsel %vm419, %v5013, 0
  %v5051 = vsel %vm419, %v5014, 0
  %5053 = vmatpush.msra.mxu0 0.0
  %5054 = vmatpush.msra.mxu0 0.0
  %5055 = vmatpush.msra.mxu0 0.0
  %5056 = vmatpush.msra.mxu0 0.0
  %5057 = vmatpush.msra.mxu0 0.0
  %5058 = vmatpush.msra.mxu0 0.0
  %5059 = vmatpush.msra.mxu0 0.0
  %5060 = vmatpush.msra.mxu0 0.0
  %5061 = vmatpush.msra.mxu0 0.0
  %5062 = vmatpush.msra.mxu0 0.0
  %5063 = vmatpush.msra.mxu0 0.0
  %5064 = vmatpush.msra.mxu0 0.0
  %5065 = vmatpush.msra.mxu0 0.0
  %5066 = vmatpush.msra.mxu0 0.0
  %5067 = vmatpush.msra.mxu0 %v5016
  %5068 = vmatpush.msra.mxu0 %v5015
  %5069 = vmatmul.f32.gmra.mxu0 %v5018
  %v5070 = vpop.f32.mrf.mxu0
  %v5071 = vadd.f32 0.0, %v5070
  %5072 = vmatmul.f32.gmra.mxu0 %v5021
  %v5073 = vpop.f32.mrf.mxu0
  %v5074 = vadd.f32 0.0, %v5073
  %5075 = vmatmul.f32.gmra.mxu0 %v5024
  %v5076 = vpop.f32.mrf.mxu0
  %v5077 = vadd.f32 0.0, %v5076
  %5078 = vmatmul.f32.gmra.mxu0 %v5027
  %v5079 = vpop.f32.mrf.mxu0
  %v5080 = vadd.f32 0.0, %v5079
  %5081 = vmatmul.f32.gmra.mxu0 %v5030
  %v5082 = vpop.f32.mrf.mxu0
  %v5083 = vadd.f32 0.0, %v5082
  %5084 = vmatmul.f32.gmra.mxu0 %v5033
  %v5085 = vpop.f32.mrf.mxu0
  %v5086 = vadd.f32 0.0, %v5085
  %5087 = vmatmul.f32.gmra.mxu0 %v5036
  %v5088 = vpop.f32.mrf.mxu0
  %v5089 = vadd.f32 0.0, %v5088
  %5090 = vmatmul.f32.gmra.mxu0 %v5039
  %v5091 = vpop.f32.mrf.mxu0
  %v5092 = vadd.f32 0.0, %v5091
  %5093 = vmatmul.f32.gmra.mxu0 %v5042
  %v5094 = vpop.f32.mrf.mxu0
  %v5095 = vadd.f32 0.0, %v5094
  %5096 = vmatmul.f32.gmra.mxu0 %v5045
  %v5097 = vpop.f32.mrf.mxu0
  %v5098 = vadd.f32 0.0, %v5097
  %5099 = vmatmul.f32.gmra.mxu0 %v5048
  %v5100 = vpop.f32.mrf.mxu0
  %v5101 = vadd.f32 0.0, %v5100
  %5102 = vmatmul.f32.gmra.mxu0 %v5051
  %v5103 = vpop.f32.mrf.mxu0
  %5104 = vdwg.mxu0
  %v5105 = vadd.f32 %v4969, %v5071
  %v5106 = vadd.f32 %v4972, %v5074
  %v5107 = vadd.f32 %v4975, %v5077
  %v5108 = vadd.f32 %v4978, %v5080
  %v5109 = vadd.f32 %v4981, %v5083
  %v5110 = vadd.f32 %v4984, %v5086
  %v5111 = vadd.f32 %v4987, %v5089
  %v5112 = vadd.f32 %v4990, %v5092
  %v5113 = vadd.f32 %v4993, %v5095
  %v5114 = vadd.f32 %v4996, %v5098
  %v5115 = vadd.f32 %v4999, %v5101
  %v5116 = vld [vmem:[#allocation3 + $0x6] sm:$0xff]
  %v5117 = vld [vmem:[#allocation3 + $0xe] sm:$0xff]
  %v5118 = vld [vmem:[#allocation3 + $0x16] sm:$0xff]
  %v5119 = vld [vmem:[#allocation3 + $0x1e] sm:$0xff]
  %v5120 = vld [vmem:[#allocation3 + $0x26] sm:$0xff]
  %v5121 = vld [vmem:[#allocation3 + $0x2e] sm:$0xff]
  %v5122 = vld [vmem:[#allocation3 + $0x36] sm:$0xff]
  %v5123 = vld [vmem:[#allocation3 + $0x3e] sm:$0xff]
  %v5124 = vld [vmem:[#allocation3 + $0x46] sm:$0xff]
  %v5125 = vld [vmem:[#allocation3 + $0x4e] sm:$0xff]
  %v5126 = vld [vmem:[#allocation3 + $0x56] sm:$0xff]
  %v5127 = vld [vmem:[#allocation3 + $0x5e] sm:$0x3]
  %v5128 = vld [vmem:[%s10 + $0x30] sm:$0xff]
  %v5129 = vld [vmem:[%s10 + $0x38] sm:$0xff]
  %v5131 = vsel %vm419, %v5116, 0
  %v5134 = vsel %vm419, %v5117, 0
  %v5137 = vsel %vm419, %v5118, 0
  %v5140 = vsel %vm419, %v5119, 0
  %v5143 = vsel %vm419, %v5120, 0
  %v5146 = vsel %vm419, %v5121, 0
  %v5149 = vsel %vm419, %v5122, 0
  %v5152 = vsel %vm419, %v5123, 0
  %v5155 = vsel %vm419, %v5124, 0
  %v5158 = vsel %vm419, %v5125, 0
  %v5161 = vsel %vm419, %v5126, 0
  %v5164 = vsel %vm419, %v5127, 0
  %5166 = vmatpush.msra.mxu0 0.0
  %5167 = vmatpush.msra.mxu0 0.0
  %5168 = vmatpush.msra.mxu0 0.0
  %5169 = vmatpush.msra.mxu0 0.0
  %5170 = vmatpush.msra.mxu0 0.0
  %5171 = vmatpush.msra.mxu0 0.0
  %5172 = vmatpush.msra.mxu0 0.0
  %5173 = vmatpush.msra.mxu0 0.0
  %5174 = vmatpush.msra.mxu0 0.0
  %5175 = vmatpush.msra.mxu0 0.0
  %5176 = vmatpush.msra.mxu0 0.0
  %5177 = vmatpush.msra.mxu0 0.0
  %5178 = vmatpush.msra.mxu0 0.0
  %5179 = vmatpush.msra.mxu0 0.0
  %5180 = vmatpush.msra.mxu0 %v5129
  %5181 = vmatpush.msra.mxu0 %v5128
  %5182 = vmatmul.f32.gmra.mxu0 %v5131
  %v5183 = vpop.f32.mrf.mxu0
  %v5184 = vadd.f32 0.0, %v5183
  %5185 = vmatmul.f32.gmra.mxu0 %v5134
  %v5186 = vpop.f32.mrf.mxu0
  %v5187 = vadd.f32 0.0, %v5186
  %5188 = vmatmul.f32.gmra.mxu0 %v5137
  %v5189 = vpop.f32.mrf.mxu0
  %v5190 = vadd.f32 0.0, %v5189
  %5191 = vmatmul.f32.gmra.mxu0 %v5140
  %v5192 = vpop.f32.mrf.mxu0
  %v5193 = vadd.f32 0.0, %v5192
  %5194 = vmatmul.f32.gmra.mxu0 %v5143
  %v5195 = vpop.f32.mrf.mxu0
  %v5196 = vadd.f32 0.0, %v5195
  %5197 = vmatmul.f32.gmra.mxu0 %v5146
  %v5198 = vpop.f32.mrf.mxu0
  %v5199 = vadd.f32 0.0, %v5198
  %5200 = vmatmul.f32.gmra.mxu0 %v5149
  %v5201 = vpop.f32.mrf.mxu0
  %v5202 = vadd.f32 0.0, %v5201
  %5203 = vmatmul.f32.gmra.mxu0 %v5152
  %v5204 = vpop.f32.mrf.mxu0
  %v5205 = vadd.f32 0.0, %v5204
  %5206 = vmatmul.f32.gmra.mxu0 %v5155
  %v5207 = vpop.f32.mrf.mxu0
  %v5208 = vadd.f32 0.0, %v5207
  %5209 = vmatmul.f32.gmra.mxu0 %v5158
  %v5210 = vpop.f32.mrf.mxu0
  %v5211 = vadd.f32 0.0, %v5210
  %5212 = vmatmul.f32.gmra.mxu0 %v5161
  %v5213 = vpop.f32.mrf.mxu0
  %v5214 = vadd.f32 0.0, %v5213
  %5215 = vmatmul.f32.gmra.mxu0 %v5164
  %v5216 = vpop.f32.mrf.mxu0
  %5217 = vdwg.mxu0
  %v5218 = vadd.f32 %v5105, %v5184
  %v5219 = vadd.f32 %v5106, %v5187
  %v5220 = vadd.f32 %v5107, %v5190
  %v5221 = vadd.f32 %v5108, %v5193
  %v5222 = vadd.f32 %v5109, %v5196
  %v5223 = vadd.f32 %v5110, %v5199
  %v5224 = vadd.f32 %v5111, %v5202
  %v5225 = vadd.f32 %v5112, %v5205
  %v5226 = vadd.f32 %v5113, %v5208
  %v5227 = vadd.f32 %v5114, %v5211
  %v5228 = vadd.f32 %v5115, %v5214
  %v5229 = vld [vmem:[%s11] sm:$0x1]
  %v5231 = vperm.slane %v5229, 0
  %v5233 = vadd.f32 %v5218, %v5231
  %v5234 = vadd.f32 %v5219, %v5231
  %v5235 = vadd.f32 %v5220, %v5231
  %v5236 = vadd.f32 %v5221, %v5231
  %v5237 = vadd.f32 %v5222, %v5231
  %v5238 = vadd.f32 %v5223, %v5231
  %v5239 = vadd.f32 %v5224, %v5231
  %v5240 = vadd.f32 %v5225, %v5231
  %v5241 = vadd.f32 %v5226, %v5231
  %v5242 = vadd.f32 %v5227, %v5231
  %v5243 = vadd.f32 %v5228, %v5231
  %v5244 = vmax.f32 %v5233, 0.0
  %v5245 = vmax.f32 %v5234, 0.0
  %v5246 = vmax.f32 %v5235, 0.0
  %v5247 = vmax.f32 %v5236, 0.0
  %v5248 = vmax.f32 %v5237, 0.0
  %v5249 = vmax.f32 %v5238, 0.0
  %v5250 = vmax.f32 %v5239, 0.0
  %v5251 = vmax.f32 %v5240, 0.0
  %v5252 = vmax.f32 %v5241, 0.0
  %v5253 = vmax.f32 %v5242, 0.0
  %v5254 = vmax.f32 %v5243, 0.0
  %v5266 = vrot.slane %v5244, 2
  %v5267 = vrot.slane %v5244, 4
  %v5268 = vrot.slane %v5244, 6
  %v5269 = vrot.slane %v5245, 2
  %v5270 = vrot.slane %v5245, 4
  %v5271 = vrot.slane %v5245, 6
  %v5272 = vrot.slane %v5246, 2
  %v5273 = vrot.slane %v5246, 4
  %v5274 = vrot.slane %v5246, 6
  %v5275 = vrot.slane %v5247, 2
  %v5276 = vrot.slane %v5247, 4
  %v5277 = vrot.slane %v5247, 6
  %v5278 = vrot.slane %v5248, 2
  %v5279 = vrot.slane %v5248, 4
  %v5280 = vrot.slane %v5248, 6
  %v5281 = vrot.slane %v5249, 2
  %v5282 = vrot.slane %v5249, 4
  %v5283 = vrot.slane %v5249, 6
  %v5284 = vrot.slane %v5250, 2
  %v5285 = vrot.slane %v5250, 4
  %v5286 = vrot.slane %v5250, 6
  %v5287 = vrot.slane %v5251, 2
  %v5288 = vrot.slane %v5251, 4
  %v5289 = vrot.slane %v5251, 6
  %v5290 = vrot.slane %v5252, 2
  %v5291 = vrot.slane %v5252, 4
  %v5292 = vrot.slane %v5252, 6
  %v5293 = vrot.slane %v5253, 2
  %v5294 = vrot.slane %v5253, 4
  %v5295 = vrot.slane %v5253, 6
  %v5296 = vrot.slane %v5254, 2
  %v5297 = vrot.slane %v5254, 4
  %v5298 = vrot.slane %v5254, 6
  %v5332 = vsel %vm3903, %v5244, -inf
  %v5333 = vsel %vm3903, %v5266, -inf
  %v5334 = vmax.f32 %v5332, %v5333
  %v5335 = vsel %vm3903, %v5267, -inf
  %v5336 = vsel %vm3903, %v5268, -inf
  %v5337 = vmax.f32 %v5335, %v5336
  %v5338 = vsel %vm3903, %v5245, -inf
  %v5339 = vsel %vm3903, %v5269, -inf
  %v5340 = vmax.f32 %v5338, %v5339
  %v5341 = vsel %vm3903, %v5270, -inf
  %v5342 = vsel %vm3903, %v5271, -inf
  %v5343 = vmax.f32 %v5341, %v5342
  %v5344 = vsel %vm3903, %v5246, -inf
  %v5345 = vsel %vm3903, %v5272, -inf
  %v5346 = vmax.f32 %v5344, %v5345
  %v5347 = vsel %vm3903, %v5273, -inf
  %v5348 = vsel %vm3903, %v5274, -inf
  %v5349 = vmax.f32 %v5347, %v5348
  %v5350 = vsel %vm3903, %v5247, -inf
  %v5351 = vsel %vm3903, %v5275, -inf
  %v5352 = vmax.f32 %v5350, %v5351
  %v5353 = vsel %vm3903, %v5276, -inf
  %v5354 = vsel %vm3903, %v5277, -inf
  %v5355 = vmax.f32 %v5353, %v5354
  %v5356 = vsel %vm3903, %v5248, -inf
  %v5357 = vsel %vm3903, %v5278, -inf
  %v5358 = vmax.f32 %v5356, %v5357
  %v5359 = vsel %vm3903, %v5279, -inf
  %v5360 = vsel %vm3903, %v5280, -inf
  %v5361 = vmax.f32 %v5359, %v5360
  %v5362 = vsel %vm3903, %v5249, -inf
  %v5363 = vsel %vm3903, %v5281, -inf
  %v5364 = vmax.f32 %v5362, %v5363
  %v5365 = vsel %vm3903, %v5282, -inf
  %v5366 = vsel %vm3903, %v5283, -inf
  %v5367 = vmax.f32 %v5365, %v5366
  %v5368 = vsel %vm3903, %v5250, -inf
  %v5369 = vsel %vm3903, %v5284, -inf
  %v5370 = vmax.f32 %v5368, %v5369
  %v5371 = vsel %vm3903, %v5285, -inf
  %v5372 = vsel %vm3903, %v5286, -inf
  %v5373 = vmax.f32 %v5371, %v5372
  %v5374 = vsel %vm3903, %v5251, -inf
  %v5375 = vsel %vm3903, %v5287, -inf
  %v5376 = vmax.f32 %v5374, %v5375
  %v5377 = vsel %vm3903, %v5288, -inf
  %v5378 = vsel %vm3903, %v5289, -inf
  %v5379 = vmax.f32 %v5377, %v5378
  %v5380 = vsel %vm3903, %v5252, -inf
  %v5381 = vsel %vm3903, %v5290, -inf
  %v5382 = vmax.f32 %v5380, %v5381
  %v5383 = vsel %vm3903, %v5291, -inf
  %v5384 = vsel %vm3903, %v5292, -inf
  %v5385 = vmax.f32 %v5383, %v5384
  %v5386 = vsel %vm3903, %v5253, -inf
  %v5387 = vsel %vm3903, %v5293, -inf
  %v5388 = vmax.f32 %v5386, %v5387
  %v5389 = vsel %vm3903, %v5294, -inf
  %v5390 = vsel %vm3903, %v5295, -inf
  %v5391 = vmax.f32 %v5389, %v5390
  %v5392 = vsel %vm3903, %v5254, -inf
  %v5393 = vsel %vm3903, %v5296, -inf
  %v5394 = vmax.f32 %v5392, %v5393
  %v5395 = vsel %vm3903, %v5297, -inf
  %v5396 = vsel %vm3903, %v5298, -inf
  %v5397 = vmax.f32 %v5395, %v5396
  %v5398 = vld [vmem:[%s12] sm:$0x1]
  %v5399 = vld [vmem:[%s12 + $0x1] sm:$0x1]
  %v5400 = vld [vmem:[%s12 + $0x2] sm:$0x1]
  %v5401 = vld [vmem:[%s12 + $0x3] sm:$0x1]
  %v5402 = vld [vmem:[%s12 + $0x4] sm:$0x1]
  %v5403 = vld [vmem:[%s12 + $0x5] sm:$0x1]
  %v5404 = vld [vmem:[%s12 + $0x6] sm:$0x1]
  %v5405 = vld [vmem:[%s12 + $0x7] sm:$0x1]
  %v5406 = vld [vmem:[%s12 + $0x8] sm:$0x1]
  %v5407 = vld [vmem:[%s12 + $0x9] sm:$0x1]
  %v5408 = vld [vmem:[%s12 + $0xa] sm:$0x1]
  %v5409 = vld [vmem:[%s12 + $0xb] sm:$0x1]
  %v5410 = vld [vmem:[%s12 + $0xc] sm:$0x1]
  %v5411 = vld [vmem:[%s12 + $0xd] sm:$0x1]
  %v5412 = vld [vmem:[%s12 + $0xe] sm:$0x1]
  %v5413 = vld [vmem:[%s12 + $0xf] sm:$0x1]
  %v5414 = vld [vmem:[%s12 + $0x10] sm:$0x1]
  %v5415 = vld [vmem:[%s12 + $0x11] sm:$0x1]
  %v5416 = vld [vmem:[%s12 + $0x12] sm:$0x1]
  %v5417 = vld [vmem:[%s12 + $0x13] sm:$0x1]
  %v5418 = vld [vmem:[%s12 + $0x14] sm:$0x1]
  %v5419 = vld [vmem:[%s12 + $0x15] sm:$0x1]
  %v5442 = vperm.slane %v5398, 0
  %v5443 = vperm.slane %v5399, 0
  %v5444 = vperm.slane %v5400, 0
  %v5445 = vperm.slane %v5401, 0
  %v5446 = vperm.slane %v5402, 0
  %v5447 = vperm.slane %v5403, 0
  %v5448 = vperm.slane %v5404, 0
  %v5449 = vperm.slane %v5405, 0
  %v5450 = vperm.slane %v5406, 0
  %v5451 = vperm.slane %v5407, 0
  %v5452 = vperm.slane %v5408, 0
  %v5453 = vperm.slane %v5409, 0
  %v5454 = vperm.slane %v5410, 0
  %v5455 = vperm.slane %v5411, 0
  %v5456 = vperm.slane %v5412, 0
  %v5457 = vperm.slane %v5413, 0
  %v5458 = vperm.slane %v5414, 0
  %v5459 = vperm.slane %v5415, 0
  %v5460 = vperm.slane %v5416, 0
  %v5461 = vperm.slane %v5417, 0
  %v5462 = vperm.slane %v5418, 0
  %v5463 = vperm.slane %v5419, 0
  %v5486 = vmul.f32 %v5334, %v5442
  %v5487 = vmul.f32 %v5337, %v5443
  %v5488 = vmul.f32 %v5340, %v5444
  %v5489 = vmul.f32 %v5343, %v5445
  %v5490 = vmul.f32 %v5346, %v5446
  %v5491 = vmul.f32 %v5349, %v5447
  %v5492 = vmul.f32 %v5352, %v5448
  %v5493 = vmul.f32 %v5355, %v5449
  %v5494 = vmul.f32 %v5358, %v5450
  %v5495 = vmul.f32 %v5361, %v5451
  %v5496 = vmul.f32 %v5364, %v5452
  %v5497 = vmul.f32 %v5367, %v5453
  %v5498 = vmul.f32 %v5370, %v5454
  %v5499 = vmul.f32 %v5373, %v5455
  %v5500 = vmul.f32 %v5376, %v5456
  %v5501 = vmul.f32 %v5379, %v5457
  %v5502 = vmul.f32 %v5382, %v5458
  %v5503 = vmul.f32 %v5385, %v5459
  %v5504 = vmul.f32 %v5388, %v5460
  %v5505 = vmul.f32 %v5391, %v5461
  %v5506 = vmul.f32 %v5394, %v5462
  %v5507 = vmul.f32 %v5397, %v5463
  %v5508 = vsel %vm3903, %v5486, 0.0
  %v5509 = vsel %vm3903, %v5487, 0.0
  %v5510 = vadd.f32 %v5508, %v5509
  %v5511 = vsel %vm3903, %v5488, 0.0
  %v5512 = vadd.f32 %v5510, %v5511
  %v5513 = vsel %vm3903, %v5489, 0.0
  %v5514 = vadd.f32 %v5512, %v5513
  %v5515 = vsel %vm3903, %v5490, 0.0
  %v5516 = vadd.f32 %v5514, %v5515
  %v5517 = vsel %vm3903, %v5491, 0.0
  %v5518 = vadd.f32 %v5516, %v5517
  %v5519 = vsel %vm3903, %v5492, 0.0
  %v5520 = vadd.f32 %v5518, %v5519
  %v5521 = vsel %vm3903, %v5493, 0.0
  %v5522 = vadd.f32 %v5520, %v5521
  %v5523 = vsel %vm3903, %v5494, 0.0
  %v5524 = vadd.f32 %v5522, %v5523
  %v5525 = vsel %vm3903, %v5495, 0.0
  %v5526 = vadd.f32 %v5524, %v5525
  %v5527 = vsel %vm3903, %v5496, 0.0
  %v5528 = vadd.f32 %v5526, %v5527
  %v5529 = vsel %vm3903, %v5497, 0.0
  %v5530 = vadd.f32 %v5528, %v5529
  %v5531 = vsel %vm3903, %v5498, 0.0
  %v5532 = vadd.f32 %v5530, %v5531
  %v5533 = vsel %vm3903, %v5499, 0.0
  %v5534 = vadd.f32 %v5532, %v5533
  %v5535 = vsel %vm3903, %v5500, 0.0
  %v5536 = vadd.f32 %v5534, %v5535
  %v5537 = vsel %vm3903, %v5501, 0.0
  %v5538 = vadd.f32 %v5536, %v5537
  %v5539 = vsel %vm3903, %v5502, 0.0
  %v5540 = vadd.f32 %v5538, %v5539
  %v5541 = vsel %vm3903, %v5503, 0.0
  %v5542 = vadd.f32 %v5540, %v5541
  %v5543 = vsel %vm3903, %v5504, 0.0
  %v5544 = vadd.f32 %v5542, %v5543
  %v5545 = vsel %vm3903, %v5505, 0.0
  %v5546 = vadd.f32 %v5544, %v5545
  %v5547 = vsel %vm3903, %v5506, 0.0
  %v5548 = vadd.f32 %v5546, %v5547
  %v5549 = vsel %vm3903, %v5507, 0.0
  %v5550 = vadd.f32 %v5548, %v5549
  %v5551 = vsel %vm3903, %v5550, 0.0
  %5552 = vadd.xlane.f32.xlu0 %v5551
  %v5553 = vpop.xlane.xlu0 %5552
  %v5554 = vadd.f32 %v4798, %v5553
  %v5555 = vld [vmem:[#allocation4] sm:$0x1]
  %v5557 = vperm.slane %v5555, 0
  %v5559 = vadd.f32 %v5554, %v5557
  %vm5560 = vcmask 1024
  %5561 = vst.msk [vmem:[%s14] sm:$0x3] %vm5560, %v5559
  // Predicated region
  $region58: #{lstm_cnn4_forward.1} parent=0 // pred_check
    _
  $region59: #{lstm_cnn4_forward.1} parent=0 // pred_check_branch
    %5563 = sbr.rel (0) target = $region61
  $region60: #{lstm_cnn4_forward.1} parent=0 // pred_region
    _
  $region61: #{lstm_cnn4_forward.1} parent=0 // pred_fallthru
    _
  // Predicated region
  $region62: #{lstm_cnn4_forward.1} parent=0 // pred_check
    _
  $region63: #{lstm_cnn4_forward.1} parent=0 // pred_check_branch
    %5565 = sbr.rel (0) target = $region65
  $region64: #{lstm_cnn4_forward.1} parent=0 // pred_region
    _
  $region65: #{lstm_cnn4_forward.1} parent=0 // pred_fallthru
    _

</llo_original>
